<compile_context>
chip_gen: v5e
topology: v5e:2x2
jax: 0.10.0
libtpu: 0.0.40
codegen_flags: <defaults>
</compile_context>

<pallas_src>
import jax
import jax.numpy as jnp
from jax import lax
from jax.experimental import pallas as pl
from jax.experimental.pallas import tpu as pltpu

O_PAD = 128  # lane-dense FC output width (real output dim sliced out in the wrapper)


def bilstm_fc_kernel(len_ref, x_ref, w_in_ref, b_in_ref,
                     whh_f_ref, whh_b_ref, wfc_ref, bfc_ref,
                     out_ref, gi_ref):
    T, TB, E = x_ref.shape
    H = whh_f_ref.shape[0]
    H4 = 4 * H

    # ---- 1) hoisted input projection: one MXU matmul for both directions, biases folded in.
    #      gi[t, :, 0:4H]  = x_t @ wih_f + (b_ih_f + b_hh_f)
    #      gi[t, :, 4H:8H] = x_t @ wih_b + (b_ih_b + b_hh_b)
    # Stored bf16 / (T, TB, 8H) so per-step access is a leading-axis index (tile-aligned slab).
    x2 = x_ref[...].reshape(T * TB, E)                       # bf16 already
    gi = jnp.dot(x2, w_in_ref[...], preferred_element_type=jnp.float32) + b_in_ref[...]
    gi_ref[...] = gi.reshape(T, TB, 2 * H4).astype(jnp.bfloat16)

    lens = len_ref[...]                                      # (TB, 1) int32, hoisted

    def gates_to_hc(g, c_prev):
        # PyTorch gate order: i, f, g, o — all slices are 128-lane aligned (H = 128).
        i = jax.nn.sigmoid(g[:, 0:H])
        f = jax.nn.sigmoid(g[:, H:2 * H])
        gg = jnp.tanh(g[:, 2 * H:3 * H])
        o = jax.nn.sigmoid(g[:, 3 * H:4 * H])
        c_new = f * c_prev + i * gg
        h_new = o * jnp.tanh(c_new)
        return h_new, c_new

    # ---- 2) fused fwd/bwd recurrence; only the h @ whh dot remains per step.
    # TODO(synk): if bundle dumps show whh_f/whh_b re-pushed to MXU weight regs every step,
    #             switch to pltpu.matmul_push_rhs once + matmul_acc_lhs/matmul_pop per step.
    def body(t, carry):
        hf, cf, hb, cb = carry                               # hf/hb bf16, cf/cb f32
        tb = T - 1 - t

        gf_in = gi_ref[t, :, 0:H4]                           # (TB, 4H) bf16
        gb_in = gi_ref[tb, :, H4:2 * H4]

        # two independent recurrent chains -> overlappable MXU/EUP work (f32 accumulation)
        gf = gf_in + jnp.dot(hf, whh_f_ref[...], preferred_element_type=jnp.float32)
        gb = gb_in + jnp.dot(hb, whh_b_ref[...], preferred_element_type=jnp.float32)

        hf_n, cf_n = gates_to_hc(gf, cf)
        hb_n, cb_n = gates_to_hc(gb, cb)

        # packed-sequence emulation: hold state on padded positions (single select, no mask tensor)
        live_f = t < lens                                    # (TB, 1) bool
        live_b = tb < lens
        hf = jnp.where(live_f, hf_n.astype(jnp.bfloat16), hf)
        cf = jnp.where(live_f, cf_n, cf)
        hb = jnp.where(live_b, hb_n.astype(jnp.bfloat16), hb)
        cb = jnp.where(live_b, cb_n, cb)
        return hf, cf, hb, cb

    zb = jnp.zeros((TB, H), jnp.bfloat16)                    # h0 = 0 (PyTorch default), bf16 carry
    zf = jnp.zeros((TB, H), jnp.float32)                     # c0 = 0, f32 carry
    unroll = T if T <= 16 else 4                             # T is small & static -> full unroll
    hf, cf, hb, cb = lax.fori_loop(0, T, body, (zb, zf, zb, zf), unroll=unroll)

    # ---- 3) concat(h_fwd, h_bwd) + FC (dropout identity in eval); lane-dense padded output.
    hidden = jnp.concatenate([hf, hb], axis=1)               # (TB, 2H) bf16, no extra cast
    out_ref[...] = (jnp.dot(hidden, wfc_ref[...], preferred_element_type=jnp.float32)
                    + bfc_ref[...])


def _num_tensorcores():
    """TensorCores per chip (grid parallelism only pays off when > 1)."""
    try:
        kind = jax.devices()[0].device_kind.lower()
    except Exception:
        return 1
    if "v7" in kind or "v4" in kind or "v5p" in kind:
        return 2
    return 1


def _pick_batch_tile(B, num_tc, cap=32):
    """Largest batch tile <= cap that is a multiple of 16 (bf16 sublane tile) and gives a grid
    divisible by the TensorCore count; otherwise a single full-batch tile (grid=(1,))."""
    cands = [bt for bt in range(16, min(B, cap) + 1, 16)
             if B % bt == 0 and (B // bt) % num_tc == 0]
    if cands:
        return max(cands)
    return B


def text_classifier_forward(text, text_lengths, params, *, batch_tile=None):
    """text: (T, B) int32 token ids, text_lengths: (B,) int32 (all lengths must be >= 1)."""
    T, B = text.shape
    E = params["embedding"].shape[1]
    H = params["whh_f"].shape[0]
    O = params["wfc"].shape[1]

    if batch_tile is None:
        batch_tile = _pick_batch_tile(B, _num_tensorcores())
    assert B % batch_tile == 0
    grid = (B // batch_tile,)

    # Glue: embedding gather in bf16 (padding_idx row stays 0) + dropout (identity in eval).
    # TODO(synk): at scale, gather embedding rows in-kernel (scalar-prefetched token ids + per-row
    #             DMA) and stream T-slabs of x (manual double-buffer / emit_pipeline over T) so
    #             VMEM use is O(slab) instead of O(T) — mandatory for long T on v7x (64 MiB VMEM).
    x = params["embedding"].astype(jnp.bfloat16)[text]                                   # (T, B, E) bf16

    # Kernel-layout parameters (bf16 MXU operands, f32 biases).
    w_in = jnp.concatenate([params["wih_f"], params["wih_b"]], axis=1).astype(jnp.bfloat16)  # (E, 8H)
    b_in = jnp.concatenate([params["b_f"], params["b_b"]], axis=1)                           # (1, 8H) f32
    whh_f = params["whh_f"].astype(jnp.bfloat16)                                             # (H, 4H)
    whh_b = params["whh_b"].astype(jnp.bfloat16)                                             # (H, 4H)
    wfc_pad = jnp.zeros((2 * H, O_PAD), jnp.float32).at[:, :O].set(params["wfc"]).astype(jnp.bfloat16)
    bfc_pad = jnp.zeros((1, O_PAD), jnp.float32).at[:, :O].set(params["bfc"])
    lens = text_lengths.astype(jnp.int32).reshape(B, 1)

    # VMEM budget: bf16 x (double-buffered) + bf16 gi scratch + weights, with headroom.
    x_bytes = T * batch_tile * E * 2
    gi_bytes = T * batch_tile * 8 * H * 2
    w_bytes = (E * 8 * H + 2 * H * 4 * H + 2 * H * O_PAD) * 2 + (8 * H + O_PAD) * 4
    vmem_limit = int(min(64 << 20, max(32 << 20, 2 * (2 * x_bytes + gi_bytes + w_bytes) + (4 << 20))))

    out = pl.pallas_call(
        bilstm_fc_kernel,
        out_shape=jax.ShapeDtypeStruct((B, O_PAD), jnp.float32),
        grid_spec=pltpu.PrefetchScalarGridSpec(
            num_scalar_prefetch=0,
            grid=grid,                                      # 1 tile on 1-TC chips; >=2 tiles on 2-TC chips
            in_specs=[
                pl.BlockSpec((batch_tile, 1), lambda b: (b, 0)),           # lengths
                pl.BlockSpec((T, batch_tile, E), lambda b: (0, b, 0)),     # embedded tokens (bf16)
                pl.BlockSpec((E, 8 * H), lambda b: (0, 0)),                # [wih_f | wih_b]
                pl.BlockSpec((1, 8 * H), lambda b: (0, 0)),                # folded biases
                pl.BlockSpec((H, 4 * H), lambda b: (0, 0)),                # whh_f
                pl.BlockSpec((H, 4 * H), lambda b: (0, 0)),                # whh_b
                pl.BlockSpec((2 * H, O_PAD), lambda b: (0, 0)),            # fc weight (lane-padded)
                pl.BlockSpec((1, O_PAD), lambda b: (0, 0)),                # fc bias (lane-padded)
            ],
            out_specs=pl.BlockSpec((batch_tile, O_PAD), lambda b: (b, 0)),
            scratch_shapes=[pltpu.VMEM((T, batch_tile, 8 * H), jnp.bfloat16)],  # precomputed input gates
        ),
        compiler_params=pltpu.CompilerParams(
            dimension_semantics=("parallel",),
            vmem_limit_bytes=vmem_limit),
    )(lens, x, w_in, b_in, whh_f, whh_b, wfc_pad, bfc_pad)

    return out[:, :O]


def init_params(key, vocab_size, embedding_dim, hidden_dim, output_dim, pad_idx):
    ks = jax.random.split(key, 12)
    E, H, O = embedding_dim, hidden_dim, output_dim
    bound = 1.0 / jnp.sqrt(H)

    def u(k, shape, b):
        return jax.random.uniform(k, shape, jnp.float32, -b, b)

    emb = jax.random.normal(ks[0], (vocab_size, E), jnp.float32)
    emb = emb.at[pad_idx].set(0.0)                      # padding_idx semantics

    # Pre-transposed so the kernel computes x @ W (PyTorch stores (4H, E)/(4H, H)).
    wih_f = u(ks[1], (E, 4 * H), bound)
    whh_f = u(ks[2], (H, 4 * H), bound)
    b_f = u(ks[3], (1, 4 * H), bound) + u(ks[4], (1, 4 * H), bound)    # bias_ih + bias_hh
    wih_b = u(ks[5], (E, 4 * H), bound)
    whh_b = u(ks[6], (H, 4 * H), bound)
    b_b = u(ks[7], (1, 4 * H), bound) + u(ks[8], (1, 4 * H), bound)

    fc_bound = 1.0 / jnp.sqrt(2 * H)
    wfc = u(ks[9], (2 * H, O), fc_bound)
    bfc = u(ks[10], (1, O), fc_bound)

    return {"embedding": emb,
            "wih_f": wih_f, "whh_f": whh_f, "b_f": b_f,
            "wih_b": wih_b, "whh_b": whh_b, "b_b": b_b,
            "wfc": wfc, "bfc": bfc}


if __name__ == "__main__":
    # Model config: rnn_type='lstm', n_layers=1, bidirectional=True, dropout=0.0 (eval identity)
    VOCAB, E, H, O, PAD = 50, 128, 128, 2, 0
    T, B = 12, 16

    key = jax.random.PRNGKey(0)
    k_par, k_tok = jax.random.split(key)
    params = init_params(k_par, VOCAB, E, H, O, PAD)

    # lengths sorted descending (pack_padded_sequence convention, all >= 1); pad with PAD token
    text_lengths = jnp.array([12, 12, 11, 10, 9, 9, 8, 8, 7, 6, 5, 5, 4, 3, 2, 2], dtype=jnp.int32)
    tokens = jax.random.randint(k_tok, (T, B), 1, VOCAB, dtype=jnp.int32)
    valid = jnp.arange(T)[:, None] < text_lengths[None, :]
    text = jnp.where(valid, tokens, PAD)

    out = text_classifier_forward(text, text_lengths, params)
    jax.block_until_ready(out)
    assert out.shape == (B, O) and out.dtype == jnp.float32
    print("KERNEL_OK")
</pallas_src>

<mosaic_0001>
module attributes {stable_mosaic.version = 11 : i64} {
  func.func @bilstm_fc_kernel(%arg0: i32, %arg1: memref<16x1xi32, #tpu.memory_space<vmem>>, %arg2: memref<12x16x128xbf16, #tpu.memory_space<vmem>>, %arg3: memref<128x1024xbf16, #tpu.memory_space<vmem>>, %arg4: memref<1x1024xf32, #tpu.memory_space<vmem>>, %arg5: memref<128x512xbf16, #tpu.memory_space<vmem>>, %arg6: memref<128x512xbf16, #tpu.memory_space<vmem>>, %arg7: memref<256x128xbf16, #tpu.memory_space<vmem>>, %arg8: memref<1x128xf32, #tpu.memory_space<vmem>>, %arg9: memref<16x128xf32, #tpu.memory_space<vmem>>, %arg10: memref<12x16x1024xbf16, #tpu.memory_space<vmem>>) attributes {dimension_semantics = [#tpu.dimension_semantics<parallel>], iteration_bounds = array<i64: 1>, scalar_prefetch = 0 : i64, scratch_operands = 1 : i64, tpu.core_type = #tpu.core_type<tc>, window_params = [{transform_indices = @transform_0, window_bounds = array<i64: 16, 1>}, {transform_indices = @transform_1, window_bounds = array<i64: 12, 16, 128>}, {pipeline_mode = #tpu.pipeline_mode<synchronous>, transform_indices = @transform_2, window_bounds = array<i64: 128, 1024>}, {pipeline_mode = #tpu.pipeline_mode<synchronous>, transform_indices = @transform_3, window_bounds = array<i64: 1, 1024>}, {pipeline_mode = #tpu.pipeline_mode<synchronous>, transform_indices = @transform_4, window_bounds = array<i64: 128, 512>}, {pipeline_mode = #tpu.pipeline_mode<synchronous>, transform_indices = @transform_5, window_bounds = array<i64: 128, 512>}, {pipeline_mode = #tpu.pipeline_mode<synchronous>, transform_indices = @transform_6, window_bounds = array<i64: 256, 128>}, {pipeline_mode = #tpu.pipeline_mode<synchronous>, transform_indices = @transform_7, window_bounds = array<i64: 1, 128>}, {transform_indices = @transform_8, window_bounds = array<i64: 16, 128>}]} {
    %c0 = arith.constant 0 : index
    %c0_0 = arith.constant 0 : index
    %c0_1 = arith.constant 0 : index
    %0 = vector.load %arg2[%c0, %c0_0, %c0_1] : memref<12x16x128xbf16, #tpu.memory_space<vmem>>, vector<12x16x128xbf16>
    %1 = vector.shape_cast %0 : vector<12x16x128xbf16> to vector<192x128xbf16>
    %c0_2 = arith.constant 0 : index
    %c0_3 = arith.constant 0 : index
    %2 = vector.load %arg3[%c0_2, %c0_3] : memref<128x1024xbf16, #tpu.memory_space<vmem>>, vector<128x1024xbf16>
    %cst = arith.constant dense<0.000000e+00> : vector<192x1024xf32>
    %3 = tpu.matmul %1, %2, %cst {dimension_numbers = #tpu.dot_dimension_numbers<[1], [0], [0], [1], [0, 0, 1, 1], [], []>} : vector<192x128xbf16>, vector<128x1024xbf16>, vector<192x1024xf32> -> vector<192x1024xf32>
    %c0_4 = arith.constant 0 : index
    %c0_5 = arith.constant 0 : index
    %4 = vector.load %arg4[%c0_4, %c0_5] : memref<1x1024xf32, #tpu.memory_space<vmem>>, vector<1x1024xf32>
    %5 = vector.broadcast %4 : vector<1x1024xf32> to vector<192x1024xf32>
    %6 = arith.addf %3, %5 : vector<192x1024xf32>
    %7 = vector.shape_cast %6 : vector<192x1024xf32> to vector<12x16x1024xf32>
    %8 = arith.truncf %7 : vector<12x16x1024xf32> to vector<12x16x1024xbf16>
    %c0_6 = arith.constant 0 : index
    %c0_7 = arith.constant 0 : index
    %c0_8 = arith.constant 0 : index
    %9 = vector.load %arg10[%c0_6, %c0_7, %c0_8] : memref<12x16x1024xbf16, #tpu.memory_space<vmem>>, vector<12x16x1024xbf16>
    tpu.vector_store %arg10[%c0_6, %c0_7, %c0_8], %8 {strides = array<i32>} : memref<12x16x1024xbf16, #tpu.memory_space<vmem>>, vector<12x16x1024xbf16>,
    %c0_9 = arith.constant 0 : index
    %c0_10 = arith.constant 0 : index
    %10 = vector.load %arg1[%c0_9, %c0_10] : memref<16x1xi32, #tpu.memory_space<vmem>>, vector<16x1xi32>
    %cst_11 = arith.constant 0.000000e+00 : bf16
    %11 = vector.broadcast %cst_11 : bf16 to vector<16x128xbf16>
    %cst_12 = arith.constant 0.000000e+00 : f32
    %12 = vector.broadcast %cst_12 : f32 to vector<16x128xf32>
    %c0_i32 = arith.constant 0 : i32
    %c11_i32 = arith.constant 11 : i32
    %13 = arith.subi %c11_i32, %c0_i32 : i32
    %14 = arith.index_cast %c0_i32 : i32 to index
    %c0_13 = arith.constant 0 : index
    %c0_14 = arith.constant 0 : index
    %15 = vector.load %arg10[%14, %c0_13, %c0_14] : memref<12x16x1024xbf16, #tpu.memory_space<vmem>>, vector<1x16x512xbf16>
    %16 = vector.shape_cast %15 : vector<1x16x512xbf16> to vector<16x512xbf16>
    %17 = arith.index_cast %13 : i32 to index
    %c0_15 = arith.constant 0 : index
    %c512 = arith.constant 512 : index
    %18 = vector.load %arg10[%17, %c0_15, %c512] : memref<12x16x1024xbf16, #tpu.memory_space<vmem>>, vector<1x16x512xbf16>
    %19 = vector.shape_cast %18 : vector<1x16x512xbf16> to vector<16x512xbf16>
    %c0_16 = arith.constant 0 : index
    %c0_17 = arith.constant 0 : index
    %20 = vector.load %arg5[%c0_16, %c0_17] : memref<128x512xbf16, #tpu.memory_space<vmem>>, vector<128x512xbf16>
    %cst_18 = arith.constant dense<0.000000e+00> : vector<16x512xf32>
    %21 = tpu.matmul %11, %20, %cst_18 {dimension_numbers = #tpu.dot_dimension_numbers<[1], [0], [0], [1], [0, 0, 1, 1], [], []>} : vector<16x128xbf16>, vector<128x512xbf16>, vector<16x512xf32> -> vector<16x512xf32>
    %22 = arith.extf %16 : vector<16x512xbf16> to vector<16x512xf32>
    %23 = arith.addf %22, %21 : vector<16x512xf32>
    %c0_19 = arith.constant 0 : index
    %c0_20 = arith.constant 0 : index
    %24 = vector.load %arg6[%c0_19, %c0_20] : memref<128x512xbf16, #tpu.memory_space<vmem>>, vector<128x512xbf16>
    %cst_21 = arith.constant dense<0.000000e+00> : vector<16x512xf32>
    %25 = tpu.matmul %11, %24, %cst_21 {dimension_numbers = #tpu.dot_dimension_numbers<[1], [0], [0], [1], [0, 0, 1, 1], [], []>} : vector<16x128xbf16>, vector<128x512xbf16>, vector<16x512xf32> -> vector<16x512xf32>
    %26 = arith.extf %19 : vector<16x512xbf16> to vector<16x512xf32>
    %27 = arith.addf %26, %25 : vector<16x512xf32>
    %28 = vector.extract_strided_slice %23 {offsets = [0, 0], sizes = [16, 128], strides = [1, 1]} : vector<16x512xf32> to vector<16x128xf32>
    %29 = arith.negf %28 : vector<16x128xf32>
    %30 = math.exp %29 : vector<16x128xf32>
    %cst_22 = arith.constant 1.000000e+00 : f32
    %31 = vector.broadcast %cst_22 : f32 to vector<16x128xf32>
    %32 = arith.addf %31, %30 : vector<16x128xf32>
    %33 = arith.divf %31, %32 : vector<16x128xf32>
    %34 = vector.extract_strided_slice %23 {offsets = [0, 128], sizes = [16, 128], strides = [1, 1]} : vector<16x512xf32> to vector<16x128xf32>
    %35 = arith.negf %34 : vector<16x128xf32>
    %36 = math.exp %35 : vector<16x128xf32>
    %cst_23 = arith.constant 1.000000e+00 : f32
    %37 = vector.broadcast %cst_23 : f32 to vector<16x128xf32>
    %38 = arith.addf %37, %36 : vector<16x128xf32>
    %39 = arith.divf %37, %38 : vector<16x128xf32>
    %40 = vector.extract_strided_slice %23 {offsets = [0, 256], sizes = [16, 128], strides = [1, 1]} : vector<16x512xf32> to vector<16x128xf32>
    %41 = math.tanh %40 : vector<16x128xf32>
    %42 = vector.extract_strided_slice %23 {offsets = [0, 384], sizes = [16, 128], strides = [1, 1]} : vector<16x512xf32> to vector<16x128xf32>
    %43 = arith.negf %42 : vector<16x128xf32>
    %44 = math.exp %43 : vector<16x128xf32>
    %cst_24 = arith.constant 1.000000e+00 : f32
    %45 = vector.broadcast %cst_24 : f32 to vector<16x128xf32>
    %46 = arith.addf %45, %44 : vector<16x128xf32>
    %47 = arith.divf %45, %46 : vector<16x128xf32>
    %48 = arith.mulf %39, %12 : vector<16x128xf32>
    %49 = arith.mulf %33, %41 : vector<16x128xf32>
    %50 = arith.addf %48, %49 : vector<16x128xf32>
    %51 = math.tanh %50 : vector<16x128xf32>
    %52 = arith.mulf %47, %51 : vector<16x128xf32>
    %53 = vector.extract_strided_slice %27 {offsets = [0, 0], sizes = [16, 128], strides = [1, 1]} : vector<16x512xf32> to vector<16x128xf32>
    %54 = arith.negf %53 : vector<16x128xf32>
    %55 = math.exp %54 : vector<16x128xf32>
    %cst_25 = arith.constant 1.000000e+00 : f32
    %56 = vector.broadcast %cst_25 : f32 to vector<16x128xf32>
    %57 = arith.addf %56, %55 : vector<16x128xf32>
    %58 = arith.divf %56, %57 : vector<16x128xf32>
    %59 = vector.extract_strided_slice %27 {offsets = [0, 128], sizes = [16, 128], strides = [1, 1]} : vector<16x512xf32> to vector<16x128xf32>
    %60 = arith.negf %59 : vector<16x128xf32>
    %61 = math.exp %60 : vector<16x128xf32>
    %cst_26 = arith.constant 1.000000e+00 : f32
    %62 = vector.broadcast %cst_26 : f32 to vector<16x128xf32>
    %63 = arith.addf %62, %61 : vector<16x128xf32>
    %64 = arith.divf %62, %63 : vector<16x128xf32>
    %65 = vector.extract_strided_slice %27 {offsets = [0, 256], sizes = [16, 128], strides = [1, 1]} : vector<16x512xf32> to vector<16x128xf32>
    %66 = math.tanh %65 : vector<16x128xf32>
    %67 = vector.extract_strided_slice %27 {offsets = [0, 384], sizes = [16, 128], strides = [1, 1]} : vector<16x512xf32> to vector<16x128xf32>
    %68 = arith.negf %67 : vector<16x128xf32>
    %69 = math.exp %68 : vector<16x128xf32>
    %cst_27 = arith.constant 1.000000e+00 : f32
    %70 = vector.broadcast %cst_27 : f32 to vector<16x128xf32>
    %71 = arith.addf %70, %69 : vector<16x128xf32>
    %72 = arith.divf %70, %71 : vector<16x128xf32>
    %73 = arith.mulf %64, %12 : vector<16x128xf32>
    %74 = arith.mulf %58, %66 : vector<16x128xf32>
    %75 = arith.addf %73, %74 : vector<16x128xf32>
    %76 = math.tanh %75 : vector<16x128xf32>
    %77 = arith.mulf %72, %76 : vector<16x128xf32>
    %78 = vector.broadcast %c0_i32 : i32 to vector<16x1xi32>
    %79 = arith.cmpi slt, %78, %10 : vector<16x1xi32>
    %80 = vector.broadcast %13 : i32 to vector<16x1xi32>
    %81 = arith.cmpi slt, %80, %10 : vector<16x1xi32>
    %82 = arith.truncf %52 : vector<16x128xf32> to vector<16x128xbf16>
    %83 = vector.shape_cast %79 : vector<16x1xi1> to vector<16x1xi1>
    %84 = vector.broadcast %83 : vector<16x1xi1> to vector<16x128xi1>
    %85 = arith.select %84, %82, %11 : vector<16x128xi1>, vector<16x128xbf16>
    %86 = vector.shape_cast %79 : vector<16x1xi1> to vector<16x1xi1>
    %87 = vector.broadcast %86 : vector<16x1xi1> to vector<16x128xi1>
    %88 = arith.select %87, %50, %12 : vector<16x128xi1>, vector<16x128xf32>
    %89 = arith.truncf %77 : vector<16x128xf32> to vector<16x128xbf16>
    %90 = vector.shape_cast %81 : vector<16x1xi1> to vector<16x1xi1>
    %91 = vector.broadcast %90 : vector<16x1xi1> to vector<16x128xi1>
    %92 = arith.select %91, %89, %11 : vector<16x128xi1>, vector<16x128xbf16>
    %93 = vector.shape_cast %81 : vector<16x1xi1> to vector<16x1xi1>
    %94 = vector.broadcast %93 : vector<16x1xi1> to vector<16x128xi1>
    %95 = arith.select %94, %75, %12 : vector<16x128xi1>, vector<16x128xf32>
    %c1_i32 = arith.constant 1 : i32
    %c11_i32_28 = arith.constant 11 : i32
    %96 = arith.subi %c11_i32_28, %c1_i32 : i32
    %97 = arith.index_cast %c1_i32 : i32 to index
    %c0_29 = arith.constant 0 : index
    %c0_30 = arith.constant 0 : index
    %98 = vector.load %arg10[%97, %c0_29, %c0_30] : memref<12x16x1024xbf16, #tpu.memory_space<vmem>>, vector<1x16x512xbf16>
    %99 = vector.shape_cast %98 : vector<1x16x512xbf16> to vector<16x512xbf16>
    %100 = arith.index_cast %96 : i32 to index
    %c0_31 = arith.constant 0 : index
    %c512_32 = arith.constant 512 : index
    %101 = vector.load %arg10[%100, %c0_31, %c512_32] : memref<12x16x1024xbf16, #tpu.memory_space<vmem>>, vector<1x16x512xbf16>
    %102 = vector.shape_cast %101 : vector<1x16x512xbf16> to vector<16x512xbf16>
    %c0_33 = arith.constant 0 : index
    %c0_34 = arith.constant 0 : index
    %103 = vector.load %arg5[%c0_33, %c0_34] : memref<128x512xbf16, #tpu.memory_space<vmem>>, vector<128x512xbf16>
    %cst_35 = arith.constant dense<0.000000e+00> : vector<16x512xf32>
    %104 = tpu.matmul %85, %103, %cst_35 {dimension_numbers = #tpu.dot_dimension_numbers<[1], [0], [0], [1], [0, 0, 1, 1], [], []>} : vector<16x128xbf16>, vector<128x512xbf16>, vector<16x512xf32> -> vector<16x512xf32>
    %105 = arith.extf %99 : vector<16x512xbf16> to vector<16x512xf32>
    %106 = arith.addf %105, %104 : vector<16x512xf32>
    %c0_36 = arith.constant 0 : index
    %c0_37 = arith.constant 0 : index
    %107 = vector.load %arg6[%c0_36, %c0_37] : memref<128x512xbf16, #tpu.memory_space<vmem>>, vector<128x512xbf16>
    %cst_38 = arith.constant dense<0.000000e+00> : vector<16x512xf32>
    %108 = tpu.matmul %92, %107, %cst_38 {dimension_numbers = #tpu.dot_dimension_numbers<[1], [0], [0], [1], [0, 0, 1, 1], [], []>} : vector<16x128xbf16>, vector<128x512xbf16>, vector<16x512xf32> -> vector<16x512xf32>
    %109 = arith.extf %102 : vector<16x512xbf16> to vector<16x512xf32>
    %110 = arith.addf %109, %108 : vector<16x512xf32>
    %111 = vector.extract_strided_slice %106 {offsets = [0, 0], sizes = [16, 128], strides = [1, 1]} : vector<16x512xf32> to vector<16x128xf32>
    %112 = arith.negf %111 : vector<16x128xf32>
    %113 = math.exp %112 : vector<16x128xf32>
    %cst_39 = arith.constant 1.000000e+00 : f32
    %114 = vector.broadcast %cst_39 : f32 to vector<16x128xf32>
    %115 = arith.addf %114, %113 : vector<16x128xf32>
    %116 = arith.divf %114, %115 : vector<16x128xf32>
    %117 = vector.extract_strided_slice %106 {offsets = [0, 128], sizes = [16, 128], strides = [1, 1]} : vector<16x512xf32> to vector<16x128xf32>
    %118 = arith.negf %117 : vector<16x128xf32>
    %119 = math.exp %118 : vector<16x128xf32>
    %cst_40 = arith.constant 1.000000e+00 : f32
    %120 = vector.broadcast %cst_40 : f32 to vector<16x128xf32>
    %121 = arith.addf %120, %119 : vector<16x128xf32>
    %122 = arith.divf %120, %121 : vector<16x128xf32>
    %123 = vector.extract_strided_slice %106 {offsets = [0, 256], sizes = [16, 128], strides = [1, 1]} : vector<16x512xf32> to vector<16x128xf32>
    %124 = math.tanh %123 : vector<16x128xf32>
    %125 = vector.extract_strided_slice %106 {offsets = [0, 384], sizes = [16, 128], strides = [1, 1]} : vector<16x512xf32> to vector<16x128xf32>
    %126 = arith.negf %125 : vector<16x128xf32>
    %127 = math.exp %126 : vector<16x128xf32>
    %cst_41 = arith.constant 1.000000e+00 : f32
    %128 = vector.broadcast %cst_41 : f32 to vector<16x128xf32>
    %129 = arith.addf %128, %127 : vector<16x128xf32>
    %130 = arith.divf %128, %129 : vector<16x128xf32>
    %131 = arith.mulf %122, %88 : vector<16x128xf32>
    %132 = arith.mulf %116, %124 : vector<16x128xf32>
    %133 = arith.addf %131, %132 : vector<16x128xf32>
    %134 = math.tanh %133 : vector<16x128xf32>
    %135 = arith.mulf %130, %134 : vector<16x128xf32>
    %136 = vector.extract_strided_slice %110 {offsets = [0, 0], sizes = [16, 128], strides = [1, 1]} : vector<16x512xf32> to vector<16x128xf32>
    %137 = arith.negf %136 : vector<16x128xf32>
    %138 = math.exp %137 : vector<16x128xf32>
    %cst_42 = arith.constant 1.000000e+00 : f32
    %139 = vector.broadcast %cst_42 : f32 to vector<16x128xf32>
    %140 = arith.addf %139, %138 : vector<16x128xf32>
    %141 = arith.divf %139, %140 : vector<16x128xf32>
    %142 = vector.extract_strided_slice %110 {offsets = [0, 128], sizes = [16, 128], strides = [1, 1]} : vector<16x512xf32> to vector<16x128xf32>
    %143 = arith.negf %142 : vector<16x128xf32>
    %144 = math.exp %143 : vector<16x128xf32>
    %cst_43 = arith.constant 1.000000e+00 : f32
    %145 = vector.broadcast %cst_43 : f32 to vector<16x128xf32>
    %146 = arith.addf %145, %144 : vector<16x128xf32>
    %147 = arith.divf %145, %146 : vector<16x128xf32>
    %148 = vector.extract_strided_slice %110 {offsets = [0, 256], sizes = [16, 128], strides = [1, 1]} : vector<16x512xf32> to vector<16x128xf32>
    %149 = math.tanh %148 : vector<16x128xf32>
    %150 = vector.extract_strided_slice %110 {offsets = [0, 384], sizes = [16, 128], strides = [1, 1]} : vector<16x512xf32> to vector<16x128xf32>
    %151 = arith.negf %150 : vector<16x128xf32>
    %152 = math.exp %151 : vector<16x128xf32>
    %cst_44 = arith.constant 1.000000e+00 : f32
    %153 = vector.broadcast %cst_44 : f32 to vector<16x128xf32>
    %154 = arith.addf %153, %152 : vector<16x128xf32>
    %155 = arith.divf %153, %154 : vector<16x128xf32>
    %156 = arith.mulf %147, %95 : vector<16x128xf32>
    %157 = arith.mulf %141, %149 : vector<16x128xf32>
    %158 = arith.addf %156, %157 : vector<16x128xf32>
    %159 = math.tanh %158 : vector<16x128xf32>
    %160 = arith.mulf %155, %159 : vector<16x128xf32>
    %161 = vector.broadcast %c1_i32 : i32 to vector<16x1xi32>
    %162 = arith.cmpi slt, %161, %10 : vector<16x1xi32>
    %163 = vector.broadcast %96 : i32 to vector<16x1xi32>
    %164 = arith.cmpi slt, %163, %10 : vector<16x1xi32>
    %165 = arith.truncf %135 : vector<16x128xf32> to vector<16x128xbf16>
    %166 = vector.shape_cast %162 : vector<16x1xi1> to vector<16x1xi1>
    %167 = vector.broadcast %166 : vector<16x1xi1> to vector<16x128xi1>
    %168 = arith.select %167, %165, %85 : vector<16x128xi1>, vector<16x128xbf16>
    %169 = vector.shape_cast %162 : vector<16x1xi1> to vector<16x1xi1>
    %170 = vector.broadcast %169 : vector<16x1xi1> to vector<16x128xi1>
    %171 = arith.select %170, %133, %88 : vector<16x128xi1>, vector<16x128xf32>
    %172 = arith.truncf %160 : vector<16x128xf32> to vector<16x128xbf16>
    %173 = vector.shape_cast %164 : vector<16x1xi1> to vector<16x1xi1>
    %174 = vector.broadcast %173 : vector<16x1xi1> to vector<16x128xi1>
    %175 = arith.select %174, %172, %92 : vector<16x128xi1>, vector<16x128xbf16>
    %176 = vector.shape_cast %164 : vector<16x1xi1> to vector<16x1xi1>
    %177 = vector.broadcast %176 : vector<16x1xi1> to vector<16x128xi1>
    %178 = arith.select %177, %158, %95 : vector<16x128xi1>, vector<16x128xf32>
    %c2_i32 = arith.constant 2 : i32
    %c11_i32_45 = arith.constant 11 : i32
    %179 = arith.subi %c11_i32_45, %c2_i32 : i32
    %180 = arith.index_cast %c2_i32 : i32 to index
    %c0_46 = arith.constant 0 : index
    %c0_47 = arith.constant 0 : index
    %181 = vector.load %arg10[%180, %c0_46, %c0_47] : memref<12x16x1024xbf16, #tpu.memory_space<vmem>>, vector<1x16x512xbf16>
    %182 = vector.shape_cast %181 : vector<1x16x512xbf16> to vector<16x512xbf16>
    %183 = arith.index_cast %179 : i32 to index
    %c0_48 = arith.constant 0 : index
    %c512_49 = arith.constant 512 : index
    %184 = vector.load %arg10[%183, %c0_48, %c512_49] : memref<12x16x1024xbf16, #tpu.memory_space<vmem>>, vector<1x16x512xbf16>
    %185 = vector.shape_cast %184 : vector<1x16x512xbf16> to vector<16x512xbf16>
    %c0_50 = arith.constant 0 : index
    %c0_51 = arith.constant 0 : index
    %186 = vector.load %arg5[%c0_50, %c0_51] : memref<128x512xbf16, #tpu.memory_space<vmem>>, vector<128x512xbf16>
    %cst_52 = arith.constant dense<0.000000e+00> : vector<16x512xf32>
    %187 = tpu.matmul %168, %186, %cst_52 {dimension_numbers = #tpu.dot_dimension_numbers<[1], [0], [0], [1], [0, 0, 1, 1], [], []>} : vector<16x128xbf16>, vector<128x512xbf16>, vector<16x512xf32> -> vector<16x512xf32>
    %188 = arith.extf %182 : vector<16x512xbf16> to vector<16x512xf32>
    %189 = arith.addf %188, %187 : vector<16x512xf32>
    %c0_53 = arith.constant 0 : index
    %c0_54 = arith.constant 0 : index
    %190 = vector.load %arg6[%c0_53, %c0_54] : memref<128x512xbf16, #tpu.memory_space<vmem>>, vector<128x512xbf16>
    %cst_55 = arith.constant dense<0.000000e+00> : vector<16x512xf32>
    %191 = tpu.matmul %175, %190, %cst_55 {dimension_numbers = #tpu.dot_dimension_numbers<[1], [0], [0], [1], [0, 0, 1, 1], [], []>} : vector<16x128xbf16>, vector<128x512xbf16>, vector<16x512xf32> -> vector<16x512xf32>
    %192 = arith.extf %185 : vector<16x512xbf16> to vector<16x512xf32>
    %193 = arith.addf %192, %191 : vector<16x512xf32>
    %194 = vector.extract_strided_slice %189 {offsets = [0, 0], sizes = [16, 128], strides = [1, 1]} : vector<16x512xf32> to vector<16x128xf32>
    %195 = arith.negf %194 : vector<16x128xf32>
    %196 = math.exp %195 : vector<16x128xf32>
    %cst_56 = arith.constant 1.000000e+00 : f32
    %197 = vector.broadcast %cst_56 : f32 to vector<16x128xf32>
    %198 = arith.addf %197, %196 : vector<16x128xf32>
    %199 = arith.divf %197, %198 : vector<16x128xf32>
    %200 = vector.extract_strided_slice %189 {offsets = [0, 128], sizes = [16, 128], strides = [1, 1]} : vector<16x512xf32> to vector<16x128xf32>
    %201 = arith.negf %200 : vector<16x128xf32>
    %202 = math.exp %201 : vector<16x128xf32>
    %cst_57 = arith.constant 1.000000e+00 : f32
    %203 = vector.broadcast %cst_57 : f32 to vector<16x128xf32>
    %204 = arith.addf %203, %202 : vector<16x128xf32>
    %205 = arith.divf %203, %204 : vector<16x128xf32>
    %206 = vector.extract_strided_slice %189 {offsets = [0, 256], sizes = [16, 128], strides = [1, 1]} : vector<16x512xf32> to vector<16x128xf32>
    %207 = math.tanh %206 : vector<16x128xf32>
    %208 = vector.extract_strided_slice %189 {offsets = [0, 384], sizes = [16, 128], strides = [1, 1]} : vector<16x512xf32> to vector<16x128xf32>
    %209 = arith.negf %208 : vector<16x128xf32>
    %210 = math.exp %209 : vector<16x128xf32>
    %cst_58 = arith.constant 1.000000e+00 : f32
    %211 = vector.broadcast %cst_58 : f32 to vector<16x128xf32>
    %212 = arith.addf %211, %210 : vector<16x128xf32>
    %213 = arith.divf %211, %212 : vector<16x128xf32>
    %214 = arith.mulf %205, %171 : vector<16x128xf32>
    %215 = arith.mulf %199, %207 : vector<16x128xf32>
    %216 = arith.addf %214, %215 : vector<16x128xf32>
    %217 = math.tanh %216 : vector<16x128xf32>
    %218 = arith.mulf %213, %217 : vector<16x128xf32>
    %219 = vector.extract_strided_slice %193 {offsets = [0, 0], sizes = [16, 128], strides = [1, 1]} : vector<16x512xf32> to vector<16x128xf32>
    %220 = arith.negf %219 : vector<16x128xf32>
    %221 = math.exp %220 : vector<16x128xf32>
    %cst_59 = arith.constant 1.000000e+00 : f32
    %222 = vector.broadcast %cst_59 : f32 to vector<16x128xf32>
    %223 = arith.addf %222, %221 : vector<16x128xf32>
    %224 = arith.divf %222, %223 : vector<16x128xf32>
    %225 = vector.extract_strided_slice %193 {offsets = [0, 128], sizes = [16, 128], strides = [1, 1]} : vector<16x512xf32> to vector<16x128xf32>
    %226 = arith.negf %225 : vector<16x128xf32>
    %227 = math.exp %226 : vector<16x128xf32>
    %cst_60 = arith.constant 1.000000e+00 : f32
    %228 = vector.broadcast %cst_60 : f32 to vector<16x128xf32>
    %229 = arith.addf %228, %227 : vector<16x128xf32>
    %230 = arith.divf %228, %229 : vector<16x128xf32>
    %231 = vector.extract_strided_slice %193 {offsets = [0, 256], sizes = [16, 128], strides = [1, 1]} : vector<16x512xf32> to vector<16x128xf32>
    %232 = math.tanh %231 : vector<16x128xf32>
    %233 = vector.extract_strided_slice %193 {offsets = [0, 384], sizes = [16, 128], strides = [1, 1]} : vector<16x512xf32> to vector<16x128xf32>
    %234 = arith.negf %233 : vector<16x128xf32>
    %235 = math.exp %234 : vector<16x128xf32>
    %cst_61 = arith.constant 1.000000e+00 : f32
    %236 = vector.broadcast %cst_61 : f32 to vector<16x128xf32>
    %237 = arith.addf %236, %235 : vector<16x128xf32>
    %238 = arith.divf %236, %237 : vector<16x128xf32>
    %239 = arith.mulf %230, %178 : vector<16x128xf32>
    %240 = arith.mulf %224, %232 : vector<16x128xf32>
    %241 = arith.addf %239, %240 : vector<16x128xf32>
    %242 = math.tanh %241 : vector<16x128xf32>
    %243 = arith.mulf %238, %242 : vector<16x128xf32>
    %244 = vector.broadcast %c2_i32 : i32 to vector<16x1xi32>
    %245 = arith.cmpi slt, %244, %10 : vector<16x1xi32>
    %246 = vector.broadcast %179 : i32 to vector<16x1xi32>
    %247 = arith.cmpi slt, %246, %10 : vector<16x1xi32>
    %248 = arith.truncf %218 : vector<16x128xf32> to vector<16x128xbf16>
    %249 = vector.shape_cast %245 : vector<16x1xi1> to vector<16x1xi1>
    %250 = vector.broadcast %249 : vector<16x1xi1> to vector<16x128xi1>
    %251 = arith.select %250, %248, %168 : vector<16x128xi1>, vector<16x128xbf16>
    %252 = vector.shape_cast %245 : vector<16x1xi1> to vector<16x1xi1>
    %253 = vector.broadcast %252 : vector<16x1xi1> to vector<16x128xi1>
    %254 = arith.select %253, %216, %171 : vector<16x128xi1>, vector<16x128xf32>
    %255 = arith.truncf %243 : vector<16x128xf32> to vector<16x128xbf16>
    %256 = vector.shape_cast %247 : vector<16x1xi1> to vector<16x1xi1>
    %257 = vector.broadcast %256 : vector<16x1xi1> to vector<16x128xi1>
    %258 = arith.select %257, %255, %175 : vector<16x128xi1>, vector<16x128xbf16>
    %259 = vector.shape_cast %247 : vector<16x1xi1> to vector<16x1xi1>
    %260 = vector.broadcast %259 : vector<16x1xi1> to vector<16x128xi1>
    %261 = arith.select %260, %241, %178 : vector<16x128xi1>, vector<16x128xf32>
    %c3_i32 = arith.constant 3 : i32
    %c11_i32_62 = arith.constant 11 : i32
    %262 = arith.subi %c11_i32_62, %c3_i32 : i32
    %263 = arith.index_cast %c3_i32 : i32 to index
    %c0_63 = arith.constant 0 : index
    %c0_64 = arith.constant 0 : index
    %264 = vector.load %arg10[%263, %c0_63, %c0_64] : memref<12x16x1024xbf16, #tpu.memory_space<vmem>>, vector<1x16x512xbf16>
    %265 = vector.shape_cast %264 : vector<1x16x512xbf16> to vector<16x512xbf16>
    %266 = arith.index_cast %262 : i32 to index
    %c0_65 = arith.constant 0 : index
    %c512_66 = arith.constant 512 : index
    %267 = vector.load %arg10[%266, %c0_65, %c512_66] : memref<12x16x1024xbf16, #tpu.memory_space<vmem>>, vector<1x16x512xbf16>
    %268 = vector.shape_cast %267 : vector<1x16x512xbf16> to vector<16x512xbf16>
    %c0_67 = arith.constant 0 : index
    %c0_68 = arith.constant 0 : index
    %269 = vector.load %arg5[%c0_67, %c0_68] : memref<128x512xbf16, #tpu.memory_space<vmem>>, vector<128x512xbf16>
    %cst_69 = arith.constant dense<0.000000e+00> : vector<16x512xf32>
    %270 = tpu.matmul %251, %269, %cst_69 {dimension_numbers = #tpu.dot_dimension_numbers<[1], [0], [0], [1], [0, 0, 1, 1], [], []>} : vector<16x128xbf16>, vector<128x512xbf16>, vector<16x512xf32> -> vector<16x512xf32>
    %271 = arith.extf %265 : vector<16x512xbf16> to vector<16x512xf32>
    %272 = arith.addf %271, %270 : vector<16x512xf32>
    %c0_70 = arith.constant 0 : index
    %c0_71 = arith.constant 0 : index
    %273 = vector.load %arg6[%c0_70, %c0_71] : memref<128x512xbf16, #tpu.memory_space<vmem>>, vector<128x512xbf16>
    %cst_72 = arith.constant dense<0.000000e+00> : vector<16x512xf32>
    %274 = tpu.matmul %258, %273, %cst_72 {dimension_numbers = #tpu.dot_dimension_numbers<[1], [0], [0], [1], [0, 0, 1, 1], [], []>} : vector<16x128xbf16>, vector<128x512xbf16>, vector<16x512xf32> -> vector<16x512xf32>
    %275 = arith.extf %268 : vector<16x512xbf16> to vector<16x512xf32>
    %276 = arith.addf %275, %274 : vector<16x512xf32>
    %277 = vector.extract_strided_slice %272 {offsets = [0, 0], sizes = [16, 128], strides = [1, 1]} : vector<16x512xf32> to vector<16x128xf32>
    %278 = arith.negf %277 : vector<16x128xf32>
    %279 = math.exp %278 : vector<16x128xf32>
    %cst_73 = arith.constant 1.000000e+00 : f32
    %280 = vector.broadcast %cst_73 : f32 to vector<16x128xf32>
    %281 = arith.addf %280, %279 : vector<16x128xf32>
    %282 = arith.divf %280, %281 : vector<16x128xf32>
    %283 = vector.extract_strided_slice %272 {offsets = [0, 128], sizes = [16, 128], strides = [1, 1]} : vector<16x512xf32> to vector<16x128xf32>
    %284 = arith.negf %283 : vector<16x128xf32>
    %285 = math.exp %284 : vector<16x128xf32>
    %cst_74 = arith.constant 1.000000e+00 : f32
    %286 = vector.broadcast %cst_74 : f32 to vector<16x128xf32>
    %287 = arith.addf %286, %285 : vector<16x128xf32>
    %288 = arith.divf %286, %287 : vector<16x128xf32>
    %289 = vector.extract_strided_slice %272 {offsets = [0, 256], sizes = [16, 128], strides = [1, 1]} : vector<16x512xf32> to vector<16x128xf32>
    %290 = math.tanh %289 : vector<16x128xf32>
    %291 = vector.extract_strided_slice %272 {offsets = [0, 384], sizes = [16, 128], strides = [1, 1]} : vector<16x512xf32> to vector<16x128xf32>
    %292 = arith.negf %291 : vector<16x128xf32>
    %293 = math.exp %292 : vector<16x128xf32>
    %cst_75 = arith.constant 1.000000e+00 : f32
    %294 = vector.broadcast %cst_75 : f32 to vector<16x128xf32>
    %295 = arith.addf %294, %293 : vector<16x128xf32>
    %296 = arith.divf %294, %295 : vector<16x128xf32>
    %297 = arith.mulf %288, %254 : vector<16x128xf32>
    %298 = arith.mulf %282, %290 : vector<16x128xf32>
    %299 = arith.addf %297, %298 : vector<16x128xf32>
    %300 = math.tanh %299 : vector<16x128xf32>
    %301 = arith.mulf %296, %300 : vector<16x128xf32>
    %302 = vector.extract_strided_slice %276 {offsets = [0, 0], sizes = [16, 128], strides = [1, 1]} : vector<16x512xf32> to vector<16x128xf32>
    %303 = arith.negf %302 : vector<16x128xf32>
    %304 = math.exp %303 : vector<16x128xf32>
    %cst_76 = arith.constant 1.000000e+00 : f32
    %305 = vector.broadcast %cst_76 : f32 to vector<16x128xf32>
    %306 = arith.addf %305, %304 : vector<16x128xf32>
    %307 = arith.divf %305, %306 : vector<16x128xf32>
    %308 = vector.extract_strided_slice %276 {offsets = [0, 128], sizes = [16, 128], strides = [1, 1]} : vector<16x512xf32> to vector<16x128xf32>
    %309 = arith.negf %308 : vector<16x128xf32>
    %310 = math.exp %309 : vector<16x128xf32>
    %cst_77 = arith.constant 1.000000e+00 : f32
    %311 = vector.broadcast %cst_77 : f32 to vector<16x128xf32>
    %312 = arith.addf %311, %310 : vector<16x128xf32>
    %313 = arith.divf %311, %312 : vector<16x128xf32>
    %314 = vector.extract_strided_slice %276 {offsets = [0, 256], sizes = [16, 128], strides = [1, 1]} : vector<16x512xf32> to vector<16x128xf32>
    %315 = math.tanh %314 : vector<16x128xf32>
    %316 = vector.extract_strided_slice %276 {offsets = [0, 384], sizes = [16, 128], strides = [1, 1]} : vector<16x512xf32> to vector<16x128xf32>
    %317 = arith.negf %316 : vector<16x128xf32>
    %318 = math.exp %317 : vector<16x128xf32>
    %cst_78 = arith.constant 1.000000e+00 : f32
    %319 = vector.broadcast %cst_78 : f32 to vector<16x128xf32>
    %320 = arith.addf %319, %318 : vector<16x128xf32>
    %321 = arith.divf %319, %320 : vector<16x128xf32>
    %322 = arith.mulf %313, %261 : vector<16x128xf32>
    %323 = arith.mulf %307, %315 : vector<16x128xf32>
    %324 = arith.addf %322, %323 : vector<16x128xf32>
    %325 = math.tanh %324 : vector<16x128xf32>
    %326 = arith.mulf %321, %325 : vector<16x128xf32>
    %327 = vector.broadcast %c3_i32 : i32 to vector<16x1xi32>
    %328 = arith.cmpi slt, %327, %10 : vector<16x1xi32>
    %329 = vector.broadcast %262 : i32 to vector<16x1xi32>
    %330 = arith.cmpi slt, %329, %10 : vector<16x1xi32>
    %331 = arith.truncf %301 : vector<16x128xf32> to vector<16x128xbf16>
    %332 = vector.shape_cast %328 : vector<16x1xi1> to vector<16x1xi1>
    %333 = vector.broadcast %332 : vector<16x1xi1> to vector<16x128xi1>
    %334 = arith.select %333, %331, %251 : vector<16x128xi1>, vector<16x128xbf16>
    %335 = vector.shape_cast %328 : vector<16x1xi1> to vector<16x1xi1>
    %336 = vector.broadcast %335 : vector<16x1xi1> to vector<16x128xi1>
    %337 = arith.select %336, %299, %254 : vector<16x128xi1>, vector<16x128xf32>
    %338 = arith.truncf %326 : vector<16x128xf32> to vector<16x128xbf16>
    %339 = vector.shape_cast %330 : vector<16x1xi1> to vector<16x1xi1>
    %340 = vector.broadcast %339 : vector<16x1xi1> to vector<16x128xi1>
    %341 = arith.select %340, %338, %258 : vector<16x128xi1>, vector<16x128xbf16>
    %342 = vector.shape_cast %330 : vector<16x1xi1> to vector<16x1xi1>
    %343 = vector.broadcast %342 : vector<16x1xi1> to vector<16x128xi1>
    %344 = arith.select %343, %324, %261 : vector<16x128xi1>, vector<16x128xf32>
    %c4_i32 = arith.constant 4 : i32
    %c11_i32_79 = arith.constant 11 : i32
    %345 = arith.subi %c11_i32_79, %c4_i32 : i32
    %346 = arith.index_cast %c4_i32 : i32 to index
    %c0_80 = arith.constant 0 : index
    %c0_81 = arith.constant 0 : index
    %347 = vector.load %arg10[%346, %c0_80, %c0_81] : memref<12x16x1024xbf16, #tpu.memory_space<vmem>>, vector<1x16x512xbf16>
    %348 = vector.shape_cast %347 : vector<1x16x512xbf16> to vector<16x512xbf16>
    %349 = arith.index_cast %345 : i32 to index
    %c0_82 = arith.constant 0 : index
    %c512_83 = arith.constant 512 : index
    %350 = vector.load %arg10[%349, %c0_82, %c512_83] : memref<12x16x1024xbf16, #tpu.memory_space<vmem>>, vector<1x16x512xbf16>
    %351 = vector.shape_cast %350 : vector<1x16x512xbf16> to vector<16x512xbf16>
    %c0_84 = arith.constant 0 : index
    %c0_85 = arith.constant 0 : index
    %352 = vector.load %arg5[%c0_84, %c0_85] : memref<128x512xbf16, #tpu.memory_space<vmem>>, vector<128x512xbf16>
    %cst_86 = arith.constant dense<0.000000e+00> : vector<16x512xf32>
    %353 = tpu.matmul %334, %352, %cst_86 {dimension_numbers = #tpu.dot_dimension_numbers<[1], [0], [0], [1], [0, 0, 1, 1], [], []>} : vector<16x128xbf16>, vector<128x512xbf16>, vector<16x512xf32> -> vector<16x512xf32>
    %354 = arith.extf %348 : vector<16x512xbf16> to vector<16x512xf32>
    %355 = arith.addf %354, %353 : vector<16x512xf32>
    %c0_87 = arith.constant 0 : index
    %c0_88 = arith.constant 0 : index
    %356 = vector.load %arg6[%c0_87, %c0_88] : memref<128x512xbf16, #tpu.memory_space<vmem>>, vector<128x512xbf16>
    %cst_89 = arith.constant dense<0.000000e+00> : vector<16x512xf32>
    %357 = tpu.matmul %341, %356, %cst_89 {dimension_numbers = #tpu.dot_dimension_numbers<[1], [0], [0], [1], [0, 0, 1, 1], [], []>} : vector<16x128xbf16>, vector<128x512xbf16>, vector<16x512xf32> -> vector<16x512xf32>
    %358 = arith.extf %351 : vector<16x512xbf16> to vector<16x512xf32>
    %359 = arith.addf %358, %357 : vector<16x512xf32>
    %360 = vector.extract_strided_slice %355 {offsets = [0, 0], sizes = [16, 128], strides = [1, 1]} : vector<16x512xf32> to vector<16x128xf32>
    %361 = arith.negf %360 : vector<16x128xf32>
    %362 = math.exp %361 : vector<16x128xf32>
    %cst_90 = arith.constant 1.000000e+00 : f32
    %363 = vector.broadcast %cst_90 : f32 to vector<16x128xf32>
    %364 = arith.addf %363, %362 : vector<16x128xf32>
    %365 = arith.divf %363, %364 : vector<16x128xf32>
    %366 = vector.extract_strided_slice %355 {offsets = [0, 128], sizes = [16, 128], strides = [1, 1]} : vector<16x512xf32> to vector<16x128xf32>
    %367 = arith.negf %366 : vector<16x128xf32>
    %368 = math.exp %367 : vector<16x128xf32>
    %cst_91 = arith.constant 1.000000e+00 : f32
    %369 = vector.broadcast %cst_91 : f32 to vector<16x128xf32>
    %370 = arith.addf %369, %368 : vector<16x128xf32>
    %371 = arith.divf %369, %370 : vector<16x128xf32>
    %372 = vector.extract_strided_slice %355 {offsets = [0, 256], sizes = [16, 128], strides = [1, 1]} : vector<16x512xf32> to vector<16x128xf32>
    %373 = math.tanh %372 : vector<16x128xf32>
    %374 = vector.extract_strided_slice %355 {offsets = [0, 384], sizes = [16, 128], strides = [1, 1]} : vector<16x512xf32> to vector<16x128xf32>
    %375 = arith.negf %374 : vector<16x128xf32>
    %376 = math.exp %375 : vector<16x128xf32>
    %cst_92 = arith.constant 1.000000e+00 : f32
    %377 = vector.broadcast %cst_92 : f32 to vector<16x128xf32>
    %378 = arith.addf %377, %376 : vector<16x128xf32>
    %379 = arith.divf %377, %378 : vector<16x128xf32>
    %380 = arith.mulf %371, %337 : vector<16x128xf32>
    %381 = arith.mulf %365, %373 : vector<16x128xf32>
    %382 = arith.addf %380, %381 : vector<16x128xf32>
    %383 = math.tanh %382 : vector<16x128xf32>
    %384 = arith.mulf %379, %383 : vector<16x128xf32>
    %385 = vector.extract_strided_slice %359 {offsets = [0, 0], sizes = [16, 128], strides = [1, 1]} : vector<16x512xf32> to vector<16x128xf32>
    %386 = arith.negf %385 : vector<16x128xf32>
    %387 = math.exp %386 : vector<16x128xf32>
    %cst_93 = arith.constant 1.000000e+00 : f32
    %388 = vector.broadcast %cst_93 : f32 to vector<16x128xf32>
    %389 = arith.addf %388, %387 : vector<16x128xf32>
    %390 = arith.divf %388, %389 : vector<16x128xf32>
    %391 = vector.extract_strided_slice %359 {offsets = [0, 128], sizes = [16, 128], strides = [1, 1]} : vector<16x512xf32> to vector<16x128xf32>
    %392 = arith.negf %391 : vector<16x128xf32>
    %393 = math.exp %392 : vector<16x128xf32>
    %cst_94 = arith.constant 1.000000e+00 : f32
    %394 = vector.broadcast %cst_94 : f32 to vector<16x128xf32>
    %395 = arith.addf %394, %393 : vector<16x128xf32>
    %396 = arith.divf %394, %395 : vector<16x128xf32>
    %397 = vector.extract_strided_slice %359 {offsets = [0, 256], sizes = [16, 128], strides = [1, 1]} : vector<16x512xf32> to vector<16x128xf32>
    %398 = math.tanh %397 : vector<16x128xf32>
    %399 = vector.extract_strided_slice %359 {offsets = [0, 384], sizes = [16, 128], strides = [1, 1]} : vector<16x512xf32> to vector<16x128xf32>
    %400 = arith.negf %399 : vector<16x128xf32>
    %401 = math.exp %400 : vector<16x128xf32>
    %cst_95 = arith.constant 1.000000e+00 : f32
    %402 = vector.broadcast %cst_95 : f32 to vector<16x128xf32>
    %403 = arith.addf %402, %401 : vector<16x128xf32>
    %404 = arith.divf %402, %403 : vector<16x128xf32>
    %405 = arith.mulf %396, %344 : vector<16x128xf32>
    %406 = arith.mulf %390, %398 : vector<16x128xf32>
    %407 = arith.addf %405, %406 : vector<16x128xf32>
    %408 = math.tanh %407 : vector<16x128xf32>
    %409 = arith.mulf %404, %408 : vector<16x128xf32>
    %410 = vector.broadcast %c4_i32 : i32 to vector<16x1xi32>
    %411 = arith.cmpi slt, %410, %10 : vector<16x1xi32>
    %412 = vector.broadcast %345 : i32 to vector<16x1xi32>
    %413 = arith.cmpi slt, %412, %10 : vector<16x1xi32>
    %414 = arith.truncf %384 : vector<16x128xf32> to vector<16x128xbf16>
    %415 = vector.shape_cast %411 : vector<16x1xi1> to vector<16x1xi1>
    %416 = vector.broadcast %415 : vector<16x1xi1> to vector<16x128xi1>
    %417 = arith.select %416, %414, %334 : vector<16x128xi1>, vector<16x128xbf16>
    %418 = vector.shape_cast %411 : vector<16x1xi1> to vector<16x1xi1>
    %419 = vector.broadcast %418 : vector<16x1xi1> to vector<16x128xi1>
    %420 = arith.select %419, %382, %337 : vector<16x128xi1>, vector<16x128xf32>
    %421 = arith.truncf %409 : vector<16x128xf32> to vector<16x128xbf16>
    %422 = vector.shape_cast %413 : vector<16x1xi1> to vector<16x1xi1>
    %423 = vector.broadcast %422 : vector<16x1xi1> to vector<16x128xi1>
    %424 = arith.select %423, %421, %341 : vector<16x128xi1>, vector<16x128xbf16>
    %425 = vector.shape_cast %413 : vector<16x1xi1> to vector<16x1xi1>
    %426 = vector.broadcast %425 : vector<16x1xi1> to vector<16x128xi1>
    %427 = arith.select %426, %407, %344 : vector<16x128xi1>, vector<16x128xf32>
    %c5_i32 = arith.constant 5 : i32
    %c11_i32_96 = arith.constant 11 : i32
    %428 = arith.subi %c11_i32_96, %c5_i32 : i32
    %429 = arith.index_cast %c5_i32 : i32 to index
    %c0_97 = arith.constant 0 : index
    %c0_98 = arith.constant 0 : index
    %430 = vector.load %arg10[%429, %c0_97, %c0_98] : memref<12x16x1024xbf16, #tpu.memory_space<vmem>>, vector<1x16x512xbf16>
    %431 = vector.shape_cast %430 : vector<1x16x512xbf16> to vector<16x512xbf16>
    %432 = arith.index_cast %428 : i32 to index
    %c0_99 = arith.constant 0 : index
    %c512_100 = arith.constant 512 : index
    %433 = vector.load %arg10[%432, %c0_99, %c512_100] : memref<12x16x1024xbf16, #tpu.memory_space<vmem>>, vector<1x16x512xbf16>
    %434 = vector.shape_cast %433 : vector<1x16x512xbf16> to vector<16x512xbf16>
    %c0_101 = arith.constant 0 : index
    %c0_102 = arith.constant 0 : index
    %435 = vector.load %arg5[%c0_101, %c0_102] : memref<128x512xbf16, #tpu.memory_space<vmem>>, vector<128x512xbf16>
    %cst_103 = arith.constant dense<0.000000e+00> : vector<16x512xf32>
    %436 = tpu.matmul %417, %435, %cst_103 {dimension_numbers = #tpu.dot_dimension_numbers<[1], [0], [0], [1], [0, 0, 1, 1], [], []>} : vector<16x128xbf16>, vector<128x512xbf16>, vector<16x512xf32> -> vector<16x512xf32>
    %437 = arith.extf %431 : vector<16x512xbf16> to vector<16x512xf32>
    %438 = arith.addf %437, %436 : vector<16x512xf32>
    %c0_104 = arith.constant 0 : index
    %c0_105 = arith.constant 0 : index
    %439 = vector.load %arg6[%c0_104, %c0_105] : memref<128x512xbf16, #tpu.memory_space<vmem>>, vector<128x512xbf16>
    %cst_106 = arith.constant dense<0.000000e+00> : vector<16x512xf32>
    %440 = tpu.matmul %424, %439, %cst_106 {dimension_numbers = #tpu.dot_dimension_numbers<[1], [0], [0], [1], [0, 0, 1, 1], [], []>} : vector<16x128xbf16>, vector<128x512xbf16>, vector<16x512xf32> -> vector<16x512xf32>
    %441 = arith.extf %434 : vector<16x512xbf16> to vector<16x512xf32>
    %442 = arith.addf %441, %440 : vector<16x512xf32>
    %443 = vector.extract_strided_slice %438 {offsets = [0, 0], sizes = [16, 128], strides = [1, 1]} : vector<16x512xf32> to vector<16x128xf32>
    %444 = arith.negf %443 : vector<16x128xf32>
    %445 = math.exp %444 : vector<16x128xf32>
    %cst_107 = arith.constant 1.000000e+00 : f32
    %446 = vector.broadcast %cst_107 : f32 to vector<16x128xf32>
    %447 = arith.addf %446, %445 : vector<16x128xf32>
    %448 = arith.divf %446, %447 : vector<16x128xf32>
    %449 = vector.extract_strided_slice %438 {offsets = [0, 128], sizes = [16, 128], strides = [1, 1]} : vector<16x512xf32> to vector<16x128xf32>
    %450 = arith.negf %449 : vector<16x128xf32>
    %451 = math.exp %450 : vector<16x128xf32>
    %cst_108 = arith.constant 1.000000e+00 : f32
    %452 = vector.broadcast %cst_108 : f32 to vector<16x128xf32>
    %453 = arith.addf %452, %451 : vector<16x128xf32>
    %454 = arith.divf %452, %453 : vector<16x128xf32>
    %455 = vector.extract_strided_slice %438 {offsets = [0, 256], sizes = [16, 128], strides = [1, 1]} : vector<16x512xf32> to vector<16x128xf32>
    %456 = math.tanh %455 : vector<16x128xf32>
    %457 = vector.extract_strided_slice %438 {offsets = [0, 384], sizes = [16, 128], strides = [1, 1]} : vector<16x512xf32> to vector<16x128xf32>
    %458 = arith.negf %457 : vector<16x128xf32>
    %459 = math.exp %458 : vector<16x128xf32>
    %cst_109 = arith.constant 1.000000e+00 : f32
    %460 = vector.broadcast %cst_109 : f32 to vector<16x128xf32>
    %461 = arith.addf %460, %459 : vector<16x128xf32>
    %462 = arith.divf %460, %461 : vector<16x128xf32>
    %463 = arith.mulf %454, %420 : vector<16x128xf32>
    %464 = arith.mulf %448, %456 : vector<16x128xf32>
    %465 = arith.addf %463, %464 : vector<16x128xf32>
    %466 = math.tanh %465 : vector<16x128xf32>
    %467 = arith.mulf %462, %466 : vector<16x128xf32>
    %468 = vector.extract_strided_slice %442 {offsets = [0, 0], sizes = [16, 128], strides = [1, 1]} : vector<16x512xf32> to vector<16x128xf32>
    %469 = arith.negf %468 : vector<16x128xf32>
    %470 = math.exp %469 : vector<16x128xf32>
    %cst_110 = arith.constant 1.000000e+00 : f32
    %471 = vector.broadcast %cst_110 : f32 to vector<16x128xf32>
    %472 = arith.addf %471, %470 : vector<16x128xf32>
    %473 = arith.divf %471, %472 : vector<16x128xf32>
    %474 = vector.extract_strided_slice %442 {offsets = [0, 128], sizes = [16, 128], strides = [1, 1]} : vector<16x512xf32> to vector<16x128xf32>
    %475 = arith.negf %474 : vector<16x128xf32>
    %476 = math.exp %475 : vector<16x128xf32>
    %cst_111 = arith.constant 1.000000e+00 : f32
    %477 = vector.broadcast %cst_111 : f32 to vector<16x128xf32>
    %478 = arith.addf %477, %476 : vector<16x128xf32>
    %479 = arith.divf %477, %478 : vector<16x128xf32>
    %480 = vector.extract_strided_slice %442 {offsets = [0, 256], sizes = [16, 128], strides = [1, 1]} : vector<16x512xf32> to vector<16x128xf32>
    %481 = math.tanh %480 : vector<16x128xf32>
    %482 = vector.extract_strided_slice %442 {offsets = [0, 384], sizes = [16, 128], strides = [1, 1]} : vector<16x512xf32> to vector<16x128xf32>
    %483 = arith.negf %482 : vector<16x128xf32>
    %484 = math.exp %483 : vector<16x128xf32>
    %cst_112 = arith.constant 1.000000e+00 : f32
    %485 = vector.broadcast %cst_112 : f32 to vector<16x128xf32>
    %486 = arith.addf %485, %484 : vector<16x128xf32>
    %487 = arith.divf %485, %486 : vector<16x128xf32>
    %488 = arith.mulf %479, %427 : vector<16x128xf32>
    %489 = arith.mulf %473, %481 : vector<16x128xf32>
    %490 = arith.addf %488, %489 : vector<16x128xf32>
    %491 = math.tanh %490 : vector<16x128xf32>
    %492 = arith.mulf %487, %491 : vector<16x128xf32>
    %493 = vector.broadcast %c5_i32 : i32 to vector<16x1xi32>
    %494 = arith.cmpi slt, %493, %10 : vector<16x1xi32>
    %495 = vector.broadcast %428 : i32 to vector<16x1xi32>
    %496 = arith.cmpi slt, %495, %10 : vector<16x1xi32>
    %497 = arith.truncf %467 : vector<16x128xf32> to vector<16x128xbf16>
    %498 = vector.shape_cast %494 : vector<16x1xi1> to vector<16x1xi1>
    %499 = vector.broadcast %498 : vector<16x1xi1> to vector<16x128xi1>
    %500 = arith.select %499, %497, %417 : vector<16x128xi1>, vector<16x128xbf16>
    %501 = vector.shape_cast %494 : vector<16x1xi1> to vector<16x1xi1>
    %502 = vector.broadcast %501 : vector<16x1xi1> to vector<16x128xi1>
    %503 = arith.select %502, %465, %420 : vector<16x128xi1>, vector<16x128xf32>
    %504 = arith.truncf %492 : vector<16x128xf32> to vector<16x128xbf16>
    %505 = vector.shape_cast %496 : vector<16x1xi1> to vector<16x1xi1>
    %506 = vector.broadcast %505 : vector<16x1xi1> to vector<16x128xi1>
    %507 = arith.select %506, %504, %424 : vector<16x128xi1>, vector<16x128xbf16>
    %508 = vector.shape_cast %496 : vector<16x1xi1> to vector<16x1xi1>
    %509 = vector.broadcast %508 : vector<16x1xi1> to vector<16x128xi1>
    %510 = arith.select %509, %490, %427 : vector<16x128xi1>, vector<16x128xf32>
    %c6_i32 = arith.constant 6 : i32
    %c11_i32_113 = arith.constant 11 : i32
    %511 = arith.subi %c11_i32_113, %c6_i32 : i32
    %512 = arith.index_cast %c6_i32 : i32 to index
    %c0_114 = arith.constant 0 : index
    %c0_115 = arith.constant 0 : index
    %513 = vector.load %arg10[%512, %c0_114, %c0_115] : memref<12x16x1024xbf16, #tpu.memory_space<vmem>>, vector<1x16x512xbf16>
    %514 = vector.shape_cast %513 : vector<1x16x512xbf16> to vector<16x512xbf16>
    %515 = arith.index_cast %511 : i32 to index
    %c0_116 = arith.constant 0 : index
    %c512_117 = arith.constant 512 : index
    %516 = vector.load %arg10[%515, %c0_116, %c512_117] : memref<12x16x1024xbf16, #tpu.memory_space<vmem>>, vector<1x16x512xbf16>
    %517 = vector.shape_cast %516 : vector<1x16x512xbf16> to vector<16x512xbf16>
    %c0_118 = arith.constant 0 : index
    %c0_119 = arith.constant 0 : index
    %518 = vector.load %arg5[%c0_118, %c0_119] : memref<128x512xbf16, #tpu.memory_space<vmem>>, vector<128x512xbf16>
    %cst_120 = arith.constant dense<0.000000e+00> : vector<16x512xf32>
    %519 = tpu.matmul %500, %518, %cst_120 {dimension_numbers = #tpu.dot_dimension_numbers<[1], [0], [0], [1], [0, 0, 1, 1], [], []>} : vector<16x128xbf16>, vector<128x512xbf16>, vector<16x512xf32> -> vector<16x512xf32>
    %520 = arith.extf %514 : vector<16x512xbf16> to vector<16x512xf32>
    %521 = arith.addf %520, %519 : vector<16x512xf32>
    %c0_121 = arith.constant 0 : index
    %c0_122 = arith.constant 0 : index
    %522 = vector.load %arg6[%c0_121, %c0_122] : memref<128x512xbf16, #tpu.memory_space<vmem>>, vector<128x512xbf16>
    %cst_123 = arith.constant dense<0.000000e+00> : vector<16x512xf32>
    %523 = tpu.matmul %507, %522, %cst_123 {dimension_numbers = #tpu.dot_dimension_numbers<[1], [0], [0], [1], [0, 0, 1, 1], [], []>} : vector<16x128xbf16>, vector<128x512xbf16>, vector<16x512xf32> -> vector<16x512xf32>
    %524 = arith.extf %517 : vector<16x512xbf16> to vector<16x512xf32>
    %525 = arith.addf %524, %523 : vector<16x512xf32>
    %526 = vector.extract_strided_slice %521 {offsets = [0, 0], sizes = [16, 128], strides = [1, 1]} : vector<16x512xf32> to vector<16x128xf32>
    %527 = arith.negf %526 : vector<16x128xf32>
    %528 = math.exp %527 : vector<16x128xf32>
    %cst_124 = arith.constant 1.000000e+00 : f32
    %529 = vector.broadcast %cst_124 : f32 to vector<16x128xf32>
    %530 = arith.addf %529, %528 : vector<16x128xf32>
    %531 = arith.divf %529, %530 : vector<16x128xf32>
    %532 = vector.extract_strided_slice %521 {offsets = [0, 128], sizes = [16, 128], strides = [1, 1]} : vector<16x512xf32> to vector<16x128xf32>
    %533 = arith.negf %532 : vector<16x128xf32>
    %534 = math.exp %533 : vector<16x128xf32>
    %cst_125 = arith.constant 1.000000e+00 : f32
    %535 = vector.broadcast %cst_125 : f32 to vector<16x128xf32>
    %536 = arith.addf %535, %534 : vector<16x128xf32>
    %537 = arith.divf %535, %536 : vector<16x128xf32>
    %538 = vector.extract_strided_slice %521 {offsets = [0, 256], sizes = [16, 128], strides = [1, 1]} : vector<16x512xf32> to vector<16x128xf32>
    %539 = math.tanh %538 : vector<16x128xf32>
    %540 = vector.extract_strided_slice %521 {offsets = [0, 384], sizes = [16, 128], strides = [1, 1]} : vector<16x512xf32> to vector<16x128xf32>
    %541 = arith.negf %540 : vector<16x128xf32>
    %542 = math.exp %541 : vector<16x128xf32>
    %cst_126 = arith.constant 1.000000e+00 : f32
    %543 = vector.broadcast %cst_126 : f32 to vector<16x128xf32>
    %544 = arith.addf %543, %542 : vector<16x128xf32>
    %545 = arith.divf %543, %544 : vector<16x128xf32>
    %546 = arith.mulf %537, %503 : vector<16x128xf32>
    %547 = arith.mulf %531, %539 : vector<16x128xf32>
    %548 = arith.addf %546, %547 : vector<16x128xf32>
    %549 = math.tanh %548 : vector<16x128xf32>
    %550 = arith.mulf %545, %549 : vector<16x128xf32>
    %551 = vector.extract_strided_slice %525 {offsets = [0, 0], sizes = [16, 128], strides = [1, 1]} : vector<16x512xf32> to vector<16x128xf32>
    %552 = arith.negf %551 : vector<16x128xf32>
    %553 = math.exp %552 : vector<16x128xf32>
    %cst_127 = arith.constant 1.000000e+00 : f32
    %554 = vector.broadcast %cst_127 : f32 to vector<16x128xf32>
    %555 = arith.addf %554, %553 : vector<16x128xf32>
    %556 = arith.divf %554, %555 : vector<16x128xf32>
    %557 = vector.extract_strided_slice %525 {offsets = [0, 128], sizes = [16, 128], strides = [1, 1]} : vector<16x512xf32> to vector<16x128xf32>
    %558 = arith.negf %557 : vector<16x128xf32>
    %559 = math.exp %558 : vector<16x128xf32>
    %cst_128 = arith.constant 1.000000e+00 : f32
    %560 = vector.broadcast %cst_128 : f32 to vector<16x128xf32>
    %561 = arith.addf %560, %559 : vector<16x128xf32>
    %562 = arith.divf %560, %561 : vector<16x128xf32>
    %563 = vector.extract_strided_slice %525 {offsets = [0, 256], sizes = [16, 128], strides = [1, 1]} : vector<16x512xf32> to vector<16x128xf32>
    %564 = math.tanh %563 : vector<16x128xf32>
    %565 = vector.extract_strided_slice %525 {offsets = [0, 384], sizes = [16, 128], strides = [1, 1]} : vector<16x512xf32> to vector<16x128xf32>
    %566 = arith.negf %565 : vector<16x128xf32>
    %567 = math.exp %566 : vector<16x128xf32>
    %cst_129 = arith.constant 1.000000e+00 : f32
    %568 = vector.broadcast %cst_129 : f32 to vector<16x128xf32>
    %569 = arith.addf %568, %567 : vector<16x128xf32>
    %570 = arith.divf %568, %569 : vector<16x128xf32>
    %571 = arith.mulf %562, %510 : vector<16x128xf32>
    %572 = arith.mulf %556, %564 : vector<16x128xf32>
    %573 = arith.addf %571, %572 : vector<16x128xf32>
    %574 = math.tanh %573 : vector<16x128xf32>
    %575 = arith.mulf %570, %574 : vector<16x128xf32>
    %576 = vector.broadcast %c6_i32 : i32 to vector<16x1xi32>
    %577 = arith.cmpi slt, %576, %10 : vector<16x1xi32>
    %578 = vector.broadcast %511 : i32 to vector<16x1xi32>
    %579 = arith.cmpi slt, %578, %10 : vector<16x1xi32>
    %580 = arith.truncf %550 : vector<16x128xf32> to vector<16x128xbf16>
    %581 = vector.shape_cast %577 : vector<16x1xi1> to vector<16x1xi1>
    %582 = vector.broadcast %581 : vector<16x1xi1> to vector<16x128xi1>
    %583 = arith.select %582, %580, %500 : vector<16x128xi1>, vector<16x128xbf16>
    %584 = vector.shape_cast %577 : vector<16x1xi1> to vector<16x1xi1>
    %585 = vector.broadcast %584 : vector<16x1xi1> to vector<16x128xi1>
    %586 = arith.select %585, %548, %503 : vector<16x128xi1>, vector<16x128xf32>
    %587 = arith.truncf %575 : vector<16x128xf32> to vector<16x128xbf16>
    %588 = vector.shape_cast %579 : vector<16x1xi1> to vector<16x1xi1>
    %589 = vector.broadcast %588 : vector<16x1xi1> to vector<16x128xi1>
    %590 = arith.select %589, %587, %507 : vector<16x128xi1>, vector<16x128xbf16>
    %591 = vector.shape_cast %579 : vector<16x1xi1> to vector<16x1xi1>
    %592 = vector.broadcast %591 : vector<16x1xi1> to vector<16x128xi1>
    %593 = arith.select %592, %573, %510 : vector<16x128xi1>, vector<16x128xf32>
    %c7_i32 = arith.constant 7 : i32
    %c11_i32_130 = arith.constant 11 : i32
    %594 = arith.subi %c11_i32_130, %c7_i32 : i32
    %595 = arith.index_cast %c7_i32 : i32 to index
    %c0_131 = arith.constant 0 : index
    %c0_132 = arith.constant 0 : index
    %596 = vector.load %arg10[%595, %c0_131, %c0_132] : memref<12x16x1024xbf16, #tpu.memory_space<vmem>>, vector<1x16x512xbf16>
    %597 = vector.shape_cast %596 : vector<1x16x512xbf16> to vector<16x512xbf16>
    %598 = arith.index_cast %594 : i32 to index
    %c0_133 = arith.constant 0 : index
    %c512_134 = arith.constant 512 : index
    %599 = vector.load %arg10[%598, %c0_133, %c512_134] : memref<12x16x1024xbf16, #tpu.memory_space<vmem>>, vector<1x16x512xbf16>
    %600 = vector.shape_cast %599 : vector<1x16x512xbf16> to vector<16x512xbf16>
    %c0_135 = arith.constant 0 : index
    %c0_136 = arith.constant 0 : index
    %601 = vector.load %arg5[%c0_135, %c0_136] : memref<128x512xbf16, #tpu.memory_space<vmem>>, vector<128x512xbf16>
    %cst_137 = arith.constant dense<0.000000e+00> : vector<16x512xf32>
    %602 = tpu.matmul %583, %601, %cst_137 {dimension_numbers = #tpu.dot_dimension_numbers<[1], [0], [0], [1], [0, 0, 1, 1], [], []>} : vector<16x128xbf16>, vector<128x512xbf16>, vector<16x512xf32> -> vector<16x512xf32>
    %603 = arith.extf %597 : vector<16x512xbf16> to vector<16x512xf32>
    %604 = arith.addf %603, %602 : vector<16x512xf32>
    %c0_138 = arith.constant 0 : index
    %c0_139 = arith.constant 0 : index
    %605 = vector.load %arg6[%c0_138, %c0_139] : memref<128x512xbf16, #tpu.memory_space<vmem>>, vector<128x512xbf16>
    %cst_140 = arith.constant dense<0.000000e+00> : vector<16x512xf32>
    %606 = tpu.matmul %590, %605, %cst_140 {dimension_numbers = #tpu.dot_dimension_numbers<[1], [0], [0], [1], [0, 0, 1, 1], [], []>} : vector<16x128xbf16>, vector<128x512xbf16>, vector<16x512xf32> -> vector<16x512xf32>
    %607 = arith.extf %600 : vector<16x512xbf16> to vector<16x512xf32>
    %608 = arith.addf %607, %606 : vector<16x512xf32>
    %609 = vector.extract_strided_slice %604 {offsets = [0, 0], sizes = [16, 128], strides = [1, 1]} : vector<16x512xf32> to vector<16x128xf32>
    %610 = arith.negf %609 : vector<16x128xf32>
    %611 = math.exp %610 : vector<16x128xf32>
    %cst_141 = arith.constant 1.000000e+00 : f32
    %612 = vector.broadcast %cst_141 : f32 to vector<16x128xf32>
    %613 = arith.addf %612, %611 : vector<16x128xf32>
    %614 = arith.divf %612, %613 : vector<16x128xf32>
    %615 = vector.extract_strided_slice %604 {offsets = [0, 128], sizes = [16, 128], strides = [1, 1]} : vector<16x512xf32> to vector<16x128xf32>
    %616 = arith.negf %615 : vector<16x128xf32>
    %617 = math.exp %616 : vector<16x128xf32>
    %cst_142 = arith.constant 1.000000e+00 : f32
    %618 = vector.broadcast %cst_142 : f32 to vector<16x128xf32>
    %619 = arith.addf %618, %617 : vector<16x128xf32>
    %620 = arith.divf %618, %619 : vector<16x128xf32>
    %621 = vector.extract_strided_slice %604 {offsets = [0, 256], sizes = [16, 128], strides = [1, 1]} : vector<16x512xf32> to vector<16x128xf32>
    %622 = math.tanh %621 : vector<16x128xf32>
    %623 = vector.extract_strided_slice %604 {offsets = [0, 384], sizes = [16, 128], strides = [1, 1]} : vector<16x512xf32> to vector<16x128xf32>
    %624 = arith.negf %623 : vector<16x128xf32>
    %625 = math.exp %624 : vector<16x128xf32>
    %cst_143 = arith.constant 1.000000e+00 : f32
    %626 = vector.broadcast %cst_143 : f32 to vector<16x128xf32>
    %627 = arith.addf %626, %625 : vector<16x128xf32>
    %628 = arith.divf %626, %627 : vector<16x128xf32>
    %629 = arith.mulf %620, %586 : vector<16x128xf32>
    %630 = arith.mulf %614, %622 : vector<16x128xf32>
    %631 = arith.addf %629, %630 : vector<16x128xf32>
    %632 = math.tanh %631 : vector<16x128xf32>
    %633 = arith.mulf %628, %632 : vector<16x128xf32>
    %634 = vector.extract_strided_slice %608 {offsets = [0, 0], sizes = [16, 128], strides = [1, 1]} : vector<16x512xf32> to vector<16x128xf32>
    %635 = arith.negf %634 : vector<16x128xf32>
    %636 = math.exp %635 : vector<16x128xf32>
    %cst_144 = arith.constant 1.000000e+00 : f32
    %637 = vector.broadcast %cst_144 : f32 to vector<16x128xf32>
    %638 = arith.addf %637, %636 : vector<16x128xf32>
    %639 = arith.divf %637, %638 : vector<16x128xf32>
    %640 = vector.extract_strided_slice %608 {offsets = [0, 128], sizes = [16, 128], strides = [1, 1]} : vector<16x512xf32> to vector<16x128xf32>
    %641 = arith.negf %640 : vector<16x128xf32>
    %642 = math.exp %641 : vector<16x128xf32>
    %cst_145 = arith.constant 1.000000e+00 : f32
    %643 = vector.broadcast %cst_145 : f32 to vector<16x128xf32>
    %644 = arith.addf %643, %642 : vector<16x128xf32>
    %645 = arith.divf %643, %644 : vector<16x128xf32>
    %646 = vector.extract_strided_slice %608 {offsets = [0, 256], sizes = [16, 128], strides = [1, 1]} : vector<16x512xf32> to vector<16x128xf32>
    %647 = math.tanh %646 : vector<16x128xf32>
    %648 = vector.extract_strided_slice %608 {offsets = [0, 384], sizes = [16, 128], strides = [1, 1]} : vector<16x512xf32> to vector<16x128xf32>
    %649 = arith.negf %648 : vector<16x128xf32>
    %650 = math.exp %649 : vector<16x128xf32>
    %cst_146 = arith.constant 1.000000e+00 : f32
    %651 = vector.broadcast %cst_146 : f32 to vector<16x128xf32>
    %652 = arith.addf %651, %650 : vector<16x128xf32>
    %653 = arith.divf %651, %652 : vector<16x128xf32>
    %654 = arith.mulf %645, %593 : vector<16x128xf32>
    %655 = arith.mulf %639, %647 : vector<16x128xf32>
    %656 = arith.addf %654, %655 : vector<16x128xf32>
    %657 = math.tanh %656 : vector<16x128xf32>
    %658 = arith.mulf %653, %657 : vector<16x128xf32>
    %659 = vector.broadcast %c7_i32 : i32 to vector<16x1xi32>
    %660 = arith.cmpi slt, %659, %10 : vector<16x1xi32>
    %661 = vector.broadcast %594 : i32 to vector<16x1xi32>
    %662 = arith.cmpi slt, %661, %10 : vector<16x1xi32>
    %663 = arith.truncf %633 : vector<16x128xf32> to vector<16x128xbf16>
    %664 = vector.shape_cast %660 : vector<16x1xi1> to vector<16x1xi1>
    %665 = vector.broadcast %664 : vector<16x1xi1> to vector<16x128xi1>
    %666 = arith.select %665, %663, %583 : vector<16x128xi1>, vector<16x128xbf16>
    %667 = vector.shape_cast %660 : vector<16x1xi1> to vector<16x1xi1>
    %668 = vector.broadcast %667 : vector<16x1xi1> to vector<16x128xi1>
    %669 = arith.select %668, %631, %586 : vector<16x128xi1>, vector<16x128xf32>
    %670 = arith.truncf %658 : vector<16x128xf32> to vector<16x128xbf16>
    %671 = vector.shape_cast %662 : vector<16x1xi1> to vector<16x1xi1>
    %672 = vector.broadcast %671 : vector<16x1xi1> to vector<16x128xi1>
    %673 = arith.select %672, %670, %590 : vector<16x128xi1>, vector<16x128xbf16>
    %674 = vector.shape_cast %662 : vector<16x1xi1> to vector<16x1xi1>
    %675 = vector.broadcast %674 : vector<16x1xi1> to vector<16x128xi1>
    %676 = arith.select %675, %656, %593 : vector<16x128xi1>, vector<16x128xf32>
    %c8_i32 = arith.constant 8 : i32
    %c11_i32_147 = arith.constant 11 : i32
    %677 = arith.subi %c11_i32_147, %c8_i32 : i32
    %678 = arith.index_cast %c8_i32 : i32 to index
    %c0_148 = arith.constant 0 : index
    %c0_149 = arith.constant 0 : index
    %679 = vector.load %arg10[%678, %c0_148, %c0_149] : memref<12x16x1024xbf16, #tpu.memory_space<vmem>>, vector<1x16x512xbf16>
    %680 = vector.shape_cast %679 : vector<1x16x512xbf16> to vector<16x512xbf16>
    %681 = arith.index_cast %677 : i32 to index
    %c0_150 = arith.constant 0 : index
    %c512_151 = arith.constant 512 : index
    %682 = vector.load %arg10[%681, %c0_150, %c512_151] : memref<12x16x1024xbf16, #tpu.memory_space<vmem>>, vector<1x16x512xbf16>
    %683 = vector.shape_cast %682 : vector<1x16x512xbf16> to vector<16x512xbf16>
    %c0_152 = arith.constant 0 : index
    %c0_153 = arith.constant 0 : index
    %684 = vector.load %arg5[%c0_152, %c0_153] : memref<128x512xbf16, #tpu.memory_space<vmem>>, vector<128x512xbf16>
    %cst_154 = arith.constant dense<0.000000e+00> : vector<16x512xf32>
    %685 = tpu.matmul %666, %684, %cst_154 {dimension_numbers = #tpu.dot_dimension_numbers<[1], [0], [0], [1], [0, 0, 1, 1], [], []>} : vector<16x128xbf16>, vector<128x512xbf16>, vector<16x512xf32> -> vector<16x512xf32>
    %686 = arith.extf %680 : vector<16x512xbf16> to vector<16x512xf32>
    %687 = arith.addf %686, %685 : vector<16x512xf32>
    %c0_155 = arith.constant 0 : index
    %c0_156 = arith.constant 0 : index
    %688 = vector.load %arg6[%c0_155, %c0_156] : memref<128x512xbf16, #tpu.memory_space<vmem>>, vector<128x512xbf16>
    %cst_157 = arith.constant dense<0.000000e+00> : vector<16x512xf32>
    %689 = tpu.matmul %673, %688, %cst_157 {dimension_numbers = #tpu.dot_dimension_numbers<[1], [0], [0], [1], [0, 0, 1, 1], [], []>} : vector<16x128xbf16>, vector<128x512xbf16>, vector<16x512xf32> -> vector<16x512xf32>
    %690 = arith.extf %683 : vector<16x512xbf16> to vector<16x512xf32>
    %691 = arith.addf %690, %689 : vector<16x512xf32>
    %692 = vector.extract_strided_slice %687 {offsets = [0, 0], sizes = [16, 128], strides = [1, 1]} : vector<16x512xf32> to vector<16x128xf32>
    %693 = arith.negf %692 : vector<16x128xf32>
    %694 = math.exp %693 : vector<16x128xf32>
    %cst_158 = arith.constant 1.000000e+00 : f32
    %695 = vector.broadcast %cst_158 : f32 to vector<16x128xf32>
    %696 = arith.addf %695, %694 : vector<16x128xf32>
    %697 = arith.divf %695, %696 : vector<16x128xf32>
    %698 = vector.extract_strided_slice %687 {offsets = [0, 128], sizes = [16, 128], strides = [1, 1]} : vector<16x512xf32> to vector<16x128xf32>
    %699 = arith.negf %698 : vector<16x128xf32>
    %700 = math.exp %699 : vector<16x128xf32>
    %cst_159 = arith.constant 1.000000e+00 : f32
    %701 = vector.broadcast %cst_159 : f32 to vector<16x128xf32>
    %702 = arith.addf %701, %700 : vector<16x128xf32>
    %703 = arith.divf %701, %702 : vector<16x128xf32>
    %704 = vector.extract_strided_slice %687 {offsets = [0, 256], sizes = [16, 128], strides = [1, 1]} : vector<16x512xf32> to vector<16x128xf32>
    %705 = math.tanh %704 : vector<16x128xf32>
    %706 = vector.extract_strided_slice %687 {offsets = [0, 384], sizes = [16, 128], strides = [1, 1]} : vector<16x512xf32> to vector<16x128xf32>
    %707 = arith.negf %706 : vector<16x128xf32>
    %708 = math.exp %707 : vector<16x128xf32>
    %cst_160 = arith.constant 1.000000e+00 : f32
    %709 = vector.broadcast %cst_160 : f32 to vector<16x128xf32>
    %710 = arith.addf %709, %708 : vector<16x128xf32>
    %711 = arith.divf %709, %710 : vector<16x128xf32>
    %712 = arith.mulf %703, %669 : vector<16x128xf32>
    %713 = arith.mulf %697, %705 : vector<16x128xf32>
    %714 = arith.addf %712, %713 : vector<16x128xf32>
    %715 = math.tanh %714 : vector<16x128xf32>
    %716 = arith.mulf %711, %715 : vector<16x128xf32>
    %717 = vector.extract_strided_slice %691 {offsets = [0, 0], sizes = [16, 128], strides = [1, 1]} : vector<16x512xf32> to vector<16x128xf32>
    %718 = arith.negf %717 : vector<16x128xf32>
    %719 = math.exp %718 : vector<16x128xf32>
    %cst_161 = arith.constant 1.000000e+00 : f32
    %720 = vector.broadcast %cst_161 : f32 to vector<16x128xf32>
    %721 = arith.addf %720, %719 : vector<16x128xf32>
    %722 = arith.divf %720, %721 : vector<16x128xf32>
    %723 = vector.extract_strided_slice %691 {offsets = [0, 128], sizes = [16, 128], strides = [1, 1]} : vector<16x512xf32> to vector<16x128xf32>
    %724 = arith.negf %723 : vector<16x128xf32>
    %725 = math.exp %724 : vector<16x128xf32>
    %cst_162 = arith.constant 1.000000e+00 : f32
    %726 = vector.broadcast %cst_162 : f32 to vector<16x128xf32>
    %727 = arith.addf %726, %725 : vector<16x128xf32>
    %728 = arith.divf %726, %727 : vector<16x128xf32>
    %729 = vector.extract_strided_slice %691 {offsets = [0, 256], sizes = [16, 128], strides = [1, 1]} : vector<16x512xf32> to vector<16x128xf32>
    %730 = math.tanh %729 : vector<16x128xf32>
    %731 = vector.extract_strided_slice %691 {offsets = [0, 384], sizes = [16, 128], strides = [1, 1]} : vector<16x512xf32> to vector<16x128xf32>
    %732 = arith.negf %731 : vector<16x128xf32>
    %733 = math.exp %732 : vector<16x128xf32>
    %cst_163 = arith.constant 1.000000e+00 : f32
    %734 = vector.broadcast %cst_163 : f32 to vector<16x128xf32>
    %735 = arith.addf %734, %733 : vector<16x128xf32>
    %736 = arith.divf %734, %735 : vector<16x128xf32>
    %737 = arith.mulf %728, %676 : vector<16x128xf32>
    %738 = arith.mulf %722, %730 : vector<16x128xf32>
    %739 = arith.addf %737, %738 : vector<16x128xf32>
    %740 = math.tanh %739 : vector<16x128xf32>
    %741 = arith.mulf %736, %740 : vector<16x128xf32>
    %742 = vector.broadcast %c8_i32 : i32 to vector<16x1xi32>
    %743 = arith.cmpi slt, %742, %10 : vector<16x1xi32>
    %744 = vector.broadcast %677 : i32 to vector<16x1xi32>
    %745 = arith.cmpi slt, %744, %10 : vector<16x1xi32>
    %746 = arith.truncf %716 : vector<16x128xf32> to vector<16x128xbf16>
    %747 = vector.shape_cast %743 : vector<16x1xi1> to vector<16x1xi1>
    %748 = vector.broadcast %747 : vector<16x1xi1> to vector<16x128xi1>
    %749 = arith.select %748, %746, %666 : vector<16x128xi1>, vector<16x128xbf16>
    %750 = vector.shape_cast %743 : vector<16x1xi1> to vector<16x1xi1>
    %751 = vector.broadcast %750 : vector<16x1xi1> to vector<16x128xi1>
    %752 = arith.select %751, %714, %669 : vector<16x128xi1>, vector<16x128xf32>
    %753 = arith.truncf %741 : vector<16x128xf32> to vector<16x128xbf16>
    %754 = vector.shape_cast %745 : vector<16x1xi1> to vector<16x1xi1>
    %755 = vector.broadcast %754 : vector<16x1xi1> to vector<16x128xi1>
    %756 = arith.select %755, %753, %673 : vector<16x128xi1>, vector<16x128xbf16>
    %757 = vector.shape_cast %745 : vector<16x1xi1> to vector<16x1xi1>
    %758 = vector.broadcast %757 : vector<16x1xi1> to vector<16x128xi1>
    %759 = arith.select %758, %739, %676 : vector<16x128xi1>, vector<16x128xf32>
    %c9_i32 = arith.constant 9 : i32
    %c11_i32_164 = arith.constant 11 : i32
    %760 = arith.subi %c11_i32_164, %c9_i32 : i32
    %761 = arith.index_cast %c9_i32 : i32 to index
    %c0_165 = arith.constant 0 : index
    %c0_166 = arith.constant 0 : index
    %762 = vector.load %arg10[%761, %c0_165, %c0_166] : memref<12x16x1024xbf16, #tpu.memory_space<vmem>>, vector<1x16x512xbf16>
    %763 = vector.shape_cast %762 : vector<1x16x512xbf16> to vector<16x512xbf16>
    %764 = arith.index_cast %760 : i32 to index
    %c0_167 = arith.constant 0 : index
    %c512_168 = arith.constant 512 : index
    %765 = vector.load %arg10[%764, %c0_167, %c512_168] : memref<12x16x1024xbf16, #tpu.memory_space<vmem>>, vector<1x16x512xbf16>
    %766 = vector.shape_cast %765 : vector<1x16x512xbf16> to vector<16x512xbf16>
    %c0_169 = arith.constant 0 : index
    %c0_170 = arith.constant 0 : index
    %767 = vector.load %arg5[%c0_169, %c0_170] : memref<128x512xbf16, #tpu.memory_space<vmem>>, vector<128x512xbf16>
    %cst_171 = arith.constant dense<0.000000e+00> : vector<16x512xf32>
    %768 = tpu.matmul %749, %767, %cst_171 {dimension_numbers = #tpu.dot_dimension_numbers<[1], [0], [0], [1], [0, 0, 1, 1], [], []>} : vector<16x128xbf16>, vector<128x512xbf16>, vector<16x512xf32> -> vector<16x512xf32>
    %769 = arith.extf %763 : vector<16x512xbf16> to vector<16x512xf32>
    %770 = arith.addf %769, %768 : vector<16x512xf32>
    %c0_172 = arith.constant 0 : index
    %c0_173 = arith.constant 0 : index
    %771 = vector.load %arg6[%c0_172, %c0_173] : memref<128x512xbf16, #tpu.memory_space<vmem>>, vector<128x512xbf16>
    %cst_174 = arith.constant dense<0.000000e+00> : vector<16x512xf32>
    %772 = tpu.matmul %756, %771, %cst_174 {dimension_numbers = #tpu.dot_dimension_numbers<[1], [0], [0], [1], [0, 0, 1, 1], [], []>} : vector<16x128xbf16>, vector<128x512xbf16>, vector<16x512xf32> -> vector<16x512xf32>
    %773 = arith.extf %766 : vector<16x512xbf16> to vector<16x512xf32>
    %774 = arith.addf %773, %772 : vector<16x512xf32>
    %775 = vector.extract_strided_slice %770 {offsets = [0, 0], sizes = [16, 128], strides = [1, 1]} : vector<16x512xf32> to vector<16x128xf32>
    %776 = arith.negf %775 : vector<16x128xf32>
    %777 = math.exp %776 : vector<16x128xf32>
    %cst_175 = arith.constant 1.000000e+00 : f32
    %778 = vector.broadcast %cst_175 : f32 to vector<16x128xf32>
    %779 = arith.addf %778, %777 : vector<16x128xf32>
    %780 = arith.divf %778, %779 : vector<16x128xf32>
    %781 = vector.extract_strided_slice %770 {offsets = [0, 128], sizes = [16, 128], strides = [1, 1]} : vector<16x512xf32> to vector<16x128xf32>
    %782 = arith.negf %781 : vector<16x128xf32>
    %783 = math.exp %782 : vector<16x128xf32>
    %cst_176 = arith.constant 1.000000e+00 : f32
    %784 = vector.broadcast %cst_176 : f32 to vector<16x128xf32>
    %785 = arith.addf %784, %783 : vector<16x128xf32>
    %786 = arith.divf %784, %785 : vector<16x128xf32>
    %787 = vector.extract_strided_slice %770 {offsets = [0, 256], sizes = [16, 128], strides = [1, 1]} : vector<16x512xf32> to vector<16x128xf32>
    %788 = math.tanh %787 : vector<16x128xf32>
    %789 = vector.extract_strided_slice %770 {offsets = [0, 384], sizes = [16, 128], strides = [1, 1]} : vector<16x512xf32> to vector<16x128xf32>
    %790 = arith.negf %789 : vector<16x128xf32>
    %791 = math.exp %790 : vector<16x128xf32>
    %cst_177 = arith.constant 1.000000e+00 : f32
    %792 = vector.broadcast %cst_177 : f32 to vector<16x128xf32>
    %793 = arith.addf %792, %791 : vector<16x128xf32>
    %794 = arith.divf %792, %793 : vector<16x128xf32>
    %795 = arith.mulf %786, %752 : vector<16x128xf32>
    %796 = arith.mulf %780, %788 : vector<16x128xf32>
    %797 = arith.addf %795, %796 : vector<16x128xf32>
    %798 = math.tanh %797 : vector<16x128xf32>
    %799 = arith.mulf %794, %798 : vector<16x128xf32>
    %800 = vector.extract_strided_slice %774 {offsets = [0, 0], sizes = [16, 128], strides = [1, 1]} : vector<16x512xf32> to vector<16x128xf32>
    %801 = arith.negf %800 : vector<16x128xf32>
    %802 = math.exp %801 : vector<16x128xf32>
    %cst_178 = arith.constant 1.000000e+00 : f32
    %803 = vector.broadcast %cst_178 : f32 to vector<16x128xf32>
    %804 = arith.addf %803, %802 : vector<16x128xf32>
    %805 = arith.divf %803, %804 : vector<16x128xf32>
    %806 = vector.extract_strided_slice %774 {offsets = [0, 128], sizes = [16, 128], strides = [1, 1]} : vector<16x512xf32> to vector<16x128xf32>
    %807 = arith.negf %806 : vector<16x128xf32>
    %808 = math.exp %807 : vector<16x128xf32>
    %cst_179 = arith.constant 1.000000e+00 : f32
    %809 = vector.broadcast %cst_179 : f32 to vector<16x128xf32>
    %810 = arith.addf %809, %808 : vector<16x128xf32>
    %811 = arith.divf %809, %810 : vector<16x128xf32>
    %812 = vector.extract_strided_slice %774 {offsets = [0, 256], sizes = [16, 128], strides = [1, 1]} : vector<16x512xf32> to vector<16x128xf32>
    %813 = math.tanh %812 : vector<16x128xf32>
    %814 = vector.extract_strided_slice %774 {offsets = [0, 384], sizes = [16, 128], strides = [1, 1]} : vector<16x512xf32> to vector<16x128xf32>
    %815 = arith.negf %814 : vector<16x128xf32>
    %816 = math.exp %815 : vector<16x128xf32>
    %cst_180 = arith.constant 1.000000e+00 : f32
    %817 = vector.broadcast %cst_180 : f32 to vector<16x128xf32>
    %818 = arith.addf %817, %816 : vector<16x128xf32>
    %819 = arith.divf %817, %818 : vector<16x128xf32>
    %820 = arith.mulf %811, %759 : vector<16x128xf32>
    %821 = arith.mulf %805, %813 : vector<16x128xf32>
    %822 = arith.addf %820, %821 : vector<16x128xf32>
    %823 = math.tanh %822 : vector<16x128xf32>
    %824 = arith.mulf %819, %823 : vector<16x128xf32>
    %825 = vector.broadcast %c9_i32 : i32 to vector<16x1xi32>
    %826 = arith.cmpi slt, %825, %10 : vector<16x1xi32>
    %827 = vector.broadcast %760 : i32 to vector<16x1xi32>
    %828 = arith.cmpi slt, %827, %10 : vector<16x1xi32>
    %829 = arith.truncf %799 : vector<16x128xf32> to vector<16x128xbf16>
    %830 = vector.shape_cast %826 : vector<16x1xi1> to vector<16x1xi1>
    %831 = vector.broadcast %830 : vector<16x1xi1> to vector<16x128xi1>
    %832 = arith.select %831, %829, %749 : vector<16x128xi1>, vector<16x128xbf16>
    %833 = vector.shape_cast %826 : vector<16x1xi1> to vector<16x1xi1>
    %834 = vector.broadcast %833 : vector<16x1xi1> to vector<16x128xi1>
    %835 = arith.select %834, %797, %752 : vector<16x128xi1>, vector<16x128xf32>
    %836 = arith.truncf %824 : vector<16x128xf32> to vector<16x128xbf16>
    %837 = vector.shape_cast %828 : vector<16x1xi1> to vector<16x1xi1>
    %838 = vector.broadcast %837 : vector<16x1xi1> to vector<16x128xi1>
    %839 = arith.select %838, %836, %756 : vector<16x128xi1>, vector<16x128xbf16>
    %840 = vector.shape_cast %828 : vector<16x1xi1> to vector<16x1xi1>
    %841 = vector.broadcast %840 : vector<16x1xi1> to vector<16x128xi1>
    %842 = arith.select %841, %822, %759 : vector<16x128xi1>, vector<16x128xf32>
    %c10_i32 = arith.constant 10 : i32
    %c11_i32_181 = arith.constant 11 : i32
    %843 = arith.subi %c11_i32_181, %c10_i32 : i32
    %844 = arith.index_cast %c10_i32 : i32 to index
    %c0_182 = arith.constant 0 : index
    %c0_183 = arith.constant 0 : index
    %845 = vector.load %arg10[%844, %c0_182, %c0_183] : memref<12x16x1024xbf16, #tpu.memory_space<vmem>>, vector<1x16x512xbf16>
    %846 = vector.shape_cast %845 : vector<1x16x512xbf16> to vector<16x512xbf16>
    %847 = arith.index_cast %843 : i32 to index
    %c0_184 = arith.constant 0 : index
    %c512_185 = arith.constant 512 : index
    %848 = vector.load %arg10[%847, %c0_184, %c512_185] : memref<12x16x1024xbf16, #tpu.memory_space<vmem>>, vector<1x16x512xbf16>
    %849 = vector.shape_cast %848 : vector<1x16x512xbf16> to vector<16x512xbf16>
    %c0_186 = arith.constant 0 : index
    %c0_187 = arith.constant 0 : index
    %850 = vector.load %arg5[%c0_186, %c0_187] : memref<128x512xbf16, #tpu.memory_space<vmem>>, vector<128x512xbf16>
    %cst_188 = arith.constant dense<0.000000e+00> : vector<16x512xf32>
    %851 = tpu.matmul %832, %850, %cst_188 {dimension_numbers = #tpu.dot_dimension_numbers<[1], [0], [0], [1], [0, 0, 1, 1], [], []>} : vector<16x128xbf16>, vector<128x512xbf16>, vector<16x512xf32> -> vector<16x512xf32>
    %852 = arith.extf %846 : vector<16x512xbf16> to vector<16x512xf32>
    %853 = arith.addf %852, %851 : vector<16x512xf32>
    %c0_189 = arith.constant 0 : index
    %c0_190 = arith.constant 0 : index
    %854 = vector.load %arg6[%c0_189, %c0_190] : memref<128x512xbf16, #tpu.memory_space<vmem>>, vector<128x512xbf16>
    %cst_191 = arith.constant dense<0.000000e+00> : vector<16x512xf32>
    %855 = tpu.matmul %839, %854, %cst_191 {dimension_numbers = #tpu.dot_dimension_numbers<[1], [0], [0], [1], [0, 0, 1, 1], [], []>} : vector<16x128xbf16>, vector<128x512xbf16>, vector<16x512xf32> -> vector<16x512xf32>
    %856 = arith.extf %849 : vector<16x512xbf16> to vector<16x512xf32>
    %857 = arith.addf %856, %855 : vector<16x512xf32>
    %858 = vector.extract_strided_slice %853 {offsets = [0, 0], sizes = [16, 128], strides = [1, 1]} : vector<16x512xf32> to vector<16x128xf32>
    %859 = arith.negf %858 : vector<16x128xf32>
    %860 = math.exp %859 : vector<16x128xf32>
    %cst_192 = arith.constant 1.000000e+00 : f32
    %861 = vector.broadcast %cst_192 : f32 to vector<16x128xf32>
    %862 = arith.addf %861, %860 : vector<16x128xf32>
    %863 = arith.divf %861, %862 : vector<16x128xf32>
    %864 = vector.extract_strided_slice %853 {offsets = [0, 128], sizes = [16, 128], strides = [1, 1]} : vector<16x512xf32> to vector<16x128xf32>
    %865 = arith.negf %864 : vector<16x128xf32>
    %866 = math.exp %865 : vector<16x128xf32>
    %cst_193 = arith.constant 1.000000e+00 : f32
    %867 = vector.broadcast %cst_193 : f32 to vector<16x128xf32>
    %868 = arith.addf %867, %866 : vector<16x128xf32>
    %869 = arith.divf %867, %868 : vector<16x128xf32>
    %870 = vector.extract_strided_slice %853 {offsets = [0, 256], sizes = [16, 128], strides = [1, 1]} : vector<16x512xf32> to vector<16x128xf32>
    %871 = math.tanh %870 : vector<16x128xf32>
    %872 = vector.extract_strided_slice %853 {offsets = [0, 384], sizes = [16, 128], strides = [1, 1]} : vector<16x512xf32> to vector<16x128xf32>
    %873 = arith.negf %872 : vector<16x128xf32>
    %874 = math.exp %873 : vector<16x128xf32>
    %cst_194 = arith.constant 1.000000e+00 : f32
    %875 = vector.broadcast %cst_194 : f32 to vector<16x128xf32>
    %876 = arith.addf %875, %874 : vector<16x128xf32>
    %877 = arith.divf %875, %876 : vector<16x128xf32>
    %878 = arith.mulf %869, %835 : vector<16x128xf32>
    %879 = arith.mulf %863, %871 : vector<16x128xf32>
    %880 = arith.addf %878, %879 : vector<16x128xf32>
    %881 = math.tanh %880 : vector<16x128xf32>
    %882 = arith.mulf %877, %881 : vector<16x128xf32>
    %883 = vector.extract_strided_slice %857 {offsets = [0, 0], sizes = [16, 128], strides = [1, 1]} : vector<16x512xf32> to vector<16x128xf32>
    %884 = arith.negf %883 : vector<16x128xf32>
    %885 = math.exp %884 : vector<16x128xf32>
    %cst_195 = arith.constant 1.000000e+00 : f32
    %886 = vector.broadcast %cst_195 : f32 to vector<16x128xf32>
    %887 = arith.addf %886, %885 : vector<16x128xf32>
    %888 = arith.divf %886, %887 : vector<16x128xf32>
    %889 = vector.extract_strided_slice %857 {offsets = [0, 128], sizes = [16, 128], strides = [1, 1]} : vector<16x512xf32> to vector<16x128xf32>
    %890 = arith.negf %889 : vector<16x128xf32>
    %891 = math.exp %890 : vector<16x128xf32>
    %cst_196 = arith.constant 1.000000e+00 : f32
    %892 = vector.broadcast %cst_196 : f32 to vector<16x128xf32>
    %893 = arith.addf %892, %891 : vector<16x128xf32>
    %894 = arith.divf %892, %893 : vector<16x128xf32>
    %895 = vector.extract_strided_slice %857 {offsets = [0, 256], sizes = [16, 128], strides = [1, 1]} : vector<16x512xf32> to vector<16x128xf32>
    %896 = math.tanh %895 : vector<16x128xf32>
    %897 = vector.extract_strided_slice %857 {offsets = [0, 384], sizes = [16, 128], strides = [1, 1]} : vector<16x512xf32> to vector<16x128xf32>
    %898 = arith.negf %897 : vector<16x128xf32>
    %899 = math.exp %898 : vector<16x128xf32>
    %cst_197 = arith.constant 1.000000e+00 : f32
    %900 = vector.broadcast %cst_197 : f32 to vector<16x128xf32>
    %901 = arith.addf %900, %899 : vector<16x128xf32>
    %902 = arith.divf %900, %901 : vector<16x128xf32>
    %903 = arith.mulf %894, %842 : vector<16x128xf32>
    %904 = arith.mulf %888, %896 : vector<16x128xf32>
    %905 = arith.addf %903, %904 : vector<16x128xf32>
    %906 = math.tanh %905 : vector<16x128xf32>
    %907 = arith.mulf %902, %906 : vector<16x128xf32>
    %908 = vector.broadcast %c10_i32 : i32 to vector<16x1xi32>
    %909 = arith.cmpi slt, %908, %10 : vector<16x1xi32>
    %910 = vector.broadcast %843 : i32 to vector<16x1xi32>
    %911 = arith.cmpi slt, %910, %10 : vector<16x1xi32>
    %912 = arith.truncf %882 : vector<16x128xf32> to vector<16x128xbf16>
    %913 = vector.shape_cast %909 : vector<16x1xi1> to vector<16x1xi1>
    %914 = vector.broadcast %913 : vector<16x1xi1> to vector<16x128xi1>
    %915 = arith.select %914, %912, %832 : vector<16x128xi1>, vector<16x128xbf16>
    %916 = vector.shape_cast %909 : vector<16x1xi1> to vector<16x1xi1>
    %917 = vector.broadcast %916 : vector<16x1xi1> to vector<16x128xi1>
    %918 = arith.select %917, %880, %835 : vector<16x128xi1>, vector<16x128xf32>
    %919 = arith.truncf %907 : vector<16x128xf32> to vector<16x128xbf16>
    %920 = vector.shape_cast %911 : vector<16x1xi1> to vector<16x1xi1>
    %921 = vector.broadcast %920 : vector<16x1xi1> to vector<16x128xi1>
    %922 = arith.select %921, %919, %839 : vector<16x128xi1>, vector<16x128xbf16>
    %923 = vector.shape_cast %911 : vector<16x1xi1> to vector<16x1xi1>
    %924 = vector.broadcast %923 : vector<16x1xi1> to vector<16x128xi1>
    %925 = arith.select %924, %905, %842 : vector<16x128xi1>, vector<16x128xf32>
    %c11_i32_198 = arith.constant 11 : i32
    %c11_i32_199 = arith.constant 11 : i32
    %926 = arith.subi %c11_i32_199, %c11_i32_198 : i32
    %927 = arith.index_cast %c11_i32_198 : i32 to index
    %c0_200 = arith.constant 0 : index
    %c0_201 = arith.constant 0 : index
    %928 = vector.load %arg10[%927, %c0_200, %c0_201] : memref<12x16x1024xbf16, #tpu.memory_space<vmem>>, vector<1x16x512xbf16>
    %929 = vector.shape_cast %928 : vector<1x16x512xbf16> to vector<16x512xbf16>
    %930 = arith.index_cast %926 : i32 to index
    %c0_202 = arith.constant 0 : index
    %c512_203 = arith.constant 512 : index
    %931 = vector.load %arg10[%930, %c0_202, %c512_203] : memref<12x16x1024xbf16, #tpu.memory_space<vmem>>, vector<1x16x512xbf16>
    %932 = vector.shape_cast %931 : vector<1x16x512xbf16> to vector<16x512xbf16>
    %c0_204 = arith.constant 0 : index
    %c0_205 = arith.constant 0 : index
    %933 = vector.load %arg5[%c0_204, %c0_205] : memref<128x512xbf16, #tpu.memory_space<vmem>>, vector<128x512xbf16>
    %cst_206 = arith.constant dense<0.000000e+00> : vector<16x512xf32>
    %934 = tpu.matmul %915, %933, %cst_206 {dimension_numbers = #tpu.dot_dimension_numbers<[1], [0], [0], [1], [0, 0, 1, 1], [], []>} : vector<16x128xbf16>, vector<128x512xbf16>, vector<16x512xf32> -> vector<16x512xf32>
    %935 = arith.extf %929 : vector<16x512xbf16> to vector<16x512xf32>
    %936 = arith.addf %935, %934 : vector<16x512xf32>
    %c0_207 = arith.constant 0 : index
    %c0_208 = arith.constant 0 : index
    %937 = vector.load %arg6[%c0_207, %c0_208] : memref<128x512xbf16, #tpu.memory_space<vmem>>, vector<128x512xbf16>
    %cst_209 = arith.constant dense<0.000000e+00> : vector<16x512xf32>
    %938 = tpu.matmul %922, %937, %cst_209 {dimension_numbers = #tpu.dot_dimension_numbers<[1], [0], [0], [1], [0, 0, 1, 1], [], []>} : vector<16x128xbf16>, vector<128x512xbf16>, vector<16x512xf32> -> vector<16x512xf32>
    %939 = arith.extf %932 : vector<16x512xbf16> to vector<16x512xf32>
    %940 = arith.addf %939, %938 : vector<16x512xf32>
    %941 = vector.extract_strided_slice %936 {offsets = [0, 0], sizes = [16, 128], strides = [1, 1]} : vector<16x512xf32> to vector<16x128xf32>
    %942 = arith.negf %941 : vector<16x128xf32>
    %943 = math.exp %942 : vector<16x128xf32>
    %cst_210 = arith.constant 1.000000e+00 : f32
    %944 = vector.broadcast %cst_210 : f32 to vector<16x128xf32>
    %945 = arith.addf %944, %943 : vector<16x128xf32>
    %946 = arith.divf %944, %945 : vector<16x128xf32>
    %947 = vector.extract_strided_slice %936 {offsets = [0, 128], sizes = [16, 128], strides = [1, 1]} : vector<16x512xf32> to vector<16x128xf32>
    %948 = arith.negf %947 : vector<16x128xf32>
    %949 = math.exp %948 : vector<16x128xf32>
    %cst_211 = arith.constant 1.000000e+00 : f32
    %950 = vector.broadcast %cst_211 : f32 to vector<16x128xf32>
    %951 = arith.addf %950, %949 : vector<16x128xf32>
    %952 = arith.divf %950, %951 : vector<16x128xf32>
    %953 = vector.extract_strided_slice %936 {offsets = [0, 256], sizes = [16, 128], strides = [1, 1]} : vector<16x512xf32> to vector<16x128xf32>
    %954 = math.tanh %953 : vector<16x128xf32>
    %955 = vector.extract_strided_slice %936 {offsets = [0, 384], sizes = [16, 128], strides = [1, 1]} : vector<16x512xf32> to vector<16x128xf32>
    %956 = arith.negf %955 : vector<16x128xf32>
    %957 = math.exp %956 : vector<16x128xf32>
    %cst_212 = arith.constant 1.000000e+00 : f32
    %958 = vector.broadcast %cst_212 : f32 to vector<16x128xf32>
    %959 = arith.addf %958, %957 : vector<16x128xf32>
    %960 = arith.divf %958, %959 : vector<16x128xf32>
    %961 = arith.mulf %952, %918 : vector<16x128xf32>
    %962 = arith.mulf %946, %954 : vector<16x128xf32>
    %963 = arith.addf %961, %962 : vector<16x128xf32>
    %964 = math.tanh %963 : vector<16x128xf32>
    %965 = arith.mulf %960, %964 : vector<16x128xf32>
    %966 = vector.extract_strided_slice %940 {offsets = [0, 0], sizes = [16, 128], strides = [1, 1]} : vector<16x512xf32> to vector<16x128xf32>
    %967 = arith.negf %966 : vector<16x128xf32>
    %968 = math.exp %967 : vector<16x128xf32>
    %cst_213 = arith.constant 1.000000e+00 : f32
    %969 = vector.broadcast %cst_213 : f32 to vector<16x128xf32>
    %970 = arith.addf %969, %968 : vector<16x128xf32>
    %971 = arith.divf %969, %970 : vector<16x128xf32>
    %972 = vector.extract_strided_slice %940 {offsets = [0, 128], sizes = [16, 128], strides = [1, 1]} : vector<16x512xf32> to vector<16x128xf32>
    %973 = arith.negf %972 : vector<16x128xf32>
    %974 = math.exp %973 : vector<16x128xf32>
    %cst_214 = arith.constant 1.000000e+00 : f32
    %975 = vector.broadcast %cst_214 : f32 to vector<16x128xf32>
    %976 = arith.addf %975, %974 : vector<16x128xf32>
    %977 = arith.divf %975, %976 : vector<16x128xf32>
    %978 = vector.extract_strided_slice %940 {offsets = [0, 256], sizes = [16, 128], strides = [1, 1]} : vector<16x512xf32> to vector<16x128xf32>
    %979 = math.tanh %978 : vector<16x128xf32>
    %980 = vector.extract_strided_slice %940 {offsets = [0, 384], sizes = [16, 128], strides = [1, 1]} : vector<16x512xf32> to vector<16x128xf32>
    %981 = arith.negf %980 : vector<16x128xf32>
    %982 = math.exp %981 : vector<16x128xf32>
    %cst_215 = arith.constant 1.000000e+00 : f32
    %983 = vector.broadcast %cst_215 : f32 to vector<16x128xf32>
    %984 = arith.addf %983, %982 : vector<16x128xf32>
    %985 = arith.divf %983, %984 : vector<16x128xf32>
    %986 = arith.mulf %977, %925 : vector<16x128xf32>
    %987 = arith.mulf %971, %979 : vector<16x128xf32>
    %988 = arith.addf %986, %987 : vector<16x128xf32>
    %989 = math.tanh %988 : vector<16x128xf32>
    %990 = arith.mulf %985, %989 : vector<16x128xf32>
    %991 = vector.broadcast %c11_i32_198 : i32 to vector<16x1xi32>
    %992 = arith.cmpi slt, %991, %10 : vector<16x1xi32>
    %993 = vector.broadcast %926 : i32 to vector<16x1xi32>
    %994 = arith.cmpi slt, %993, %10 : vector<16x1xi32>
    %995 = arith.truncf %965 : vector<16x128xf32> to vector<16x128xbf16>
    %996 = vector.shape_cast %992 : vector<16x1xi1> to vector<16x1xi1>
    %997 = vector.broadcast %996 : vector<16x1xi1> to vector<16x128xi1>
    %998 = arith.select %997, %995, %915 : vector<16x128xi1>, vector<16x128xbf16>
    %999 = vector.shape_cast %992 : vector<16x1xi1> to vector<16x1xi1>
    %1000 = vector.broadcast %999 : vector<16x1xi1> to vector<16x128xi1>
    %1001 = arith.select %1000, %963, %918 : vector<16x128xi1>, vector<16x128xf32>
    %1002 = arith.truncf %990 : vector<16x128xf32> to vector<16x128xbf16>
    %1003 = vector.shape_cast %994 : vector<16x1xi1> to vector<16x1xi1>
    %1004 = vector.broadcast %1003 : vector<16x1xi1> to vector<16x128xi1>
    %1005 = arith.select %1004, %1002, %922 : vector<16x128xi1>, vector<16x128xbf16>
    %1006 = vector.shape_cast %994 : vector<16x1xi1> to vector<16x1xi1>
    %1007 = vector.broadcast %1006 : vector<16x1xi1> to vector<16x128xi1>
    %1008 = arith.select %1007, %988, %925 : vector<16x128xi1>, vector<16x128xf32>
    %c12_i32 = arith.constant 12 : i32
    %1009 = tpu.concatenate %998, %1005 in 1 : vector<16x128xbf16>, vector<16x128xbf16> -> vector<16x256xbf16>
    %c0_216 = arith.constant 0 : index
    %c0_217 = arith.constant 0 : index
    %1010 = vector.load %arg7[%c0_216, %c0_217] : memref<256x128xbf16, #tpu.memory_space<vmem>>, vector<256x128xbf16>
    %cst_218 = arith.constant dense<0.000000e+00> : vector<16x128xf32>
    %1011 = tpu.matmul %1009, %1010, %cst_218 {dimension_numbers = #tpu.dot_dimension_numbers<[1], [0], [0], [1], [0, 0, 1, 1], [], []>} : vector<16x256xbf16>, vector<256x128xbf16>, vector<16x128xf32> -> vector<16x128xf32>
    %c0_219 = arith.constant 0 : index
    %c0_220 = arith.constant 0 : index
    %1012 = vector.load %arg8[%c0_219, %c0_220] : memref<1x128xf32, #tpu.memory_space<vmem>>, vector<1x128xf32>
    %1013 = vector.broadcast %1012 : vector<1x128xf32> to vector<16x128xf32>
    %1014 = arith.addf %1011, %1013 : vector<16x128xf32>
    %c0_221 = arith.constant 0 : index
    %c0_222 = arith.constant 0 : index
    %1015 = vector.load %arg9[%c0_221, %c0_222] : memref<16x128xf32, #tpu.memory_space<vmem>>, vector<16x128xf32>
    tpu.vector_store %arg9[%c0_221, %c0_222], %1014 {strides = array<i32>} : memref<16x128xf32, #tpu.memory_space<vmem>>, vector<16x128xf32>,
    return
  }
  func.func @transform_0(%arg0: i32) -> (i32, i32) {
    %c0_i32 = arith.constant 0 : i32
    %c0_i32_0 = arith.constant 0 : i32
    return %arg0, %c0_i32 : i32, i32
  }
  func.func @transform_1(%arg0: i32) -> (i32, i32, i32) {
    %c0_i32 = arith.constant 0 : i32
    %c0_i32_0 = arith.constant 0 : i32
    %c0_i32_1 = arith.constant 0 : i32
    return %c0_i32, %arg0, %c0_i32_0 : i32, i32, i32
  }
  func.func @transform_2(%arg0: i32) -> (i32, i32) {
    %c0_i32 = arith.constant 0 : i32
    %c0_i32_0 = arith.constant 0 : i32
    %c0_i32_1 = arith.constant 0 : i32
    return %c0_i32, %c0_i32_0 : i32, i32
  }
  func.func @transform_3(%arg0: i32) -> (i32, i32) {
    %c0_i32 = arith.constant 0 : i32
    %c0_i32_0 = arith.constant 0 : i32
    %c0_i32_1 = arith.constant 0 : i32
    return %c0_i32, %c0_i32_0 : i32, i32
  }
  func.func @transform_4(%arg0: i32) -> (i32, i32) {
    %c0_i32 = arith.constant 0 : i32
    %c0_i32_0 = arith.constant 0 : i32
    %c0_i32_1 = arith.constant 0 : i32
    return %c0_i32, %c0_i32_0 : i32, i32
  }
  func.func @transform_5(%arg0: i32) -> (i32, i32) {
    %c0_i32 = arith.constant 0 : i32
    %c0_i32_0 = arith.constant 0 : i32
    %c0_i32_1 = arith.constant 0 : i32
    return %c0_i32, %c0_i32_0 : i32, i32
  }
  func.func @transform_6(%arg0: i32) -> (i32, i32) {
    %c0_i32 = arith.constant 0 : i32
    %c0_i32_0 = arith.constant 0 : i32
    %c0_i32_1 = arith.constant 0 : i32
    return %c0_i32, %c0_i32_0 : i32, i32
  }
  func.func @transform_7(%arg0: i32) -> (i32, i32) {
    %c0_i32 = arith.constant 0 : i32
    %c0_i32_0 = arith.constant 0 : i32
    %c0_i32_1 = arith.constant 0 : i32
    return %c0_i32, %c0_i32_0 : i32, i32
  }
  func.func @transform_8(%arg0: i32) -> (i32, i32) {
    %c0_i32 = arith.constant 0 : i32
    %c0_i32_0 = arith.constant 0 : i32
    return %arg0, %c0_i32 : i32, i32
  }
}

</mosaic_0001>

<llo_original>
// kernel: tpu_custom_call.1
$region0: #{tpu_custom_call.1}
  #allocation0 [shape = 'u32[]', space=smem, size = 0x4, offset = 0x4, fixed_abs, tag = 'smem constant byte address 0x4 - core index']
  #allocation1 [shape = 'u32[72,128]{1,0:T(1,128)}', space=vmem, size = 0x9000, scoped, tag = 'internal scratch']
  #allocation2 [shape = 'bf16[12,16,1024]{2,1,0:T(8,128)(2,1)}', space=vmem, size = 0x60000, scoped, tag = 'scratch operand']
  %s0 = inlined_call_operand.vmem [shape: s32[16,1], index: 0, kind: input, shape index: {}]
  %s1 = inlined_call_operand.hbm [shape: bf16[12,16,128], index: 1, kind: input, shape index: {}]
  %s2 = inlined_call_operand.hbm [shape: bf16[128,1024], index: 2, kind: input, shape index: {}]
  %s3 = inlined_call_operand.vmem [shape: f32[1,1024], index: 3, kind: input, shape index: {}]
  %s4 = inlined_call_operand.hbm [shape: bf16[128,512], index: 4, kind: input, shape index: {}]
  %s5 = inlined_call_operand.hbm [shape: bf16[128,512], index: 5, kind: input, shape index: {}]
  %s6 = inlined_call_operand.hbm [shape: bf16[256,128], index: 6, kind: input, shape index: {}]
  %s7 = inlined_call_operand.vmem [shape: f32[1,128], index: 7, kind: input, shape index: {}]
  %s8 = inlined_call_operand.hbm [shape: f32[16,128], index: 8, kind: output, shape index: {}]
  %s9 = sld [smem:[#allocation0]]
  $region62: #{tpu_custom_call.1} parent=0
    _
  %s11 = ssub.s32 1, %s9
  %s12 = scalar_select 0, %s11, %s9
  $region1: #{tpu_custom_call.1} parent=0
    #allocation3 [shape = 'u8[49152]{0}', space=vmem, size = 0xc000, scoped, tag = 'input window, operand 1, single buffered']
    #allocation4 [shape = 's32[1]{0}', space=sflag, size = 0x4, scoped, tag = 'scoped memory for tpu_custom_call.1']
    #allocation5 [shape = 's32[1]{0}', space=sflag, size = 0x4, scoped, tag = 'scoped memory for tpu_custom_call.1']
    #allocation6 [shape = 'u8[262144]{0}', space=vmem, size = 0x40000, scoped, tag = 'input window, operand 2, single buffered']
    #allocation7 [shape = 's32[1]{0}', space=sflag, size = 0x4, scoped, tag = 'scoped memory for tpu_custom_call.1']
    #allocation8 [shape = 'u8[131072]{0}', space=vmem, size = 0x20000, scoped, tag = 'input window, operand 4, single buffered']
    #allocation9 [shape = 'u8[131072]{0}', space=vmem, size = 0x20000, scoped, tag = 'input window, operand 5, single buffered']
    #allocation10 [shape = 's32[1]{0}', space=sflag, size = 0x4, scoped, tag = 'scoped memory for tpu_custom_call.1']
    #allocation11 [shape = 'u8[65536]{0}', space=vmem, size = 0x10000, scoped, tag = 'input window, operand 6, single buffered']
    #allocation12 [shape = 'u8[8192]{0}', space=vmem, size = 0x2000, scoped, tag = 'output window, operand 0, single buffered']
    %13 = vsyncpa [#allocation4], 0
    %14 = vsyncpa [#allocation7], 0
    %15 = vsyncpa [#allocation10], 0
    %16 = vsyncpa [#allocation5], 0
    // Predicated region
    $region2: #{tpu_custom_call.1} parent=1 // pred_check
      _
    $region3: #{tpu_custom_call.1} parent=1 // pred_check_branch
      %18 = sbr.rel (0) target = $region5
    $region4: #{tpu_custom_call.1} parent=1 // pred_region
      _
    $region5: #{tpu_custom_call.1} parent=1 // pred_fallthru
      _
    // Predicated region
    $region6: #{tpu_custom_call.1} parent=1 // pred_check
      _
    $region7: #{tpu_custom_call.1} parent=1 // pred_check_branch
      %20 = sbr.rel (0) target = $region9
    $region8: #{tpu_custom_call.1} parent=1 // pred_region
      %22 = vsyncadd [#allocation4], 0
      %s23 = sshll.u32 %s1, 4
      %s24 = int_to_ptr.hbm [resolvable:$true] %s23
      %s25 = sshll.u32 [#allocation3], 4
      %s26 = int_to_ptr.vmem [resolvable:$true] %s25
      %31 = dma.hbm_to_vmem [thread:$0]  %s24, 1536, %s26, [#allocation4], 64, 64, 4
    $region9: #{tpu_custom_call.1} parent=1 // pred_fallthru
      _
    // Predicated region
    $region10: #{tpu_custom_call.1} parent=1 // pred_check
      _
    $region11: #{tpu_custom_call.1} parent=1 // pred_check_branch
      %33 = sbr.rel (0) target = $region13
    $region12: #{tpu_custom_call.1} parent=1 // pred_region
      %35 = vsyncadd [#allocation7], 0
      %s36 = sshll.u32 %s2, 4
      %s37 = int_to_ptr.hbm [resolvable:$true] %s36
      %s38 = sshll.u32 [#allocation6], 4
      %s39 = int_to_ptr.vmem [resolvable:$true] %s38
      %44 = dma.hbm_to_vmem [thread:$0]  %s37, 8192, %s39, [#allocation7], 512, 512, 32
    $region13: #{tpu_custom_call.1} parent=1 // pred_fallthru
      _
    // Predicated region
    $region14: #{tpu_custom_call.1} parent=1 // pred_check
      _
    $region15: #{tpu_custom_call.1} parent=1 // pred_check_branch
      %46 = sbr.rel (0) target = $region17
    $region16: #{tpu_custom_call.1} parent=1 // pred_region
      _
    $region17: #{tpu_custom_call.1} parent=1 // pred_fallthru
      _
    // Predicated region
    $region18: #{tpu_custom_call.1} parent=1 // pred_check
      _
    $region19: #{tpu_custom_call.1} parent=1 // pred_check_branch
      %48 = sbr.rel (0) target = $region21
    $region20: #{tpu_custom_call.1} parent=1 // pred_region
      %50 = vsyncadd [#allocation7], 0
      %s51 = sshll.u32 %s4, 4
      %s52 = int_to_ptr.hbm [resolvable:$true] %s51
      %s53 = sshll.u32 [#allocation8], 4
      %s54 = int_to_ptr.vmem [resolvable:$true] %s53
      %59 = dma.hbm_to_vmem [thread:$0]  %s52, 4096, %s54, [#allocation7], 256, 256, 16
    $region21: #{tpu_custom_call.1} parent=1 // pred_fallthru
      _
    // Predicated region
    $region22: #{tpu_custom_call.1} parent=1 // pred_check
      _
    $region23: #{tpu_custom_call.1} parent=1 // pred_check_branch
      %61 = sbr.rel (0) target = $region25
    $region24: #{tpu_custom_call.1} parent=1 // pred_region
      %63 = vsyncadd [#allocation10], 0
      %s64 = sshll.u32 %s5, 4
      %s65 = int_to_ptr.hbm [resolvable:$true] %s64
      %s66 = sshll.u32 [#allocation9], 4
      %s67 = int_to_ptr.vmem [resolvable:$true] %s66
      %72 = dma.hbm_to_vmem [thread:$0]  %s65, 4096, %s67, [#allocation10], 256, 256, 16
    $region25: #{tpu_custom_call.1} parent=1 // pred_fallthru
      _
    // Predicated region
    $region26: #{tpu_custom_call.1} parent=1 // pred_check
      _
    $region27: #{tpu_custom_call.1} parent=1 // pred_check_branch
      %74 = sbr.rel (0) target = $region29
    $region28: #{tpu_custom_call.1} parent=1 // pred_region
      %76 = vsyncadd [#allocation10], 0
      %s77 = sshll.u32 %s6, 4
      %s78 = int_to_ptr.hbm [resolvable:$true] %s77
      %s79 = sshll.u32 [#allocation11], 4
      %s80 = int_to_ptr.vmem [resolvable:$true] %s79
      %85 = dma.hbm_to_vmem [thread:$0]  %s78, 2048, %s80, [#allocation10], 64, 64, 4
    $region29: #{tpu_custom_call.1} parent=1 // pred_fallthru
      _
    // Predicated region
    $region30: #{tpu_custom_call.1} parent=1 // pred_check
      _
    $region31: #{tpu_custom_call.1} parent=1 // pred_check_branch
      %87 = sbr.rel (0) target = $region33
    $region32: #{tpu_custom_call.1} parent=1 // pred_region
      _
    $region33: #{tpu_custom_call.1} parent=1 // pred_fallthru
      _
    // Predicated region
    $region34: #{tpu_custom_call.1} parent=1 // pred_check
      _
    $region35: #{tpu_custom_call.1} parent=1 // pred_check_branch
      %89 = sbr.rel (0) target = $region37
    $region36: #{tpu_custom_call.1} parent=1 // pred_region
      %91 = dma.done [#allocation4], 1536
    $region37: #{tpu_custom_call.1} parent=1 // pred_fallthru
      _
    // Predicated region
    $region38: #{tpu_custom_call.1} parent=1 // pred_check
      _
    $region39: #{tpu_custom_call.1} parent=1 // pred_check_branch
      %93 = sbr.rel (0) target = $region41
    $region40: #{tpu_custom_call.1} parent=1 // pred_region
      %95 = dma.done [#allocation7], 8192
    $region41: #{tpu_custom_call.1} parent=1 // pred_fallthru
      _
    // Predicated region
    $region42: #{tpu_custom_call.1} parent=1 // pred_check
      _
    $region43: #{tpu_custom_call.1} parent=1 // pred_check_branch
      %97 = sbr.rel (0) target = $region45
    $region44: #{tpu_custom_call.1} parent=1 // pred_region
      %99 = dma.done [#allocation7], 4096
    $region45: #{tpu_custom_call.1} parent=1 // pred_fallthru
      _
    // Predicated region
    $region46: #{tpu_custom_call.1} parent=1 // pred_check
      _
    $region47: #{tpu_custom_call.1} parent=1 // pred_check_branch
      %101 = sbr.rel (0) target = $region49
    $region48: #{tpu_custom_call.1} parent=1 // pred_region
      %103 = dma.done [#allocation10], 4096
    $region49: #{tpu_custom_call.1} parent=1 // pred_fallthru
      _
    // Predicated region
    $region50: #{tpu_custom_call.1} parent=1 // pred_check
      _
    $region51: #{tpu_custom_call.1} parent=1 // pred_check_branch
      %105 = sbr.rel (0) target = $region53
    $region52: #{tpu_custom_call.1} parent=1 // pred_region
      %107 = dma.done [#allocation10], 2048
    $region53: #{tpu_custom_call.1} parent=1 // pred_fallthru
      _
    %v109 = vld [vmem:[#allocation3] sm:$0xf]
    %v110 = vld [vmem:[#allocation3 + $0x4] sm:$0xf]
    %v111 = vld [vmem:[#allocation3 + $0x8] sm:$0xf]
    %v112 = vld [vmem:[#allocation3 + $0xc] sm:$0xf]
    %v113 = vld [vmem:[#allocation3 + $0x10] sm:$0xf]
    %v114 = vld [vmem:[#allocation3 + $0x14] sm:$0xf]
    %v115 = vld [vmem:[#allocation3 + $0x18] sm:$0xf]
    %v116 = vld [vmem:[#allocation3 + $0x1c] sm:$0xf]
    %v117 = vld [vmem:[#allocation3 + $0x20] sm:$0xf]
    %v118 = vld [vmem:[#allocation3 + $0x24] sm:$0xf]
    %v119 = vld [vmem:[#allocation3 + $0x28] sm:$0xf]
    %v120 = vld [vmem:[#allocation3 + $0x2c] sm:$0xf]
    %v121 = vld [vmem:[#allocation3 + $0x30] sm:$0xf]
    %v122 = vld [vmem:[#allocation3 + $0x34] sm:$0xf]
    %v123 = vld [vmem:[#allocation3 + $0x38] sm:$0xf]
    %v124 = vld [vmem:[#allocation3 + $0x3c] sm:$0xf]
    %v125 = vld [vmem:[#allocation3 + $0x40] sm:$0xf]
    %v126 = vld [vmem:[#allocation3 + $0x44] sm:$0xf]
    %v127 = vld [vmem:[#allocation3 + $0x48] sm:$0xf]
    %v128 = vld [vmem:[#allocation3 + $0x4c] sm:$0xf]
    %v129 = vld [vmem:[#allocation3 + $0x50] sm:$0xf]
    %v130 = vld [vmem:[#allocation3 + $0x54] sm:$0xf]
    %v131 = vld [vmem:[#allocation3 + $0x58] sm:$0xf]
    %v132 = vld [vmem:[#allocation3 + $0x5c] sm:$0xf]
    %v133 = vld [vmem:[#allocation6] sm:$0xff]
    %v134 = vld [vmem:[#allocation6 + $0x8] sm:$0xff]
    %v135 = vld [vmem:[#allocation6 + $0x10] sm:$0xff]
    %v136 = vld [vmem:[#allocation6 + $0x18] sm:$0xff]
    %v137 = vld [vmem:[#allocation6 + $0x20] sm:$0xff]
    %v138 = vld [vmem:[#allocation6 + $0x28] sm:$0xff]
    %v139 = vld [vmem:[#allocation6 + $0x30] sm:$0xff]
    %v140 = vld [vmem:[#allocation6 + $0x38] sm:$0xff]
    %v141 = vld [vmem:[#allocation6 + $0x40] sm:$0xff]
    %v142 = vld [vmem:[#allocation6 + $0x48] sm:$0xff]
    %v143 = vld [vmem:[#allocation6 + $0x50] sm:$0xff]
    %v144 = vld [vmem:[#allocation6 + $0x58] sm:$0xff]
    %v145 = vld [vmem:[#allocation6 + $0x60] sm:$0xff]
    %v146 = vld [vmem:[#allocation6 + $0x68] sm:$0xff]
    %v147 = vld [vmem:[#allocation6 + $0x70] sm:$0xff]
    %v148 = vld [vmem:[#allocation6 + $0x78] sm:$0xff]
    %v149 = vld [vmem:[#allocation6 + $0x80] sm:$0xff]
    %v150 = vld [vmem:[#allocation6 + $0x88] sm:$0xff]
    %v151 = vld [vmem:[#allocation6 + $0x90] sm:$0xff]
    %v152 = vld [vmem:[#allocation6 + $0x98] sm:$0xff]
    %v153 = vld [vmem:[#allocation6 + $0xa0] sm:$0xff]
    %v154 = vld [vmem:[#allocation6 + $0xa8] sm:$0xff]
    %v155 = vld [vmem:[#allocation6 + $0xb0] sm:$0xff]
    %v156 = vld [vmem:[#allocation6 + $0xb8] sm:$0xff]
    %v157 = vld [vmem:[#allocation6 + $0xc0] sm:$0xff]
    %v158 = vld [vmem:[#allocation6 + $0xc8] sm:$0xff]
    %v159 = vld [vmem:[#allocation6 + $0xd0] sm:$0xff]
    %v160 = vld [vmem:[#allocation6 + $0xd8] sm:$0xff]
    %v161 = vld [vmem:[#allocation6 + $0xe0] sm:$0xff]
    %v162 = vld [vmem:[#allocation6 + $0xe8] sm:$0xff]
    %v163 = vld [vmem:[#allocation6 + $0xf0] sm:$0xff]
    %v164 = vld [vmem:[#allocation6 + $0xf8] sm:$0xff]
    %v165 = vld [vmem:[#allocation6 + $0x100] sm:$0xff]
    %v166 = vld [vmem:[#allocation6 + $0x108] sm:$0xff]
    %v167 = vld [vmem:[#allocation6 + $0x110] sm:$0xff]
    %v168 = vld [vmem:[#allocation6 + $0x118] sm:$0xff]
    %v169 = vld [vmem:[#allocation6 + $0x120] sm:$0xff]
    %v170 = vld [vmem:[#allocation6 + $0x128] sm:$0xff]
    %v171 = vld [vmem:[#allocation6 + $0x130] sm:$0xff]
    %v172 = vld [vmem:[#allocation6 + $0x138] sm:$0xff]
    %v173 = vld [vmem:[#allocation6 + $0x140] sm:$0xff]
    %v174 = vld [vmem:[#allocation6 + $0x148] sm:$0xff]
    %v175 = vld [vmem:[#allocation6 + $0x150] sm:$0xff]
    %v176 = vld [vmem:[#allocation6 + $0x158] sm:$0xff]
    %v177 = vld [vmem:[#allocation6 + $0x160] sm:$0xff]
    %v178 = vld [vmem:[#allocation6 + $0x168] sm:$0xff]
    %v179 = vld [vmem:[#allocation6 + $0x170] sm:$0xff]
    %v180 = vld [vmem:[#allocation6 + $0x178] sm:$0xff]
    %v181 = vld [vmem:[#allocation6 + $0x180] sm:$0xff]
    %v182 = vld [vmem:[#allocation6 + $0x188] sm:$0xff]
    %v183 = vld [vmem:[#allocation6 + $0x190] sm:$0xff]
    %v184 = vld [vmem:[#allocation6 + $0x198] sm:$0xff]
    %v185 = vld [vmem:[#allocation6 + $0x1a0] sm:$0xff]
    %v186 = vld [vmem:[#allocation6 + $0x1a8] sm:$0xff]
    %v187 = vld [vmem:[#allocation6 + $0x1b0] sm:$0xff]
    %v188 = vld [vmem:[#allocation6 + $0x1b8] sm:$0xff]
    %v189 = vld [vmem:[#allocation6 + $0x1c0] sm:$0xff]
    %v190 = vld [vmem:[#allocation6 + $0x1c8] sm:$0xff]
    %v191 = vld [vmem:[#allocation6 + $0x1d0] sm:$0xff]
    %v192 = vld [vmem:[#allocation6 + $0x1d8] sm:$0xff]
    %v193 = vld [vmem:[#allocation6 + $0x1e0] sm:$0xff]
    %v194 = vld [vmem:[#allocation6 + $0x1e8] sm:$0xff]
    %v195 = vld [vmem:[#allocation6 + $0x1f0] sm:$0xff]
    %v196 = vld [vmem:[#allocation6 + $0x1f8] sm:$0xff]
    %v197 = vld [vmem:[%s3] sm:$0xff]
    %v199 = vperm.slane %v197, 0
    %v200 = vperm.slane %v197, 1
    %v201 = vperm.slane %v197, 2
    %v202 = vperm.slane %v197, 3
    %v203 = vperm.slane %v197, 4
    %v204 = vperm.slane %v197, 5
    %v205 = vperm.slane %v197, 6
    %v206 = vperm.slane %v197, 7
    %v239 = vunpack.c.l.b16 %v109
    %v240 = vunpack.c.l.b16 %v110
    %v241 = vunpack.c.l.b16 %v111
    %v242 = vunpack.c.l.b16 %v112
    %v243 = vunpack.c.l.b16 %v113
    %v244 = vunpack.c.l.b16 %v114
    %v245 = vunpack.c.l.b16 %v115
    %v246 = vunpack.c.l.b16 %v116
    %v247 = vunpack.c.l.b16 %v117
    %v248 = vunpack.c.l.b16 %v118
    %v249 = vunpack.c.l.b16 %v119
    %v250 = vunpack.c.l.b16 %v120
    %v251 = vunpack.c.l.b16 %v121
    %v252 = vunpack.c.l.b16 %v122
    %v253 = vunpack.c.l.b16 %v123
    %v254 = vunpack.c.l.b16 %v124
    %v255 = vunpack.c.l.b16 %v125
    %v256 = vunpack.c.l.b16 %v126
    %v257 = vunpack.c.l.b16 %v127
    %v258 = vunpack.c.l.b16 %v128
    %v259 = vunpack.c.l.b16 %v129
    %v260 = vunpack.c.l.b16 %v130
    %v261 = vunpack.c.l.b16 %v131
    %v262 = vunpack.c.l.b16 %v132
    %v263 = vpack.c.b16 %v240, %v239
    %v264 = vpack.c.b16 %v242, %v241
    %v265 = vpack.c.b16 %v244, %v243
    %v266 = vpack.c.b16 %v246, %v245
    %v267 = vpack.c.b16 %v248, %v247
    %v268 = vpack.c.b16 %v250, %v249
    %v269 = vpack.c.b16 %v252, %v251
    %v270 = vpack.c.b16 %v254, %v253
    %v271 = vpack.c.b16 %v256, %v255
    %v272 = vpack.c.b16 %v258, %v257
    %v273 = vpack.c.b16 %v260, %v259
    %v274 = vpack.c.b16 %v262, %v261
    %v351 = vunpack.c.l.b16 %v133
    %v352 = vunpack.c.h.b16 %v133
    %v353 = vunpack.c.l.b16 %v134
    %v354 = vunpack.c.h.b16 %v134
    %v355 = vunpack.c.l.b16 %v135
    %v356 = vunpack.c.h.b16 %v135
    %v357 = vunpack.c.l.b16 %v136
    %v358 = vunpack.c.h.b16 %v136
    %v359 = vunpack.c.l.b16 %v137
    %v360 = vunpack.c.h.b16 %v137
    %v361 = vunpack.c.l.b16 %v138
    %v362 = vunpack.c.h.b16 %v138
    %v363 = vunpack.c.l.b16 %v139
    %v364 = vunpack.c.h.b16 %v139
    %v365 = vunpack.c.l.b16 %v140
    %v366 = vunpack.c.h.b16 %v140
    %v367 = vunpack.c.l.b16 %v141
    %v368 = vunpack.c.h.b16 %v141
    %v369 = vunpack.c.l.b16 %v142
    %v370 = vunpack.c.h.b16 %v142
    %v371 = vunpack.c.l.b16 %v143
    %v372 = vunpack.c.h.b16 %v143
    %v373 = vunpack.c.l.b16 %v144
    %v374 = vunpack.c.h.b16 %v144
    %v375 = vunpack.c.l.b16 %v145
    %v376 = vunpack.c.h.b16 %v145
    %v377 = vunpack.c.l.b16 %v146
    %v378 = vunpack.c.h.b16 %v146
    %v379 = vunpack.c.l.b16 %v147
    %v380 = vunpack.c.h.b16 %v147
    %v381 = vunpack.c.l.b16 %v148
    %v382 = vunpack.c.h.b16 %v148
    %v383 = vunpack.c.l.b16 %v149
    %v384 = vunpack.c.h.b16 %v149
    %v385 = vunpack.c.l.b16 %v150
    %v386 = vunpack.c.h.b16 %v150
    %v387 = vunpack.c.l.b16 %v151
    %v388 = vunpack.c.h.b16 %v151
    %v389 = vunpack.c.l.b16 %v152
    %v390 = vunpack.c.h.b16 %v152
    %v391 = vunpack.c.l.b16 %v153
    %v392 = vunpack.c.h.b16 %v153
    %v393 = vunpack.c.l.b16 %v154
    %v394 = vunpack.c.h.b16 %v154
    %v395 = vunpack.c.l.b16 %v155
    %v396 = vunpack.c.h.b16 %v155
    %v397 = vunpack.c.l.b16 %v156
    %v398 = vunpack.c.h.b16 %v156
    %v399 = vunpack.c.l.b16 %v157
    %v400 = vunpack.c.h.b16 %v157
    %v401 = vunpack.c.l.b16 %v158
    %v402 = vunpack.c.h.b16 %v158
    %v403 = vunpack.c.l.b16 %v159
    %v404 = vunpack.c.h.b16 %v159
    %v405 = vunpack.c.l.b16 %v160
    %v406 = vunpack.c.h.b16 %v160
    %v407 = vunpack.c.l.b16 %v161
    %v408 = vunpack.c.h.b16 %v161
    %v409 = vunpack.c.l.b16 %v162
    %v410 = vunpack.c.h.b16 %v162
    %v411 = vunpack.c.l.b16 %v163
    %v412 = vunpack.c.h.b16 %v163
    %v413 = vunpack.c.l.b16 %v164
    %v414 = vunpack.c.h.b16 %v164
    %v415 = vunpack.c.l.b16 %v165
    %v416 = vunpack.c.h.b16 %v165
    %v417 = vunpack.c.l.b16 %v166
    %v418 = vunpack.c.h.b16 %v166
    %v419 = vunpack.c.l.b16 %v167
    %v420 = vunpack.c.h.b16 %v167
    %v421 = vunpack.c.l.b16 %v168
    %v422 = vunpack.c.h.b16 %v168
    %v423 = vunpack.c.l.b16 %v169
    %v424 = vunpack.c.h.b16 %v169
    %v425 = vunpack.c.l.b16 %v170
    %v426 = vunpack.c.h.b16 %v170
    %v427 = vunpack.c.l.b16 %v171
    %v428 = vunpack.c.h.b16 %v171
    %v429 = vunpack.c.l.b16 %v172
    %v430 = vunpack.c.h.b16 %v172
    %v431 = vunpack.c.l.b16 %v173
    %v432 = vunpack.c.h.b16 %v173
    %v433 = vunpack.c.l.b16 %v174
    %v434 = vunpack.c.h.b16 %v174
    %v435 = vunpack.c.l.b16 %v175
    %v436 = vunpack.c.h.b16 %v175
    %v437 = vunpack.c.l.b16 %v176
    %v438 = vunpack.c.h.b16 %v176
    %v439 = vunpack.c.l.b16 %v177
    %v440 = vunpack.c.h.b16 %v177
    %v441 = vunpack.c.l.b16 %v178
    %v442 = vunpack.c.h.b16 %v178
    %v443 = vunpack.c.l.b16 %v179
    %v444 = vunpack.c.h.b16 %v179
    %v445 = vunpack.c.l.b16 %v180
    %v446 = vunpack.c.h.b16 %v180
    %v447 = vunpack.c.l.b16 %v181
    %v448 = vunpack.c.h.b16 %v181
    %v449 = vunpack.c.l.b16 %v182
    %v450 = vunpack.c.h.b16 %v182
    %v451 = vunpack.c.l.b16 %v183
    %v452 = vunpack.c.h.b16 %v183
    %v453 = vunpack.c.l.b16 %v184
    %v454 = vunpack.c.h.b16 %v184
    %v455 = vunpack.c.l.b16 %v185
    %v456 = vunpack.c.h.b16 %v185
    %v457 = vunpack.c.l.b16 %v186
    %v458 = vunpack.c.h.b16 %v186
    %v459 = vunpack.c.l.b16 %v187
    %v460 = vunpack.c.h.b16 %v187
    %v461 = vunpack.c.l.b16 %v188
    %v462 = vunpack.c.h.b16 %v188
    %v463 = vunpack.c.l.b16 %v189
    %v464 = vunpack.c.h.b16 %v189
    %v465 = vunpack.c.l.b16 %v190
    %v466 = vunpack.c.h.b16 %v190
    %v467 = vunpack.c.l.b16 %v191
    %v468 = vunpack.c.h.b16 %v191
    %v469 = vunpack.c.l.b16 %v192
    %v470 = vunpack.c.h.b16 %v192
    %v471 = vunpack.c.l.b16 %v193
    %v472 = vunpack.c.h.b16 %v193
    %v473 = vunpack.c.l.b16 %v194
    %v474 = vunpack.c.h.b16 %v194
    %v475 = vunpack.c.l.b16 %v195
    %v476 = vunpack.c.h.b16 %v195
    %v477 = vunpack.c.l.b16 %v196
    %v478 = vunpack.c.h.b16 %v196
    %v479 = vpack.c.b16 %v359, %v351
    %v480 = vpack.c.b16 %v360, %v352
    %v481 = vpack.c.b16 %v361, %v353
    %v482 = vpack.c.b16 %v362, %v354
    %v483 = vpack.c.b16 %v363, %v355
    %v484 = vpack.c.b16 %v364, %v356
    %v485 = vpack.c.b16 %v365, %v357
    %v486 = vpack.c.b16 %v366, %v358
    %v487 = vpack.c.b16 %v375, %v367
    %v488 = vpack.c.b16 %v376, %v368
    %v489 = vpack.c.b16 %v377, %v369
    %v490 = vpack.c.b16 %v378, %v370
    %v491 = vpack.c.b16 %v379, %v371
    %v492 = vpack.c.b16 %v380, %v372
    %v493 = vpack.c.b16 %v381, %v373
    %v494 = vpack.c.b16 %v382, %v374
    %v495 = vpack.c.b16 %v391, %v383
    %v496 = vpack.c.b16 %v392, %v384
    %v497 = vpack.c.b16 %v393, %v385
    %v498 = vpack.c.b16 %v394, %v386
    %v499 = vpack.c.b16 %v395, %v387
    %v500 = vpack.c.b16 %v396, %v388
    %v501 = vpack.c.b16 %v397, %v389
    %v502 = vpack.c.b16 %v398, %v390
    %v503 = vpack.c.b16 %v407, %v399
    %v504 = vpack.c.b16 %v408, %v400
    %v505 = vpack.c.b16 %v409, %v401
    %v506 = vpack.c.b16 %v410, %v402
    %v507 = vpack.c.b16 %v411, %v403
    %v508 = vpack.c.b16 %v412, %v404
    %v509 = vpack.c.b16 %v413, %v405
    %v510 = vpack.c.b16 %v414, %v406
    %v511 = vpack.c.b16 %v423, %v415
    %v512 = vpack.c.b16 %v424, %v416
    %v513 = vpack.c.b16 %v425, %v417
    %v514 = vpack.c.b16 %v426, %v418
    %v515 = vpack.c.b16 %v427, %v419
    %v516 = vpack.c.b16 %v428, %v420
    %v517 = vpack.c.b16 %v429, %v421
    %v518 = vpack.c.b16 %v430, %v422
    %v519 = vpack.c.b16 %v439, %v431
    %v520 = vpack.c.b16 %v440, %v432
    %v521 = vpack.c.b16 %v441, %v433
    %v522 = vpack.c.b16 %v442, %v434
    %v523 = vpack.c.b16 %v443, %v435
    %v524 = vpack.c.b16 %v444, %v436
    %v525 = vpack.c.b16 %v445, %v437
    %v526 = vpack.c.b16 %v446, %v438
    %v527 = vpack.c.b16 %v455, %v447
    %v528 = vpack.c.b16 %v456, %v448
    %v529 = vpack.c.b16 %v457, %v449
    %v530 = vpack.c.b16 %v458, %v450
    %v531 = vpack.c.b16 %v459, %v451
    %v532 = vpack.c.b16 %v460, %v452
    %v533 = vpack.c.b16 %v461, %v453
    %v534 = vpack.c.b16 %v462, %v454
    %v535 = vpack.c.b16 %v471, %v463
    %v536 = vpack.c.b16 %v472, %v464
    %v537 = vpack.c.b16 %v473, %v465
    %v538 = vpack.c.b16 %v474, %v466
    %v539 = vpack.c.b16 %v475, %v467
    %v540 = vpack.c.b16 %v476, %v468
    %v541 = vpack.c.b16 %v477, %v469
    %v542 = vpack.c.b16 %v478, %v470
    %607 = vmatpush.bf16.msra.mxu0 %v535
    %608 = vmatpush.bf16.msra.mxu0 %v527
    %609 = vmatpush.bf16.msra.mxu0 %v519
    %610 = vmatpush.bf16.msra.mxu0 %v511
    %611 = vmatpush.bf16.msra.mxu0 %v503
    %612 = vmatpush.bf16.msra.mxu0 %v495
    %613 = vmatpush.bf16.msra.mxu0 %v487
    %614 = vmatpush.bf16.msra.mxu0 %v479
    %615 = vmatmul.bf16.gmra.mxu0 %v263
    %v616 = vpop.f32.mrf.mxu0
    %v617 = vadd.f32 %v199, %v616
    %v618 = vpop.f32.mrf.mxu0
    %v619 = vadd.f32 %v199, %v618
    %620 = vmatmul.bf16.gmra.mxu0 %v264
    %v621 = vpop.f32.mrf.mxu0
    %v622 = vadd.f32 %v199, %v621
    %v623 = vpop.f32.mrf.mxu0
    %v624 = vadd.f32 %v199, %v623
    %625 = vmatmul.bf16.gmra.mxu0 %v265
    %v626 = vpop.f32.mrf.mxu0
    %v627 = vadd.f32 %v199, %v626
    %v628 = vpop.f32.mrf.mxu0
    %v629 = vadd.f32 %v199, %v628
    %630 = vmatmul.bf16.gmra.mxu0 %v266
    %v631 = vpop.f32.mrf.mxu0
    %v632 = vadd.f32 %v199, %v631
    %v633 = vpop.f32.mrf.mxu0
    %v634 = vadd.f32 %v199, %v633
    %635 = vmatmul.bf16.gmra.mxu0 %v267
    %v636 = vpop.f32.mrf.mxu0
    %v637 = vadd.f32 %v199, %v636
    %v638 = vpop.f32.mrf.mxu0
    %v639 = vadd.f32 %v199, %v638
    %640 = vmatmul.bf16.gmra.mxu0 %v268
    %v641 = vpop.f32.mrf.mxu0
    %v642 = vadd.f32 %v199, %v641
    %v643 = vpop.f32.mrf.mxu0
    %v644 = vadd.f32 %v199, %v643
    %645 = vmatmul.bf16.gmra.mxu0 %v269
    %v646 = vpop.f32.mrf.mxu0
    %v647 = vadd.f32 %v199, %v646
    %v648 = vpop.f32.mrf.mxu0
    %v649 = vadd.f32 %v199, %v648
    %650 = vmatmul.bf16.gmra.mxu0 %v270
    %v651 = vpop.f32.mrf.mxu0
    %v652 = vadd.f32 %v199, %v651
    %v653 = vpop.f32.mrf.mxu0
    %v654 = vadd.f32 %v199, %v653
    %655 = vmatmul.bf16.gmra.mxu0 %v271
    %v656 = vpop.f32.mrf.mxu0
    %v657 = vadd.f32 %v199, %v656
    %v658 = vpop.f32.mrf.mxu0
    %v659 = vadd.f32 %v199, %v658
    %660 = vmatmul.bf16.gmra.mxu0 %v272
    %v661 = vpop.f32.mrf.mxu0
    %v662 = vadd.f32 %v199, %v661
    %v663 = vpop.f32.mrf.mxu0
    %v664 = vadd.f32 %v199, %v663
    %665 = vmatmul.bf16.gmra.mxu0 %v273
    %v666 = vpop.f32.mrf.mxu0
    %v667 = vadd.f32 %v199, %v666
    %v668 = vpop.f32.mrf.mxu0
    %v669 = vadd.f32 %v199, %v668
    %670 = vmatmul.bf16.gmra.mxu0 %v274
    %v671 = vpop.f32.mrf.mxu0
    %v672 = vadd.f32 %v199, %v671
    %v673 = vpop.f32.mrf.mxu0
    %v674 = vadd.f32 %v199, %v673
    %675 = vdwg.mxu0
    %676 = vmatpush.bf16.msra.mxu0 %v536
    %677 = vmatpush.bf16.msra.mxu0 %v528
    %678 = vmatpush.bf16.msra.mxu0 %v520
    %679 = vmatpush.bf16.msra.mxu0 %v512
    %680 = vmatpush.bf16.msra.mxu0 %v504
    %681 = vmatpush.bf16.msra.mxu0 %v496
    %682 = vmatpush.bf16.msra.mxu0 %v488
    %683 = vmatpush.bf16.msra.mxu0 %v480
    %684 = vmatmul.bf16.gmra.mxu0 %v263
    %v685 = vpop.f32.mrf.mxu0
    %v686 = vadd.f32 %v200, %v685
    %v687 = vpop.f32.mrf.mxu0
    %v688 = vadd.f32 %v200, %v687
    %689 = vmatmul.bf16.gmra.mxu0 %v264
    %v690 = vpop.f32.mrf.mxu0
    %v691 = vadd.f32 %v200, %v690
    %v692 = vpop.f32.mrf.mxu0
    %v693 = vadd.f32 %v200, %v692
    %694 = vmatmul.bf16.gmra.mxu0 %v265
    %v695 = vpop.f32.mrf.mxu0
    %v696 = vadd.f32 %v200, %v695
    %v697 = vpop.f32.mrf.mxu0
    %v698 = vadd.f32 %v200, %v697
    %699 = vmatmul.bf16.gmra.mxu0 %v266
    %v700 = vpop.f32.mrf.mxu0
    %v701 = vadd.f32 %v200, %v700
    %v702 = vpop.f32.mrf.mxu0
    %v703 = vadd.f32 %v200, %v702
    %704 = vmatmul.bf16.gmra.mxu0 %v267
    %v705 = vpop.f32.mrf.mxu0
    %v706 = vadd.f32 %v200, %v705
    %v707 = vpop.f32.mrf.mxu0
    %v708 = vadd.f32 %v200, %v707
    %709 = vmatmul.bf16.gmra.mxu0 %v268
    %v710 = vpop.f32.mrf.mxu0
    %v711 = vadd.f32 %v200, %v710
    %v712 = vpop.f32.mrf.mxu0
    %v713 = vadd.f32 %v200, %v712
    %714 = vmatmul.bf16.gmra.mxu0 %v269
    %v715 = vpop.f32.mrf.mxu0
    %v716 = vadd.f32 %v200, %v715
    %v717 = vpop.f32.mrf.mxu0
    %v718 = vadd.f32 %v200, %v717
    %719 = vmatmul.bf16.gmra.mxu0 %v270
    %v720 = vpop.f32.mrf.mxu0
    %v721 = vadd.f32 %v200, %v720
    %v722 = vpop.f32.mrf.mxu0
    %v723 = vadd.f32 %v200, %v722
    %724 = vmatmul.bf16.gmra.mxu0 %v271
    %v725 = vpop.f32.mrf.mxu0
    %v726 = vadd.f32 %v200, %v725
    %v727 = vpop.f32.mrf.mxu0
    %v728 = vadd.f32 %v200, %v727
    %729 = vmatmul.bf16.gmra.mxu0 %v272
    %v730 = vpop.f32.mrf.mxu0
    %v731 = vadd.f32 %v200, %v730
    %v732 = vpop.f32.mrf.mxu0
    %v733 = vadd.f32 %v200, %v732
    %734 = vmatmul.bf16.gmra.mxu0 %v273
    %v735 = vpop.f32.mrf.mxu0
    %v736 = vadd.f32 %v200, %v735
    %v737 = vpop.f32.mrf.mxu0
    %v738 = vadd.f32 %v200, %v737
    %739 = vmatmul.bf16.gmra.mxu0 %v274
    %v740 = vpop.f32.mrf.mxu0
    %v741 = vadd.f32 %v200, %v740
    %v742 = vpop.f32.mrf.mxu0
    %v743 = vadd.f32 %v200, %v742
    %744 = vdwg.mxu0
    %745 = vmatpush.bf16.msra.mxu0 %v537
    %746 = vmatpush.bf16.msra.mxu0 %v529
    %747 = vmatpush.bf16.msra.mxu0 %v521
    %748 = vmatpush.bf16.msra.mxu0 %v513
    %749 = vmatpush.bf16.msra.mxu0 %v505
    %750 = vmatpush.bf16.msra.mxu0 %v497
    %751 = vmatpush.bf16.msra.mxu0 %v489
    %752 = vmatpush.bf16.msra.mxu0 %v481
    %753 = vmatmul.bf16.gmra.mxu0 %v263
    %v754 = vpop.f32.mrf.mxu0
    %v755 = vadd.f32 %v201, %v754
    %v756 = vpop.f32.mrf.mxu0
    %v757 = vadd.f32 %v201, %v756
    %758 = vmatmul.bf16.gmra.mxu0 %v264
    %v759 = vpop.f32.mrf.mxu0
    %v760 = vadd.f32 %v201, %v759
    %v761 = vpop.f32.mrf.mxu0
    %v762 = vadd.f32 %v201, %v761
    %763 = vmatmul.bf16.gmra.mxu0 %v265
    %v764 = vpop.f32.mrf.mxu0
    %v765 = vadd.f32 %v201, %v764
    %v766 = vpop.f32.mrf.mxu0
    %v767 = vadd.f32 %v201, %v766
    %768 = vmatmul.bf16.gmra.mxu0 %v266
    %v769 = vpop.f32.mrf.mxu0
    %v770 = vadd.f32 %v201, %v769
    %v771 = vpop.f32.mrf.mxu0
    %v772 = vadd.f32 %v201, %v771
    %773 = vmatmul.bf16.gmra.mxu0 %v267
    %v774 = vpop.f32.mrf.mxu0
    %v775 = vadd.f32 %v201, %v774
    %v776 = vpop.f32.mrf.mxu0
    %v777 = vadd.f32 %v201, %v776
    %778 = vmatmul.bf16.gmra.mxu0 %v268
    %v779 = vpop.f32.mrf.mxu0
    %v780 = vadd.f32 %v201, %v779
    %v781 = vpop.f32.mrf.mxu0
    %v782 = vadd.f32 %v201, %v781
    %783 = vmatmul.bf16.gmra.mxu0 %v269
    %v784 = vpop.f32.mrf.mxu0
    %v785 = vadd.f32 %v201, %v784
    %v786 = vpop.f32.mrf.mxu0
    %v787 = vadd.f32 %v201, %v786
    %788 = vmatmul.bf16.gmra.mxu0 %v270
    %v789 = vpop.f32.mrf.mxu0
    %v790 = vadd.f32 %v201, %v789
    %v791 = vpop.f32.mrf.mxu0
    %v792 = vadd.f32 %v201, %v791
    %793 = vmatmul.bf16.gmra.mxu0 %v271
    %v794 = vpop.f32.mrf.mxu0
    %v795 = vadd.f32 %v201, %v794
    %v796 = vpop.f32.mrf.mxu0
    %v797 = vadd.f32 %v201, %v796
    %798 = vmatmul.bf16.gmra.mxu0 %v272
    %v799 = vpop.f32.mrf.mxu0
    %v800 = vadd.f32 %v201, %v799
    %v801 = vpop.f32.mrf.mxu0
    %v802 = vadd.f32 %v201, %v801
    %803 = vmatmul.bf16.gmra.mxu0 %v273
    %v804 = vpop.f32.mrf.mxu0
    %v805 = vadd.f32 %v201, %v804
    %v806 = vpop.f32.mrf.mxu0
    %v807 = vadd.f32 %v201, %v806
    %808 = vmatmul.bf16.gmra.mxu0 %v274
    %v809 = vpop.f32.mrf.mxu0
    %v810 = vadd.f32 %v201, %v809
    %v811 = vpop.f32.mrf.mxu0
    %v812 = vadd.f32 %v201, %v811
    %813 = vdwg.mxu0
    %814 = vmatpush.bf16.msra.mxu0 %v538
    %815 = vmatpush.bf16.msra.mxu0 %v530
    %816 = vmatpush.bf16.msra.mxu0 %v522
    %817 = vmatpush.bf16.msra.mxu0 %v514
    %818 = vmatpush.bf16.msra.mxu0 %v506
    %819 = vmatpush.bf16.msra.mxu0 %v498
    %820 = vmatpush.bf16.msra.mxu0 %v490
    %821 = vmatpush.bf16.msra.mxu0 %v482
    %822 = vmatmul.bf16.gmra.mxu0 %v263
    %v823 = vpop.f32.mrf.mxu0
    %v824 = vadd.f32 %v202, %v823
    %v825 = vpop.f32.mrf.mxu0
    %v826 = vadd.f32 %v202, %v825
    %827 = vmatmul.bf16.gmra.mxu0 %v264
    %v828 = vpop.f32.mrf.mxu0
    %v829 = vadd.f32 %v202, %v828
    %v830 = vpop.f32.mrf.mxu0
    %v831 = vadd.f32 %v202, %v830
    %832 = vmatmul.bf16.gmra.mxu0 %v265
    %v833 = vpop.f32.mrf.mxu0
    %v834 = vadd.f32 %v202, %v833
    %v835 = vpop.f32.mrf.mxu0
    %v836 = vadd.f32 %v202, %v835
    %837 = vmatmul.bf16.gmra.mxu0 %v266
    %v838 = vpop.f32.mrf.mxu0
    %v839 = vadd.f32 %v202, %v838
    %v840 = vpop.f32.mrf.mxu0
    %v841 = vadd.f32 %v202, %v840
    %842 = vmatmul.bf16.gmra.mxu0 %v267
    %v843 = vpop.f32.mrf.mxu0
    %v844 = vadd.f32 %v202, %v843
    %v845 = vpop.f32.mrf.mxu0
    %v846 = vadd.f32 %v202, %v845
    %847 = vmatmul.bf16.gmra.mxu0 %v268
    %v848 = vpop.f32.mrf.mxu0
    %v849 = vadd.f32 %v202, %v848
    %v850 = vpop.f32.mrf.mxu0
    %v851 = vadd.f32 %v202, %v850
    %852 = vmatmul.bf16.gmra.mxu0 %v269
    %v853 = vpop.f32.mrf.mxu0
    %v854 = vadd.f32 %v202, %v853
    %v855 = vpop.f32.mrf.mxu0
    %v856 = vadd.f32 %v202, %v855
    %857 = vmatmul.bf16.gmra.mxu0 %v270
    %v858 = vpop.f32.mrf.mxu0
    %v859 = vadd.f32 %v202, %v858
    %v860 = vpop.f32.mrf.mxu0
    %v861 = vadd.f32 %v202, %v860
    %862 = vmatmul.bf16.gmra.mxu0 %v271
    %v863 = vpop.f32.mrf.mxu0
    %v864 = vadd.f32 %v202, %v863
    %v865 = vpop.f32.mrf.mxu0
    %v866 = vadd.f32 %v202, %v865
    %867 = vmatmul.bf16.gmra.mxu0 %v272
    %v868 = vpop.f32.mrf.mxu0
    %v869 = vadd.f32 %v202, %v868
    %v870 = vpop.f32.mrf.mxu0
    %v871 = vadd.f32 %v202, %v870
    %872 = vmatmul.bf16.gmra.mxu0 %v273
    %v873 = vpop.f32.mrf.mxu0
    %v874 = vadd.f32 %v202, %v873
    %v875 = vpop.f32.mrf.mxu0
    %v876 = vadd.f32 %v202, %v875
    %877 = vmatmul.bf16.gmra.mxu0 %v274
    %v878 = vpop.f32.mrf.mxu0
    %v879 = vadd.f32 %v202, %v878
    %v880 = vpop.f32.mrf.mxu0
    %v881 = vadd.f32 %v202, %v880
    %882 = vdwg.mxu0
    %883 = vmatpush.bf16.msra.mxu0 %v539
    %884 = vmatpush.bf16.msra.mxu0 %v531
    %885 = vmatpush.bf16.msra.mxu0 %v523
    %886 = vmatpush.bf16.msra.mxu0 %v515
    %887 = vmatpush.bf16.msra.mxu0 %v507
    %888 = vmatpush.bf16.msra.mxu0 %v499
    %889 = vmatpush.bf16.msra.mxu0 %v491
    %890 = vmatpush.bf16.msra.mxu0 %v483
    %891 = vmatmul.bf16.gmra.mxu0 %v263
    %v892 = vpop.f32.mrf.mxu0
    %v893 = vadd.f32 %v203, %v892
    %v894 = vpop.f32.mrf.mxu0
    %v895 = vadd.f32 %v203, %v894
    %896 = vmatmul.bf16.gmra.mxu0 %v264
    %v897 = vpop.f32.mrf.mxu0
    %v898 = vadd.f32 %v203, %v897
    %v899 = vpop.f32.mrf.mxu0
    %v900 = vadd.f32 %v203, %v899
    %901 = vmatmul.bf16.gmra.mxu0 %v265
    %v902 = vpop.f32.mrf.mxu0
    %v903 = vadd.f32 %v203, %v902
    %v904 = vpop.f32.mrf.mxu0
    %v905 = vadd.f32 %v203, %v904
    %906 = vmatmul.bf16.gmra.mxu0 %v266
    %v907 = vpop.f32.mrf.mxu0
    %v908 = vadd.f32 %v203, %v907
    %v909 = vpop.f32.mrf.mxu0
    %v910 = vadd.f32 %v203, %v909
    %911 = vmatmul.bf16.gmra.mxu0 %v267
    %v912 = vpop.f32.mrf.mxu0
    %v913 = vadd.f32 %v203, %v912
    %v914 = vpop.f32.mrf.mxu0
    %v915 = vadd.f32 %v203, %v914
    %916 = vmatmul.bf16.gmra.mxu0 %v268
    %v917 = vpop.f32.mrf.mxu0
    %v918 = vadd.f32 %v203, %v917
    %v919 = vpop.f32.mrf.mxu0
    %v920 = vadd.f32 %v203, %v919
    %921 = vmatmul.bf16.gmra.mxu0 %v269
    %v922 = vpop.f32.mrf.mxu0
    %v923 = vadd.f32 %v203, %v922
    %v924 = vpop.f32.mrf.mxu0
    %v925 = vadd.f32 %v203, %v924
    %926 = vmatmul.bf16.gmra.mxu0 %v270
    %v927 = vpop.f32.mrf.mxu0
    %v928 = vadd.f32 %v203, %v927
    %v929 = vpop.f32.mrf.mxu0
    %v930 = vadd.f32 %v203, %v929
    %931 = vmatmul.bf16.gmra.mxu0 %v271
    %v932 = vpop.f32.mrf.mxu0
    %v933 = vadd.f32 %v203, %v932
    %v934 = vpop.f32.mrf.mxu0
    %v935 = vadd.f32 %v203, %v934
    %936 = vmatmul.bf16.gmra.mxu0 %v272
    %v937 = vpop.f32.mrf.mxu0
    %v938 = vadd.f32 %v203, %v937
    %v939 = vpop.f32.mrf.mxu0
    %v940 = vadd.f32 %v203, %v939
    %941 = vmatmul.bf16.gmra.mxu0 %v273
    %v942 = vpop.f32.mrf.mxu0
    %v943 = vadd.f32 %v203, %v942
    %v944 = vpop.f32.mrf.mxu0
    %v945 = vadd.f32 %v203, %v944
    %946 = vmatmul.bf16.gmra.mxu0 %v274
    %v947 = vpop.f32.mrf.mxu0
    %v948 = vadd.f32 %v203, %v947
    %v949 = vpop.f32.mrf.mxu0
    %v950 = vadd.f32 %v203, %v949
    %951 = vdwg.mxu0
    %952 = vmatpush.bf16.msra.mxu0 %v540
    %953 = vmatpush.bf16.msra.mxu0 %v532
    %954 = vmatpush.bf16.msra.mxu0 %v524
    %955 = vmatpush.bf16.msra.mxu0 %v516
    %956 = vmatpush.bf16.msra.mxu0 %v508
    %957 = vmatpush.bf16.msra.mxu0 %v500
    %958 = vmatpush.bf16.msra.mxu0 %v492
    %959 = vmatpush.bf16.msra.mxu0 %v484
    %960 = vmatmul.bf16.gmra.mxu0 %v263
    %v961 = vpop.f32.mrf.mxu0
    %v962 = vadd.f32 %v204, %v961
    %v963 = vpop.f32.mrf.mxu0
    %v964 = vadd.f32 %v204, %v963
    %965 = vmatmul.bf16.gmra.mxu0 %v264
    %v966 = vpop.f32.mrf.mxu0
    %v967 = vadd.f32 %v204, %v966
    %v968 = vpop.f32.mrf.mxu0
    %v969 = vadd.f32 %v204, %v968
    %970 = vmatmul.bf16.gmra.mxu0 %v265
    %v971 = vpop.f32.mrf.mxu0
    %v972 = vadd.f32 %v204, %v971
    %v973 = vpop.f32.mrf.mxu0
    %v974 = vadd.f32 %v204, %v973
    %975 = vmatmul.bf16.gmra.mxu0 %v266
    %v976 = vpop.f32.mrf.mxu0
    %v977 = vadd.f32 %v204, %v976
    %v978 = vpop.f32.mrf.mxu0
    %v979 = vadd.f32 %v204, %v978
    %980 = vmatmul.bf16.gmra.mxu0 %v267
    %v981 = vpop.f32.mrf.mxu0
    %v982 = vadd.f32 %v204, %v981
    %v983 = vpop.f32.mrf.mxu0
    %v984 = vadd.f32 %v204, %v983
    %985 = vmatmul.bf16.gmra.mxu0 %v268
    %v986 = vpop.f32.mrf.mxu0
    %v987 = vadd.f32 %v204, %v986
    %v988 = vpop.f32.mrf.mxu0
    %v989 = vadd.f32 %v204, %v988
    %990 = vmatmul.bf16.gmra.mxu0 %v269
    %v991 = vpop.f32.mrf.mxu0
    %v992 = vadd.f32 %v204, %v991
    %v993 = vpop.f32.mrf.mxu0
    %v994 = vadd.f32 %v204, %v993
    %995 = vmatmul.bf16.gmra.mxu0 %v270
    %v996 = vpop.f32.mrf.mxu0
    %v997 = vadd.f32 %v204, %v996
    %v998 = vpop.f32.mrf.mxu0
    %v999 = vadd.f32 %v204, %v998
    %1000 = vmatmul.bf16.gmra.mxu0 %v271
    %v1001 = vpop.f32.mrf.mxu0
    %v1002 = vadd.f32 %v204, %v1001
    %v1003 = vpop.f32.mrf.mxu0
    %v1004 = vadd.f32 %v204, %v1003
    %1005 = vmatmul.bf16.gmra.mxu0 %v272
    %v1006 = vpop.f32.mrf.mxu0
    %v1007 = vadd.f32 %v204, %v1006
    %v1008 = vpop.f32.mrf.mxu0
    %v1009 = vadd.f32 %v204, %v1008
    %1010 = vmatmul.bf16.gmra.mxu0 %v273
    %v1011 = vpop.f32.mrf.mxu0
    %v1012 = vadd.f32 %v204, %v1011
    %v1013 = vpop.f32.mrf.mxu0
    %v1014 = vadd.f32 %v204, %v1013
    %1015 = vmatmul.bf16.gmra.mxu0 %v274
    %v1016 = vpop.f32.mrf.mxu0
    %v1017 = vadd.f32 %v204, %v1016
    %v1018 = vpop.f32.mrf.mxu0
    %v1019 = vadd.f32 %v204, %v1018
    %1020 = vdwg.mxu0
    %1021 = vmatpush.bf16.msra.mxu0 %v541
    %1022 = vmatpush.bf16.msra.mxu0 %v533
    %1023 = vmatpush.bf16.msra.mxu0 %v525
    %1024 = vmatpush.bf16.msra.mxu0 %v517
    %1025 = vmatpush.bf16.msra.mxu0 %v509
    %1026 = vmatpush.bf16.msra.mxu0 %v501
    %1027 = vmatpush.bf16.msra.mxu0 %v493
    %1028 = vmatpush.bf16.msra.mxu0 %v485
    %1029 = vmatmul.bf16.gmra.mxu0 %v263
    %v1030 = vpop.f32.mrf.mxu0
    %v1031 = vadd.f32 %v205, %v1030
    %v1032 = vpop.f32.mrf.mxu0
    %v1033 = vadd.f32 %v205, %v1032
    %1034 = vmatmul.bf16.gmra.mxu0 %v264
    %v1035 = vpop.f32.mrf.mxu0
    %v1036 = vadd.f32 %v205, %v1035
    %v1037 = vpop.f32.mrf.mxu0
    %v1038 = vadd.f32 %v205, %v1037
    %1039 = vmatmul.bf16.gmra.mxu0 %v265
    %v1040 = vpop.f32.mrf.mxu0
    %v1041 = vadd.f32 %v205, %v1040
    %v1042 = vpop.f32.mrf.mxu0
    %v1043 = vadd.f32 %v205, %v1042
    %1044 = vmatmul.bf16.gmra.mxu0 %v266
    %v1045 = vpop.f32.mrf.mxu0
    %v1046 = vadd.f32 %v205, %v1045
    %v1047 = vpop.f32.mrf.mxu0
    %v1048 = vadd.f32 %v205, %v1047
    %1049 = vmatmul.bf16.gmra.mxu0 %v267
    %v1050 = vpop.f32.mrf.mxu0
    %v1051 = vadd.f32 %v205, %v1050
    %v1052 = vpop.f32.mrf.mxu0
    %v1053 = vadd.f32 %v205, %v1052
    %1054 = vmatmul.bf16.gmra.mxu0 %v268
    %v1055 = vpop.f32.mrf.mxu0
    %v1056 = vadd.f32 %v205, %v1055
    %v1057 = vpop.f32.mrf.mxu0
    %v1058 = vadd.f32 %v205, %v1057
    %1059 = vmatmul.bf16.gmra.mxu0 %v269
    %v1060 = vpop.f32.mrf.mxu0
    %v1061 = vadd.f32 %v205, %v1060
    %v1062 = vpop.f32.mrf.mxu0
    %v1063 = vadd.f32 %v205, %v1062
    %1064 = vmatmul.bf16.gmra.mxu0 %v270
    %v1065 = vpop.f32.mrf.mxu0
    %v1066 = vadd.f32 %v205, %v1065
    %v1067 = vpop.f32.mrf.mxu0
    %v1068 = vadd.f32 %v205, %v1067
    %1069 = vmatmul.bf16.gmra.mxu0 %v271
    %v1070 = vpop.f32.mrf.mxu0
    %v1071 = vadd.f32 %v205, %v1070
    %v1072 = vpop.f32.mrf.mxu0
    %v1073 = vadd.f32 %v205, %v1072
    %1074 = vmatmul.bf16.gmra.mxu0 %v272
    %v1075 = vpop.f32.mrf.mxu0
    %v1076 = vadd.f32 %v205, %v1075
    %v1077 = vpop.f32.mrf.mxu0
    %v1078 = vadd.f32 %v205, %v1077
    %1079 = vmatmul.bf16.gmra.mxu0 %v273
    %v1080 = vpop.f32.mrf.mxu0
    %v1081 = vadd.f32 %v205, %v1080
    %v1082 = vpop.f32.mrf.mxu0
    %v1083 = vadd.f32 %v205, %v1082
    %1084 = vmatmul.bf16.gmra.mxu0 %v274
    %v1085 = vpop.f32.mrf.mxu0
    %v1086 = vadd.f32 %v205, %v1085
    %v1087 = vpop.f32.mrf.mxu0
    %v1088 = vadd.f32 %v205, %v1087
    %1089 = vdwg.mxu0
    %1090 = vmatpush.bf16.msra.mxu0 %v542
    %1091 = vmatpush.bf16.msra.mxu0 %v534
    %1092 = vmatpush.bf16.msra.mxu0 %v526
    %1093 = vmatpush.bf16.msra.mxu0 %v518
    %1094 = vmatpush.bf16.msra.mxu0 %v510
    %1095 = vmatpush.bf16.msra.mxu0 %v502
    %1096 = vmatpush.bf16.msra.mxu0 %v494
    %1097 = vmatpush.bf16.msra.mxu0 %v486
    %1098 = vmatmul.bf16.gmra.mxu0 %v263
    %v1099 = vpop.f32.mrf.mxu0
    %v1100 = vadd.f32 %v206, %v1099
    %v1101 = vpop.f32.mrf.mxu0
    %v1102 = vadd.f32 %v206, %v1101
    %1103 = vmatmul.bf16.gmra.mxu0 %v264
    %v1104 = vpop.f32.mrf.mxu0
    %v1105 = vadd.f32 %v206, %v1104
    %v1106 = vpop.f32.mrf.mxu0
    %v1107 = vadd.f32 %v206, %v1106
    %1108 = vmatmul.bf16.gmra.mxu0 %v265
    %v1109 = vpop.f32.mrf.mxu0
    %v1110 = vadd.f32 %v206, %v1109
    %v1111 = vpop.f32.mrf.mxu0
    %v1112 = vadd.f32 %v206, %v1111
    %1113 = vmatmul.bf16.gmra.mxu0 %v266
    %v1114 = vpop.f32.mrf.mxu0
    %v1115 = vadd.f32 %v206, %v1114
    %v1116 = vpop.f32.mrf.mxu0
    %v1117 = vadd.f32 %v206, %v1116
    %1118 = vmatmul.bf16.gmra.mxu0 %v267
    %v1119 = vpop.f32.mrf.mxu0
    %v1120 = vadd.f32 %v206, %v1119
    %v1121 = vpop.f32.mrf.mxu0
    %v1122 = vadd.f32 %v206, %v1121
    %1123 = vmatmul.bf16.gmra.mxu0 %v268
    %v1124 = vpop.f32.mrf.mxu0
    %v1125 = vadd.f32 %v206, %v1124
    %v1126 = vpop.f32.mrf.mxu0
    %v1127 = vadd.f32 %v206, %v1126
    %1128 = vmatmul.bf16.gmra.mxu0 %v269
    %v1129 = vpop.f32.mrf.mxu0
    %v1130 = vadd.f32 %v206, %v1129
    %v1131 = vpop.f32.mrf.mxu0
    %v1132 = vadd.f32 %v206, %v1131
    %1133 = vmatmul.bf16.gmra.mxu0 %v270
    %v1134 = vpop.f32.mrf.mxu0
    %v1135 = vadd.f32 %v206, %v1134
    %v1136 = vpop.f32.mrf.mxu0
    %v1137 = vadd.f32 %v206, %v1136
    %1138 = vmatmul.bf16.gmra.mxu0 %v271
    %v1139 = vpop.f32.mrf.mxu0
    %v1140 = vadd.f32 %v206, %v1139
    %v1141 = vpop.f32.mrf.mxu0
    %v1142 = vadd.f32 %v206, %v1141
    %1143 = vmatmul.bf16.gmra.mxu0 %v272
    %v1144 = vpop.f32.mrf.mxu0
    %v1145 = vadd.f32 %v206, %v1144
    %v1146 = vpop.f32.mrf.mxu0
    %v1147 = vadd.f32 %v206, %v1146
    %1148 = vmatmul.bf16.gmra.mxu0 %v273
    %v1149 = vpop.f32.mrf.mxu0
    %v1150 = vadd.f32 %v206, %v1149
    %v1151 = vpop.f32.mrf.mxu0
    %v1152 = vadd.f32 %v206, %v1151
    %1153 = vmatmul.bf16.gmra.mxu0 %v274
    %v1154 = vpop.f32.mrf.mxu0
    %v1155 = vadd.f32 %v206, %v1154
    %v1156 = vpop.f32.mrf.mxu0
    %v1157 = vadd.f32 %v206, %v1156
    %1158 = vdwg.mxu0
    %v1159 = vpack.c.bf16 %v686, %v617
    %v1160 = vpack.c.bf16 %v824, %v755
    %v1161 = vpack.c.bf16 %v962, %v893
    %v1162 = vpack.c.bf16 %v1100, %v1031
    %v1163 = vpack.c.bf16 %v688, %v619
    %v1164 = vpack.c.bf16 %v826, %v757
    %v1165 = vpack.c.bf16 %v964, %v895
    %v1166 = vpack.c.bf16 %v1102, %v1033
    %v1167 = vpack.c.bf16 %v691, %v622
    %v1168 = vpack.c.bf16 %v829, %v760
    %v1169 = vpack.c.bf16 %v967, %v898
    %v1170 = vpack.c.bf16 %v1105, %v1036
    %v1171 = vpack.c.bf16 %v693, %v624
    %v1172 = vpack.c.bf16 %v831, %v762
    %v1173 = vpack.c.bf16 %v969, %v900
    %v1174 = vpack.c.bf16 %v1107, %v1038
    %v1175 = vpack.c.bf16 %v696, %v627
    %v1176 = vpack.c.bf16 %v834, %v765
    %v1177 = vpack.c.bf16 %v972, %v903
    %v1178 = vpack.c.bf16 %v1110, %v1041
    %v1179 = vpack.c.bf16 %v698, %v629
    %v1180 = vpack.c.bf16 %v836, %v767
    %v1181 = vpack.c.bf16 %v974, %v905
    %v1182 = vpack.c.bf16 %v1112, %v1043
    %v1183 = vpack.c.bf16 %v701, %v632
    %v1184 = vpack.c.bf16 %v839, %v770
    %v1185 = vpack.c.bf16 %v977, %v908
    %v1186 = vpack.c.bf16 %v1115, %v1046
    %v1187 = vpack.c.bf16 %v703, %v634
    %v1188 = vpack.c.bf16 %v841, %v772
    %v1189 = vpack.c.bf16 %v979, %v910
    %v1190 = vpack.c.bf16 %v1117, %v1048
    %v1191 = vpack.c.bf16 %v706, %v637
    %v1192 = vpack.c.bf16 %v844, %v775
    %v1193 = vpack.c.bf16 %v982, %v913
    %v1194 = vpack.c.bf16 %v1120, %v1051
    %v1195 = vpack.c.bf16 %v708, %v639
    %v1196 = vpack.c.bf16 %v846, %v777
    %v1197 = vpack.c.bf16 %v984, %v915
    %v1198 = vpack.c.bf16 %v1122, %v1053
    %v1199 = vpack.c.bf16 %v711, %v642
    %v1200 = vpack.c.bf16 %v849, %v780
    %v1201 = vpack.c.bf16 %v987, %v918
    %v1202 = vpack.c.bf16 %v1125, %v1056
    %v1203 = vpack.c.bf16 %v713, %v644
    %v1204 = vpack.c.bf16 %v851, %v782
    %v1205 = vpack.c.bf16 %v989, %v920
    %v1206 = vpack.c.bf16 %v1127, %v1058
    %v1207 = vpack.c.bf16 %v716, %v647
    %v1208 = vpack.c.bf16 %v854, %v785
    %v1209 = vpack.c.bf16 %v992, %v923
    %v1210 = vpack.c.bf16 %v1130, %v1061
    %v1211 = vpack.c.bf16 %v718, %v649
    %v1212 = vpack.c.bf16 %v856, %v787
    %v1213 = vpack.c.bf16 %v994, %v925
    %v1214 = vpack.c.bf16 %v1132, %v1063
    %v1215 = vpack.c.bf16 %v721, %v652
    %v1216 = vpack.c.bf16 %v859, %v790
    %v1217 = vpack.c.bf16 %v997, %v928
    %v1218 = vpack.c.bf16 %v1135, %v1066
    %v1219 = vpack.c.bf16 %v723, %v654
    %v1220 = vpack.c.bf16 %v861, %v792
    %v1221 = vpack.c.bf16 %v999, %v930
    %v1222 = vpack.c.bf16 %v1137, %v1068
    %v1223 = vpack.c.bf16 %v726, %v657
    %v1224 = vpack.c.bf16 %v864, %v795
    %v1225 = vpack.c.bf16 %v1002, %v933
    %v1226 = vpack.c.bf16 %v1140, %v1071
    %v1227 = vpack.c.bf16 %v728, %v659
    %v1228 = vpack.c.bf16 %v866, %v797
    %v1229 = vpack.c.bf16 %v1004, %v935
    %v1230 = vpack.c.bf16 %v1142, %v1073
    %v1231 = vpack.c.bf16 %v731, %v662
    %v1232 = vpack.c.bf16 %v869, %v800
    %v1233 = vpack.c.bf16 %v1007, %v938
    %v1234 = vpack.c.bf16 %v1145, %v1076
    %v1235 = vpack.c.bf16 %v733, %v664
    %v1236 = vpack.c.bf16 %v871, %v802
    %v1237 = vpack.c.bf16 %v1009, %v940
    %v1238 = vpack.c.bf16 %v1147, %v1078
    %v1239 = vpack.c.bf16 %v736, %v667
    %v1240 = vpack.c.bf16 %v874, %v805
    %v1241 = vpack.c.bf16 %v1012, %v943
    %v1242 = vpack.c.bf16 %v1150, %v1081
    %v1243 = vpack.c.bf16 %v738, %v669
    %v1244 = vpack.c.bf16 %v876, %v807
    %v1245 = vpack.c.bf16 %v1014, %v945
    %v1246 = vpack.c.bf16 %v1152, %v1083
    %v1247 = vpack.c.bf16 %v741, %v672
    %v1248 = vpack.c.bf16 %v879, %v810
    %v1249 = vpack.c.bf16 %v1017, %v948
    %v1250 = vpack.c.bf16 %v1155, %v1086
    %v1251 = vpack.c.bf16 %v743, %v674
    %v1252 = vpack.c.bf16 %v881, %v812
    %v1253 = vpack.c.bf16 %v1019, %v950
    %v1254 = vpack.c.bf16 %v1157, %v1088
    %1255 = vst [vmem:[#allocation2] sm:$0xff] %v1159
    %1256 = vst [vmem:[#allocation2 + $0x8] sm:$0xff] %v1160
    %1257 = vst [vmem:[#allocation2 + $0x10] sm:$0xff] %v1161
    %1258 = vst [vmem:[#allocation2 + $0x18] sm:$0xff] %v1162
    %1259 = vst [vmem:[#allocation2 + $0x20] sm:$0xff] %v1163
    %1260 = vst [vmem:[#allocation2 + $0x28] sm:$0xff] %v1164
    %1261 = vst [vmem:[#allocation2 + $0x30] sm:$0xff] %v1165
    %1262 = vst [vmem:[#allocation2 + $0x38] sm:$0xff] %v1166
    %1263 = vst [vmem:[#allocation2 + $0x40] sm:$0xff] %v1167
    %1264 = vst [vmem:[#allocation2 + $0x48] sm:$0xff] %v1168
    %1265 = vst [vmem:[#allocation2 + $0x50] sm:$0xff] %v1169
    %1266 = vst [vmem:[#allocation2 + $0x58] sm:$0xff] %v1170
    %1267 = vst [vmem:[#allocation2 + $0x60] sm:$0xff] %v1171
    %1268 = vst [vmem:[#allocation2 + $0x68] sm:$0xff] %v1172
    %1269 = vst [vmem:[#allocation2 + $0x70] sm:$0xff] %v1173
    %1270 = vst [vmem:[#allocation2 + $0x78] sm:$0xff] %v1174
    %1271 = vst [vmem:[#allocation2 + $0x80] sm:$0xff] %v1175
    %1272 = vst [vmem:[#allocation2 + $0x88] sm:$0xff] %v1176
    %1273 = vst [vmem:[#allocation2 + $0x90] sm:$0xff] %v1177
    %1274 = vst [vmem:[#allocation2 + $0x98] sm:$0xff] %v1178
    %1275 = vst [vmem:[#allocation2 + $0xa0] sm:$0xff] %v1179
    %1276 = vst [vmem:[#allocation2 + $0xa8] sm:$0xff] %v1180
    %1277 = vst [vmem:[#allocation2 + $0xb0] sm:$0xff] %v1181
    %1278 = vst [vmem:[#allocation2 + $0xb8] sm:$0xff] %v1182
    %1279 = vst [vmem:[#allocation2 + $0xc0] sm:$0xff] %v1183
    %1280 = vst [vmem:[#allocation2 + $0xc8] sm:$0xff] %v1184
    %1281 = vst [vmem:[#allocation2 + $0xd0] sm:$0xff] %v1185
    %1282 = vst [vmem:[#allocation2 + $0xd8] sm:$0xff] %v1186
    %1283 = vst [vmem:[#allocation2 + $0xe0] sm:$0xff] %v1187
    %1284 = vst [vmem:[#allocation2 + $0xe8] sm:$0xff] %v1188
    %1285 = vst [vmem:[#allocation2 + $0xf0] sm:$0xff] %v1189
    %1286 = vst [vmem:[#allocation2 + $0xf8] sm:$0xff] %v1190
    %1287 = vst [vmem:[#allocation2 + $0x100] sm:$0xff] %v1191
    %1288 = vst [vmem:[#allocation2 + $0x108] sm:$0xff] %v1192
    %1289 = vst [vmem:[#allocation2 + $0x110] sm:$0xff] %v1193
    %1290 = vst [vmem:[#allocation2 + $0x118] sm:$0xff] %v1194
    %1291 = vst [vmem:[#allocation2 + $0x120] sm:$0xff] %v1195
    %1292 = vst [vmem:[#allocation2 + $0x128] sm:$0xff] %v1196
    %1293 = vst [vmem:[#allocation2 + $0x130] sm:$0xff] %v1197
    %1294 = vst [vmem:[#allocation2 + $0x138] sm:$0xff] %v1198
    %1295 = vst [vmem:[#allocation2 + $0x140] sm:$0xff] %v1199
    %1296 = vst [vmem:[#allocation2 + $0x148] sm:$0xff] %v1200
    %1297 = vst [vmem:[#allocation2 + $0x150] sm:$0xff] %v1201
    %1298 = vst [vmem:[#allocation2 + $0x158] sm:$0xff] %v1202
    %1299 = vst [vmem:[#allocation2 + $0x160] sm:$0xff] %v1203
    %1300 = vst [vmem:[#allocation2 + $0x168] sm:$0xff] %v1204
    %1301 = vst [vmem:[#allocation2 + $0x170] sm:$0xff] %v1205
    %1302 = vst [vmem:[#allocation2 + $0x178] sm:$0xff] %v1206
    %1303 = vst [vmem:[#allocation2 + $0x180] sm:$0xff] %v1207
    %1304 = vst [vmem:[#allocation2 + $0x188] sm:$0xff] %v1208
    %1305 = vst [vmem:[#allocation2 + $0x190] sm:$0xff] %v1209
    %1306 = vst [vmem:[#allocation2 + $0x198] sm:$0xff] %v1210
    %1307 = vst [vmem:[#allocation2 + $0x1a0] sm:$0xff] %v1211
    %1308 = vst [vmem:[#allocation2 + $0x1a8] sm:$0xff] %v1212
    %1309 = vst [vmem:[#allocation2 + $0x1b0] sm:$0xff] %v1213
    %1310 = vst [vmem:[#allocation2 + $0x1b8] sm:$0xff] %v1214
    %1311 = vst [vmem:[#allocation2 + $0x1c0] sm:$0xff] %v1215
    %1312 = vst [vmem:[#allocation2 + $0x1c8] sm:$0xff] %v1216
    %1313 = vst [vmem:[#allocation2 + $0x1d0] sm:$0xff] %v1217
    %1314 = vst [vmem:[#allocation2 + $0x1d8] sm:$0xff] %v1218
    %1315 = vst [vmem:[#allocation2 + $0x1e0] sm:$0xff] %v1219
    %1316 = vst [vmem:[#allocation2 + $0x1e8] sm:$0xff] %v1220
    %1317 = vst [vmem:[#allocation2 + $0x1f0] sm:$0xff] %v1221
    %1318 = vst [vmem:[#allocation2 + $0x1f8] sm:$0xff] %v1222
    %1319 = vst [vmem:[#allocation2 + $0x200] sm:$0xff] %v1223
    %1320 = vst [vmem:[#allocation2 + $0x208] sm:$0xff] %v1224
    %1321 = vst [vmem:[#allocation2 + $0x210] sm:$0xff] %v1225
    %1322 = vst [vmem:[#allocation2 + $0x218] sm:$0xff] %v1226
    %1323 = vst [vmem:[#allocation2 + $0x220] sm:$0xff] %v1227
    %1324 = vst [vmem:[#allocation2 + $0x228] sm:$0xff] %v1228
    %1325 = vst [vmem:[#allocation2 + $0x230] sm:$0xff] %v1229
    %1326 = vst [vmem:[#allocation2 + $0x238] sm:$0xff] %v1230
    %1327 = vst [vmem:[#allocation2 + $0x240] sm:$0xff] %v1231
    %1328 = vst [vmem:[#allocation2 + $0x248] sm:$0xff] %v1232
    %1329 = vst [vmem:[#allocation2 + $0x250] sm:$0xff] %v1233
    %1330 = vst [vmem:[#allocation2 + $0x258] sm:$0xff] %v1234
    %1331 = vst [vmem:[#allocation2 + $0x260] sm:$0xff] %v1235
    %1332 = vst [vmem:[#allocation2 + $0x268] sm:$0xff] %v1236
    %1333 = vst [vmem:[#allocation2 + $0x270] sm:$0xff] %v1237
    %1334 = vst [vmem:[#allocation2 + $0x278] sm:$0xff] %v1238
    %1335 = vst [vmem:[#allocation2 + $0x280] sm:$0xff] %v1239
    %1336 = vst [vmem:[#allocation2 + $0x288] sm:$0xff] %v1240
    %1337 = vst [vmem:[#allocation2 + $0x290] sm:$0xff] %v1241
    %1338 = vst [vmem:[#allocation2 + $0x298] sm:$0xff] %v1242
    %1339 = vst [vmem:[#allocation2 + $0x2a0] sm:$0xff] %v1243
    %1340 = vst [vmem:[#allocation2 + $0x2a8] sm:$0xff] %v1244
    %1341 = vst [vmem:[#allocation2 + $0x2b0] sm:$0xff] %v1245
    %1342 = vst [vmem:[#allocation2 + $0x2b8] sm:$0xff] %v1246
    %1343 = vst [vmem:[#allocation2 + $0x2c0] sm:$0xff] %v1247
    %1344 = vst [vmem:[#allocation2 + $0x2c8] sm:$0xff] %v1248
    %1345 = vst [vmem:[#allocation2 + $0x2d0] sm:$0xff] %v1249
    %1346 = vst [vmem:[#allocation2 + $0x2d8] sm:$0xff] %v1250
    %1347 = vst [vmem:[#allocation2 + $0x2e0] sm:$0xff] %v1251
    %1348 = vst [vmem:[#allocation2 + $0x2e8] sm:$0xff] %v1252
    %1349 = vst [vmem:[#allocation2 + $0x2f0] sm:$0xff] %v1253
    %1350 = vst [vmem:[#allocation2 + $0x2f8] sm:$0xff] %v1254
    %v1351 = vld [vmem:[%s0] sm:$0xff]
    %v1352 = vld [vmem:[%s0 + $0x8] sm:$0xff]
    %v1353 = vld [vmem:[#allocation2] sm:$0xff]
    %v1354 = vld [vmem:[#allocation2 + $0x8] sm:$0xff]
    %v1355 = vld [vmem:[#allocation2 + $0x20] sm:$0xff]
    %v1356 = vld [vmem:[#allocation2 + $0x28] sm:$0xff]
    %s1357 = scalar_lea.vmem [#allocation2], 704
    %v1358 = vld [vmem:[%s1357 + $0x10] sm:$0xff]
    %v1359 = vld [vmem:[%s1357 + $0x18] sm:$0xff]
    %v1360 = vld [vmem:[%s1357 + $0x30] sm:$0xff]
    %v1361 = vld [vmem:[%s1357 + $0x38] sm:$0xff]
    %v1362 = vld [vmem:[#allocation8] sm:$0xff]
    %v1363 = vld [vmem:[#allocation8 + $0x8] sm:$0xff]
    %v1364 = vld [vmem:[#allocation8 + $0x10] sm:$0xff]
    %v1365 = vld [vmem:[#allocation8 + $0x18] sm:$0xff]
    %v1366 = vld [vmem:[#allocation8 + $0x20] sm:$0xff]
    %v1367 = vld [vmem:[#allocation8 + $0x28] sm:$0xff]
    %v1368 = vld [vmem:[#allocation8 + $0x30] sm:$0xff]
    %v1369 = vld [vmem:[#allocation8 + $0x38] sm:$0xff]
    %v1370 = vld [vmem:[#allocation8 + $0x40] sm:$0xff]
    %v1371 = vld [vmem:[#allocation8 + $0x48] sm:$0xff]
    %v1372 = vld [vmem:[#allocation8 + $0x50] sm:$0xff]
    %v1373 = vld [vmem:[#allocation8 + $0x58] sm:$0xff]
    %v1374 = vld [vmem:[#allocation8 + $0x60] sm:$0xff]
    %v1375 = vld [vmem:[#allocation8 + $0x68] sm:$0xff]
    %v1376 = vld [vmem:[#allocation8 + $0x70] sm:$0xff]
    %v1377 = vld [vmem:[#allocation8 + $0x78] sm:$0xff]
    %v1378 = vld [vmem:[#allocation8 + $0x80] sm:$0xff]
    %v1379 = vld [vmem:[#allocation8 + $0x88] sm:$0xff]
    %v1380 = vld [vmem:[#allocation8 + $0x90] sm:$0xff]
    %v1381 = vld [vmem:[#allocation8 + $0x98] sm:$0xff]
    %v1382 = vld [vmem:[#allocation8 + $0xa0] sm:$0xff]
    %v1383 = vld [vmem:[#allocation8 + $0xa8] sm:$0xff]
    %v1384 = vld [vmem:[#allocation8 + $0xb0] sm:$0xff]
    %v1385 = vld [vmem:[#allocation8 + $0xb8] sm:$0xff]
    %v1386 = vld [vmem:[#allocation8 + $0xc0] sm:$0xff]
    %v1387 = vld [vmem:[#allocation8 + $0xc8] sm:$0xff]
    %v1388 = vld [vmem:[#allocation8 + $0xd0] sm:$0xff]
    %v1389 = vld [vmem:[#allocation8 + $0xd8] sm:$0xff]
    %v1390 = vld [vmem:[#allocation8 + $0xe0] sm:$0xff]
    %v1391 = vld [vmem:[#allocation8 + $0xe8] sm:$0xff]
    %v1392 = vld [vmem:[#allocation8 + $0xf0] sm:$0xff]
    %v1393 = vld [vmem:[#allocation8 + $0xf8] sm:$0xff]
    %v1426 = vunpack.c.l.b16 %v1362
    %v1427 = vunpack.c.h.b16 %v1362
    %v1428 = vunpack.c.l.b16 %v1363
    %v1429 = vunpack.c.h.b16 %v1363
    %v1430 = vunpack.c.l.b16 %v1364
    %v1431 = vunpack.c.h.b16 %v1364
    %v1432 = vunpack.c.l.b16 %v1365
    %v1433 = vunpack.c.h.b16 %v1365
    %v1434 = vunpack.c.l.b16 %v1366
    %v1435 = vunpack.c.h.b16 %v1366
    %v1436 = vunpack.c.l.b16 %v1367
    %v1437 = vunpack.c.h.b16 %v1367
    %v1438 = vunpack.c.l.b16 %v1368
    %v1439 = vunpack.c.h.b16 %v1368
    %v1440 = vunpack.c.l.b16 %v1369
    %v1441 = vunpack.c.h.b16 %v1369
    %v1442 = vunpack.c.l.b16 %v1370
    %v1443 = vunpack.c.h.b16 %v1370
    %v1444 = vunpack.c.l.b16 %v1371
    %v1445 = vunpack.c.h.b16 %v1371
    %v1446 = vunpack.c.l.b16 %v1372
    %v1447 = vunpack.c.h.b16 %v1372
    %v1448 = vunpack.c.l.b16 %v1373
    %v1449 = vunpack.c.h.b16 %v1373
    %v1450 = vunpack.c.l.b16 %v1374
    %v1451 = vunpack.c.h.b16 %v1374
    %v1452 = vunpack.c.l.b16 %v1375
    %v1453 = vunpack.c.h.b16 %v1375
    %v1454 = vunpack.c.l.b16 %v1376
    %v1455 = vunpack.c.h.b16 %v1376
    %v1456 = vunpack.c.l.b16 %v1377
    %v1457 = vunpack.c.h.b16 %v1377
    %v1458 = vunpack.c.l.b16 %v1378
    %v1459 = vunpack.c.h.b16 %v1378
    %v1460 = vunpack.c.l.b16 %v1379
    %v1461 = vunpack.c.h.b16 %v1379
    %v1462 = vunpack.c.l.b16 %v1380
    %v1463 = vunpack.c.h.b16 %v1380
    %v1464 = vunpack.c.l.b16 %v1381
    %v1465 = vunpack.c.h.b16 %v1381
    %v1466 = vunpack.c.l.b16 %v1382
    %v1467 = vunpack.c.h.b16 %v1382
    %v1468 = vunpack.c.l.b16 %v1383
    %v1469 = vunpack.c.h.b16 %v1383
    %v1470 = vunpack.c.l.b16 %v1384
    %v1471 = vunpack.c.h.b16 %v1384
    %v1472 = vunpack.c.l.b16 %v1385
    %v1473 = vunpack.c.h.b16 %v1385
    %v1474 = vunpack.c.l.b16 %v1386
    %v1475 = vunpack.c.h.b16 %v1386
    %v1476 = vunpack.c.l.b16 %v1387
    %v1477 = vunpack.c.h.b16 %v1387
    %v1478 = vunpack.c.l.b16 %v1388
    %v1479 = vunpack.c.h.b16 %v1388
    %v1480 = vunpack.c.l.b16 %v1389
    %v1481 = vunpack.c.h.b16 %v1389
    %v1482 = vunpack.c.l.b16 %v1390
    %v1483 = vunpack.c.h.b16 %v1390
    %v1484 = vunpack.c.l.b16 %v1391
    %v1485 = vunpack.c.h.b16 %v1391
    %v1486 = vunpack.c.l.b16 %v1392
    %v1487 = vunpack.c.h.b16 %v1392
    %v1488 = vunpack.c.l.b16 %v1393
    %v1489 = vunpack.c.h.b16 %v1393
    %v1490 = vpack.c.b16 %v1430, %v1426
    %v1491 = vpack.c.b16 %v1431, %v1427
    %v1492 = vpack.c.b16 %v1432, %v1428
    %v1493 = vpack.c.b16 %v1433, %v1429
    %v1494 = vpack.c.b16 %v1438, %v1434
    %v1495 = vpack.c.b16 %v1439, %v1435
    %v1496 = vpack.c.b16 %v1440, %v1436
    %v1497 = vpack.c.b16 %v1441, %v1437
    %v1498 = vpack.c.b16 %v1446, %v1442
    %v1499 = vpack.c.b16 %v1447, %v1443
    %v1500 = vpack.c.b16 %v1448, %v1444
    %v1501 = vpack.c.b16 %v1449, %v1445
    %v1502 = vpack.c.b16 %v1454, %v1450
    %v1503 = vpack.c.b16 %v1455, %v1451
    %v1504 = vpack.c.b16 %v1456, %v1452
    %v1505 = vpack.c.b16 %v1457, %v1453
    %v1506 = vpack.c.b16 %v1462, %v1458
    %v1507 = vpack.c.b16 %v1463, %v1459
    %v1508 = vpack.c.b16 %v1464, %v1460
    %v1509 = vpack.c.b16 %v1465, %v1461
    %v1510 = vpack.c.b16 %v1470, %v1466
    %v1511 = vpack.c.b16 %v1471, %v1467
    %v1512 = vpack.c.b16 %v1472, %v1468
    %v1513 = vpack.c.b16 %v1473, %v1469
    %v1514 = vpack.c.b16 %v1478, %v1474
    %v1515 = vpack.c.b16 %v1479, %v1475
    %v1516 = vpack.c.b16 %v1480, %v1476
    %v1517 = vpack.c.b16 %v1481, %v1477
    %v1518 = vpack.c.b16 %v1486, %v1482
    %v1519 = vpack.c.b16 %v1487, %v1483
    %v1520 = vpack.c.b16 %v1488, %v1484
    %v1521 = vpack.c.b16 %v1489, %v1485
    %1554 = vmatpush.bf16.msra.mxu0 %v1518
    %1555 = vmatpush.bf16.msra.mxu0 %v1514
    %1556 = vmatpush.bf16.msra.mxu0 %v1510
    %1557 = vmatpush.bf16.msra.mxu0 %v1506
    %1558 = vmatpush.bf16.msra.mxu0 %v1502
    %1559 = vmatpush.bf16.msra.mxu0 %v1498
    %1560 = vmatpush.bf16.msra.mxu0 %v1494
    %1561 = vmatpush.bf16.msra.mxu0 %v1490
    %1562 = vmatmul.bf16.gmra.mxu0 0
    %v1563 = vpop.f32.mrf.mxu0
    %v1564 = vadd.f32 0.0, %v1563
    %v1565 = vpop.f32.mrf.mxu0
    %v1566 = vadd.f32 0.0, %v1565
    %1567 = vdwg.mxu0
    %1568 = vmatpush.bf16.msra.mxu0 %v1519
    %1569 = vmatpush.bf16.msra.mxu0 %v1515
    %1570 = vmatpush.bf16.msra.mxu0 %v1511
    %1571 = vmatpush.bf16.msra.mxu0 %v1507
    %1572 = vmatpush.bf16.msra.mxu0 %v1503
    %1573 = vmatpush.bf16.msra.mxu0 %v1499
    %1574 = vmatpush.bf16.msra.mxu0 %v1495
    %1575 = vmatpush.bf16.msra.mxu0 %v1491
    %1576 = vmatmul.bf16.gmra.mxu0 0
    %v1577 = vpop.f32.mrf.mxu0
    %v1578 = vadd.f32 0.0, %v1577
    %v1579 = vpop.f32.mrf.mxu0
    %v1580 = vadd.f32 0.0, %v1579
    %1581 = vdwg.mxu0
    %1582 = vmatpush.bf16.msra.mxu0 %v1520
    %1583 = vmatpush.bf16.msra.mxu0 %v1516
    %1584 = vmatpush.bf16.msra.mxu0 %v1512
    %1585 = vmatpush.bf16.msra.mxu0 %v1508
    %1586 = vmatpush.bf16.msra.mxu0 %v1504
    %1587 = vmatpush.bf16.msra.mxu0 %v1500
    %1588 = vmatpush.bf16.msra.mxu0 %v1496
    %1589 = vmatpush.bf16.msra.mxu0 %v1492
    %1590 = vmatmul.bf16.gmra.mxu0 0
    %v1591 = vpop.f32.mrf.mxu0
    %v1592 = vadd.f32 0.0, %v1591
    %v1593 = vpop.f32.mrf.mxu0
    %v1594 = vadd.f32 0.0, %v1593
    %1595 = vdwg.mxu0
    %1596 = vmatpush.bf16.msra.mxu0 %v1521
    %1597 = vmatpush.bf16.msra.mxu0 %v1517
    %1598 = vmatpush.bf16.msra.mxu0 %v1513
    %1599 = vmatpush.bf16.msra.mxu0 %v1509
    %1600 = vmatpush.bf16.msra.mxu0 %v1505
    %1601 = vmatpush.bf16.msra.mxu0 %v1501
    %1602 = vmatpush.bf16.msra.mxu0 %v1497
    %1603 = vmatpush.bf16.msra.mxu0 %v1493
    %1604 = vmatmul.bf16.gmra.mxu0 0
    %v1605 = vpop.f32.mrf.mxu0
    %v1606 = vadd.f32 0.0, %v1605
    %v1607 = vpop.f32.mrf.mxu0
    %v1608 = vadd.f32 0.0, %v1607
    %1609 = vdwg.mxu0
    %v1610 = vunpack.c.l.bf16 %v1353
    %v1611 = vunpack.c.h.bf16 %v1353
    %v1612 = vunpack.c.l.bf16 %v1354
    %v1613 = vunpack.c.h.bf16 %v1354
    %v1614 = vunpack.c.l.bf16 %v1355
    %v1615 = vunpack.c.h.bf16 %v1355
    %v1616 = vunpack.c.l.bf16 %v1356
    %v1617 = vunpack.c.h.bf16 %v1356
    %v1618 = vadd.f32 %v1610, %v1564
    %v1619 = vadd.f32 %v1611, %v1578
    %v1620 = vadd.f32 %v1612, %v1592
    %v1621 = vadd.f32 %v1613, %v1606
    %v1622 = vadd.f32 %v1614, %v1566
    %v1623 = vadd.f32 %v1615, %v1580
    %v1624 = vadd.f32 %v1616, %v1594
    %v1625 = vadd.f32 %v1617, %v1608
    %v1626 = vld [vmem:[#allocation9] sm:$0xff]
    %v1627 = vld [vmem:[#allocation9 + $0x8] sm:$0xff]
    %v1628 = vld [vmem:[#allocation9 + $0x10] sm:$0xff]
    %v1629 = vld [vmem:[#allocation9 + $0x18] sm:$0xff]
    %v1630 = vld [vmem:[#allocation9 + $0x20] sm:$0xff]
    %v1631 = vld [vmem:[#allocation9 + $0x28] sm:$0xff]
    %v1632 = vld [vmem:[#allocation9 + $0x30] sm:$0xff]
    %v1633 = vld [vmem:[#allocation9 + $0x38] sm:$0xff]
    %v1634 = vld [vmem:[#allocation9 + $0x40] sm:$0xff]
    %v1635 = vld [vmem:[#allocation9 + $0x48] sm:$0xff]
    %v1636 = vld [vmem:[#allocation9 + $0x50] sm:$0xff]
    %v1637 = vld [vmem:[#allocation9 + $0x58] sm:$0xff]
    %v1638 = vld [vmem:[#allocation9 + $0x60] sm:$0xff]
    %v1639 = vld [vmem:[#allocation9 + $0x68] sm:$0xff]
    %v1640 = vld [vmem:[#allocation9 + $0x70] sm:$0xff]
    %v1641 = vld [vmem:[#allocation9 + $0x78] sm:$0xff]
    %v1642 = vld [vmem:[#allocation9 + $0x80] sm:$0xff]
    %v1643 = vld [vmem:[#allocation9 + $0x88] sm:$0xff]
    %v1644 = vld [vmem:[#allocation9 + $0x90] sm:$0xff]
    %v1645 = vld [vmem:[#allocation9 + $0x98] sm:$0xff]
    %v1646 = vld [vmem:[#allocation9 + $0xa0] sm:$0xff]
    %v1647 = vld [vmem:[#allocation9 + $0xa8] sm:$0xff]
    %v1648 = vld [vmem:[#allocation9 + $0xb0] sm:$0xff]
    %v1649 = vld [vmem:[#allocation9 + $0xb8] sm:$0xff]
    %v1650 = vld [vmem:[#allocation9 + $0xc0] sm:$0xff]
    %v1651 = vld [vmem:[#allocation9 + $0xc8] sm:$0xff]
    %v1652 = vld [vmem:[#allocation9 + $0xd0] sm:$0xff]
    %v1653 = vld [vmem:[#allocation9 + $0xd8] sm:$0xff]
    %v1654 = vld [vmem:[#allocation9 + $0xe0] sm:$0xff]
    %v1655 = vld [vmem:[#allocation9 + $0xe8] sm:$0xff]
    %v1656 = vld [vmem:[#allocation9 + $0xf0] sm:$0xff]
    %v1657 = vld [vmem:[#allocation9 + $0xf8] sm:$0xff]
    %v1690 = vunpack.c.l.b16 %v1626
    %v1691 = vunpack.c.h.b16 %v1626
    %v1692 = vunpack.c.l.b16 %v1627
    %v1693 = vunpack.c.h.b16 %v1627
    %v1694 = vunpack.c.l.b16 %v1628
    %v1695 = vunpack.c.h.b16 %v1628
    %v1696 = vunpack.c.l.b16 %v1629
    %v1697 = vunpack.c.h.b16 %v1629
    %v1698 = vunpack.c.l.b16 %v1630
    %v1699 = vunpack.c.h.b16 %v1630
    %v1700 = vunpack.c.l.b16 %v1631
    %v1701 = vunpack.c.h.b16 %v1631
    %v1702 = vunpack.c.l.b16 %v1632
    %v1703 = vunpack.c.h.b16 %v1632
    %v1704 = vunpack.c.l.b16 %v1633
    %v1705 = vunpack.c.h.b16 %v1633
    %v1706 = vunpack.c.l.b16 %v1634
    %v1707 = vunpack.c.h.b16 %v1634
    %v1708 = vunpack.c.l.b16 %v1635
    %v1709 = vunpack.c.h.b16 %v1635
    %v1710 = vunpack.c.l.b16 %v1636
    %v1711 = vunpack.c.h.b16 %v1636
    %v1712 = vunpack.c.l.b16 %v1637
    %v1713 = vunpack.c.h.b16 %v1637
    %v1714 = vunpack.c.l.b16 %v1638
    %v1715 = vunpack.c.h.b16 %v1638
    %v1716 = vunpack.c.l.b16 %v1639
    %v1717 = vunpack.c.h.b16 %v1639
    %v1718 = vunpack.c.l.b16 %v1640
    %v1719 = vunpack.c.h.b16 %v1640
    %v1720 = vunpack.c.l.b16 %v1641
    %v1721 = vunpack.c.h.b16 %v1641
    %v1722 = vunpack.c.l.b16 %v1642
    %v1723 = vunpack.c.h.b16 %v1642
    %v1724 = vunpack.c.l.b16 %v1643
    %v1725 = vunpack.c.h.b16 %v1643
    %v1726 = vunpack.c.l.b16 %v1644
    %v1727 = vunpack.c.h.b16 %v1644
    %v1728 = vunpack.c.l.b16 %v1645
    %v1729 = vunpack.c.h.b16 %v1645
    %v1730 = vunpack.c.l.b16 %v1646
    %v1731 = vunpack.c.h.b16 %v1646
    %v1732 = vunpack.c.l.b16 %v1647
    %v1733 = vunpack.c.h.b16 %v1647
    %v1734 = vunpack.c.l.b16 %v1648
    %v1735 = vunpack.c.h.b16 %v1648
    %v1736 = vunpack.c.l.b16 %v1649
    %v1737 = vunpack.c.h.b16 %v1649
    %v1738 = vunpack.c.l.b16 %v1650
    %v1739 = vunpack.c.h.b16 %v1650
    %v1740 = vunpack.c.l.b16 %v1651
    %v1741 = vunpack.c.h.b16 %v1651
    %v1742 = vunpack.c.l.b16 %v1652
    %v1743 = vunpack.c.h.b16 %v1652
    %v1744 = vunpack.c.l.b16 %v1653
    %v1745 = vunpack.c.h.b16 %v1653
    %v1746 = vunpack.c.l.b16 %v1654
    %v1747 = vunpack.c.h.b16 %v1654
    %v1748 = vunpack.c.l.b16 %v1655
    %v1749 = vunpack.c.h.b16 %v1655
    %v1750 = vunpack.c.l.b16 %v1656
    %v1751 = vunpack.c.h.b16 %v1656
    %v1752 = vunpack.c.l.b16 %v1657
    %v1753 = vunpack.c.h.b16 %v1657
    %v1754 = vpack.c.b16 %v1694, %v1690
    %v1755 = vpack.c.b16 %v1695, %v1691
    %v1756 = vpack.c.b16 %v1696, %v1692
    %v1757 = vpack.c.b16 %v1697, %v1693
    %v1758 = vpack.c.b16 %v1702, %v1698
    %v1759 = vpack.c.b16 %v1703, %v1699
    %v1760 = vpack.c.b16 %v1704, %v1700
    %v1761 = vpack.c.b16 %v1705, %v1701
    %v1762 = vpack.c.b16 %v1710, %v1706
    %v1763 = vpack.c.b16 %v1711, %v1707
    %v1764 = vpack.c.b16 %v1712, %v1708
    %v1765 = vpack.c.b16 %v1713, %v1709
    %v1766 = vpack.c.b16 %v1718, %v1714
    %v1767 = vpack.c.b16 %v1719, %v1715
    %v1768 = vpack.c.b16 %v1720, %v1716
    %v1769 = vpack.c.b16 %v1721, %v1717
    %v1770 = vpack.c.b16 %v1726, %v1722
    %v1771 = vpack.c.b16 %v1727, %v1723
    %v1772 = vpack.c.b16 %v1728, %v1724
    %v1773 = vpack.c.b16 %v1729, %v1725
    %v1774 = vpack.c.b16 %v1734, %v1730
    %v1775 = vpack.c.b16 %v1735, %v1731
    %v1776 = vpack.c.b16 %v1736, %v1732
    %v1777 = vpack.c.b16 %v1737, %v1733
    %v1778 = vpack.c.b16 %v1742, %v1738
    %v1779 = vpack.c.b16 %v1743, %v1739
    %v1780 = vpack.c.b16 %v1744, %v1740
    %v1781 = vpack.c.b16 %v1745, %v1741
    %v1782 = vpack.c.b16 %v1750, %v1746
    %v1783 = vpack.c.b16 %v1751, %v1747
    %v1784 = vpack.c.b16 %v1752, %v1748
    %v1785 = vpack.c.b16 %v1753, %v1749
    %1818 = vmatpush.bf16.msra.mxu0 %v1782
    %1819 = vmatpush.bf16.msra.mxu0 %v1778
    %1820 = vmatpush.bf16.msra.mxu0 %v1774
    %1821 = vmatpush.bf16.msra.mxu0 %v1770
    %1822 = vmatpush.bf16.msra.mxu0 %v1766
    %1823 = vmatpush.bf16.msra.mxu0 %v1762
    %1824 = vmatpush.bf16.msra.mxu0 %v1758
    %1825 = vmatpush.bf16.msra.mxu0 %v1754
    %1826 = vmatmul.bf16.gmra.mxu0 0
    %v1827 = vpop.f32.mrf.mxu0
    %v1828 = vadd.f32 0.0, %v1827
    %v1829 = vpop.f32.mrf.mxu0
    %v1830 = vadd.f32 0.0, %v1829
    %1831 = vdwg.mxu0
    %1832 = vmatpush.bf16.msra.mxu0 %v1783
    %1833 = vmatpush.bf16.msra.mxu0 %v1779
    %1834 = vmatpush.bf16.msra.mxu0 %v1775
    %1835 = vmatpush.bf16.msra.mxu0 %v1771
    %1836 = vmatpush.bf16.msra.mxu0 %v1767
    %1837 = vmatpush.bf16.msra.mxu0 %v1763
    %1838 = vmatpush.bf16.msra.mxu0 %v1759
    %1839 = vmatpush.bf16.msra.mxu0 %v1755
    %1840 = vmatmul.bf16.gmra.mxu0 0
    %v1841 = vpop.f32.mrf.mxu0
    %v1842 = vadd.f32 0.0, %v1841
    %v1843 = vpop.f32.mrf.mxu0
    %v1844 = vadd.f32 0.0, %v1843
    %1845 = vdwg.mxu0
    %1846 = vmatpush.bf16.msra.mxu0 %v1784
    %1847 = vmatpush.bf16.msra.mxu0 %v1780
    %1848 = vmatpush.bf16.msra.mxu0 %v1776
    %1849 = vmatpush.bf16.msra.mxu0 %v1772
    %1850 = vmatpush.bf16.msra.mxu0 %v1768
    %1851 = vmatpush.bf16.msra.mxu0 %v1764
    %1852 = vmatpush.bf16.msra.mxu0 %v1760
    %1853 = vmatpush.bf16.msra.mxu0 %v1756
    %1854 = vmatmul.bf16.gmra.mxu0 0
    %v1855 = vpop.f32.mrf.mxu0
    %v1856 = vadd.f32 0.0, %v1855
    %v1857 = vpop.f32.mrf.mxu0
    %v1858 = vadd.f32 0.0, %v1857
    %1859 = vdwg.mxu0
    %1860 = vmatpush.bf16.msra.mxu0 %v1785
    %1861 = vmatpush.bf16.msra.mxu0 %v1781
    %1862 = vmatpush.bf16.msra.mxu0 %v1777
    %1863 = vmatpush.bf16.msra.mxu0 %v1773
    %1864 = vmatpush.bf16.msra.mxu0 %v1769
    %1865 = vmatpush.bf16.msra.mxu0 %v1765
    %1866 = vmatpush.bf16.msra.mxu0 %v1761
    %1867 = vmatpush.bf16.msra.mxu0 %v1757
    %1868 = vmatmul.bf16.gmra.mxu0 0
    %v1869 = vpop.f32.mrf.mxu0
    %v1870 = vadd.f32 0.0, %v1869
    %v1871 = vpop.f32.mrf.mxu0
    %v1872 = vadd.f32 0.0, %v1871
    %1873 = vdwg.mxu0
    %v1874 = vunpack.c.l.bf16 %v1358
    %v1875 = vunpack.c.h.bf16 %v1358
    %v1876 = vunpack.c.l.bf16 %v1359
    %v1877 = vunpack.c.h.bf16 %v1359
    %v1878 = vunpack.c.l.bf16 %v1360
    %v1879 = vunpack.c.h.bf16 %v1360
    %v1880 = vunpack.c.l.bf16 %v1361
    %v1881 = vunpack.c.h.bf16 %v1361
    %v1882 = vadd.f32 %v1874, %v1828
    %v1883 = vadd.f32 %v1875, %v1842
    %v1884 = vadd.f32 %v1876, %v1856
    %v1885 = vadd.f32 %v1877, %v1870
    %v1886 = vadd.f32 %v1878, %v1830
    %v1887 = vadd.f32 %v1879, %v1844
    %v1888 = vadd.f32 %v1880, %v1858
    %v1889 = vadd.f32 %v1881, %v1872
    %v1890 = vxor.u32 %v1618, 2147483648
    %v1891 = vxor.u32 %v1622, 2147483648
    %v1892 = vmul.f32 %v1890, 1.442695
    %v1893 = vpow.pop %v1892
    %v1894 = vmul.f32 %v1891, 1.442695
    %v1895 = vpow.pop %v1894
    %v1896 = vadd.f32 %v1893, 1.0
    %v1897 = vadd.f32 %v1895, 1.0
    %v1898 = vrcp.pop %v1896
    %v1899 = vmul.f32 %v1896, %v1898
    %v1900 = vsub.f32 1.0, %v1899
    %v1901 = vmul.f32 %v1898, %v1900
    %v1902 = vadd.f32 %v1898, %v1901
    %vm1903 = vweird.f32 %v1896
    %vm1904 = vweird.f32 %v1898
    %vm1905 = vmor %vm1903, %vm1904
    %v1906 = vsel %vm1905, %v1898, %v1902
    %v1907 = vand.u32 2147483647, %v1896
    %vm1908 = vcmp.eq.f32.partialorder %v1907, 8.507059e+37
    %v1909 = vand.u32 %v1896, 2147483648
    %v1910 = vor.u32 1.1754944e-38, %v1909
    %v1911 = vsel %vm1908, %v1910, %v1906
    %v1912 = vmul.f32 1.0, %v1911
    %v1913 = vrcp.pop %v1897
    %v1914 = vmul.f32 %v1897, %v1913
    %v1915 = vsub.f32 1.0, %v1914
    %v1916 = vmul.f32 %v1913, %v1915
    %v1917 = vadd.f32 %v1913, %v1916
    %vm1918 = vweird.f32 %v1897
    %vm1919 = vweird.f32 %v1913
    %vm1920 = vmor %vm1918, %vm1919
    %v1921 = vsel %vm1920, %v1913, %v1917
    %v1922 = vand.u32 2147483647, %v1897
    %vm1923 = vcmp.eq.f32.partialorder %v1922, 8.507059e+37
    %v1924 = vand.u32 %v1897, 2147483648
    %v1925 = vor.u32 1.1754944e-38, %v1924
    %v1926 = vsel %vm1923, %v1925, %v1921
    %v1927 = vmul.f32 1.0, %v1926
    %v1928 = vxor.u32 %v1619, 2147483648
    %v1929 = vxor.u32 %v1623, 2147483648
    %v1930 = vmul.f32 %v1928, 1.442695
    %v1931 = vpow.pop %v1930
    %v1932 = vmul.f32 %v1929, 1.442695
    %v1933 = vpow.pop %v1932
    %v1934 = vadd.f32 %v1931, 1.0
    %v1935 = vadd.f32 %v1933, 1.0
    %v1936 = vrcp.pop %v1934
    %v1937 = vmul.f32 %v1934, %v1936
    %v1938 = vsub.f32 1.0, %v1937
    %v1939 = vmul.f32 %v1936, %v1938
    %v1940 = vadd.f32 %v1936, %v1939
    %vm1941 = vweird.f32 %v1934
    %vm1942 = vweird.f32 %v1936
    %vm1943 = vmor %vm1941, %vm1942
    %v1944 = vsel %vm1943, %v1936, %v1940
    %v1945 = vand.u32 2147483647, %v1934
    %vm1946 = vcmp.eq.f32.partialorder %v1945, 8.507059e+37
    %v1947 = vand.u32 %v1934, 2147483648
    %v1948 = vor.u32 1.1754944e-38, %v1947
    %v1949 = vsel %vm1946, %v1948, %v1944
    %v1950 = vmul.f32 1.0, %v1949
    %v1951 = vrcp.pop %v1935
    %v1952 = vmul.f32 %v1935, %v1951
    %v1953 = vsub.f32 1.0, %v1952
    %v1954 = vmul.f32 %v1951, %v1953
    %v1955 = vadd.f32 %v1951, %v1954
    %vm1956 = vweird.f32 %v1935
    %vm1957 = vweird.f32 %v1951
    %vm1958 = vmor %vm1956, %vm1957
    %v1959 = vsel %vm1958, %v1951, %v1955
    %v1960 = vand.u32 2147483647, %v1935
    %vm1961 = vcmp.eq.f32.partialorder %v1960, 8.507059e+37
    %v1962 = vand.u32 %v1935, 2147483648
    %v1963 = vor.u32 1.1754944e-38, %v1962
    %v1964 = vsel %vm1961, %v1963, %v1959
    %v1965 = vmul.f32 1.0, %v1964
    %v1966 = vtanh.pop %v1620
    %v1967 = vtanh.pop %v1624
    %v1968 = vxor.u32 %v1621, 2147483648
    %v1969 = vxor.u32 %v1625, 2147483648
    %v1970 = vmul.f32 %v1968, 1.442695
    %v1971 = vpow.pop %v1970
    %v1972 = vmul.f32 %v1969, 1.442695
    %v1973 = vpow.pop %v1972
    %v1974 = vadd.f32 %v1971, 1.0
    %v1975 = vadd.f32 %v1973, 1.0
    %v1976 = vrcp.pop %v1974
    %v1977 = vmul.f32 %v1974, %v1976
    %v1978 = vsub.f32 1.0, %v1977
    %v1979 = vmul.f32 %v1976, %v1978
    %v1980 = vadd.f32 %v1976, %v1979
    %vm1981 = vweird.f32 %v1974
    %vm1982 = vweird.f32 %v1976
    %vm1983 = vmor %vm1981, %vm1982
    %v1984 = vsel %vm1983, %v1976, %v1980
    %v1985 = vand.u32 2147483647, %v1974
    %vm1986 = vcmp.eq.f32.partialorder %v1985, 8.507059e+37
    %v1987 = vand.u32 %v1974, 2147483648
    %v1988 = vor.u32 1.1754944e-38, %v1987
    %v1989 = vsel %vm1986, %v1988, %v1984
    %v1990 = vmul.f32 1.0, %v1989
    %v1991 = vrcp.pop %v1975
    %v1992 = vmul.f32 %v1975, %v1991
    %v1993 = vsub.f32 1.0, %v1992
    %v1994 = vmul.f32 %v1991, %v1993
    %v1995 = vadd.f32 %v1991, %v1994
    %vm1996 = vweird.f32 %v1975
    %vm1997 = vweird.f32 %v1991
    %vm1998 = vmor %vm1996, %vm1997
    %v1999 = vsel %vm1998, %v1991, %v1995
    %v2000 = vand.u32 2147483647, %v1975
    %vm2001 = vcmp.eq.f32.partialorder %v2000, 8.507059e+37
    %v2002 = vand.u32 %v1975, 2147483648
    %v2003 = vor.u32 1.1754944e-38, %v2002
    %v2004 = vsel %vm2001, %v2003, %v1999
    %v2005 = vmul.f32 1.0, %v2004
    %v2006 = vmul.f32 %v1950, 0.0
    %v2007 = vmul.f32 %v1965, 0.0
    %v2008 = vmul.f32 %v1912, %v1966
    %v2009 = vmul.f32 %v1927, %v1967
    %v2010 = vadd.f32 %v2006, %v2008
    %v2011 = vadd.f32 %v2007, %v2009
    %v2012 = vtanh.pop %v2010
    %v2013 = vtanh.pop %v2011
    %v2014 = vmul.f32 %v1990, %v2012
    %v2015 = vmul.f32 %v2005, %v2013
    %v2016 = vxor.u32 %v1882, 2147483648
    %v2017 = vxor.u32 %v1886, 2147483648
    %v2018 = vmul.f32 %v2016, 1.442695
    %v2019 = vpow.pop %v2018
    %v2020 = vmul.f32 %v2017, 1.442695
    %v2021 = vpow.pop %v2020
    %v2022 = vadd.f32 %v2019, 1.0
    %v2023 = vadd.f32 %v2021, 1.0
    %v2024 = vrcp.pop %v2022
    %v2025 = vmul.f32 %v2022, %v2024
    %v2026 = vsub.f32 1.0, %v2025
    %v2027 = vmul.f32 %v2024, %v2026
    %v2028 = vadd.f32 %v2024, %v2027
    %vm2029 = vweird.f32 %v2022
    %vm2030 = vweird.f32 %v2024
    %vm2031 = vmor %vm2029, %vm2030
    %v2032 = vsel %vm2031, %v2024, %v2028
    %v2033 = vand.u32 2147483647, %v2022
    %vm2034 = vcmp.eq.f32.partialorder %v2033, 8.507059e+37
    %v2035 = vand.u32 %v2022, 2147483648
    %v2036 = vor.u32 1.1754944e-38, %v2035
    %v2037 = vsel %vm2034, %v2036, %v2032
    %v2038 = vmul.f32 1.0, %v2037
    %v2039 = vrcp.pop %v2023
    %v2040 = vmul.f32 %v2023, %v2039
    %v2041 = vsub.f32 1.0, %v2040
    %v2042 = vmul.f32 %v2039, %v2041
    %v2043 = vadd.f32 %v2039, %v2042
    %vm2044 = vweird.f32 %v2023
    %vm2045 = vweird.f32 %v2039
    %vm2046 = vmor %vm2044, %vm2045
    %v2047 = vsel %vm2046, %v2039, %v2043
    %v2048 = vand.u32 2147483647, %v2023
    %vm2049 = vcmp.eq.f32.partialorder %v2048, 8.507059e+37
    %v2050 = vand.u32 %v2023, 2147483648
    %v2051 = vor.u32 1.1754944e-38, %v2050
    %v2052 = vsel %vm2049, %v2051, %v2047
    %v2053 = vmul.f32 1.0, %v2052
    %v2054 = vxor.u32 %v1883, 2147483648
    %v2055 = vxor.u32 %v1887, 2147483648
    %v2056 = vmul.f32 %v2054, 1.442695
    %v2057 = vpow.pop %v2056
    %v2058 = vmul.f32 %v2055, 1.442695
    %v2059 = vpow.pop %v2058
    %v2060 = vadd.f32 %v2057, 1.0
    %v2061 = vadd.f32 %v2059, 1.0
    %v2062 = vrcp.pop %v2060
    %v2063 = vmul.f32 %v2060, %v2062
    %v2064 = vsub.f32 1.0, %v2063
    %v2065 = vmul.f32 %v2062, %v2064
    %v2066 = vadd.f32 %v2062, %v2065
    %vm2067 = vweird.f32 %v2060
    %vm2068 = vweird.f32 %v2062
    %vm2069 = vmor %vm2067, %vm2068
    %v2070 = vsel %vm2069, %v2062, %v2066
    %v2071 = vand.u32 2147483647, %v2060
    %vm2072 = vcmp.eq.f32.partialorder %v2071, 8.507059e+37
    %v2073 = vand.u32 %v2060, 2147483648
    %v2074 = vor.u32 1.1754944e-38, %v2073
    %v2075 = vsel %vm2072, %v2074, %v2070
    %v2076 = vmul.f32 1.0, %v2075
    %v2077 = vrcp.pop %v2061
    %v2078 = vmul.f32 %v2061, %v2077
    %v2079 = vsub.f32 1.0, %v2078
    %v2080 = vmul.f32 %v2077, %v2079
    %v2081 = vadd.f32 %v2077, %v2080
    %vm2082 = vweird.f32 %v2061
    %vm2083 = vweird.f32 %v2077
    %vm2084 = vmor %vm2082, %vm2083
    %v2085 = vsel %vm2084, %v2077, %v2081
    %v2086 = vand.u32 2147483647, %v2061
    %vm2087 = vcmp.eq.f32.partialorder %v2086, 8.507059e+37
    %v2088 = vand.u32 %v2061, 2147483648
    %v2089 = vor.u32 1.1754944e-38, %v2088
    %v2090 = vsel %vm2087, %v2089, %v2085
    %v2091 = vmul.f32 1.0, %v2090
    %v2092 = vtanh.pop %v1884
    %v2093 = vtanh.pop %v1888
    %v2094 = vxor.u32 %v1885, 2147483648
    %v2095 = vxor.u32 %v1889, 2147483648
    %v2096 = vmul.f32 %v2094, 1.442695
    %v2097 = vpow.pop %v2096
    %v2098 = vmul.f32 %v2095, 1.442695
    %v2099 = vpow.pop %v2098
    %v2100 = vadd.f32 %v2097, 1.0
    %v2101 = vadd.f32 %v2099, 1.0
    %v2102 = vrcp.pop %v2100
    %v2103 = vmul.f32 %v2100, %v2102
    %v2104 = vsub.f32 1.0, %v2103
    %v2105 = vmul.f32 %v2102, %v2104
    %v2106 = vadd.f32 %v2102, %v2105
    %vm2107 = vweird.f32 %v2100
    %vm2108 = vweird.f32 %v2102
    %vm2109 = vmor %vm2107, %vm2108
    %v2110 = vsel %vm2109, %v2102, %v2106
    %v2111 = vand.u32 2147483647, %v2100
    %vm2112 = vcmp.eq.f32.partialorder %v2111, 8.507059e+37
    %v2113 = vand.u32 %v2100, 2147483648
    %v2114 = vor.u32 1.1754944e-38, %v2113
    %v2115 = vsel %vm2112, %v2114, %v2110
    %v2116 = vmul.f32 1.0, %v2115
    %v2117 = vrcp.pop %v2101
    %v2118 = vmul.f32 %v2101, %v2117
    %v2119 = vsub.f32 1.0, %v2118
    %v2120 = vmul.f32 %v2117, %v2119
    %v2121 = vadd.f32 %v2117, %v2120
    %vm2122 = vweird.f32 %v2101
    %vm2123 = vweird.f32 %v2117
    %vm2124 = vmor %vm2122, %vm2123
    %v2125 = vsel %vm2124, %v2117, %v2121
    %v2126 = vand.u32 2147483647, %v2101
    %vm2127 = vcmp.eq.f32.partialorder %v2126, 8.507059e+37
    %v2128 = vand.u32 %v2101, 2147483648
    %v2129 = vor.u32 1.1754944e-38, %v2128
    %v2130 = vsel %vm2127, %v2129, %v2125
    %v2131 = vmul.f32 1.0, %v2130
    %v2132 = vmul.f32 %v2076, 0.0
    %v2133 = vmul.f32 %v2091, 0.0
    %v2134 = vmul.f32 %v2038, %v2092
    %v2135 = vmul.f32 %v2053, %v2093
    %v2136 = vadd.f32 %v2132, %v2134
    %v2137 = vadd.f32 %v2133, %v2135
    %v2138 = vtanh.pop %v2136
    %v2139 = vtanh.pop %v2137
    %v2140 = vmul.f32 %v2116, %v2138
    %v2141 = vmul.f32 %v2131, %v2139
    %vm2142 = vcmp.gt.s32.totalorder %v1351, 0
    %vm2143 = vcmp.gt.s32.totalorder %v1352, 0
    %vm2144 = vcmp.gt.s32.totalorder %v1351, 11
    %vm2145 = vcmp.gt.s32.totalorder %v1352, 11
    %v2146 = vpack.c.bf16 %v2014, %v2014
    %v2147 = vpack.c.bf16 %v2015, %v2015
    %v2148 = vsel %vm2142, 1, 0
    %v2149 = vsel %vm2143, 1, 0
    %2150 = vset.pattern.permute.xlu0 0
    %2151 = vperm.xlu0 %2150, %v2148
    %v2152 = vpop.permute.xlu0 %2151
    %2153 = vset.pattern.permute.xlu0 0
    %2154 = vperm.xlu0 %2153, %v2149
    %v2155 = vpop.permute.xlu0 %2154
    %vm2156 = vcmp.eq.s32.totalorder %v2152, 1
    %vm2157 = vcmp.eq.s32.totalorder %v2155, 1
    %vm2158 = vmpackc.low %vm2156, %vm2156
    %vm2159 = vmpackc.low %vm2157, %vm2157
    %v2160 = vsel %vm2158, %v2146, 0
    %v2161 = vsel %vm2159, %v2147, 0
    %v2162 = vsel %vm2156, %v2010, 0.0
    %v2163 = vsel %vm2157, %v2011, 0.0
    %v2164 = vpack.c.bf16 %v2140, %v2140
    %v2165 = vpack.c.bf16 %v2141, %v2141
    %v2166 = vsel %vm2144, 1, 0
    %v2167 = vsel %vm2145, 1, 0
    %2168 = vset.pattern.permute.xlu0 0
    %2169 = vperm.xlu0 %2168, %v2166
    %v2170 = vpop.permute.xlu0 %2169
    %2171 = vset.pattern.permute.xlu0 0
    %2172 = vperm.xlu0 %2171, %v2167
    %v2173 = vpop.permute.xlu0 %2172
    %vm2174 = vcmp.eq.s32.totalorder %v2170, 1
    %vm2175 = vcmp.eq.s32.totalorder %v2173, 1
    %vm2176 = vmpackc.low %vm2174, %vm2174
    %vm2177 = vmpackc.low %vm2175, %vm2175
    %v2178 = vsel %vm2176, %v2164, 0
    %v2179 = vsel %vm2177, %v2165, 0
    %v2180 = vsel %vm2174, %v2136, 0.0
    %v2181 = vsel %vm2175, %v2137, 0.0
    %s2182 = scalar_lea.vmem [#allocation2], 64
    %v2183 = vld [vmem:[%s2182] sm:$0xff]
    %v2184 = vld [vmem:[%s2182 + $0x8] sm:$0xff]
    %v2185 = vld [vmem:[%s2182 + $0x20] sm:$0xff]
    %v2186 = vld [vmem:[%s2182 + $0x28] sm:$0xff]
    %s2187 = scalar_lea.vmem [#allocation2], 640
    %v2188 = vld [vmem:[%s2187 + $0x10] sm:$0xff]
    %v2189 = vld [vmem:[%s2187 + $0x18] sm:$0xff]
    %v2190 = vld [vmem:[%s2187 + $0x30] sm:$0xff]
    %v2191 = vld [vmem:[%s2187 + $0x38] sm:$0xff]
    %v2194 = vunpack.c.l.b16 %v2160
    %v2195 = vunpack.c.l.b16 %v2161
    %v2196 = vpack.c.b16 %v2195, %v2194
    %2198 = vmatpush.bf16.msra.mxu0 %v1518
    %2199 = vmatpush.bf16.msra.mxu0 %v1514
    %2200 = vmatpush.bf16.msra.mxu0 %v1510
    %2201 = vmatpush.bf16.msra.mxu0 %v1506
    %2202 = vmatpush.bf16.msra.mxu0 %v1502
    %2203 = vmatpush.bf16.msra.mxu0 %v1498
    %2204 = vmatpush.bf16.msra.mxu0 %v1494
    %2205 = vmatpush.bf16.msra.mxu0 %v1490
    %2206 = vmatmul.bf16.gmra.mxu0 %v2196
    %v2207 = vpop.f32.mrf.mxu0
    %v2208 = vadd.f32 0.0, %v2207
    %v2209 = vpop.f32.mrf.mxu0
    %v2210 = vadd.f32 0.0, %v2209
    %2211 = vdwg.mxu0
    %2212 = vmatpush.bf16.msra.mxu0 %v1519
    %2213 = vmatpush.bf16.msra.mxu0 %v1515
    %2214 = vmatpush.bf16.msra.mxu0 %v1511
    %2215 = vmatpush.bf16.msra.mxu0 %v1507
    %2216 = vmatpush.bf16.msra.mxu0 %v1503
    %2217 = vmatpush.bf16.msra.mxu0 %v1499
    %2218 = vmatpush.bf16.msra.mxu0 %v1495
    %2219 = vmatpush.bf16.msra.mxu0 %v1491
    %2220 = vmatmul.bf16.gmra.mxu0 %v2196
    %v2221 = vpop.f32.mrf.mxu0
    %v2222 = vadd.f32 0.0, %v2221
    %v2223 = vpop.f32.mrf.mxu0
    %v2224 = vadd.f32 0.0, %v2223
    %2225 = vdwg.mxu0
    %2226 = vmatpush.bf16.msra.mxu0 %v1520
    %2227 = vmatpush.bf16.msra.mxu0 %v1516
    %2228 = vmatpush.bf16.msra.mxu0 %v1512
    %2229 = vmatpush.bf16.msra.mxu0 %v1508
    %2230 = vmatpush.bf16.msra.mxu0 %v1504
    %2231 = vmatpush.bf16.msra.mxu0 %v1500
    %2232 = vmatpush.bf16.msra.mxu0 %v1496
    %2233 = vmatpush.bf16.msra.mxu0 %v1492
    %2234 = vmatmul.bf16.gmra.mxu0 %v2196
    %v2235 = vpop.f32.mrf.mxu0
    %v2236 = vadd.f32 0.0, %v2235
    %v2237 = vpop.f32.mrf.mxu0
    %v2238 = vadd.f32 0.0, %v2237
    %2239 = vdwg.mxu0
    %2240 = vmatpush.bf16.msra.mxu0 %v1521
    %2241 = vmatpush.bf16.msra.mxu0 %v1517
    %2242 = vmatpush.bf16.msra.mxu0 %v1513
    %2243 = vmatpush.bf16.msra.mxu0 %v1509
    %2244 = vmatpush.bf16.msra.mxu0 %v1505
    %2245 = vmatpush.bf16.msra.mxu0 %v1501
    %2246 = vmatpush.bf16.msra.mxu0 %v1497
    %2247 = vmatpush.bf16.msra.mxu0 %v1493
    %2248 = vmatmul.bf16.gmra.mxu0 %v2196
    %v2249 = vpop.f32.mrf.mxu0
    %v2250 = vadd.f32 0.0, %v2249
    %v2251 = vpop.f32.mrf.mxu0
    %v2252 = vadd.f32 0.0, %v2251
    %2253 = vdwg.mxu0
    %v2254 = vunpack.c.l.bf16 %v2183
    %v2255 = vunpack.c.h.bf16 %v2183
    %v2256 = vunpack.c.l.bf16 %v2184
    %v2257 = vunpack.c.h.bf16 %v2184
    %v2258 = vunpack.c.l.bf16 %v2185
    %v2259 = vunpack.c.h.bf16 %v2185
    %v2260 = vunpack.c.l.bf16 %v2186
    %v2261 = vunpack.c.h.bf16 %v2186
    %v2262 = vadd.f32 %v2254, %v2208
    %v2263 = vadd.f32 %v2255, %v2222
    %v2264 = vadd.f32 %v2256, %v2236
    %v2265 = vadd.f32 %v2257, %v2250
    %v2266 = vadd.f32 %v2258, %v2210
    %v2267 = vadd.f32 %v2259, %v2224
    %v2268 = vadd.f32 %v2260, %v2238
    %v2269 = vadd.f32 %v2261, %v2252
    %v2272 = vunpack.c.l.b16 %v2178
    %v2273 = vunpack.c.l.b16 %v2179
    %v2274 = vpack.c.b16 %v2273, %v2272
    %2276 = vmatpush.bf16.msra.mxu0 %v1782
    %2277 = vmatpush.bf16.msra.mxu0 %v1778
    %2278 = vmatpush.bf16.msra.mxu0 %v1774
    %2279 = vmatpush.bf16.msra.mxu0 %v1770
    %2280 = vmatpush.bf16.msra.mxu0 %v1766
    %2281 = vmatpush.bf16.msra.mxu0 %v1762
    %2282 = vmatpush.bf16.msra.mxu0 %v1758
    %2283 = vmatpush.bf16.msra.mxu0 %v1754
    %2284 = vmatmul.bf16.gmra.mxu0 %v2274
    %v2285 = vpop.f32.mrf.mxu0
    %v2286 = vadd.f32 0.0, %v2285
    %v2287 = vpop.f32.mrf.mxu0
    %v2288 = vadd.f32 0.0, %v2287
    %2289 = vdwg.mxu0
    %2290 = vmatpush.bf16.msra.mxu0 %v1783
    %2291 = vmatpush.bf16.msra.mxu0 %v1779
    %2292 = vmatpush.bf16.msra.mxu0 %v1775
    %2293 = vmatpush.bf16.msra.mxu0 %v1771
    %2294 = vmatpush.bf16.msra.mxu0 %v1767
    %2295 = vmatpush.bf16.msra.mxu0 %v1763
    %2296 = vmatpush.bf16.msra.mxu0 %v1759
    %2297 = vmatpush.bf16.msra.mxu0 %v1755
    %2298 = vmatmul.bf16.gmra.mxu0 %v2274
    %v2299 = vpop.f32.mrf.mxu0
    %v2300 = vadd.f32 0.0, %v2299
    %v2301 = vpop.f32.mrf.mxu0
    %v2302 = vadd.f32 0.0, %v2301
    %2303 = vdwg.mxu0
    %2304 = vmatpush.bf16.msra.mxu0 %v1784
    %2305 = vmatpush.bf16.msra.mxu0 %v1780
    %2306 = vmatpush.bf16.msra.mxu0 %v1776
    %2307 = vmatpush.bf16.msra.mxu0 %v1772
    %2308 = vmatpush.bf16.msra.mxu0 %v1768
    %2309 = vmatpush.bf16.msra.mxu0 %v1764
    %2310 = vmatpush.bf16.msra.mxu0 %v1760
    %2311 = vmatpush.bf16.msra.mxu0 %v1756
    %2312 = vmatmul.bf16.gmra.mxu0 %v2274
    %v2313 = vpop.f32.mrf.mxu0
    %v2314 = vadd.f32 0.0, %v2313
    %v2315 = vpop.f32.mrf.mxu0
    %v2316 = vadd.f32 0.0, %v2315
    %2317 = vdwg.mxu0
    %2318 = vmatpush.bf16.msra.mxu0 %v1785
    %2319 = vmatpush.bf16.msra.mxu0 %v1781
    %2320 = vmatpush.bf16.msra.mxu0 %v1777
    %2321 = vmatpush.bf16.msra.mxu0 %v1773
    %2322 = vmatpush.bf16.msra.mxu0 %v1769
    %2323 = vmatpush.bf16.msra.mxu0 %v1765
    %2324 = vmatpush.bf16.msra.mxu0 %v1761
    %2325 = vmatpush.bf16.msra.mxu0 %v1757
    %2326 = vmatmul.bf16.gmra.mxu0 %v2274
    %v2327 = vpop.f32.mrf.mxu0
    %v2328 = vadd.f32 0.0, %v2327
    %v2329 = vpop.f32.mrf.mxu0
    %v2330 = vadd.f32 0.0, %v2329
    %2331 = vdwg.mxu0
    %v2332 = vunpack.c.l.bf16 %v2188
    %v2333 = vunpack.c.h.bf16 %v2188
    %v2334 = vunpack.c.l.bf16 %v2189
    %v2335 = vunpack.c.h.bf16 %v2189
    %v2336 = vunpack.c.l.bf16 %v2190
    %v2337 = vunpack.c.h.bf16 %v2190
    %v2338 = vunpack.c.l.bf16 %v2191
    %v2339 = vunpack.c.h.bf16 %v2191
    %v2340 = vadd.f32 %v2332, %v2286
    %v2341 = vadd.f32 %v2333, %v2300
    %v2342 = vadd.f32 %v2334, %v2314
    %v2343 = vadd.f32 %v2335, %v2328
    %v2344 = vadd.f32 %v2336, %v2288
    %v2345 = vadd.f32 %v2337, %v2302
    %v2346 = vadd.f32 %v2338, %v2316
    %v2347 = vadd.f32 %v2339, %v2330
    %v2348 = vxor.u32 %v2262, 2147483648
    %v2349 = vxor.u32 %v2266, 2147483648
    %v2350 = vmul.f32 %v2348, 1.442695
    %v2351 = vpow.pop %v2350
    %v2352 = vmul.f32 %v2349, 1.442695
    %v2353 = vpow.pop %v2352
    %v2354 = vadd.f32 %v2351, 1.0
    %v2355 = vadd.f32 %v2353, 1.0
    %v2356 = vrcp.pop %v2354
    %v2357 = vmul.f32 %v2354, %v2356
    %v2358 = vsub.f32 1.0, %v2357
    %v2359 = vmul.f32 %v2356, %v2358
    %v2360 = vadd.f32 %v2356, %v2359
    %vm2361 = vweird.f32 %v2354
    %vm2362 = vweird.f32 %v2356
    %vm2363 = vmor %vm2361, %vm2362
    %v2364 = vsel %vm2363, %v2356, %v2360
    %v2365 = vand.u32 2147483647, %v2354
    %vm2366 = vcmp.eq.f32.partialorder %v2365, 8.507059e+37
    %v2367 = vand.u32 %v2354, 2147483648
    %v2368 = vor.u32 1.1754944e-38, %v2367
    %v2369 = vsel %vm2366, %v2368, %v2364
    %v2370 = vmul.f32 1.0, %v2369
    %v2371 = vrcp.pop %v2355
    %v2372 = vmul.f32 %v2355, %v2371
    %v2373 = vsub.f32 1.0, %v2372
    %v2374 = vmul.f32 %v2371, %v2373
    %v2375 = vadd.f32 %v2371, %v2374
    %vm2376 = vweird.f32 %v2355
    %vm2377 = vweird.f32 %v2371
    %vm2378 = vmor %vm2376, %vm2377
    %v2379 = vsel %vm2378, %v2371, %v2375
    %v2380 = vand.u32 2147483647, %v2355
    %vm2381 = vcmp.eq.f32.partialorder %v2380, 8.507059e+37
    %v2382 = vand.u32 %v2355, 2147483648
    %v2383 = vor.u32 1.1754944e-38, %v2382
    %v2384 = vsel %vm2381, %v2383, %v2379
    %v2385 = vmul.f32 1.0, %v2384
    %v2386 = vxor.u32 %v2263, 2147483648
    %v2387 = vxor.u32 %v2267, 2147483648
    %v2388 = vmul.f32 %v2386, 1.442695
    %v2389 = vpow.pop %v2388
    %v2390 = vmul.f32 %v2387, 1.442695
    %v2391 = vpow.pop %v2390
    %v2392 = vadd.f32 %v2389, 1.0
    %v2393 = vadd.f32 %v2391, 1.0
    %v2394 = vrcp.pop %v2392
    %v2395 = vmul.f32 %v2392, %v2394
    %v2396 = vsub.f32 1.0, %v2395
    %v2397 = vmul.f32 %v2394, %v2396
    %v2398 = vadd.f32 %v2394, %v2397
    %vm2399 = vweird.f32 %v2392
    %vm2400 = vweird.f32 %v2394
    %vm2401 = vmor %vm2399, %vm2400
    %v2402 = vsel %vm2401, %v2394, %v2398
    %v2403 = vand.u32 2147483647, %v2392
    %vm2404 = vcmp.eq.f32.partialorder %v2403, 8.507059e+37
    %v2405 = vand.u32 %v2392, 2147483648
    %v2406 = vor.u32 1.1754944e-38, %v2405
    %v2407 = vsel %vm2404, %v2406, %v2402
    %v2408 = vmul.f32 1.0, %v2407
    %v2409 = vrcp.pop %v2393
    %v2410 = vmul.f32 %v2393, %v2409
    %v2411 = vsub.f32 1.0, %v2410
    %v2412 = vmul.f32 %v2409, %v2411
    %v2413 = vadd.f32 %v2409, %v2412
    %vm2414 = vweird.f32 %v2393
    %vm2415 = vweird.f32 %v2409
    %vm2416 = vmor %vm2414, %vm2415
    %v2417 = vsel %vm2416, %v2409, %v2413
    %v2418 = vand.u32 2147483647, %v2393
    %vm2419 = vcmp.eq.f32.partialorder %v2418, 8.507059e+37
    %v2420 = vand.u32 %v2393, 2147483648
    %v2421 = vor.u32 1.1754944e-38, %v2420
    %v2422 = vsel %vm2419, %v2421, %v2417
    %v2423 = vmul.f32 1.0, %v2422
    %v2424 = vtanh.pop %v2264
    %v2425 = vtanh.pop %v2268
    %v2426 = vxor.u32 %v2265, 2147483648
    %v2427 = vxor.u32 %v2269, 2147483648
    %v2428 = vmul.f32 %v2426, 1.442695
    %v2429 = vpow.pop %v2428
    %v2430 = vmul.f32 %v2427, 1.442695
    %v2431 = vpow.pop %v2430
    %v2432 = vadd.f32 %v2429, 1.0
    %v2433 = vadd.f32 %v2431, 1.0
    %v2434 = vrcp.pop %v2432
    %v2435 = vmul.f32 %v2432, %v2434
    %v2436 = vsub.f32 1.0, %v2435
    %v2437 = vmul.f32 %v2434, %v2436
    %v2438 = vadd.f32 %v2434, %v2437
    %vm2439 = vweird.f32 %v2432
    %vm2440 = vweird.f32 %v2434
    %vm2441 = vmor %vm2439, %vm2440
    %v2442 = vsel %vm2441, %v2434, %v2438
    %v2443 = vand.u32 2147483647, %v2432
    %vm2444 = vcmp.eq.f32.partialorder %v2443, 8.507059e+37
    %v2445 = vand.u32 %v2432, 2147483648
    %v2446 = vor.u32 1.1754944e-38, %v2445
    %v2447 = vsel %vm2444, %v2446, %v2442
    %v2448 = vmul.f32 1.0, %v2447
    %v2449 = vrcp.pop %v2433
    %v2450 = vmul.f32 %v2433, %v2449
    %v2451 = vsub.f32 1.0, %v2450
    %v2452 = vmul.f32 %v2449, %v2451
    %v2453 = vadd.f32 %v2449, %v2452
    %vm2454 = vweird.f32 %v2433
    %vm2455 = vweird.f32 %v2449
    %vm2456 = vmor %vm2454, %vm2455
    %v2457 = vsel %vm2456, %v2449, %v2453
    %v2458 = vand.u32 2147483647, %v2433
    %vm2459 = vcmp.eq.f32.partialorder %v2458, 8.507059e+37
    %v2460 = vand.u32 %v2433, 2147483648
    %v2461 = vor.u32 1.1754944e-38, %v2460
    %v2462 = vsel %vm2459, %v2461, %v2457
    %v2463 = vmul.f32 1.0, %v2462
    %v2464 = vmul.f32 %v2408, %v2162
    %v2465 = vmul.f32 %v2423, %v2163
    %v2466 = vmul.f32 %v2370, %v2424
    %v2467 = vmul.f32 %v2385, %v2425
    %v2468 = vadd.f32 %v2464, %v2466
    %v2469 = vadd.f32 %v2465, %v2467
    %v2470 = vtanh.pop %v2468
    %v2471 = vtanh.pop %v2469
    %v2472 = vmul.f32 %v2448, %v2470
    %v2473 = vmul.f32 %v2463, %v2471
    %v2474 = vxor.u32 %v2340, 2147483648
    %v2475 = vxor.u32 %v2344, 2147483648
    %v2476 = vmul.f32 %v2474, 1.442695
    %v2477 = vpow.pop %v2476
    %v2478 = vmul.f32 %v2475, 1.442695
    %v2479 = vpow.pop %v2478
    %v2480 = vadd.f32 %v2477, 1.0
    %v2481 = vadd.f32 %v2479, 1.0
    %v2482 = vrcp.pop %v2480
    %v2483 = vmul.f32 %v2480, %v2482
    %v2484 = vsub.f32 1.0, %v2483
    %v2485 = vmul.f32 %v2482, %v2484
    %v2486 = vadd.f32 %v2482, %v2485
    %vm2487 = vweird.f32 %v2480
    %vm2488 = vweird.f32 %v2482
    %vm2489 = vmor %vm2487, %vm2488
    %v2490 = vsel %vm2489, %v2482, %v2486
    %v2491 = vand.u32 2147483647, %v2480
    %vm2492 = vcmp.eq.f32.partialorder %v2491, 8.507059e+37
    %v2493 = vand.u32 %v2480, 2147483648
    %v2494 = vor.u32 1.1754944e-38, %v2493
    %v2495 = vsel %vm2492, %v2494, %v2490
    %v2496 = vmul.f32 1.0, %v2495
    %v2497 = vrcp.pop %v2481
    %v2498 = vmul.f32 %v2481, %v2497
    %v2499 = vsub.f32 1.0, %v2498
    %v2500 = vmul.f32 %v2497, %v2499
    %v2501 = vadd.f32 %v2497, %v2500
    %vm2502 = vweird.f32 %v2481
    %vm2503 = vweird.f32 %v2497
    %vm2504 = vmor %vm2502, %vm2503
    %v2505 = vsel %vm2504, %v2497, %v2501
    %v2506 = vand.u32 2147483647, %v2481
    %vm2507 = vcmp.eq.f32.partialorder %v2506, 8.507059e+37
    %v2508 = vand.u32 %v2481, 2147483648
    %v2509 = vor.u32 1.1754944e-38, %v2508
    %v2510 = vsel %vm2507, %v2509, %v2505
    %v2511 = vmul.f32 1.0, %v2510
    %v2512 = vxor.u32 %v2341, 2147483648
    %v2513 = vxor.u32 %v2345, 2147483648
    %v2514 = vmul.f32 %v2512, 1.442695
    %v2515 = vpow.pop %v2514
    %v2516 = vmul.f32 %v2513, 1.442695
    %v2517 = vpow.pop %v2516
    %v2518 = vadd.f32 %v2515, 1.0
    %v2519 = vadd.f32 %v2517, 1.0
    %v2520 = vrcp.pop %v2518
    %v2521 = vmul.f32 %v2518, %v2520
    %v2522 = vsub.f32 1.0, %v2521
    %v2523 = vmul.f32 %v2520, %v2522
    %v2524 = vadd.f32 %v2520, %v2523
    %vm2525 = vweird.f32 %v2518
    %vm2526 = vweird.f32 %v2520
    %vm2527 = vmor %vm2525, %vm2526
    %v2528 = vsel %vm2527, %v2520, %v2524
    %v2529 = vand.u32 2147483647, %v2518
    %vm2530 = vcmp.eq.f32.partialorder %v2529, 8.507059e+37
    %v2531 = vand.u32 %v2518, 2147483648
    %v2532 = vor.u32 1.1754944e-38, %v2531
    %v2533 = vsel %vm2530, %v2532, %v2528
    %v2534 = vmul.f32 1.0, %v2533
    %v2535 = vrcp.pop %v2519
    %v2536 = vmul.f32 %v2519, %v2535
    %v2537 = vsub.f32 1.0, %v2536
    %v2538 = vmul.f32 %v2535, %v2537
    %v2539 = vadd.f32 %v2535, %v2538
    %vm2540 = vweird.f32 %v2519
    %vm2541 = vweird.f32 %v2535
    %vm2542 = vmor %vm2540, %vm2541
    %v2543 = vsel %vm2542, %v2535, %v2539
    %v2544 = vand.u32 2147483647, %v2519
    %vm2545 = vcmp.eq.f32.partialorder %v2544, 8.507059e+37
    %v2546 = vand.u32 %v2519, 2147483648
    %v2547 = vor.u32 1.1754944e-38, %v2546
    %v2548 = vsel %vm2545, %v2547, %v2543
    %v2549 = vmul.f32 1.0, %v2548
    %v2550 = vtanh.pop %v2342
    %v2551 = vtanh.pop %v2346
    %v2552 = vxor.u32 %v2343, 2147483648
    %v2553 = vxor.u32 %v2347, 2147483648
    %v2554 = vmul.f32 %v2552, 1.442695
    %v2555 = vpow.pop %v2554
    %v2556 = vmul.f32 %v2553, 1.442695
    %v2557 = vpow.pop %v2556
    %v2558 = vadd.f32 %v2555, 1.0
    %v2559 = vadd.f32 %v2557, 1.0
    %v2560 = vrcp.pop %v2558
    %v2561 = vmul.f32 %v2558, %v2560
    %v2562 = vsub.f32 1.0, %v2561
    %v2563 = vmul.f32 %v2560, %v2562
    %v2564 = vadd.f32 %v2560, %v2563
    %vm2565 = vweird.f32 %v2558
    %vm2566 = vweird.f32 %v2560
    %vm2567 = vmor %vm2565, %vm2566
    %v2568 = vsel %vm2567, %v2560, %v2564
    %v2569 = vand.u32 2147483647, %v2558
    %vm2570 = vcmp.eq.f32.partialorder %v2569, 8.507059e+37
    %v2571 = vand.u32 %v2558, 2147483648
    %v2572 = vor.u32 1.1754944e-38, %v2571
    %v2573 = vsel %vm2570, %v2572, %v2568
    %v2574 = vmul.f32 1.0, %v2573
    %v2575 = vrcp.pop %v2559
    %v2576 = vmul.f32 %v2559, %v2575
    %v2577 = vsub.f32 1.0, %v2576
    %v2578 = vmul.f32 %v2575, %v2577
    %v2579 = vadd.f32 %v2575, %v2578
    %vm2580 = vweird.f32 %v2559
    %vm2581 = vweird.f32 %v2575
    %vm2582 = vmor %vm2580, %vm2581
    %v2583 = vsel %vm2582, %v2575, %v2579
    %v2584 = vand.u32 2147483647, %v2559
    %vm2585 = vcmp.eq.f32.partialorder %v2584, 8.507059e+37
    %v2586 = vand.u32 %v2559, 2147483648
    %v2587 = vor.u32 1.1754944e-38, %v2586
    %v2588 = vsel %vm2585, %v2587, %v2583
    %v2589 = vmul.f32 1.0, %v2588
    %v2590 = vmul.f32 %v2534, %v2180
    %v2591 = vmul.f32 %v2549, %v2181
    %v2592 = vmul.f32 %v2496, %v2550
    %v2593 = vmul.f32 %v2511, %v2551
    %v2594 = vadd.f32 %v2590, %v2592
    %v2595 = vadd.f32 %v2591, %v2593
    %v2596 = vtanh.pop %v2594
    %v2597 = vtanh.pop %v2595
    %v2598 = vmul.f32 %v2574, %v2596
    %v2599 = vmul.f32 %v2589, %v2597
    %vm2600 = vcmp.gt.s32.totalorder %v1351, 1
    %vm2601 = vcmp.gt.s32.totalorder %v1352, 1
    %vm2602 = vcmp.gt.s32.totalorder %v1351, 10
    %vm2603 = vcmp.gt.s32.totalorder %v1352, 10
    %v2604 = vpack.c.bf16 %v2472, %v2472
    %v2605 = vpack.c.bf16 %v2473, %v2473
    %v2606 = vsel %vm2600, 1, 0
    %v2607 = vsel %vm2601, 1, 0
    %2608 = vset.pattern.permute.xlu0 0
    %2609 = vperm.xlu0 %2608, %v2606
    %v2610 = vpop.permute.xlu0 %2609
    %2611 = vset.pattern.permute.xlu0 0
    %2612 = vperm.xlu0 %2611, %v2607
    %v2613 = vpop.permute.xlu0 %2612
    %vm2614 = vcmp.eq.s32.totalorder %v2610, 1
    %vm2615 = vcmp.eq.s32.totalorder %v2613, 1
    %vm2616 = vmpackc.low %vm2614, %vm2614
    %vm2617 = vmpackc.low %vm2615, %vm2615
    %v2618 = vsel %vm2616, %v2604, %v2160
    %v2619 = vsel %vm2617, %v2605, %v2161
    %v2620 = vsel %vm2614, %v2468, %v2162
    %v2621 = vsel %vm2615, %v2469, %v2163
    %v2622 = vpack.c.bf16 %v2598, %v2598
    %v2623 = vpack.c.bf16 %v2599, %v2599
    %v2624 = vsel %vm2602, 1, 0
    %v2625 = vsel %vm2603, 1, 0
    %2626 = vset.pattern.permute.xlu0 0
    %2627 = vperm.xlu0 %2626, %v2624
    %v2628 = vpop.permute.xlu0 %2627
    %2629 = vset.pattern.permute.xlu0 0
    %2630 = vperm.xlu0 %2629, %v2625
    %v2631 = vpop.permute.xlu0 %2630
    %vm2632 = vcmp.eq.s32.totalorder %v2628, 1
    %vm2633 = vcmp.eq.s32.totalorder %v2631, 1
    %vm2634 = vmpackc.low %vm2632, %vm2632
    %vm2635 = vmpackc.low %vm2633, %vm2633
    %v2636 = vsel %vm2634, %v2622, %v2178
    %v2637 = vsel %vm2635, %v2623, %v2179
    %v2638 = vsel %vm2632, %v2594, %v2180
    %v2639 = vsel %vm2633, %v2595, %v2181
    %s2640 = scalar_lea.vmem [#allocation2], 128
    %v2641 = vld [vmem:[%s2640] sm:$0xff]
    %v2642 = vld [vmem:[%s2640 + $0x8] sm:$0xff]
    %v2643 = vld [vmem:[%s2640 + $0x20] sm:$0xff]
    %v2644 = vld [vmem:[%s2640 + $0x28] sm:$0xff]
    %s2645 = scalar_lea.vmem [#allocation2], 576
    %v2646 = vld [vmem:[%s2645 + $0x10] sm:$0xff]
    %v2647 = vld [vmem:[%s2645 + $0x18] sm:$0xff]
    %v2648 = vld [vmem:[%s2645 + $0x30] sm:$0xff]
    %v2649 = vld [vmem:[%s2645 + $0x38] sm:$0xff]
    %v2652 = vunpack.c.l.b16 %v2618
    %v2653 = vunpack.c.l.b16 %v2619
    %v2654 = vpack.c.b16 %v2653, %v2652
    %2656 = vmatpush.bf16.msra.mxu0 %v1518
    %2657 = vmatpush.bf16.msra.mxu0 %v1514
    %2658 = vmatpush.bf16.msra.mxu0 %v1510
    %2659 = vmatpush.bf16.msra.mxu0 %v1506
    %2660 = vmatpush.bf16.msra.mxu0 %v1502
    %2661 = vmatpush.bf16.msra.mxu0 %v1498
    %2662 = vmatpush.bf16.msra.mxu0 %v1494
    %2663 = vmatpush.bf16.msra.mxu0 %v1490
    %2664 = vmatmul.bf16.gmra.mxu0 %v2654
    %v2665 = vpop.f32.mrf.mxu0
    %v2666 = vadd.f32 0.0, %v2665
    %v2667 = vpop.f32.mrf.mxu0
    %v2668 = vadd.f32 0.0, %v2667
    %2669 = vdwg.mxu0
    %2670 = vmatpush.bf16.msra.mxu0 %v1519
    %2671 = vmatpush.bf16.msra.mxu0 %v1515
    %2672 = vmatpush.bf16.msra.mxu0 %v1511
    %2673 = vmatpush.bf16.msra.mxu0 %v1507
    %2674 = vmatpush.bf16.msra.mxu0 %v1503
    %2675 = vmatpush.bf16.msra.mxu0 %v1499
    %2676 = vmatpush.bf16.msra.mxu0 %v1495
    %2677 = vmatpush.bf16.msra.mxu0 %v1491
    %2678 = vmatmul.bf16.gmra.mxu0 %v2654
    %v2679 = vpop.f32.mrf.mxu0
    %v2680 = vadd.f32 0.0, %v2679
    %v2681 = vpop.f32.mrf.mxu0
    %v2682 = vadd.f32 0.0, %v2681
    %2683 = vdwg.mxu0
    %2684 = vmatpush.bf16.msra.mxu0 %v1520
    %2685 = vmatpush.bf16.msra.mxu0 %v1516
    %2686 = vmatpush.bf16.msra.mxu0 %v1512
    %2687 = vmatpush.bf16.msra.mxu0 %v1508
    %2688 = vmatpush.bf16.msra.mxu0 %v1504
    %2689 = vmatpush.bf16.msra.mxu0 %v1500
    %2690 = vmatpush.bf16.msra.mxu0 %v1496
    %2691 = vmatpush.bf16.msra.mxu0 %v1492
    %2692 = vmatmul.bf16.gmra.mxu0 %v2654
    %v2693 = vpop.f32.mrf.mxu0
    %v2694 = vadd.f32 0.0, %v2693
    %v2695 = vpop.f32.mrf.mxu0
    %v2696 = vadd.f32 0.0, %v2695
    %2697 = vdwg.mxu0
    %2698 = vmatpush.bf16.msra.mxu0 %v1521
    %2699 = vmatpush.bf16.msra.mxu0 %v1517
    %2700 = vmatpush.bf16.msra.mxu0 %v1513
    %2701 = vmatpush.bf16.msra.mxu0 %v1509
    %2702 = vmatpush.bf16.msra.mxu0 %v1505
    %2703 = vmatpush.bf16.msra.mxu0 %v1501
    %2704 = vmatpush.bf16.msra.mxu0 %v1497
    %2705 = vmatpush.bf16.msra.mxu0 %v1493
    %2706 = vmatmul.bf16.gmra.mxu0 %v2654
    %v2707 = vpop.f32.mrf.mxu0
    %v2708 = vadd.f32 0.0, %v2707
    %v2709 = vpop.f32.mrf.mxu0
    %v2710 = vadd.f32 0.0, %v2709
    %2711 = vdwg.mxu0
    %v2712 = vunpack.c.l.bf16 %v2641
    %v2713 = vunpack.c.h.bf16 %v2641
    %v2714 = vunpack.c.l.bf16 %v2642
    %v2715 = vunpack.c.h.bf16 %v2642
    %v2716 = vunpack.c.l.bf16 %v2643
    %v2717 = vunpack.c.h.bf16 %v2643
    %v2718 = vunpack.c.l.bf16 %v2644
    %v2719 = vunpack.c.h.bf16 %v2644
    %v2720 = vadd.f32 %v2712, %v2666
    %v2721 = vadd.f32 %v2713, %v2680
    %v2722 = vadd.f32 %v2714, %v2694
    %v2723 = vadd.f32 %v2715, %v2708
    %v2724 = vadd.f32 %v2716, %v2668
    %v2725 = vadd.f32 %v2717, %v2682
    %v2726 = vadd.f32 %v2718, %v2696
    %v2727 = vadd.f32 %v2719, %v2710
    %v2730 = vunpack.c.l.b16 %v2636
    %v2731 = vunpack.c.l.b16 %v2637
    %v2732 = vpack.c.b16 %v2731, %v2730
    %2734 = vmatpush.bf16.msra.mxu0 %v1782
    %2735 = vmatpush.bf16.msra.mxu0 %v1778
    %2736 = vmatpush.bf16.msra.mxu0 %v1774
    %2737 = vmatpush.bf16.msra.mxu0 %v1770
    %2738 = vmatpush.bf16.msra.mxu0 %v1766
    %2739 = vmatpush.bf16.msra.mxu0 %v1762
    %2740 = vmatpush.bf16.msra.mxu0 %v1758
    %2741 = vmatpush.bf16.msra.mxu0 %v1754
    %2742 = vmatmul.bf16.gmra.mxu0 %v2732
    %v2743 = vpop.f32.mrf.mxu0
    %v2744 = vadd.f32 0.0, %v2743
    %v2745 = vpop.f32.mrf.mxu0
    %v2746 = vadd.f32 0.0, %v2745
    %2747 = vdwg.mxu0
    %2748 = vmatpush.bf16.msra.mxu0 %v1783
    %2749 = vmatpush.bf16.msra.mxu0 %v1779
    %2750 = vmatpush.bf16.msra.mxu0 %v1775
    %2751 = vmatpush.bf16.msra.mxu0 %v1771
    %2752 = vmatpush.bf16.msra.mxu0 %v1767
    %2753 = vmatpush.bf16.msra.mxu0 %v1763
    %2754 = vmatpush.bf16.msra.mxu0 %v1759
    %2755 = vmatpush.bf16.msra.mxu0 %v1755
    %2756 = vmatmul.bf16.gmra.mxu0 %v2732
    %v2757 = vpop.f32.mrf.mxu0
    %v2758 = vadd.f32 0.0, %v2757
    %v2759 = vpop.f32.mrf.mxu0
    %v2760 = vadd.f32 0.0, %v2759
    %2761 = vdwg.mxu0
    %2762 = vmatpush.bf16.msra.mxu0 %v1784
    %2763 = vmatpush.bf16.msra.mxu0 %v1780
    %2764 = vmatpush.bf16.msra.mxu0 %v1776
    %2765 = vmatpush.bf16.msra.mxu0 %v1772
    %2766 = vmatpush.bf16.msra.mxu0 %v1768
    %2767 = vmatpush.bf16.msra.mxu0 %v1764
    %2768 = vmatpush.bf16.msra.mxu0 %v1760
    %2769 = vmatpush.bf16.msra.mxu0 %v1756
    %2770 = vmatmul.bf16.gmra.mxu0 %v2732
    %v2771 = vpop.f32.mrf.mxu0
    %v2772 = vadd.f32 0.0, %v2771
    %v2773 = vpop.f32.mrf.mxu0
    %v2774 = vadd.f32 0.0, %v2773
    %2775 = vdwg.mxu0
    %2776 = vmatpush.bf16.msra.mxu0 %v1785
    %2777 = vmatpush.bf16.msra.mxu0 %v1781
    %2778 = vmatpush.bf16.msra.mxu0 %v1777
    %2779 = vmatpush.bf16.msra.mxu0 %v1773
    %2780 = vmatpush.bf16.msra.mxu0 %v1769
    %2781 = vmatpush.bf16.msra.mxu0 %v1765
    %2782 = vmatpush.bf16.msra.mxu0 %v1761
    %2783 = vmatpush.bf16.msra.mxu0 %v1757
    %2784 = vmatmul.bf16.gmra.mxu0 %v2732
    %v2785 = vpop.f32.mrf.mxu0
    %v2786 = vadd.f32 0.0, %v2785
    %v2787 = vpop.f32.mrf.mxu0
    %v2788 = vadd.f32 0.0, %v2787
    %2789 = vdwg.mxu0
    %v2790 = vunpack.c.l.bf16 %v2646
    %v2791 = vunpack.c.h.bf16 %v2646
    %v2792 = vunpack.c.l.bf16 %v2647
    %v2793 = vunpack.c.h.bf16 %v2647
    %v2794 = vunpack.c.l.bf16 %v2648
    %v2795 = vunpack.c.h.bf16 %v2648
    %v2796 = vunpack.c.l.bf16 %v2649
    %v2797 = vunpack.c.h.bf16 %v2649
    %v2798 = vadd.f32 %v2790, %v2744
    %v2799 = vadd.f32 %v2791, %v2758
    %v2800 = vadd.f32 %v2792, %v2772
    %v2801 = vadd.f32 %v2793, %v2786
    %v2802 = vadd.f32 %v2794, %v2746
    %v2803 = vadd.f32 %v2795, %v2760
    %v2804 = vadd.f32 %v2796, %v2774
    %v2805 = vadd.f32 %v2797, %v2788
    %v2806 = vxor.u32 %v2720, 2147483648
    %v2807 = vxor.u32 %v2724, 2147483648
    %v2808 = vmul.f32 %v2806, 1.442695
    %v2809 = vpow.pop %v2808
    %v2810 = vmul.f32 %v2807, 1.442695
    %v2811 = vpow.pop %v2810
    %v2812 = vadd.f32 %v2809, 1.0
    %v2813 = vadd.f32 %v2811, 1.0
    %v2814 = vrcp.pop %v2812
    %v2815 = vmul.f32 %v2812, %v2814
    %v2816 = vsub.f32 1.0, %v2815
    %v2817 = vmul.f32 %v2814, %v2816
    %v2818 = vadd.f32 %v2814, %v2817
    %vm2819 = vweird.f32 %v2812
    %vm2820 = vweird.f32 %v2814
    %vm2821 = vmor %vm2819, %vm2820
    %v2822 = vsel %vm2821, %v2814, %v2818
    %v2823 = vand.u32 2147483647, %v2812
    %vm2824 = vcmp.eq.f32.partialorder %v2823, 8.507059e+37
    %v2825 = vand.u32 %v2812, 2147483648
    %v2826 = vor.u32 1.1754944e-38, %v2825
    %v2827 = vsel %vm2824, %v2826, %v2822
    %v2828 = vmul.f32 1.0, %v2827
    %v2829 = vrcp.pop %v2813
    %v2830 = vmul.f32 %v2813, %v2829
    %v2831 = vsub.f32 1.0, %v2830
    %v2832 = vmul.f32 %v2829, %v2831
    %v2833 = vadd.f32 %v2829, %v2832
    %vm2834 = vweird.f32 %v2813
    %vm2835 = vweird.f32 %v2829
    %vm2836 = vmor %vm2834, %vm2835
    %v2837 = vsel %vm2836, %v2829, %v2833
    %v2838 = vand.u32 2147483647, %v2813
    %vm2839 = vcmp.eq.f32.partialorder %v2838, 8.507059e+37
    %v2840 = vand.u32 %v2813, 2147483648
    %v2841 = vor.u32 1.1754944e-38, %v2840
    %v2842 = vsel %vm2839, %v2841, %v2837
    %v2843 = vmul.f32 1.0, %v2842
    %v2844 = vxor.u32 %v2721, 2147483648
    %v2845 = vxor.u32 %v2725, 2147483648
    %v2846 = vmul.f32 %v2844, 1.442695
    %v2847 = vpow.pop %v2846
    %v2848 = vmul.f32 %v2845, 1.442695
    %v2849 = vpow.pop %v2848
    %v2850 = vadd.f32 %v2847, 1.0
    %v2851 = vadd.f32 %v2849, 1.0
    %v2852 = vrcp.pop %v2850
    %v2853 = vmul.f32 %v2850, %v2852
    %v2854 = vsub.f32 1.0, %v2853
    %v2855 = vmul.f32 %v2852, %v2854
    %v2856 = vadd.f32 %v2852, %v2855
    %vm2857 = vweird.f32 %v2850
    %vm2858 = vweird.f32 %v2852
    %vm2859 = vmor %vm2857, %vm2858
    %v2860 = vsel %vm2859, %v2852, %v2856
    %v2861 = vand.u32 2147483647, %v2850
    %vm2862 = vcmp.eq.f32.partialorder %v2861, 8.507059e+37
    %v2863 = vand.u32 %v2850, 2147483648
    %v2864 = vor.u32 1.1754944e-38, %v2863
    %v2865 = vsel %vm2862, %v2864, %v2860
    %v2866 = vmul.f32 1.0, %v2865
    %v2867 = vrcp.pop %v2851
    %v2868 = vmul.f32 %v2851, %v2867
    %v2869 = vsub.f32 1.0, %v2868
    %v2870 = vmul.f32 %v2867, %v2869
    %v2871 = vadd.f32 %v2867, %v2870
    %vm2872 = vweird.f32 %v2851
    %vm2873 = vweird.f32 %v2867
    %vm2874 = vmor %vm2872, %vm2873
    %v2875 = vsel %vm2874, %v2867, %v2871
    %v2876 = vand.u32 2147483647, %v2851
    %vm2877 = vcmp.eq.f32.partialorder %v2876, 8.507059e+37
    %v2878 = vand.u32 %v2851, 2147483648
    %v2879 = vor.u32 1.1754944e-38, %v2878
    %v2880 = vsel %vm2877, %v2879, %v2875
    %v2881 = vmul.f32 1.0, %v2880
    %v2882 = vtanh.pop %v2722
    %v2883 = vtanh.pop %v2726
    %v2884 = vxor.u32 %v2723, 2147483648
    %v2885 = vxor.u32 %v2727, 2147483648
    %v2886 = vmul.f32 %v2884, 1.442695
    %v2887 = vpow.pop %v2886
    %v2888 = vmul.f32 %v2885, 1.442695
    %v2889 = vpow.pop %v2888
    %v2890 = vadd.f32 %v2887, 1.0
    %v2891 = vadd.f32 %v2889, 1.0
    %v2892 = vrcp.pop %v2890
    %v2893 = vmul.f32 %v2890, %v2892
    %v2894 = vsub.f32 1.0, %v2893
    %v2895 = vmul.f32 %v2892, %v2894
    %v2896 = vadd.f32 %v2892, %v2895
    %vm2897 = vweird.f32 %v2890
    %vm2898 = vweird.f32 %v2892
    %vm2899 = vmor %vm2897, %vm2898
    %v2900 = vsel %vm2899, %v2892, %v2896
    %v2901 = vand.u32 2147483647, %v2890
    %vm2902 = vcmp.eq.f32.partialorder %v2901, 8.507059e+37
    %v2903 = vand.u32 %v2890, 2147483648
    %v2904 = vor.u32 1.1754944e-38, %v2903
    %v2905 = vsel %vm2902, %v2904, %v2900
    %v2906 = vmul.f32 1.0, %v2905
    %v2907 = vrcp.pop %v2891
    %v2908 = vmul.f32 %v2891, %v2907
    %v2909 = vsub.f32 1.0, %v2908
    %v2910 = vmul.f32 %v2907, %v2909
    %v2911 = vadd.f32 %v2907, %v2910
    %vm2912 = vweird.f32 %v2891
    %vm2913 = vweird.f32 %v2907
    %vm2914 = vmor %vm2912, %vm2913
    %v2915 = vsel %vm2914, %v2907, %v2911
    %v2916 = vand.u32 2147483647, %v2891
    %vm2917 = vcmp.eq.f32.partialorder %v2916, 8.507059e+37
    %v2918 = vand.u32 %v2891, 2147483648
    %v2919 = vor.u32 1.1754944e-38, %v2918
    %v2920 = vsel %vm2917, %v2919, %v2915
    %v2921 = vmul.f32 1.0, %v2920
    %v2922 = vmul.f32 %v2866, %v2620
    %v2923 = vmul.f32 %v2881, %v2621
    %v2924 = vmul.f32 %v2828, %v2882
    %v2925 = vmul.f32 %v2843, %v2883
    %v2926 = vadd.f32 %v2922, %v2924
    %v2927 = vadd.f32 %v2923, %v2925
    %v2928 = vtanh.pop %v2926
    %v2929 = vtanh.pop %v2927
    %v2930 = vmul.f32 %v2906, %v2928
    %v2931 = vmul.f32 %v2921, %v2929
    %v2932 = vxor.u32 %v2798, 2147483648
    %v2933 = vxor.u32 %v2802, 2147483648
    %v2934 = vmul.f32 %v2932, 1.442695
    %v2935 = vpow.pop %v2934
    %v2936 = vmul.f32 %v2933, 1.442695
    %v2937 = vpow.pop %v2936
    %v2938 = vadd.f32 %v2935, 1.0
    %v2939 = vadd.f32 %v2937, 1.0
    %v2940 = vrcp.pop %v2938
    %v2941 = vmul.f32 %v2938, %v2940
    %v2942 = vsub.f32 1.0, %v2941
    %v2943 = vmul.f32 %v2940, %v2942
    %v2944 = vadd.f32 %v2940, %v2943
    %vm2945 = vweird.f32 %v2938
    %vm2946 = vweird.f32 %v2940
    %vm2947 = vmor %vm2945, %vm2946
    %v2948 = vsel %vm2947, %v2940, %v2944
    %v2949 = vand.u32 2147483647, %v2938
    %vm2950 = vcmp.eq.f32.partialorder %v2949, 8.507059e+37
    %v2951 = vand.u32 %v2938, 2147483648
    %v2952 = vor.u32 1.1754944e-38, %v2951
    %v2953 = vsel %vm2950, %v2952, %v2948
    %v2954 = vmul.f32 1.0, %v2953
    %v2955 = vrcp.pop %v2939
    %v2956 = vmul.f32 %v2939, %v2955
    %v2957 = vsub.f32 1.0, %v2956
    %v2958 = vmul.f32 %v2955, %v2957
    %v2959 = vadd.f32 %v2955, %v2958
    %vm2960 = vweird.f32 %v2939
    %vm2961 = vweird.f32 %v2955
    %vm2962 = vmor %vm2960, %vm2961
    %v2963 = vsel %vm2962, %v2955, %v2959
    %v2964 = vand.u32 2147483647, %v2939
    %vm2965 = vcmp.eq.f32.partialorder %v2964, 8.507059e+37
    %v2966 = vand.u32 %v2939, 2147483648
    %v2967 = vor.u32 1.1754944e-38, %v2966
    %v2968 = vsel %vm2965, %v2967, %v2963
    %v2969 = vmul.f32 1.0, %v2968
    %v2970 = vxor.u32 %v2799, 2147483648
    %v2971 = vxor.u32 %v2803, 2147483648
    %v2972 = vmul.f32 %v2970, 1.442695
    %v2973 = vpow.pop %v2972
    %v2974 = vmul.f32 %v2971, 1.442695
    %v2975 = vpow.pop %v2974
    %v2976 = vadd.f32 %v2973, 1.0
    %v2977 = vadd.f32 %v2975, 1.0
    %v2978 = vrcp.pop %v2976
    %v2979 = vmul.f32 %v2976, %v2978
    %v2980 = vsub.f32 1.0, %v2979
    %v2981 = vmul.f32 %v2978, %v2980
    %v2982 = vadd.f32 %v2978, %v2981
    %vm2983 = vweird.f32 %v2976
    %vm2984 = vweird.f32 %v2978
    %vm2985 = vmor %vm2983, %vm2984
    %v2986 = vsel %vm2985, %v2978, %v2982
    %v2987 = vand.u32 2147483647, %v2976
    %vm2988 = vcmp.eq.f32.partialorder %v2987, 8.507059e+37
    %v2989 = vand.u32 %v2976, 2147483648
    %v2990 = vor.u32 1.1754944e-38, %v2989
    %v2991 = vsel %vm2988, %v2990, %v2986
    %v2992 = vmul.f32 1.0, %v2991
    %v2993 = vrcp.pop %v2977
    %v2994 = vmul.f32 %v2977, %v2993
    %v2995 = vsub.f32 1.0, %v2994
    %v2996 = vmul.f32 %v2993, %v2995
    %v2997 = vadd.f32 %v2993, %v2996
    %vm2998 = vweird.f32 %v2977
    %vm2999 = vweird.f32 %v2993
    %vm3000 = vmor %vm2998, %vm2999
    %v3001 = vsel %vm3000, %v2993, %v2997
    %v3002 = vand.u32 2147483647, %v2977
    %vm3003 = vcmp.eq.f32.partialorder %v3002, 8.507059e+37
    %v3004 = vand.u32 %v2977, 2147483648
    %v3005 = vor.u32 1.1754944e-38, %v3004
    %v3006 = vsel %vm3003, %v3005, %v3001
    %v3007 = vmul.f32 1.0, %v3006
    %v3008 = vtanh.pop %v2800
    %v3009 = vtanh.pop %v2804
    %v3010 = vxor.u32 %v2801, 2147483648
    %v3011 = vxor.u32 %v2805, 2147483648
    %v3012 = vmul.f32 %v3010, 1.442695
    %v3013 = vpow.pop %v3012
    %v3014 = vmul.f32 %v3011, 1.442695
    %v3015 = vpow.pop %v3014
    %v3016 = vadd.f32 %v3013, 1.0
    %v3017 = vadd.f32 %v3015, 1.0
    %v3018 = vrcp.pop %v3016
    %v3019 = vmul.f32 %v3016, %v3018
    %v3020 = vsub.f32 1.0, %v3019
    %v3021 = vmul.f32 %v3018, %v3020
    %v3022 = vadd.f32 %v3018, %v3021
    %vm3023 = vweird.f32 %v3016
    %vm3024 = vweird.f32 %v3018
    %vm3025 = vmor %vm3023, %vm3024
    %v3026 = vsel %vm3025, %v3018, %v3022
    %v3027 = vand.u32 2147483647, %v3016
    %vm3028 = vcmp.eq.f32.partialorder %v3027, 8.507059e+37
    %v3029 = vand.u32 %v3016, 2147483648
    %v3030 = vor.u32 1.1754944e-38, %v3029
    %v3031 = vsel %vm3028, %v3030, %v3026
    %v3032 = vmul.f32 1.0, %v3031
    %v3033 = vrcp.pop %v3017
    %v3034 = vmul.f32 %v3017, %v3033
    %v3035 = vsub.f32 1.0, %v3034
    %v3036 = vmul.f32 %v3033, %v3035
    %v3037 = vadd.f32 %v3033, %v3036
    %vm3038 = vweird.f32 %v3017
    %vm3039 = vweird.f32 %v3033
    %vm3040 = vmor %vm3038, %vm3039
    %v3041 = vsel %vm3040, %v3033, %v3037
    %v3042 = vand.u32 2147483647, %v3017
    %vm3043 = vcmp.eq.f32.partialorder %v3042, 8.507059e+37
    %v3044 = vand.u32 %v3017, 2147483648
    %v3045 = vor.u32 1.1754944e-38, %v3044
    %v3046 = vsel %vm3043, %v3045, %v3041
    %v3047 = vmul.f32 1.0, %v3046
    %v3048 = vmul.f32 %v2992, %v2638
    %v3049 = vmul.f32 %v3007, %v2639
    %v3050 = vmul.f32 %v2954, %v3008
    %v3051 = vmul.f32 %v2969, %v3009
    %v3052 = vadd.f32 %v3048, %v3050
    %v3053 = vadd.f32 %v3049, %v3051
    %v3054 = vtanh.pop %v3052
    %v3055 = vtanh.pop %v3053
    %v3056 = vmul.f32 %v3032, %v3054
    %v3057 = vmul.f32 %v3047, %v3055
    %vm3058 = vcmp.gt.s32.totalorder %v1351, 2
    %vm3059 = vcmp.gt.s32.totalorder %v1352, 2
    %vm3060 = vcmp.gt.s32.totalorder %v1351, 9
    %vm3061 = vcmp.gt.s32.totalorder %v1352, 9
    %v3062 = vpack.c.bf16 %v2930, %v2930
    %v3063 = vpack.c.bf16 %v2931, %v2931
    %v3064 = vsel %vm3058, 1, 0
    %v3065 = vsel %vm3059, 1, 0
    %3066 = vset.pattern.permute.xlu0 0
    %3067 = vperm.xlu0 %3066, %v3064
    %v3068 = vpop.permute.xlu0 %3067
    %3069 = vset.pattern.permute.xlu0 0
    %3070 = vperm.xlu0 %3069, %v3065
    %v3071 = vpop.permute.xlu0 %3070
    %vm3072 = vcmp.eq.s32.totalorder %v3068, 1
    %vm3073 = vcmp.eq.s32.totalorder %v3071, 1
    %vm3074 = vmpackc.low %vm3072, %vm3072
    %vm3075 = vmpackc.low %vm3073, %vm3073
    %v3076 = vsel %vm3074, %v3062, %v2618
    %v3077 = vsel %vm3075, %v3063, %v2619
    %v3078 = vsel %vm3072, %v2926, %v2620
    %v3079 = vsel %vm3073, %v2927, %v2621
    %v3080 = vpack.c.bf16 %v3056, %v3056
    %v3081 = vpack.c.bf16 %v3057, %v3057
    %v3082 = vsel %vm3060, 1, 0
    %v3083 = vsel %vm3061, 1, 0
    %3084 = vset.pattern.permute.xlu0 0
    %3085 = vperm.xlu0 %3084, %v3082
    %v3086 = vpop.permute.xlu0 %3085
    %3087 = vset.pattern.permute.xlu0 0
    %3088 = vperm.xlu0 %3087, %v3083
    %v3089 = vpop.permute.xlu0 %3088
    %vm3090 = vcmp.eq.s32.totalorder %v3086, 1
    %vm3091 = vcmp.eq.s32.totalorder %v3089, 1
    %vm3092 = vmpackc.low %vm3090, %vm3090
    %vm3093 = vmpackc.low %vm3091, %vm3091
    %v3094 = vsel %vm3092, %v3080, %v2636
    %v3095 = vsel %vm3093, %v3081, %v2637
    %v3096 = vsel %vm3090, %v3052, %v2638
    %v3097 = vsel %vm3091, %v3053, %v2639
    %s3098 = scalar_lea.vmem [#allocation2], 192
    %v3099 = vld [vmem:[%s3098] sm:$0xff]
    %v3100 = vld [vmem:[%s3098 + $0x8] sm:$0xff]
    %v3101 = vld [vmem:[%s3098 + $0x20] sm:$0xff]
    %v3102 = vld [vmem:[%s3098 + $0x28] sm:$0xff]
    %s3103 = scalar_lea.vmem [#allocation2], 512
    %v3104 = vld [vmem:[%s3103 + $0x10] sm:$0xff]
    %v3105 = vld [vmem:[%s3103 + $0x18] sm:$0xff]
    %v3106 = vld [vmem:[%s3103 + $0x30] sm:$0xff]
    %v3107 = vld [vmem:[%s3103 + $0x38] sm:$0xff]
    %v3110 = vunpack.c.l.b16 %v3076
    %v3111 = vunpack.c.l.b16 %v3077
    %v3112 = vpack.c.b16 %v3111, %v3110
    %3114 = vmatpush.bf16.msra.mxu0 %v1518
    %3115 = vmatpush.bf16.msra.mxu0 %v1514
    %3116 = vmatpush.bf16.msra.mxu0 %v1510
    %3117 = vmatpush.bf16.msra.mxu0 %v1506
    %3118 = vmatpush.bf16.msra.mxu0 %v1502
    %3119 = vmatpush.bf16.msra.mxu0 %v1498
    %3120 = vmatpush.bf16.msra.mxu0 %v1494
    %3121 = vmatpush.bf16.msra.mxu0 %v1490
    %3122 = vmatmul.bf16.gmra.mxu0 %v3112
    %v3123 = vpop.f32.mrf.mxu0
    %v3124 = vadd.f32 0.0, %v3123
    %v3125 = vpop.f32.mrf.mxu0
    %v3126 = vadd.f32 0.0, %v3125
    %3127 = vdwg.mxu0
    %3128 = vmatpush.bf16.msra.mxu0 %v1519
    %3129 = vmatpush.bf16.msra.mxu0 %v1515
    %3130 = vmatpush.bf16.msra.mxu0 %v1511
    %3131 = vmatpush.bf16.msra.mxu0 %v1507
    %3132 = vmatpush.bf16.msra.mxu0 %v1503
    %3133 = vmatpush.bf16.msra.mxu0 %v1499
    %3134 = vmatpush.bf16.msra.mxu0 %v1495
    %3135 = vmatpush.bf16.msra.mxu0 %v1491
    %3136 = vmatmul.bf16.gmra.mxu0 %v3112
    %v3137 = vpop.f32.mrf.mxu0
    %v3138 = vadd.f32 0.0, %v3137
    %v3139 = vpop.f32.mrf.mxu0
    %v3140 = vadd.f32 0.0, %v3139
    %3141 = vdwg.mxu0
    %3142 = vmatpush.bf16.msra.mxu0 %v1520
    %3143 = vmatpush.bf16.msra.mxu0 %v1516
    %3144 = vmatpush.bf16.msra.mxu0 %v1512
    %3145 = vmatpush.bf16.msra.mxu0 %v1508
    %3146 = vmatpush.bf16.msra.mxu0 %v1504
    %3147 = vmatpush.bf16.msra.mxu0 %v1500
    %3148 = vmatpush.bf16.msra.mxu0 %v1496
    %3149 = vmatpush.bf16.msra.mxu0 %v1492
    %3150 = vmatmul.bf16.gmra.mxu0 %v3112
    %v3151 = vpop.f32.mrf.mxu0
    %v3152 = vadd.f32 0.0, %v3151
    %v3153 = vpop.f32.mrf.mxu0
    %v3154 = vadd.f32 0.0, %v3153
    %3155 = vdwg.mxu0
    %3156 = vmatpush.bf16.msra.mxu0 %v1521
    %3157 = vmatpush.bf16.msra.mxu0 %v1517
    %3158 = vmatpush.bf16.msra.mxu0 %v1513
    %3159 = vmatpush.bf16.msra.mxu0 %v1509
    %3160 = vmatpush.bf16.msra.mxu0 %v1505
    %3161 = vmatpush.bf16.msra.mxu0 %v1501
    %3162 = vmatpush.bf16.msra.mxu0 %v1497
    %3163 = vmatpush.bf16.msra.mxu0 %v1493
    %3164 = vmatmul.bf16.gmra.mxu0 %v3112
    %v3165 = vpop.f32.mrf.mxu0
    %v3166 = vadd.f32 0.0, %v3165
    %v3167 = vpop.f32.mrf.mxu0
    %v3168 = vadd.f32 0.0, %v3167
    %3169 = vdwg.mxu0
    %v3170 = vunpack.c.l.bf16 %v3099
    %v3171 = vunpack.c.h.bf16 %v3099
    %v3172 = vunpack.c.l.bf16 %v3100
    %v3173 = vunpack.c.h.bf16 %v3100
    %v3174 = vunpack.c.l.bf16 %v3101
    %v3175 = vunpack.c.h.bf16 %v3101
    %v3176 = vunpack.c.l.bf16 %v3102
    %v3177 = vunpack.c.h.bf16 %v3102
    %v3178 = vadd.f32 %v3170, %v3124
    %v3179 = vadd.f32 %v3171, %v3138
    %v3180 = vadd.f32 %v3172, %v3152
    %v3181 = vadd.f32 %v3173, %v3166
    %v3182 = vadd.f32 %v3174, %v3126
    %v3183 = vadd.f32 %v3175, %v3140
    %v3184 = vadd.f32 %v3176, %v3154
    %v3185 = vadd.f32 %v3177, %v3168
    %v3188 = vunpack.c.l.b16 %v3094
    %v3189 = vunpack.c.l.b16 %v3095
    %v3190 = vpack.c.b16 %v3189, %v3188
    %3192 = vmatpush.bf16.msra.mxu0 %v1782
    %3193 = vmatpush.bf16.msra.mxu0 %v1778
    %3194 = vmatpush.bf16.msra.mxu0 %v1774
    %3195 = vmatpush.bf16.msra.mxu0 %v1770
    %3196 = vmatpush.bf16.msra.mxu0 %v1766
    %3197 = vmatpush.bf16.msra.mxu0 %v1762
    %3198 = vmatpush.bf16.msra.mxu0 %v1758
    %3199 = vmatpush.bf16.msra.mxu0 %v1754
    %3200 = vmatmul.bf16.gmra.mxu0 %v3190
    %v3201 = vpop.f32.mrf.mxu0
    %v3202 = vadd.f32 0.0, %v3201
    %v3203 = vpop.f32.mrf.mxu0
    %v3204 = vadd.f32 0.0, %v3203
    %3205 = vdwg.mxu0
    %3206 = vmatpush.bf16.msra.mxu0 %v1783
    %3207 = vmatpush.bf16.msra.mxu0 %v1779
    %3208 = vmatpush.bf16.msra.mxu0 %v1775
    %3209 = vmatpush.bf16.msra.mxu0 %v1771
    %3210 = vmatpush.bf16.msra.mxu0 %v1767
    %3211 = vmatpush.bf16.msra.mxu0 %v1763
    %3212 = vmatpush.bf16.msra.mxu0 %v1759
    %3213 = vmatpush.bf16.msra.mxu0 %v1755
    %3214 = vmatmul.bf16.gmra.mxu0 %v3190
    %v3215 = vpop.f32.mrf.mxu0
    %v3216 = vadd.f32 0.0, %v3215
    %v3217 = vpop.f32.mrf.mxu0
    %v3218 = vadd.f32 0.0, %v3217
    %3219 = vdwg.mxu0
    %3220 = vmatpush.bf16.msra.mxu0 %v1784
    %3221 = vmatpush.bf16.msra.mxu0 %v1780
    %3222 = vmatpush.bf16.msra.mxu0 %v1776
    %3223 = vmatpush.bf16.msra.mxu0 %v1772
    %3224 = vmatpush.bf16.msra.mxu0 %v1768
    %3225 = vmatpush.bf16.msra.mxu0 %v1764
    %3226 = vmatpush.bf16.msra.mxu0 %v1760
    %3227 = vmatpush.bf16.msra.mxu0 %v1756
    %3228 = vmatmul.bf16.gmra.mxu0 %v3190
    %v3229 = vpop.f32.mrf.mxu0
    %v3230 = vadd.f32 0.0, %v3229
    %v3231 = vpop.f32.mrf.mxu0
    %v3232 = vadd.f32 0.0, %v3231
    %3233 = vdwg.mxu0
    %3234 = vmatpush.bf16.msra.mxu0 %v1785
    %3235 = vmatpush.bf16.msra.mxu0 %v1781
    %3236 = vmatpush.bf16.msra.mxu0 %v1777
    %3237 = vmatpush.bf16.msra.mxu0 %v1773
    %3238 = vmatpush.bf16.msra.mxu0 %v1769
    %3239 = vmatpush.bf16.msra.mxu0 %v1765
    %3240 = vmatpush.bf16.msra.mxu0 %v1761
    %3241 = vmatpush.bf16.msra.mxu0 %v1757
    %3242 = vmatmul.bf16.gmra.mxu0 %v3190
    %v3243 = vpop.f32.mrf.mxu0
    %v3244 = vadd.f32 0.0, %v3243
    %v3245 = vpop.f32.mrf.mxu0
    %v3246 = vadd.f32 0.0, %v3245
    %3247 = vdwg.mxu0
    %v3248 = vunpack.c.l.bf16 %v3104
    %v3249 = vunpack.c.h.bf16 %v3104
    %v3250 = vunpack.c.l.bf16 %v3105
    %v3251 = vunpack.c.h.bf16 %v3105
    %v3252 = vunpack.c.l.bf16 %v3106
    %v3253 = vunpack.c.h.bf16 %v3106
    %v3254 = vunpack.c.l.bf16 %v3107
    %v3255 = vunpack.c.h.bf16 %v3107
    %v3256 = vadd.f32 %v3248, %v3202
    %v3257 = vadd.f32 %v3249, %v3216
    %v3258 = vadd.f32 %v3250, %v3230
    %v3259 = vadd.f32 %v3251, %v3244
    %v3260 = vadd.f32 %v3252, %v3204
    %v3261 = vadd.f32 %v3253, %v3218
    %v3262 = vadd.f32 %v3254, %v3232
    %v3263 = vadd.f32 %v3255, %v3246
    %v3264 = vxor.u32 %v3178, 2147483648
    %v3265 = vxor.u32 %v3182, 2147483648
    %v3266 = vmul.f32 %v3264, 1.442695
    %v3267 = vpow.pop %v3266
    %v3268 = vmul.f32 %v3265, 1.442695
    %v3269 = vpow.pop %v3268
    %v3270 = vadd.f32 %v3267, 1.0
    %v3271 = vadd.f32 %v3269, 1.0
    %v3272 = vrcp.pop %v3270
    %v3273 = vmul.f32 %v3270, %v3272
    %v3274 = vsub.f32 1.0, %v3273
    %v3275 = vmul.f32 %v3272, %v3274
    %v3276 = vadd.f32 %v3272, %v3275
    %vm3277 = vweird.f32 %v3270
    %vm3278 = vweird.f32 %v3272
    %vm3279 = vmor %vm3277, %vm3278
    %v3280 = vsel %vm3279, %v3272, %v3276
    %v3281 = vand.u32 2147483647, %v3270
    %vm3282 = vcmp.eq.f32.partialorder %v3281, 8.507059e+37
    %v3283 = vand.u32 %v3270, 2147483648
    %v3284 = vor.u32 1.1754944e-38, %v3283
    %v3285 = vsel %vm3282, %v3284, %v3280
    %v3286 = vmul.f32 1.0, %v3285
    %v3287 = vrcp.pop %v3271
    %v3288 = vmul.f32 %v3271, %v3287
    %v3289 = vsub.f32 1.0, %v3288
    %v3290 = vmul.f32 %v3287, %v3289
    %v3291 = vadd.f32 %v3287, %v3290
    %vm3292 = vweird.f32 %v3271
    %vm3293 = vweird.f32 %v3287
    %vm3294 = vmor %vm3292, %vm3293
    %v3295 = vsel %vm3294, %v3287, %v3291
    %v3296 = vand.u32 2147483647, %v3271
    %vm3297 = vcmp.eq.f32.partialorder %v3296, 8.507059e+37
    %v3298 = vand.u32 %v3271, 2147483648
    %v3299 = vor.u32 1.1754944e-38, %v3298
    %v3300 = vsel %vm3297, %v3299, %v3295
    %v3301 = vmul.f32 1.0, %v3300
    %v3302 = vxor.u32 %v3179, 2147483648
    %v3303 = vxor.u32 %v3183, 2147483648
    %v3304 = vmul.f32 %v3302, 1.442695
    %v3305 = vpow.pop %v3304
    %v3306 = vmul.f32 %v3303, 1.442695
    %v3307 = vpow.pop %v3306
    %v3308 = vadd.f32 %v3305, 1.0
    %v3309 = vadd.f32 %v3307, 1.0
    %v3310 = vrcp.pop %v3308
    %v3311 = vmul.f32 %v3308, %v3310
    %v3312 = vsub.f32 1.0, %v3311
    %v3313 = vmul.f32 %v3310, %v3312
    %v3314 = vadd.f32 %v3310, %v3313
    %vm3315 = vweird.f32 %v3308
    %vm3316 = vweird.f32 %v3310
    %vm3317 = vmor %vm3315, %vm3316
    %v3318 = vsel %vm3317, %v3310, %v3314
    %v3319 = vand.u32 2147483647, %v3308
    %vm3320 = vcmp.eq.f32.partialorder %v3319, 8.507059e+37
    %v3321 = vand.u32 %v3308, 2147483648
    %v3322 = vor.u32 1.1754944e-38, %v3321
    %v3323 = vsel %vm3320, %v3322, %v3318
    %v3324 = vmul.f32 1.0, %v3323
    %v3325 = vrcp.pop %v3309
    %v3326 = vmul.f32 %v3309, %v3325
    %v3327 = vsub.f32 1.0, %v3326
    %v3328 = vmul.f32 %v3325, %v3327
    %v3329 = vadd.f32 %v3325, %v3328
    %vm3330 = vweird.f32 %v3309
    %vm3331 = vweird.f32 %v3325
    %vm3332 = vmor %vm3330, %vm3331
    %v3333 = vsel %vm3332, %v3325, %v3329
    %v3334 = vand.u32 2147483647, %v3309
    %vm3335 = vcmp.eq.f32.partialorder %v3334, 8.507059e+37
    %v3336 = vand.u32 %v3309, 2147483648
    %v3337 = vor.u32 1.1754944e-38, %v3336
    %v3338 = vsel %vm3335, %v3337, %v3333
    %v3339 = vmul.f32 1.0, %v3338
    %v3340 = vtanh.pop %v3180
    %v3341 = vtanh.pop %v3184
    %v3342 = vxor.u32 %v3181, 2147483648
    %v3343 = vxor.u32 %v3185, 2147483648
    %v3344 = vmul.f32 %v3342, 1.442695
    %v3345 = vpow.pop %v3344
    %v3346 = vmul.f32 %v3343, 1.442695
    %v3347 = vpow.pop %v3346
    %v3348 = vadd.f32 %v3345, 1.0
    %v3349 = vadd.f32 %v3347, 1.0
    %v3350 = vrcp.pop %v3348
    %v3351 = vmul.f32 %v3348, %v3350
    %v3352 = vsub.f32 1.0, %v3351
    %v3353 = vmul.f32 %v3350, %v3352
    %v3354 = vadd.f32 %v3350, %v3353
    %vm3355 = vweird.f32 %v3348
    %vm3356 = vweird.f32 %v3350
    %vm3357 = vmor %vm3355, %vm3356
    %v3358 = vsel %vm3357, %v3350, %v3354
    %v3359 = vand.u32 2147483647, %v3348
    %vm3360 = vcmp.eq.f32.partialorder %v3359, 8.507059e+37
    %v3361 = vand.u32 %v3348, 2147483648
    %v3362 = vor.u32 1.1754944e-38, %v3361
    %v3363 = vsel %vm3360, %v3362, %v3358
    %v3364 = vmul.f32 1.0, %v3363
    %v3365 = vrcp.pop %v3349
    %v3366 = vmul.f32 %v3349, %v3365
    %v3367 = vsub.f32 1.0, %v3366
    %v3368 = vmul.f32 %v3365, %v3367
    %v3369 = vadd.f32 %v3365, %v3368
    %vm3370 = vweird.f32 %v3349
    %vm3371 = vweird.f32 %v3365
    %vm3372 = vmor %vm3370, %vm3371
    %v3373 = vsel %vm3372, %v3365, %v3369
    %v3374 = vand.u32 2147483647, %v3349
    %vm3375 = vcmp.eq.f32.partialorder %v3374, 8.507059e+37
    %v3376 = vand.u32 %v3349, 2147483648
    %v3377 = vor.u32 1.1754944e-38, %v3376
    %v3378 = vsel %vm3375, %v3377, %v3373
    %v3379 = vmul.f32 1.0, %v3378
    %v3380 = vmul.f32 %v3324, %v3078
    %v3381 = vmul.f32 %v3339, %v3079
    %v3382 = vmul.f32 %v3286, %v3340
    %v3383 = vmul.f32 %v3301, %v3341
    %v3384 = vadd.f32 %v3380, %v3382
    %v3385 = vadd.f32 %v3381, %v3383
    %v3386 = vtanh.pop %v3384
    %v3387 = vtanh.pop %v3385
    %v3388 = vmul.f32 %v3364, %v3386
    %v3389 = vmul.f32 %v3379, %v3387
    %v3390 = vxor.u32 %v3256, 2147483648
    %v3391 = vxor.u32 %v3260, 2147483648
    %v3392 = vmul.f32 %v3390, 1.442695
    %v3393 = vpow.pop %v3392
    %v3394 = vmul.f32 %v3391, 1.442695
    %v3395 = vpow.pop %v3394
    %v3396 = vadd.f32 %v3393, 1.0
    %v3397 = vadd.f32 %v3395, 1.0
    %v3398 = vrcp.pop %v3396
    %v3399 = vmul.f32 %v3396, %v3398
    %v3400 = vsub.f32 1.0, %v3399
    %v3401 = vmul.f32 %v3398, %v3400
    %v3402 = vadd.f32 %v3398, %v3401
    %vm3403 = vweird.f32 %v3396
    %vm3404 = vweird.f32 %v3398
    %vm3405 = vmor %vm3403, %vm3404
    %v3406 = vsel %vm3405, %v3398, %v3402
    %v3407 = vand.u32 2147483647, %v3396
    %vm3408 = vcmp.eq.f32.partialorder %v3407, 8.507059e+37
    %v3409 = vand.u32 %v3396, 2147483648
    %v3410 = vor.u32 1.1754944e-38, %v3409
    %v3411 = vsel %vm3408, %v3410, %v3406
    %v3412 = vmul.f32 1.0, %v3411
    %v3413 = vrcp.pop %v3397
    %v3414 = vmul.f32 %v3397, %v3413
    %v3415 = vsub.f32 1.0, %v3414
    %v3416 = vmul.f32 %v3413, %v3415
    %v3417 = vadd.f32 %v3413, %v3416
    %vm3418 = vweird.f32 %v3397
    %vm3419 = vweird.f32 %v3413
    %vm3420 = vmor %vm3418, %vm3419
    %v3421 = vsel %vm3420, %v3413, %v3417
    %v3422 = vand.u32 2147483647, %v3397
    %vm3423 = vcmp.eq.f32.partialorder %v3422, 8.507059e+37
    %v3424 = vand.u32 %v3397, 2147483648
    %v3425 = vor.u32 1.1754944e-38, %v3424
    %v3426 = vsel %vm3423, %v3425, %v3421
    %v3427 = vmul.f32 1.0, %v3426
    %v3428 = vxor.u32 %v3257, 2147483648
    %v3429 = vxor.u32 %v3261, 2147483648
    %v3430 = vmul.f32 %v3428, 1.442695
    %v3431 = vpow.pop %v3430
    %v3432 = vmul.f32 %v3429, 1.442695
    %v3433 = vpow.pop %v3432
    %v3434 = vadd.f32 %v3431, 1.0
    %v3435 = vadd.f32 %v3433, 1.0
    %v3436 = vrcp.pop %v3434
    %v3437 = vmul.f32 %v3434, %v3436
    %v3438 = vsub.f32 1.0, %v3437
    %v3439 = vmul.f32 %v3436, %v3438
    %v3440 = vadd.f32 %v3436, %v3439
    %vm3441 = vweird.f32 %v3434
    %vm3442 = vweird.f32 %v3436
    %vm3443 = vmor %vm3441, %vm3442
    %v3444 = vsel %vm3443, %v3436, %v3440
    %v3445 = vand.u32 2147483647, %v3434
    %vm3446 = vcmp.eq.f32.partialorder %v3445, 8.507059e+37
    %v3447 = vand.u32 %v3434, 2147483648
    %v3448 = vor.u32 1.1754944e-38, %v3447
    %v3449 = vsel %vm3446, %v3448, %v3444
    %v3450 = vmul.f32 1.0, %v3449
    %v3451 = vrcp.pop %v3435
    %v3452 = vmul.f32 %v3435, %v3451
    %v3453 = vsub.f32 1.0, %v3452
    %v3454 = vmul.f32 %v3451, %v3453
    %v3455 = vadd.f32 %v3451, %v3454
    %vm3456 = vweird.f32 %v3435
    %vm3457 = vweird.f32 %v3451
    %vm3458 = vmor %vm3456, %vm3457
    %v3459 = vsel %vm3458, %v3451, %v3455
    %v3460 = vand.u32 2147483647, %v3435
    %vm3461 = vcmp.eq.f32.partialorder %v3460, 8.507059e+37
    %v3462 = vand.u32 %v3435, 2147483648
    %v3463 = vor.u32 1.1754944e-38, %v3462
    %v3464 = vsel %vm3461, %v3463, %v3459
    %v3465 = vmul.f32 1.0, %v3464
    %v3466 = vtanh.pop %v3258
    %v3467 = vtanh.pop %v3262
    %v3468 = vxor.u32 %v3259, 2147483648
    %v3469 = vxor.u32 %v3263, 2147483648
    %v3470 = vmul.f32 %v3468, 1.442695
    %v3471 = vpow.pop %v3470
    %v3472 = vmul.f32 %v3469, 1.442695
    %v3473 = vpow.pop %v3472
    %v3474 = vadd.f32 %v3471, 1.0
    %v3475 = vadd.f32 %v3473, 1.0
    %v3476 = vrcp.pop %v3474
    %v3477 = vmul.f32 %v3474, %v3476
    %v3478 = vsub.f32 1.0, %v3477
    %v3479 = vmul.f32 %v3476, %v3478
    %v3480 = vadd.f32 %v3476, %v3479
    %vm3481 = vweird.f32 %v3474
    %vm3482 = vweird.f32 %v3476
    %vm3483 = vmor %vm3481, %vm3482
    %v3484 = vsel %vm3483, %v3476, %v3480
    %v3485 = vand.u32 2147483647, %v3474
    %vm3486 = vcmp.eq.f32.partialorder %v3485, 8.507059e+37
    %v3487 = vand.u32 %v3474, 2147483648
    %v3488 = vor.u32 1.1754944e-38, %v3487
    %v3489 = vsel %vm3486, %v3488, %v3484
    %v3490 = vmul.f32 1.0, %v3489
    %v3491 = vrcp.pop %v3475
    %v3492 = vmul.f32 %v3475, %v3491
    %v3493 = vsub.f32 1.0, %v3492
    %v3494 = vmul.f32 %v3491, %v3493
    %v3495 = vadd.f32 %v3491, %v3494
    %vm3496 = vweird.f32 %v3475
    %vm3497 = vweird.f32 %v3491
    %vm3498 = vmor %vm3496, %vm3497
    %v3499 = vsel %vm3498, %v3491, %v3495
    %v3500 = vand.u32 2147483647, %v3475
    %vm3501 = vcmp.eq.f32.partialorder %v3500, 8.507059e+37
    %v3502 = vand.u32 %v3475, 2147483648
    %v3503 = vor.u32 1.1754944e-38, %v3502
    %v3504 = vsel %vm3501, %v3503, %v3499
    %v3505 = vmul.f32 1.0, %v3504
    %v3506 = vmul.f32 %v3450, %v3096
    %v3507 = vmul.f32 %v3465, %v3097
    %v3508 = vmul.f32 %v3412, %v3466
    %v3509 = vmul.f32 %v3427, %v3467
    %v3510 = vadd.f32 %v3506, %v3508
    %v3511 = vadd.f32 %v3507, %v3509
    %v3512 = vtanh.pop %v3510
    %v3513 = vtanh.pop %v3511
    %v3514 = vmul.f32 %v3490, %v3512
    %v3515 = vmul.f32 %v3505, %v3513
    %vm3516 = vcmp.gt.s32.totalorder %v1351, 3
    %vm3517 = vcmp.gt.s32.totalorder %v1352, 3
    %vm3518 = vcmp.gt.s32.totalorder %v1351, 8
    %vm3519 = vcmp.gt.s32.totalorder %v1352, 8
    %v3520 = vpack.c.bf16 %v3388, %v3388
    %v3521 = vpack.c.bf16 %v3389, %v3389
    %v3522 = vsel %vm3516, 1, 0
    %v3523 = vsel %vm3517, 1, 0
    %3524 = vset.pattern.permute.xlu0 0
    %3525 = vperm.xlu0 %3524, %v3522
    %v3526 = vpop.permute.xlu0 %3525
    %3527 = vset.pattern.permute.xlu0 0
    %3528 = vperm.xlu0 %3527, %v3523
    %v3529 = vpop.permute.xlu0 %3528
    %vm3530 = vcmp.eq.s32.totalorder %v3526, 1
    %vm3531 = vcmp.eq.s32.totalorder %v3529, 1
    %vm3532 = vmpackc.low %vm3530, %vm3530
    %vm3533 = vmpackc.low %vm3531, %vm3531
    %v3534 = vsel %vm3532, %v3520, %v3076
    %v3535 = vsel %vm3533, %v3521, %v3077
    %v3536 = vsel %vm3530, %v3384, %v3078
    %v3537 = vsel %vm3531, %v3385, %v3079
    %v3538 = vpack.c.bf16 %v3514, %v3514
    %v3539 = vpack.c.bf16 %v3515, %v3515
    %v3540 = vsel %vm3518, 1, 0
    %v3541 = vsel %vm3519, 1, 0
    %3542 = vset.pattern.permute.xlu0 0
    %3543 = vperm.xlu0 %3542, %v3540
    %v3544 = vpop.permute.xlu0 %3543
    %3545 = vset.pattern.permute.xlu0 0
    %3546 = vperm.xlu0 %3545, %v3541
    %v3547 = vpop.permute.xlu0 %3546
    %vm3548 = vcmp.eq.s32.totalorder %v3544, 1
    %vm3549 = vcmp.eq.s32.totalorder %v3547, 1
    %vm3550 = vmpackc.low %vm3548, %vm3548
    %vm3551 = vmpackc.low %vm3549, %vm3549
    %v3552 = vsel %vm3550, %v3538, %v3094
    %v3553 = vsel %vm3551, %v3539, %v3095
    %v3554 = vsel %vm3548, %v3510, %v3096
    %v3555 = vsel %vm3549, %v3511, %v3097
    %s3556 = scalar_lea.vmem [#allocation2], 256
    %v3557 = vld [vmem:[%s3556] sm:$0xff]
    %v3558 = vld [vmem:[%s3556 + $0x8] sm:$0xff]
    %v3559 = vld [vmem:[%s3556 + $0x20] sm:$0xff]
    %v3560 = vld [vmem:[%s3556 + $0x28] sm:$0xff]
    %s3561 = scalar_lea.vmem [#allocation2], 448
    %v3562 = vld [vmem:[%s3561 + $0x10] sm:$0xff]
    %v3563 = vld [vmem:[%s3561 + $0x18] sm:$0xff]
    %v3564 = vld [vmem:[%s3561 + $0x30] sm:$0xff]
    %v3565 = vld [vmem:[%s3561 + $0x38] sm:$0xff]
    %v3568 = vunpack.c.l.b16 %v3534
    %v3569 = vunpack.c.l.b16 %v3535
    %v3570 = vpack.c.b16 %v3569, %v3568
    %3572 = vmatpush.bf16.msra.mxu0 %v1518
    %3573 = vmatpush.bf16.msra.mxu0 %v1514
    %3574 = vmatpush.bf16.msra.mxu0 %v1510
    %3575 = vmatpush.bf16.msra.mxu0 %v1506
    %3576 = vmatpush.bf16.msra.mxu0 %v1502
    %3577 = vmatpush.bf16.msra.mxu0 %v1498
    %3578 = vmatpush.bf16.msra.mxu0 %v1494
    %3579 = vmatpush.bf16.msra.mxu0 %v1490
    %3580 = vmatmul.bf16.gmra.mxu0 %v3570
    %v3581 = vpop.f32.mrf.mxu0
    %v3582 = vadd.f32 0.0, %v3581
    %v3583 = vpop.f32.mrf.mxu0
    %v3584 = vadd.f32 0.0, %v3583
    %3585 = vdwg.mxu0
    %3586 = vmatpush.bf16.msra.mxu0 %v1519
    %3587 = vmatpush.bf16.msra.mxu0 %v1515
    %3588 = vmatpush.bf16.msra.mxu0 %v1511
    %3589 = vmatpush.bf16.msra.mxu0 %v1507
    %3590 = vmatpush.bf16.msra.mxu0 %v1503
    %3591 = vmatpush.bf16.msra.mxu0 %v1499
    %3592 = vmatpush.bf16.msra.mxu0 %v1495
    %3593 = vmatpush.bf16.msra.mxu0 %v1491
    %3594 = vmatmul.bf16.gmra.mxu0 %v3570
    %v3595 = vpop.f32.mrf.mxu0
    %v3596 = vadd.f32 0.0, %v3595
    %v3597 = vpop.f32.mrf.mxu0
    %v3598 = vadd.f32 0.0, %v3597
    %3599 = vdwg.mxu0
    %3600 = vmatpush.bf16.msra.mxu0 %v1520
    %3601 = vmatpush.bf16.msra.mxu0 %v1516
    %3602 = vmatpush.bf16.msra.mxu0 %v1512
    %3603 = vmatpush.bf16.msra.mxu0 %v1508
    %3604 = vmatpush.bf16.msra.mxu0 %v1504
    %3605 = vmatpush.bf16.msra.mxu0 %v1500
    %3606 = vmatpush.bf16.msra.mxu0 %v1496
    %3607 = vmatpush.bf16.msra.mxu0 %v1492
    %3608 = vmatmul.bf16.gmra.mxu0 %v3570
    %v3609 = vpop.f32.mrf.mxu0
    %v3610 = vadd.f32 0.0, %v3609
    %v3611 = vpop.f32.mrf.mxu0
    %v3612 = vadd.f32 0.0, %v3611
    %3613 = vdwg.mxu0
    %3614 = vmatpush.bf16.msra.mxu0 %v1521
    %3615 = vmatpush.bf16.msra.mxu0 %v1517
    %3616 = vmatpush.bf16.msra.mxu0 %v1513
    %3617 = vmatpush.bf16.msra.mxu0 %v1509
    %3618 = vmatpush.bf16.msra.mxu0 %v1505
    %3619 = vmatpush.bf16.msra.mxu0 %v1501
    %3620 = vmatpush.bf16.msra.mxu0 %v1497
    %3621 = vmatpush.bf16.msra.mxu0 %v1493
    %3622 = vmatmul.bf16.gmra.mxu0 %v3570
    %v3623 = vpop.f32.mrf.mxu0
    %v3624 = vadd.f32 0.0, %v3623
    %v3625 = vpop.f32.mrf.mxu0
    %v3626 = vadd.f32 0.0, %v3625
    %3627 = vdwg.mxu0
    %v3628 = vunpack.c.l.bf16 %v3557
    %v3629 = vunpack.c.h.bf16 %v3557
    %v3630 = vunpack.c.l.bf16 %v3558
    %v3631 = vunpack.c.h.bf16 %v3558
    %v3632 = vunpack.c.l.bf16 %v3559
    %v3633 = vunpack.c.h.bf16 %v3559
    %v3634 = vunpack.c.l.bf16 %v3560
    %v3635 = vunpack.c.h.bf16 %v3560
    %v3636 = vadd.f32 %v3628, %v3582
    %v3637 = vadd.f32 %v3629, %v3596
    %v3638 = vadd.f32 %v3630, %v3610
    %v3639 = vadd.f32 %v3631, %v3624
    %v3640 = vadd.f32 %v3632, %v3584
    %v3641 = vadd.f32 %v3633, %v3598
    %v3642 = vadd.f32 %v3634, %v3612
    %v3643 = vadd.f32 %v3635, %v3626
    %v3646 = vunpack.c.l.b16 %v3552
    %v3647 = vunpack.c.l.b16 %v3553
    %v3648 = vpack.c.b16 %v3647, %v3646
    %3650 = vmatpush.bf16.msra.mxu0 %v1782
    %3651 = vmatpush.bf16.msra.mxu0 %v1778
    %3652 = vmatpush.bf16.msra.mxu0 %v1774
    %3653 = vmatpush.bf16.msra.mxu0 %v1770
    %3654 = vmatpush.bf16.msra.mxu0 %v1766
    %3655 = vmatpush.bf16.msra.mxu0 %v1762
    %3656 = vmatpush.bf16.msra.mxu0 %v1758
    %3657 = vmatpush.bf16.msra.mxu0 %v1754
    %3658 = vmatmul.bf16.gmra.mxu0 %v3648
    %v3659 = vpop.f32.mrf.mxu0
    %v3660 = vadd.f32 0.0, %v3659
    %v3661 = vpop.f32.mrf.mxu0
    %v3662 = vadd.f32 0.0, %v3661
    %3663 = vdwg.mxu0
    %3664 = vmatpush.bf16.msra.mxu0 %v1783
    %3665 = vmatpush.bf16.msra.mxu0 %v1779
    %3666 = vmatpush.bf16.msra.mxu0 %v1775
    %3667 = vmatpush.bf16.msra.mxu0 %v1771
    %3668 = vmatpush.bf16.msra.mxu0 %v1767
    %3669 = vmatpush.bf16.msra.mxu0 %v1763
    %3670 = vmatpush.bf16.msra.mxu0 %v1759
    %3671 = vmatpush.bf16.msra.mxu0 %v1755
    %3672 = vmatmul.bf16.gmra.mxu0 %v3648
    %v3673 = vpop.f32.mrf.mxu0
    %v3674 = vadd.f32 0.0, %v3673
    %v3675 = vpop.f32.mrf.mxu0
    %v3676 = vadd.f32 0.0, %v3675
    %3677 = vdwg.mxu0
    %3678 = vmatpush.bf16.msra.mxu0 %v1784
    %3679 = vmatpush.bf16.msra.mxu0 %v1780
    %3680 = vmatpush.bf16.msra.mxu0 %v1776
    %3681 = vmatpush.bf16.msra.mxu0 %v1772
    %3682 = vmatpush.bf16.msra.mxu0 %v1768
    %3683 = vmatpush.bf16.msra.mxu0 %v1764
    %3684 = vmatpush.bf16.msra.mxu0 %v1760
    %3685 = vmatpush.bf16.msra.mxu0 %v1756
    %3686 = vmatmul.bf16.gmra.mxu0 %v3648
    %v3687 = vpop.f32.mrf.mxu0
    %v3688 = vadd.f32 0.0, %v3687
    %v3689 = vpop.f32.mrf.mxu0
    %v3690 = vadd.f32 0.0, %v3689
    %3691 = vdwg.mxu0
    %3692 = vmatpush.bf16.msra.mxu0 %v1785
    %3693 = vmatpush.bf16.msra.mxu0 %v1781
    %3694 = vmatpush.bf16.msra.mxu0 %v1777
    %3695 = vmatpush.bf16.msra.mxu0 %v1773
    %3696 = vmatpush.bf16.msra.mxu0 %v1769
    %3697 = vmatpush.bf16.msra.mxu0 %v1765
    %3698 = vmatpush.bf16.msra.mxu0 %v1761
    %3699 = vmatpush.bf16.msra.mxu0 %v1757
    %3700 = vmatmul.bf16.gmra.mxu0 %v3648
    %v3701 = vpop.f32.mrf.mxu0
    %v3702 = vadd.f32 0.0, %v3701
    %v3703 = vpop.f32.mrf.mxu0
    %v3704 = vadd.f32 0.0, %v3703
    %3705 = vdwg.mxu0
    %v3706 = vunpack.c.l.bf16 %v3562
    %v3707 = vunpack.c.h.bf16 %v3562
    %v3708 = vunpack.c.l.bf16 %v3563
    %v3709 = vunpack.c.h.bf16 %v3563
    %v3710 = vunpack.c.l.bf16 %v3564
    %v3711 = vunpack.c.h.bf16 %v3564
    %v3712 = vunpack.c.l.bf16 %v3565
    %v3713 = vunpack.c.h.bf16 %v3565
    %v3714 = vadd.f32 %v3706, %v3660
    %v3715 = vadd.f32 %v3707, %v3674
    %v3716 = vadd.f32 %v3708, %v3688
    %v3717 = vadd.f32 %v3709, %v3702
    %v3718 = vadd.f32 %v3710, %v3662
    %v3719 = vadd.f32 %v3711, %v3676
    %v3720 = vadd.f32 %v3712, %v3690
    %v3721 = vadd.f32 %v3713, %v3704
    %v3722 = vxor.u32 %v3636, 2147483648
    %v3723 = vxor.u32 %v3640, 2147483648
    %v3724 = vmul.f32 %v3722, 1.442695
    %v3725 = vpow.pop %v3724
    %v3726 = vmul.f32 %v3723, 1.442695
    %v3727 = vpow.pop %v3726
    %v3728 = vadd.f32 %v3725, 1.0
    %v3729 = vadd.f32 %v3727, 1.0
    %v3730 = vrcp.pop %v3728
    %v3731 = vmul.f32 %v3728, %v3730
    %v3732 = vsub.f32 1.0, %v3731
    %v3733 = vmul.f32 %v3730, %v3732
    %v3734 = vadd.f32 %v3730, %v3733
    %vm3735 = vweird.f32 %v3728
    %vm3736 = vweird.f32 %v3730
    %vm3737 = vmor %vm3735, %vm3736
    %v3738 = vsel %vm3737, %v3730, %v3734
    %v3739 = vand.u32 2147483647, %v3728
    %vm3740 = vcmp.eq.f32.partialorder %v3739, 8.507059e+37
    %v3741 = vand.u32 %v3728, 2147483648
    %v3742 = vor.u32 1.1754944e-38, %v3741
    %v3743 = vsel %vm3740, %v3742, %v3738
    %v3744 = vmul.f32 1.0, %v3743
    %v3745 = vrcp.pop %v3729
    %v3746 = vmul.f32 %v3729, %v3745
    %v3747 = vsub.f32 1.0, %v3746
    %v3748 = vmul.f32 %v3745, %v3747
    %v3749 = vadd.f32 %v3745, %v3748
    %vm3750 = vweird.f32 %v3729
    %vm3751 = vweird.f32 %v3745
    %vm3752 = vmor %vm3750, %vm3751
    %v3753 = vsel %vm3752, %v3745, %v3749
    %v3754 = vand.u32 2147483647, %v3729
    %vm3755 = vcmp.eq.f32.partialorder %v3754, 8.507059e+37
    %v3756 = vand.u32 %v3729, 2147483648
    %v3757 = vor.u32 1.1754944e-38, %v3756
    %v3758 = vsel %vm3755, %v3757, %v3753
    %v3759 = vmul.f32 1.0, %v3758
    %v3760 = vxor.u32 %v3637, 2147483648
    %v3761 = vxor.u32 %v3641, 2147483648
    %v3762 = vmul.f32 %v3760, 1.442695
    %v3763 = vpow.pop %v3762
    %v3764 = vmul.f32 %v3761, 1.442695
    %v3765 = vpow.pop %v3764
    %v3766 = vadd.f32 %v3763, 1.0
    %v3767 = vadd.f32 %v3765, 1.0
    %v3768 = vrcp.pop %v3766
    %v3769 = vmul.f32 %v3766, %v3768
    %v3770 = vsub.f32 1.0, %v3769
    %v3771 = vmul.f32 %v3768, %v3770
    %v3772 = vadd.f32 %v3768, %v3771
    %vm3773 = vweird.f32 %v3766
    %vm3774 = vweird.f32 %v3768
    %vm3775 = vmor %vm3773, %vm3774
    %v3776 = vsel %vm3775, %v3768, %v3772
    %v3777 = vand.u32 2147483647, %v3766
    %vm3778 = vcmp.eq.f32.partialorder %v3777, 8.507059e+37
    %v3779 = vand.u32 %v3766, 2147483648
    %v3780 = vor.u32 1.1754944e-38, %v3779
    %v3781 = vsel %vm3778, %v3780, %v3776
    %v3782 = vmul.f32 1.0, %v3781
    %v3783 = vrcp.pop %v3767
    %v3784 = vmul.f32 %v3767, %v3783
    %v3785 = vsub.f32 1.0, %v3784
    %v3786 = vmul.f32 %v3783, %v3785
    %v3787 = vadd.f32 %v3783, %v3786
    %vm3788 = vweird.f32 %v3767
    %vm3789 = vweird.f32 %v3783
    %vm3790 = vmor %vm3788, %vm3789
    %v3791 = vsel %vm3790, %v3783, %v3787
    %v3792 = vand.u32 2147483647, %v3767
    %vm3793 = vcmp.eq.f32.partialorder %v3792, 8.507059e+37
    %v3794 = vand.u32 %v3767, 2147483648
    %v3795 = vor.u32 1.1754944e-38, %v3794
    %v3796 = vsel %vm3793, %v3795, %v3791
    %v3797 = vmul.f32 1.0, %v3796
    %v3798 = vtanh.pop %v3638
    %v3799 = vtanh.pop %v3642
    %v3800 = vxor.u32 %v3639, 2147483648
    %v3801 = vxor.u32 %v3643, 2147483648
    %v3802 = vmul.f32 %v3800, 1.442695
    %v3803 = vpow.pop %v3802
    %v3804 = vmul.f32 %v3801, 1.442695
    %v3805 = vpow.pop %v3804
    %v3806 = vadd.f32 %v3803, 1.0
    %v3807 = vadd.f32 %v3805, 1.0
    %v3808 = vrcp.pop %v3806
    %v3809 = vmul.f32 %v3806, %v3808
    %v3810 = vsub.f32 1.0, %v3809
    %v3811 = vmul.f32 %v3808, %v3810
    %v3812 = vadd.f32 %v3808, %v3811
    %vm3813 = vweird.f32 %v3806
    %vm3814 = vweird.f32 %v3808
    %vm3815 = vmor %vm3813, %vm3814
    %v3816 = vsel %vm3815, %v3808, %v3812
    %v3817 = vand.u32 2147483647, %v3806
    %vm3818 = vcmp.eq.f32.partialorder %v3817, 8.507059e+37
    %v3819 = vand.u32 %v3806, 2147483648
    %v3820 = vor.u32 1.1754944e-38, %v3819
    %v3821 = vsel %vm3818, %v3820, %v3816
    %v3822 = vmul.f32 1.0, %v3821
    %v3823 = vrcp.pop %v3807
    %v3824 = vmul.f32 %v3807, %v3823
    %v3825 = vsub.f32 1.0, %v3824
    %v3826 = vmul.f32 %v3823, %v3825
    %v3827 = vadd.f32 %v3823, %v3826
    %vm3828 = vweird.f32 %v3807
    %vm3829 = vweird.f32 %v3823
    %vm3830 = vmor %vm3828, %vm3829
    %v3831 = vsel %vm3830, %v3823, %v3827
    %v3832 = vand.u32 2147483647, %v3807
    %vm3833 = vcmp.eq.f32.partialorder %v3832, 8.507059e+37
    %v3834 = vand.u32 %v3807, 2147483648
    %v3835 = vor.u32 1.1754944e-38, %v3834
    %v3836 = vsel %vm3833, %v3835, %v3831
    %v3837 = vmul.f32 1.0, %v3836
    %v3838 = vmul.f32 %v3782, %v3536
    %v3839 = vmul.f32 %v3797, %v3537
    %v3840 = vmul.f32 %v3744, %v3798
    %v3841 = vmul.f32 %v3759, %v3799
    %v3842 = vadd.f32 %v3838, %v3840
    %v3843 = vadd.f32 %v3839, %v3841
    %v3844 = vtanh.pop %v3842
    %v3845 = vtanh.pop %v3843
    %v3846 = vmul.f32 %v3822, %v3844
    %v3847 = vmul.f32 %v3837, %v3845
    %v3848 = vxor.u32 %v3714, 2147483648
    %v3849 = vxor.u32 %v3718, 2147483648
    %v3850 = vmul.f32 %v3848, 1.442695
    %v3851 = vpow.pop %v3850
    %v3852 = vmul.f32 %v3849, 1.442695
    %v3853 = vpow.pop %v3852
    %v3854 = vadd.f32 %v3851, 1.0
    %v3855 = vadd.f32 %v3853, 1.0
    %v3856 = vrcp.pop %v3854
    %v3857 = vmul.f32 %v3854, %v3856
    %v3858 = vsub.f32 1.0, %v3857
    %v3859 = vmul.f32 %v3856, %v3858
    %v3860 = vadd.f32 %v3856, %v3859
    %vm3861 = vweird.f32 %v3854
    %vm3862 = vweird.f32 %v3856
    %vm3863 = vmor %vm3861, %vm3862
    %v3864 = vsel %vm3863, %v3856, %v3860
    %v3865 = vand.u32 2147483647, %v3854
    %vm3866 = vcmp.eq.f32.partialorder %v3865, 8.507059e+37
    %v3867 = vand.u32 %v3854, 2147483648
    %v3868 = vor.u32 1.1754944e-38, %v3867
    %v3869 = vsel %vm3866, %v3868, %v3864
    %v3870 = vmul.f32 1.0, %v3869
    %v3871 = vrcp.pop %v3855
    %v3872 = vmul.f32 %v3855, %v3871
    %v3873 = vsub.f32 1.0, %v3872
    %v3874 = vmul.f32 %v3871, %v3873
    %v3875 = vadd.f32 %v3871, %v3874
    %vm3876 = vweird.f32 %v3855
    %vm3877 = vweird.f32 %v3871
    %vm3878 = vmor %vm3876, %vm3877
    %v3879 = vsel %vm3878, %v3871, %v3875
    %v3880 = vand.u32 2147483647, %v3855
    %vm3881 = vcmp.eq.f32.partialorder %v3880, 8.507059e+37
    %v3882 = vand.u32 %v3855, 2147483648
    %v3883 = vor.u32 1.1754944e-38, %v3882
    %v3884 = vsel %vm3881, %v3883, %v3879
    %v3885 = vmul.f32 1.0, %v3884
    %v3886 = vxor.u32 %v3715, 2147483648
    %v3887 = vxor.u32 %v3719, 2147483648
    %v3888 = vmul.f32 %v3886, 1.442695
    %v3889 = vpow.pop %v3888
    %v3890 = vmul.f32 %v3887, 1.442695
    %v3891 = vpow.pop %v3890
    %v3892 = vadd.f32 %v3889, 1.0
    %v3893 = vadd.f32 %v3891, 1.0
    %v3894 = vrcp.pop %v3892
    %v3895 = vmul.f32 %v3892, %v3894
    %v3896 = vsub.f32 1.0, %v3895
    %v3897 = vmul.f32 %v3894, %v3896
    %v3898 = vadd.f32 %v3894, %v3897
    %vm3899 = vweird.f32 %v3892
    %vm3900 = vweird.f32 %v3894
    %vm3901 = vmor %vm3899, %vm3900
    %v3902 = vsel %vm3901, %v3894, %v3898
    %v3903 = vand.u32 2147483647, %v3892
    %vm3904 = vcmp.eq.f32.partialorder %v3903, 8.507059e+37
    %v3905 = vand.u32 %v3892, 2147483648
    %v3906 = vor.u32 1.1754944e-38, %v3905
    %v3907 = vsel %vm3904, %v3906, %v3902
    %v3908 = vmul.f32 1.0, %v3907
    %v3909 = vrcp.pop %v3893
    %v3910 = vmul.f32 %v3893, %v3909
    %v3911 = vsub.f32 1.0, %v3910
    %v3912 = vmul.f32 %v3909, %v3911
    %v3913 = vadd.f32 %v3909, %v3912
    %vm3914 = vweird.f32 %v3893
    %vm3915 = vweird.f32 %v3909
    %vm3916 = vmor %vm3914, %vm3915
    %v3917 = vsel %vm3916, %v3909, %v3913
    %v3918 = vand.u32 2147483647, %v3893
    %vm3919 = vcmp.eq.f32.partialorder %v3918, 8.507059e+37
    %v3920 = vand.u32 %v3893, 2147483648
    %v3921 = vor.u32 1.1754944e-38, %v3920
    %v3922 = vsel %vm3919, %v3921, %v3917
    %v3923 = vmul.f32 1.0, %v3922
    %v3924 = vtanh.pop %v3716
    %v3925 = vtanh.pop %v3720
    %v3926 = vxor.u32 %v3717, 2147483648
    %v3927 = vxor.u32 %v3721, 2147483648
    %v3928 = vmul.f32 %v3926, 1.442695
    %v3929 = vpow.pop %v3928
    %v3930 = vmul.f32 %v3927, 1.442695
    %v3931 = vpow.pop %v3930
    %v3932 = vadd.f32 %v3929, 1.0
    %v3933 = vadd.f32 %v3931, 1.0
    %v3934 = vrcp.pop %v3932
    %v3935 = vmul.f32 %v3932, %v3934
    %v3936 = vsub.f32 1.0, %v3935
    %v3937 = vmul.f32 %v3934, %v3936
    %v3938 = vadd.f32 %v3934, %v3937
    %vm3939 = vweird.f32 %v3932
    %vm3940 = vweird.f32 %v3934
    %vm3941 = vmor %vm3939, %vm3940
    %v3942 = vsel %vm3941, %v3934, %v3938
    %v3943 = vand.u32 2147483647, %v3932
    %vm3944 = vcmp.eq.f32.partialorder %v3943, 8.507059e+37
    %v3945 = vand.u32 %v3932, 2147483648
    %v3946 = vor.u32 1.1754944e-38, %v3945
    %v3947 = vsel %vm3944, %v3946, %v3942
    %v3948 = vmul.f32 1.0, %v3947
    %v3949 = vrcp.pop %v3933
    %v3950 = vmul.f32 %v3933, %v3949
    %v3951 = vsub.f32 1.0, %v3950
    %v3952 = vmul.f32 %v3949, %v3951
    %v3953 = vadd.f32 %v3949, %v3952
    %vm3954 = vweird.f32 %v3933
    %vm3955 = vweird.f32 %v3949
    %vm3956 = vmor %vm3954, %vm3955
    %v3957 = vsel %vm3956, %v3949, %v3953
    %v3958 = vand.u32 2147483647, %v3933
    %vm3959 = vcmp.eq.f32.partialorder %v3958, 8.507059e+37
    %v3960 = vand.u32 %v3933, 2147483648
    %v3961 = vor.u32 1.1754944e-38, %v3960
    %v3962 = vsel %vm3959, %v3961, %v3957
    %v3963 = vmul.f32 1.0, %v3962
    %v3964 = vmul.f32 %v3908, %v3554
    %v3965 = vmul.f32 %v3923, %v3555
    %v3966 = vmul.f32 %v3870, %v3924
    %v3967 = vmul.f32 %v3885, %v3925
    %v3968 = vadd.f32 %v3964, %v3966
    %v3969 = vadd.f32 %v3965, %v3967
    %v3970 = vtanh.pop %v3968
    %v3971 = vtanh.pop %v3969
    %v3972 = vmul.f32 %v3948, %v3970
    %v3973 = vmul.f32 %v3963, %v3971
    %vm3974 = vcmp.gt.s32.totalorder %v1351, 4
    %vm3975 = vcmp.gt.s32.totalorder %v1352, 4
    %vm3976 = vcmp.gt.s32.totalorder %v1351, 7
    %vm3977 = vcmp.gt.s32.totalorder %v1352, 7
    %v3978 = vpack.c.bf16 %v3846, %v3846
    %v3979 = vpack.c.bf16 %v3847, %v3847
    %v3980 = vsel %vm3974, 1, 0
    %v3981 = vsel %vm3975, 1, 0
    %3982 = vset.pattern.permute.xlu0 0
    %3983 = vperm.xlu0 %3982, %v3980
    %v3984 = vpop.permute.xlu0 %3983
    %3985 = vset.pattern.permute.xlu0 0
    %3986 = vperm.xlu0 %3985, %v3981
    %v3987 = vpop.permute.xlu0 %3986
    %vm3988 = vcmp.eq.s32.totalorder %v3984, 1
    %vm3989 = vcmp.eq.s32.totalorder %v3987, 1
    %vm3990 = vmpackc.low %vm3988, %vm3988
    %vm3991 = vmpackc.low %vm3989, %vm3989
    %v3992 = vsel %vm3990, %v3978, %v3534
    %v3993 = vsel %vm3991, %v3979, %v3535
    %v3994 = vsel %vm3988, %v3842, %v3536
    %v3995 = vsel %vm3989, %v3843, %v3537
    %v3996 = vpack.c.bf16 %v3972, %v3972
    %v3997 = vpack.c.bf16 %v3973, %v3973
    %v3998 = vsel %vm3976, 1, 0
    %v3999 = vsel %vm3977, 1, 0
    %4000 = vset.pattern.permute.xlu0 0
    %4001 = vperm.xlu0 %4000, %v3998
    %v4002 = vpop.permute.xlu0 %4001
    %4003 = vset.pattern.permute.xlu0 0
    %4004 = vperm.xlu0 %4003, %v3999
    %v4005 = vpop.permute.xlu0 %4004
    %vm4006 = vcmp.eq.s32.totalorder %v4002, 1
    %vm4007 = vcmp.eq.s32.totalorder %v4005, 1
    %vm4008 = vmpackc.low %vm4006, %vm4006
    %vm4009 = vmpackc.low %vm4007, %vm4007
    %v4010 = vsel %vm4008, %v3996, %v3552
    %v4011 = vsel %vm4009, %v3997, %v3553
    %v4012 = vsel %vm4006, %v3968, %v3554
    %v4013 = vsel %vm4007, %v3969, %v3555
    %s4014 = scalar_lea.vmem [#allocation2], 320
    %v4015 = vld [vmem:[%s4014] sm:$0xff]
    %v4016 = vld [vmem:[%s4014 + $0x8] sm:$0xff]
    %v4017 = vld [vmem:[%s4014 + $0x20] sm:$0xff]
    %v4018 = vld [vmem:[%s4014 + $0x28] sm:$0xff]
    %s4019 = scalar_lea.vmem [#allocation2], 384
    %v4020 = vld [vmem:[%s4019 + $0x10] sm:$0xff]
    %v4021 = vld [vmem:[%s4019 + $0x18] sm:$0xff]
    %v4022 = vld [vmem:[%s4019 + $0x30] sm:$0xff]
    %v4023 = vld [vmem:[%s4019 + $0x38] sm:$0xff]
    %v4026 = vunpack.c.l.b16 %v3992
    %v4027 = vunpack.c.l.b16 %v3993
    %v4028 = vpack.c.b16 %v4027, %v4026
    %4030 = vmatpush.bf16.msra.mxu0 %v1518
    %4031 = vmatpush.bf16.msra.mxu0 %v1514
    %4032 = vmatpush.bf16.msra.mxu0 %v1510
    %4033 = vmatpush.bf16.msra.mxu0 %v1506
    %4034 = vmatpush.bf16.msra.mxu0 %v1502
    %4035 = vmatpush.bf16.msra.mxu0 %v1498
    %4036 = vmatpush.bf16.msra.mxu0 %v1494
    %4037 = vmatpush.bf16.msra.mxu0 %v1490
    %4038 = vmatmul.bf16.gmra.mxu0 %v4028
    %v4039 = vpop.f32.mrf.mxu0
    %v4040 = vadd.f32 0.0, %v4039
    %v4041 = vpop.f32.mrf.mxu0
    %v4042 = vadd.f32 0.0, %v4041
    %4043 = vdwg.mxu0
    %4044 = vmatpush.bf16.msra.mxu0 %v1519
    %4045 = vmatpush.bf16.msra.mxu0 %v1515
    %4046 = vmatpush.bf16.msra.mxu0 %v1511
    %4047 = vmatpush.bf16.msra.mxu0 %v1507
    %4048 = vmatpush.bf16.msra.mxu0 %v1503
    %4049 = vmatpush.bf16.msra.mxu0 %v1499
    %4050 = vmatpush.bf16.msra.mxu0 %v1495
    %4051 = vmatpush.bf16.msra.mxu0 %v1491
    %4052 = vmatmul.bf16.gmra.mxu0 %v4028
    %v4053 = vpop.f32.mrf.mxu0
    %v4054 = vadd.f32 0.0, %v4053
    %v4055 = vpop.f32.mrf.mxu0
    %v4056 = vadd.f32 0.0, %v4055
    %4057 = vdwg.mxu0
    %4058 = vmatpush.bf16.msra.mxu0 %v1520
    %4059 = vmatpush.bf16.msra.mxu0 %v1516
    %4060 = vmatpush.bf16.msra.mxu0 %v1512
    %4061 = vmatpush.bf16.msra.mxu0 %v1508
    %4062 = vmatpush.bf16.msra.mxu0 %v1504
    %4063 = vmatpush.bf16.msra.mxu0 %v1500
    %4064 = vmatpush.bf16.msra.mxu0 %v1496
    %4065 = vmatpush.bf16.msra.mxu0 %v1492
    %4066 = vmatmul.bf16.gmra.mxu0 %v4028
    %v4067 = vpop.f32.mrf.mxu0
    %v4068 = vadd.f32 0.0, %v4067
    %v4069 = vpop.f32.mrf.mxu0
    %v4070 = vadd.f32 0.0, %v4069
    %4071 = vdwg.mxu0
    %4072 = vmatpush.bf16.msra.mxu0 %v1521
    %4073 = vmatpush.bf16.msra.mxu0 %v1517
    %4074 = vmatpush.bf16.msra.mxu0 %v1513
    %4075 = vmatpush.bf16.msra.mxu0 %v1509
    %4076 = vmatpush.bf16.msra.mxu0 %v1505
    %4077 = vmatpush.bf16.msra.mxu0 %v1501
    %4078 = vmatpush.bf16.msra.mxu0 %v1497
    %4079 = vmatpush.bf16.msra.mxu0 %v1493
    %4080 = vmatmul.bf16.gmra.mxu0 %v4028
    %v4081 = vpop.f32.mrf.mxu0
    %v4082 = vadd.f32 0.0, %v4081
    %v4083 = vpop.f32.mrf.mxu0
    %v4084 = vadd.f32 0.0, %v4083
    %4085 = vdwg.mxu0
    %v4086 = vunpack.c.l.bf16 %v4015
    %v4087 = vunpack.c.h.bf16 %v4015
    %v4088 = vunpack.c.l.bf16 %v4016
    %v4089 = vunpack.c.h.bf16 %v4016
    %v4090 = vunpack.c.l.bf16 %v4017
    %v4091 = vunpack.c.h.bf16 %v4017
    %v4092 = vunpack.c.l.bf16 %v4018
    %v4093 = vunpack.c.h.bf16 %v4018
    %v4094 = vadd.f32 %v4086, %v4040
    %v4095 = vadd.f32 %v4087, %v4054
    %v4096 = vadd.f32 %v4088, %v4068
    %v4097 = vadd.f32 %v4089, %v4082
    %v4098 = vadd.f32 %v4090, %v4042
    %v4099 = vadd.f32 %v4091, %v4056
    %v4100 = vadd.f32 %v4092, %v4070
    %v4101 = vadd.f32 %v4093, %v4084
    %v4104 = vunpack.c.l.b16 %v4010
    %v4105 = vunpack.c.l.b16 %v4011
    %v4106 = vpack.c.b16 %v4105, %v4104
    %4108 = vmatpush.bf16.msra.mxu0 %v1782
    %4109 = vmatpush.bf16.msra.mxu0 %v1778
    %4110 = vmatpush.bf16.msra.mxu0 %v1774
    %4111 = vmatpush.bf16.msra.mxu0 %v1770
    %4112 = vmatpush.bf16.msra.mxu0 %v1766
    %4113 = vmatpush.bf16.msra.mxu0 %v1762
    %4114 = vmatpush.bf16.msra.mxu0 %v1758
    %4115 = vmatpush.bf16.msra.mxu0 %v1754
    %4116 = vmatmul.bf16.gmra.mxu0 %v4106
    %v4117 = vpop.f32.mrf.mxu0
    %v4118 = vadd.f32 0.0, %v4117
    %v4119 = vpop.f32.mrf.mxu0
    %v4120 = vadd.f32 0.0, %v4119
    %4121 = vdwg.mxu0
    %4122 = vmatpush.bf16.msra.mxu0 %v1783
    %4123 = vmatpush.bf16.msra.mxu0 %v1779
    %4124 = vmatpush.bf16.msra.mxu0 %v1775
    %4125 = vmatpush.bf16.msra.mxu0 %v1771
    %4126 = vmatpush.bf16.msra.mxu0 %v1767
    %4127 = vmatpush.bf16.msra.mxu0 %v1763
    %4128 = vmatpush.bf16.msra.mxu0 %v1759
    %4129 = vmatpush.bf16.msra.mxu0 %v1755
    %4130 = vmatmul.bf16.gmra.mxu0 %v4106
    %v4131 = vpop.f32.mrf.mxu0
    %v4132 = vadd.f32 0.0, %v4131
    %v4133 = vpop.f32.mrf.mxu0
    %v4134 = vadd.f32 0.0, %v4133
    %4135 = vdwg.mxu0
    %4136 = vmatpush.bf16.msra.mxu0 %v1784
    %4137 = vmatpush.bf16.msra.mxu0 %v1780
    %4138 = vmatpush.bf16.msra.mxu0 %v1776
    %4139 = vmatpush.bf16.msra.mxu0 %v1772
    %4140 = vmatpush.bf16.msra.mxu0 %v1768
    %4141 = vmatpush.bf16.msra.mxu0 %v1764
    %4142 = vmatpush.bf16.msra.mxu0 %v1760
    %4143 = vmatpush.bf16.msra.mxu0 %v1756
    %4144 = vmatmul.bf16.gmra.mxu0 %v4106
    %v4145 = vpop.f32.mrf.mxu0
    %v4146 = vadd.f32 0.0, %v4145
    %v4147 = vpop.f32.mrf.mxu0
    %v4148 = vadd.f32 0.0, %v4147
    %4149 = vdwg.mxu0
    %4150 = vmatpush.bf16.msra.mxu0 %v1785
    %4151 = vmatpush.bf16.msra.mxu0 %v1781
    %4152 = vmatpush.bf16.msra.mxu0 %v1777
    %4153 = vmatpush.bf16.msra.mxu0 %v1773
    %4154 = vmatpush.bf16.msra.mxu0 %v1769
    %4155 = vmatpush.bf16.msra.mxu0 %v1765
    %4156 = vmatpush.bf16.msra.mxu0 %v1761
    %4157 = vmatpush.bf16.msra.mxu0 %v1757
    %4158 = vmatmul.bf16.gmra.mxu0 %v4106
    %v4159 = vpop.f32.mrf.mxu0
    %v4160 = vadd.f32 0.0, %v4159
    %v4161 = vpop.f32.mrf.mxu0
    %v4162 = vadd.f32 0.0, %v4161
    %4163 = vdwg.mxu0
    %v4164 = vunpack.c.l.bf16 %v4020
    %v4165 = vunpack.c.h.bf16 %v4020
    %v4166 = vunpack.c.l.bf16 %v4021
    %v4167 = vunpack.c.h.bf16 %v4021
    %v4168 = vunpack.c.l.bf16 %v4022
    %v4169 = vunpack.c.h.bf16 %v4022
    %v4170 = vunpack.c.l.bf16 %v4023
    %v4171 = vunpack.c.h.bf16 %v4023
    %v4172 = vadd.f32 %v4164, %v4118
    %v4173 = vadd.f32 %v4165, %v4132
    %v4174 = vadd.f32 %v4166, %v4146
    %v4175 = vadd.f32 %v4167, %v4160
    %v4176 = vadd.f32 %v4168, %v4120
    %v4177 = vadd.f32 %v4169, %v4134
    %v4178 = vadd.f32 %v4170, %v4148
    %v4179 = vadd.f32 %v4171, %v4162
    %v4180 = vxor.u32 %v4094, 2147483648
    %v4181 = vxor.u32 %v4098, 2147483648
    %v4182 = vmul.f32 %v4180, 1.442695
    %v4183 = vpow.pop %v4182
    %v4184 = vmul.f32 %v4181, 1.442695
    %v4185 = vpow.pop %v4184
    %v4186 = vadd.f32 %v4183, 1.0
    %v4187 = vadd.f32 %v4185, 1.0
    %v4188 = vrcp.pop %v4186
    %v4189 = vmul.f32 %v4186, %v4188
    %v4190 = vsub.f32 1.0, %v4189
    %v4191 = vmul.f32 %v4188, %v4190
    %v4192 = vadd.f32 %v4188, %v4191
    %vm4193 = vweird.f32 %v4186
    %vm4194 = vweird.f32 %v4188
    %vm4195 = vmor %vm4193, %vm4194
    %v4196 = vsel %vm4195, %v4188, %v4192
    %v4197 = vand.u32 2147483647, %v4186
    %vm4198 = vcmp.eq.f32.partialorder %v4197, 8.507059e+37
    %v4199 = vand.u32 %v4186, 2147483648
    %v4200 = vor.u32 1.1754944e-38, %v4199
    %v4201 = vsel %vm4198, %v4200, %v4196
    %v4202 = vmul.f32 1.0, %v4201
    %v4203 = vrcp.pop %v4187
    %v4204 = vmul.f32 %v4187, %v4203
    %v4205 = vsub.f32 1.0, %v4204
    %v4206 = vmul.f32 %v4203, %v4205
    %v4207 = vadd.f32 %v4203, %v4206
    %vm4208 = vweird.f32 %v4187
    %vm4209 = vweird.f32 %v4203
    %vm4210 = vmor %vm4208, %vm4209
    %v4211 = vsel %vm4210, %v4203, %v4207
    %v4212 = vand.u32 2147483647, %v4187
    %vm4213 = vcmp.eq.f32.partialorder %v4212, 8.507059e+37
    %v4214 = vand.u32 %v4187, 2147483648
    %v4215 = vor.u32 1.1754944e-38, %v4214
    %v4216 = vsel %vm4213, %v4215, %v4211
    %v4217 = vmul.f32 1.0, %v4216
    %v4218 = vxor.u32 %v4095, 2147483648
    %v4219 = vxor.u32 %v4099, 2147483648
    %v4220 = vmul.f32 %v4218, 1.442695
    %v4221 = vpow.pop %v4220
    %v4222 = vmul.f32 %v4219, 1.442695
    %v4223 = vpow.pop %v4222
    %v4224 = vadd.f32 %v4221, 1.0
    %v4225 = vadd.f32 %v4223, 1.0
    %v4226 = vrcp.pop %v4224
    %v4227 = vmul.f32 %v4224, %v4226
    %v4228 = vsub.f32 1.0, %v4227
    %v4229 = vmul.f32 %v4226, %v4228
    %v4230 = vadd.f32 %v4226, %v4229
    %vm4231 = vweird.f32 %v4224
    %vm4232 = vweird.f32 %v4226
    %vm4233 = vmor %vm4231, %vm4232
    %v4234 = vsel %vm4233, %v4226, %v4230
    %v4235 = vand.u32 2147483647, %v4224
    %vm4236 = vcmp.eq.f32.partialorder %v4235, 8.507059e+37
    %v4237 = vand.u32 %v4224, 2147483648
    %v4238 = vor.u32 1.1754944e-38, %v4237
    %v4239 = vsel %vm4236, %v4238, %v4234
    %v4240 = vmul.f32 1.0, %v4239
    %v4241 = vrcp.pop %v4225
    %v4242 = vmul.f32 %v4225, %v4241
    %v4243 = vsub.f32 1.0, %v4242
    %v4244 = vmul.f32 %v4241, %v4243
    %v4245 = vadd.f32 %v4241, %v4244
    %vm4246 = vweird.f32 %v4225
    %vm4247 = vweird.f32 %v4241
    %vm4248 = vmor %vm4246, %vm4247
    %v4249 = vsel %vm4248, %v4241, %v4245
    %v4250 = vand.u32 2147483647, %v4225
    %vm4251 = vcmp.eq.f32.partialorder %v4250, 8.507059e+37
    %v4252 = vand.u32 %v4225, 2147483648
    %v4253 = vor.u32 1.1754944e-38, %v4252
    %v4254 = vsel %vm4251, %v4253, %v4249
    %v4255 = vmul.f32 1.0, %v4254
    %v4256 = vtanh.pop %v4096
    %v4257 = vtanh.pop %v4100
    %v4258 = vxor.u32 %v4097, 2147483648
    %v4259 = vxor.u32 %v4101, 2147483648
    %v4260 = vmul.f32 %v4258, 1.442695
    %v4261 = vpow.pop %v4260
    %v4262 = vmul.f32 %v4259, 1.442695
    %v4263 = vpow.pop %v4262
    %v4264 = vadd.f32 %v4261, 1.0
    %v4265 = vadd.f32 %v4263, 1.0
    %v4266 = vrcp.pop %v4264
    %v4267 = vmul.f32 %v4264, %v4266
    %v4268 = vsub.f32 1.0, %v4267
    %v4269 = vmul.f32 %v4266, %v4268
    %v4270 = vadd.f32 %v4266, %v4269
    %vm4271 = vweird.f32 %v4264
    %vm4272 = vweird.f32 %v4266
    %vm4273 = vmor %vm4271, %vm4272
    %v4274 = vsel %vm4273, %v4266, %v4270
    %v4275 = vand.u32 2147483647, %v4264
    %vm4276 = vcmp.eq.f32.partialorder %v4275, 8.507059e+37
    %v4277 = vand.u32 %v4264, 2147483648
    %v4278 = vor.u32 1.1754944e-38, %v4277
    %v4279 = vsel %vm4276, %v4278, %v4274
    %v4280 = vmul.f32 1.0, %v4279
    %v4281 = vrcp.pop %v4265
    %v4282 = vmul.f32 %v4265, %v4281
    %v4283 = vsub.f32 1.0, %v4282
    %v4284 = vmul.f32 %v4281, %v4283
    %v4285 = vadd.f32 %v4281, %v4284
    %vm4286 = vweird.f32 %v4265
    %vm4287 = vweird.f32 %v4281
    %vm4288 = vmor %vm4286, %vm4287
    %v4289 = vsel %vm4288, %v4281, %v4285
    %v4290 = vand.u32 2147483647, %v4265
    %vm4291 = vcmp.eq.f32.partialorder %v4290, 8.507059e+37
    %v4292 = vand.u32 %v4265, 2147483648
    %v4293 = vor.u32 1.1754944e-38, %v4292
    %v4294 = vsel %vm4291, %v4293, %v4289
    %v4295 = vmul.f32 1.0, %v4294
    %v4296 = vmul.f32 %v4240, %v3994
    %v4297 = vmul.f32 %v4255, %v3995
    %v4298 = vmul.f32 %v4202, %v4256
    %v4299 = vmul.f32 %v4217, %v4257
    %v4300 = vadd.f32 %v4296, %v4298
    %v4301 = vadd.f32 %v4297, %v4299
    %v4302 = vtanh.pop %v4300
    %v4303 = vtanh.pop %v4301
    %v4304 = vmul.f32 %v4280, %v4302
    %v4305 = vmul.f32 %v4295, %v4303
    %v4306 = vxor.u32 %v4172, 2147483648
    %v4307 = vxor.u32 %v4176, 2147483648
    %v4308 = vmul.f32 %v4306, 1.442695
    %v4309 = vpow.pop %v4308
    %v4310 = vmul.f32 %v4307, 1.442695
    %v4311 = vpow.pop %v4310
    %v4312 = vadd.f32 %v4309, 1.0
    %v4313 = vadd.f32 %v4311, 1.0
    %v4314 = vrcp.pop %v4312
    %v4315 = vmul.f32 %v4312, %v4314
    %v4316 = vsub.f32 1.0, %v4315
    %v4317 = vmul.f32 %v4314, %v4316
    %v4318 = vadd.f32 %v4314, %v4317
    %vm4319 = vweird.f32 %v4312
    %vm4320 = vweird.f32 %v4314
    %vm4321 = vmor %vm4319, %vm4320
    %v4322 = vsel %vm4321, %v4314, %v4318
    %v4323 = vand.u32 2147483647, %v4312
    %vm4324 = vcmp.eq.f32.partialorder %v4323, 8.507059e+37
    %v4325 = vand.u32 %v4312, 2147483648
    %v4326 = vor.u32 1.1754944e-38, %v4325
    %v4327 = vsel %vm4324, %v4326, %v4322
    %v4328 = vmul.f32 1.0, %v4327
    %v4329 = vrcp.pop %v4313
    %v4330 = vmul.f32 %v4313, %v4329
    %v4331 = vsub.f32 1.0, %v4330
    %v4332 = vmul.f32 %v4329, %v4331
    %v4333 = vadd.f32 %v4329, %v4332
    %vm4334 = vweird.f32 %v4313
    %vm4335 = vweird.f32 %v4329
    %vm4336 = vmor %vm4334, %vm4335
    %v4337 = vsel %vm4336, %v4329, %v4333
    %v4338 = vand.u32 2147483647, %v4313
    %vm4339 = vcmp.eq.f32.partialorder %v4338, 8.507059e+37
    %v4340 = vand.u32 %v4313, 2147483648
    %v4341 = vor.u32 1.1754944e-38, %v4340
    %v4342 = vsel %vm4339, %v4341, %v4337
    %v4343 = vmul.f32 1.0, %v4342
    %v4344 = vxor.u32 %v4173, 2147483648
    %v4345 = vxor.u32 %v4177, 2147483648
    %v4346 = vmul.f32 %v4344, 1.442695
    %v4347 = vpow.pop %v4346
    %v4348 = vmul.f32 %v4345, 1.442695
    %v4349 = vpow.pop %v4348
    %v4350 = vadd.f32 %v4347, 1.0
    %v4351 = vadd.f32 %v4349, 1.0
    %v4352 = vrcp.pop %v4350
    %v4353 = vmul.f32 %v4350, %v4352
    %v4354 = vsub.f32 1.0, %v4353
    %v4355 = vmul.f32 %v4352, %v4354
    %v4356 = vadd.f32 %v4352, %v4355
    %vm4357 = vweird.f32 %v4350
    %vm4358 = vweird.f32 %v4352
    %vm4359 = vmor %vm4357, %vm4358
    %v4360 = vsel %vm4359, %v4352, %v4356
    %v4361 = vand.u32 2147483647, %v4350
    %vm4362 = vcmp.eq.f32.partialorder %v4361, 8.507059e+37
    %v4363 = vand.u32 %v4350, 2147483648
    %v4364 = vor.u32 1.1754944e-38, %v4363
    %v4365 = vsel %vm4362, %v4364, %v4360
    %v4366 = vmul.f32 1.0, %v4365
    %v4367 = vrcp.pop %v4351
    %v4368 = vmul.f32 %v4351, %v4367
    %v4369 = vsub.f32 1.0, %v4368
    %v4370 = vmul.f32 %v4367, %v4369
    %v4371 = vadd.f32 %v4367, %v4370
    %vm4372 = vweird.f32 %v4351
    %vm4373 = vweird.f32 %v4367
    %vm4374 = vmor %vm4372, %vm4373
    %v4375 = vsel %vm4374, %v4367, %v4371
    %v4376 = vand.u32 2147483647, %v4351
    %vm4377 = vcmp.eq.f32.partialorder %v4376, 8.507059e+37
    %v4378 = vand.u32 %v4351, 2147483648
    %v4379 = vor.u32 1.1754944e-38, %v4378
    %v4380 = vsel %vm4377, %v4379, %v4375
    %v4381 = vmul.f32 1.0, %v4380
    %v4382 = vtanh.pop %v4174
    %v4383 = vtanh.pop %v4178
    %v4384 = vxor.u32 %v4175, 2147483648
    %v4385 = vxor.u32 %v4179, 2147483648
    %v4386 = vmul.f32 %v4384, 1.442695
    %v4387 = vpow.pop %v4386
    %v4388 = vmul.f32 %v4385, 1.442695
    %v4389 = vpow.pop %v4388
    %v4390 = vadd.f32 %v4387, 1.0
    %v4391 = vadd.f32 %v4389, 1.0
    %v4392 = vrcp.pop %v4390
    %v4393 = vmul.f32 %v4390, %v4392
    %v4394 = vsub.f32 1.0, %v4393
    %v4395 = vmul.f32 %v4392, %v4394
    %v4396 = vadd.f32 %v4392, %v4395
    %vm4397 = vweird.f32 %v4390
    %vm4398 = vweird.f32 %v4392
    %vm4399 = vmor %vm4397, %vm4398
    %v4400 = vsel %vm4399, %v4392, %v4396
    %v4401 = vand.u32 2147483647, %v4390
    %vm4402 = vcmp.eq.f32.partialorder %v4401, 8.507059e+37
    %v4403 = vand.u32 %v4390, 2147483648
    %v4404 = vor.u32 1.1754944e-38, %v4403
    %v4405 = vsel %vm4402, %v4404, %v4400
    %v4406 = vmul.f32 1.0, %v4405
    %v4407 = vrcp.pop %v4391
    %v4408 = vmul.f32 %v4391, %v4407
    %v4409 = vsub.f32 1.0, %v4408
    %v4410 = vmul.f32 %v4407, %v4409
    %v4411 = vadd.f32 %v4407, %v4410
    %vm4412 = vweird.f32 %v4391
    %vm4413 = vweird.f32 %v4407
    %vm4414 = vmor %vm4412, %vm4413
    %v4415 = vsel %vm4414, %v4407, %v4411
    %v4416 = vand.u32 2147483647, %v4391
    %vm4417 = vcmp.eq.f32.partialorder %v4416, 8.507059e+37
    %v4418 = vand.u32 %v4391, 2147483648
    %v4419 = vor.u32 1.1754944e-38, %v4418
    %v4420 = vsel %vm4417, %v4419, %v4415
    %v4421 = vmul.f32 1.0, %v4420
    %v4422 = vmul.f32 %v4366, %v4012
    %v4423 = vmul.f32 %v4381, %v4013
    %v4424 = vmul.f32 %v4328, %v4382
    %v4425 = vmul.f32 %v4343, %v4383
    %v4426 = vadd.f32 %v4422, %v4424
    %v4427 = vadd.f32 %v4423, %v4425
    %v4428 = vtanh.pop %v4426
    %v4429 = vtanh.pop %v4427
    %v4430 = vmul.f32 %v4406, %v4428
    %v4431 = vmul.f32 %v4421, %v4429
    %vm4432 = vcmp.gt.s32.totalorder %v1351, 5
    %vm4433 = vcmp.gt.s32.totalorder %v1352, 5
    %vm4434 = vcmp.gt.s32.totalorder %v1351, 6
    %vm4435 = vcmp.gt.s32.totalorder %v1352, 6
    %v4436 = vpack.c.bf16 %v4304, %v4304
    %v4437 = vpack.c.bf16 %v4305, %v4305
    %v4438 = vsel %vm4432, 1, 0
    %v4439 = vsel %vm4433, 1, 0
    %4440 = vset.pattern.permute.xlu0 0
    %4441 = vperm.xlu0 %4440, %v4438
    %v4442 = vpop.permute.xlu0 %4441
    %4443 = vset.pattern.permute.xlu0 0
    %4444 = vperm.xlu0 %4443, %v4439
    %v4445 = vpop.permute.xlu0 %4444
    %vm4446 = vcmp.eq.s32.totalorder %v4442, 1
    %vm4447 = vcmp.eq.s32.totalorder %v4445, 1
    %vm4448 = vmpackc.low %vm4446, %vm4446
    %vm4449 = vmpackc.low %vm4447, %vm4447
    %v4450 = vsel %vm4448, %v4436, %v3992
    %v4451 = vsel %vm4449, %v4437, %v3993
    %v4452 = vsel %vm4446, %v4300, %v3994
    %v4453 = vsel %vm4447, %v4301, %v3995
    %v4454 = vpack.c.bf16 %v4430, %v4430
    %v4455 = vpack.c.bf16 %v4431, %v4431
    %v4456 = vsel %vm4434, 1, 0
    %v4457 = vsel %vm4435, 1, 0
    %4458 = vset.pattern.permute.xlu0 0
    %4459 = vperm.xlu0 %4458, %v4456
    %v4460 = vpop.permute.xlu0 %4459
    %4461 = vset.pattern.permute.xlu0 0
    %4462 = vperm.xlu0 %4461, %v4457
    %v4463 = vpop.permute.xlu0 %4462
    %vm4464 = vcmp.eq.s32.totalorder %v4460, 1
    %vm4465 = vcmp.eq.s32.totalorder %v4463, 1
    %vm4466 = vmpackc.low %vm4464, %vm4464
    %vm4467 = vmpackc.low %vm4465, %vm4465
    %v4468 = vsel %vm4466, %v4454, %v4010
    %v4469 = vsel %vm4467, %v4455, %v4011
    %v4470 = vsel %vm4464, %v4426, %v4012
    %v4471 = vsel %vm4465, %v4427, %v4013
    %v4472 = vld [vmem:[%s4019] sm:$0xff]
    %v4473 = vld [vmem:[%s4019 + $0x8] sm:$0xff]
    %v4474 = vld [vmem:[%s4019 + $0x20] sm:$0xff]
    %v4475 = vld [vmem:[%s4019 + $0x28] sm:$0xff]
    %v4476 = vld [vmem:[%s4014 + $0x10] sm:$0xff]
    %v4477 = vld [vmem:[%s4014 + $0x18] sm:$0xff]
    %v4478 = vld [vmem:[%s4014 + $0x30] sm:$0xff]
    %v4479 = vld [vmem:[%s4014 + $0x38] sm:$0xff]
    %v4482 = vunpack.c.l.b16 %v4450
    %v4483 = vunpack.c.l.b16 %v4451
    %v4484 = vpack.c.b16 %v4483, %v4482
    %4486 = vmatpush.bf16.msra.mxu0 %v1518
    %4487 = vmatpush.bf16.msra.mxu0 %v1514
    %4488 = vmatpush.bf16.msra.mxu0 %v1510
    %4489 = vmatpush.bf16.msra.mxu0 %v1506
    %4490 = vmatpush.bf16.msra.mxu0 %v1502
    %4491 = vmatpush.bf16.msra.mxu0 %v1498
    %4492 = vmatpush.bf16.msra.mxu0 %v1494
    %4493 = vmatpush.bf16.msra.mxu0 %v1490
    %4494 = vmatmul.bf16.gmra.mxu0 %v4484
    %v4495 = vpop.f32.mrf.mxu0
    %v4496 = vadd.f32 0.0, %v4495
    %v4497 = vpop.f32.mrf.mxu0
    %v4498 = vadd.f32 0.0, %v4497
    %4499 = vdwg.mxu0
    %4500 = vmatpush.bf16.msra.mxu0 %v1519
    %4501 = vmatpush.bf16.msra.mxu0 %v1515
    %4502 = vmatpush.bf16.msra.mxu0 %v1511
    %4503 = vmatpush.bf16.msra.mxu0 %v1507
    %4504 = vmatpush.bf16.msra.mxu0 %v1503
    %4505 = vmatpush.bf16.msra.mxu0 %v1499
    %4506 = vmatpush.bf16.msra.mxu0 %v1495
    %4507 = vmatpush.bf16.msra.mxu0 %v1491
    %4508 = vmatmul.bf16.gmra.mxu0 %v4484
    %v4509 = vpop.f32.mrf.mxu0
    %v4510 = vadd.f32 0.0, %v4509
    %v4511 = vpop.f32.mrf.mxu0
    %v4512 = vadd.f32 0.0, %v4511
    %4513 = vdwg.mxu0
    %4514 = vmatpush.bf16.msra.mxu0 %v1520
    %4515 = vmatpush.bf16.msra.mxu0 %v1516
    %4516 = vmatpush.bf16.msra.mxu0 %v1512
    %4517 = vmatpush.bf16.msra.mxu0 %v1508
    %4518 = vmatpush.bf16.msra.mxu0 %v1504
    %4519 = vmatpush.bf16.msra.mxu0 %v1500
    %4520 = vmatpush.bf16.msra.mxu0 %v1496
    %4521 = vmatpush.bf16.msra.mxu0 %v1492
    %4522 = vmatmul.bf16.gmra.mxu0 %v4484
    %v4523 = vpop.f32.mrf.mxu0
    %v4524 = vadd.f32 0.0, %v4523
    %v4525 = vpop.f32.mrf.mxu0
    %v4526 = vadd.f32 0.0, %v4525
    %4527 = vdwg.mxu0
    %4528 = vmatpush.bf16.msra.mxu0 %v1521
    %4529 = vmatpush.bf16.msra.mxu0 %v1517
    %4530 = vmatpush.bf16.msra.mxu0 %v1513
    %4531 = vmatpush.bf16.msra.mxu0 %v1509
    %4532 = vmatpush.bf16.msra.mxu0 %v1505
    %4533 = vmatpush.bf16.msra.mxu0 %v1501
    %4534 = vmatpush.bf16.msra.mxu0 %v1497
    %4535 = vmatpush.bf16.msra.mxu0 %v1493
    %4536 = vmatmul.bf16.gmra.mxu0 %v4484
    %v4537 = vpop.f32.mrf.mxu0
    %v4538 = vadd.f32 0.0, %v4537
    %v4539 = vpop.f32.mrf.mxu0
    %v4540 = vadd.f32 0.0, %v4539
    %4541 = vdwg.mxu0
    %v4542 = vunpack.c.l.bf16 %v4472
    %v4543 = vunpack.c.h.bf16 %v4472
    %v4544 = vunpack.c.l.bf16 %v4473
    %v4545 = vunpack.c.h.bf16 %v4473
    %v4546 = vunpack.c.l.bf16 %v4474
    %v4547 = vunpack.c.h.bf16 %v4474
    %v4548 = vunpack.c.l.bf16 %v4475
    %v4549 = vunpack.c.h.bf16 %v4475
    %v4550 = vadd.f32 %v4542, %v4496
    %v4551 = vadd.f32 %v4543, %v4510
    %v4552 = vadd.f32 %v4544, %v4524
    %v4553 = vadd.f32 %v4545, %v4538
    %v4554 = vadd.f32 %v4546, %v4498
    %v4555 = vadd.f32 %v4547, %v4512
    %v4556 = vadd.f32 %v4548, %v4526
    %v4557 = vadd.f32 %v4549, %v4540
    %v4560 = vunpack.c.l.b16 %v4468
    %v4561 = vunpack.c.l.b16 %v4469
    %v4562 = vpack.c.b16 %v4561, %v4560
    %4564 = vmatpush.bf16.msra.mxu0 %v1782
    %4565 = vmatpush.bf16.msra.mxu0 %v1778
    %4566 = vmatpush.bf16.msra.mxu0 %v1774
    %4567 = vmatpush.bf16.msra.mxu0 %v1770
    %4568 = vmatpush.bf16.msra.mxu0 %v1766
    %4569 = vmatpush.bf16.msra.mxu0 %v1762
    %4570 = vmatpush.bf16.msra.mxu0 %v1758
    %4571 = vmatpush.bf16.msra.mxu0 %v1754
    %4572 = vmatmul.bf16.gmra.mxu0 %v4562
    %v4573 = vpop.f32.mrf.mxu0
    %v4574 = vadd.f32 0.0, %v4573
    %v4575 = vpop.f32.mrf.mxu0
    %v4576 = vadd.f32 0.0, %v4575
    %4577 = vdwg.mxu0
    %4578 = vmatpush.bf16.msra.mxu0 %v1783
    %4579 = vmatpush.bf16.msra.mxu0 %v1779
    %4580 = vmatpush.bf16.msra.mxu0 %v1775
    %4581 = vmatpush.bf16.msra.mxu0 %v1771
    %4582 = vmatpush.bf16.msra.mxu0 %v1767
    %4583 = vmatpush.bf16.msra.mxu0 %v1763
    %4584 = vmatpush.bf16.msra.mxu0 %v1759
    %4585 = vmatpush.bf16.msra.mxu0 %v1755
    %4586 = vmatmul.bf16.gmra.mxu0 %v4562
    %v4587 = vpop.f32.mrf.mxu0
    %v4588 = vadd.f32 0.0, %v4587
    %v4589 = vpop.f32.mrf.mxu0
    %v4590 = vadd.f32 0.0, %v4589
    %4591 = vdwg.mxu0
    %4592 = vmatpush.bf16.msra.mxu0 %v1784
    %4593 = vmatpush.bf16.msra.mxu0 %v1780
    %4594 = vmatpush.bf16.msra.mxu0 %v1776
    %4595 = vmatpush.bf16.msra.mxu0 %v1772
    %4596 = vmatpush.bf16.msra.mxu0 %v1768
    %4597 = vmatpush.bf16.msra.mxu0 %v1764
    %4598 = vmatpush.bf16.msra.mxu0 %v1760
    %4599 = vmatpush.bf16.msra.mxu0 %v1756
    %4600 = vmatmul.bf16.gmra.mxu0 %v4562
    %v4601 = vpop.f32.mrf.mxu0
    %v4602 = vadd.f32 0.0, %v4601
    %v4603 = vpop.f32.mrf.mxu0
    %v4604 = vadd.f32 0.0, %v4603
    %4605 = vdwg.mxu0
    %4606 = vmatpush.bf16.msra.mxu0 %v1785
    %4607 = vmatpush.bf16.msra.mxu0 %v1781
    %4608 = vmatpush.bf16.msra.mxu0 %v1777
    %4609 = vmatpush.bf16.msra.mxu0 %v1773
    %4610 = vmatpush.bf16.msra.mxu0 %v1769
    %4611 = vmatpush.bf16.msra.mxu0 %v1765
    %4612 = vmatpush.bf16.msra.mxu0 %v1761
    %4613 = vmatpush.bf16.msra.mxu0 %v1757
    %4614 = vmatmul.bf16.gmra.mxu0 %v4562
    %v4615 = vpop.f32.mrf.mxu0
    %v4616 = vadd.f32 0.0, %v4615
    %v4617 = vpop.f32.mrf.mxu0
    %v4618 = vadd.f32 0.0, %v4617
    %4619 = vdwg.mxu0
    %v4620 = vunpack.c.l.bf16 %v4476
    %v4621 = vunpack.c.h.bf16 %v4476
    %v4622 = vunpack.c.l.bf16 %v4477
    %v4623 = vunpack.c.h.bf16 %v4477
    %v4624 = vunpack.c.l.bf16 %v4478
    %v4625 = vunpack.c.h.bf16 %v4478
    %v4626 = vunpack.c.l.bf16 %v4479
    %v4627 = vunpack.c.h.bf16 %v4479
    %v4628 = vadd.f32 %v4620, %v4574
    %v4629 = vadd.f32 %v4621, %v4588
    %v4630 = vadd.f32 %v4622, %v4602
    %v4631 = vadd.f32 %v4623, %v4616
    %v4632 = vadd.f32 %v4624, %v4576
    %v4633 = vadd.f32 %v4625, %v4590
    %v4634 = vadd.f32 %v4626, %v4604
    %v4635 = vadd.f32 %v4627, %v4618
    %v4636 = vxor.u32 %v4550, 2147483648
    %v4637 = vxor.u32 %v4554, 2147483648
    %v4638 = vmul.f32 %v4636, 1.442695
    %v4639 = vpow.pop %v4638
    %v4640 = vmul.f32 %v4637, 1.442695
    %v4641 = vpow.pop %v4640
    %v4642 = vadd.f32 %v4639, 1.0
    %v4643 = vadd.f32 %v4641, 1.0
    %v4644 = vrcp.pop %v4642
    %v4645 = vmul.f32 %v4642, %v4644
    %v4646 = vsub.f32 1.0, %v4645
    %v4647 = vmul.f32 %v4644, %v4646
    %v4648 = vadd.f32 %v4644, %v4647
    %vm4649 = vweird.f32 %v4642
    %vm4650 = vweird.f32 %v4644
    %vm4651 = vmor %vm4649, %vm4650
    %v4652 = vsel %vm4651, %v4644, %v4648
    %v4653 = vand.u32 2147483647, %v4642
    %vm4654 = vcmp.eq.f32.partialorder %v4653, 8.507059e+37
    %v4655 = vand.u32 %v4642, 2147483648
    %v4656 = vor.u32 1.1754944e-38, %v4655
    %v4657 = vsel %vm4654, %v4656, %v4652
    %v4658 = vmul.f32 1.0, %v4657
    %v4659 = vrcp.pop %v4643
    %v4660 = vmul.f32 %v4643, %v4659
    %v4661 = vsub.f32 1.0, %v4660
    %v4662 = vmul.f32 %v4659, %v4661
    %v4663 = vadd.f32 %v4659, %v4662
    %vm4664 = vweird.f32 %v4643
    %vm4665 = vweird.f32 %v4659
    %vm4666 = vmor %vm4664, %vm4665
    %v4667 = vsel %vm4666, %v4659, %v4663
    %v4668 = vand.u32 2147483647, %v4643
    %vm4669 = vcmp.eq.f32.partialorder %v4668, 8.507059e+37
    %v4670 = vand.u32 %v4643, 2147483648
    %v4671 = vor.u32 1.1754944e-38, %v4670
    %v4672 = vsel %vm4669, %v4671, %v4667
    %v4673 = vmul.f32 1.0, %v4672
    %v4674 = vxor.u32 %v4551, 2147483648
    %v4675 = vxor.u32 %v4555, 2147483648
    %v4676 = vmul.f32 %v4674, 1.442695
    %v4677 = vpow.pop %v4676
    %v4678 = vmul.f32 %v4675, 1.442695
    %v4679 = vpow.pop %v4678
    %v4680 = vadd.f32 %v4677, 1.0
    %v4681 = vadd.f32 %v4679, 1.0
    %v4682 = vrcp.pop %v4680
    %v4683 = vmul.f32 %v4680, %v4682
    %v4684 = vsub.f32 1.0, %v4683
    %v4685 = vmul.f32 %v4682, %v4684
    %v4686 = vadd.f32 %v4682, %v4685
    %vm4687 = vweird.f32 %v4680
    %vm4688 = vweird.f32 %v4682
    %vm4689 = vmor %vm4687, %vm4688
    %v4690 = vsel %vm4689, %v4682, %v4686
    %v4691 = vand.u32 2147483647, %v4680
    %vm4692 = vcmp.eq.f32.partialorder %v4691, 8.507059e+37
    %v4693 = vand.u32 %v4680, 2147483648
    %v4694 = vor.u32 1.1754944e-38, %v4693
    %v4695 = vsel %vm4692, %v4694, %v4690
    %v4696 = vmul.f32 1.0, %v4695
    %v4697 = vrcp.pop %v4681
    %v4698 = vmul.f32 %v4681, %v4697
    %v4699 = vsub.f32 1.0, %v4698
    %v4700 = vmul.f32 %v4697, %v4699
    %v4701 = vadd.f32 %v4697, %v4700
    %vm4702 = vweird.f32 %v4681
    %vm4703 = vweird.f32 %v4697
    %vm4704 = vmor %vm4702, %vm4703
    %v4705 = vsel %vm4704, %v4697, %v4701
    %v4706 = vand.u32 2147483647, %v4681
    %vm4707 = vcmp.eq.f32.partialorder %v4706, 8.507059e+37
    %v4708 = vand.u32 %v4681, 2147483648
    %v4709 = vor.u32 1.1754944e-38, %v4708
    %v4710 = vsel %vm4707, %v4709, %v4705
    %v4711 = vmul.f32 1.0, %v4710
    %v4712 = vtanh.pop %v4552
    %v4713 = vtanh.pop %v4556
    %v4714 = vxor.u32 %v4553, 2147483648
    %v4715 = vxor.u32 %v4557, 2147483648
    %v4716 = vmul.f32 %v4714, 1.442695
    %v4717 = vpow.pop %v4716
    %v4718 = vmul.f32 %v4715, 1.442695
    %v4719 = vpow.pop %v4718
    %v4720 = vadd.f32 %v4717, 1.0
    %v4721 = vadd.f32 %v4719, 1.0
    %v4722 = vrcp.pop %v4720
    %v4723 = vmul.f32 %v4720, %v4722
    %v4724 = vsub.f32 1.0, %v4723
    %v4725 = vmul.f32 %v4722, %v4724
    %v4726 = vadd.f32 %v4722, %v4725
    %vm4727 = vweird.f32 %v4720
    %vm4728 = vweird.f32 %v4722
    %vm4729 = vmor %vm4727, %vm4728
    %v4730 = vsel %vm4729, %v4722, %v4726
    %v4731 = vand.u32 2147483647, %v4720
    %vm4732 = vcmp.eq.f32.partialorder %v4731, 8.507059e+37
    %v4733 = vand.u32 %v4720, 2147483648
    %v4734 = vor.u32 1.1754944e-38, %v4733
    %v4735 = vsel %vm4732, %v4734, %v4730
    %v4736 = vmul.f32 1.0, %v4735
    %v4737 = vrcp.pop %v4721
    %v4738 = vmul.f32 %v4721, %v4737
    %v4739 = vsub.f32 1.0, %v4738
    %v4740 = vmul.f32 %v4737, %v4739
    %v4741 = vadd.f32 %v4737, %v4740
    %vm4742 = vweird.f32 %v4721
    %vm4743 = vweird.f32 %v4737
    %vm4744 = vmor %vm4742, %vm4743
    %v4745 = vsel %vm4744, %v4737, %v4741
    %v4746 = vand.u32 2147483647, %v4721
    %vm4747 = vcmp.eq.f32.partialorder %v4746, 8.507059e+37
    %v4748 = vand.u32 %v4721, 2147483648
    %v4749 = vor.u32 1.1754944e-38, %v4748
    %v4750 = vsel %vm4747, %v4749, %v4745
    %v4751 = vmul.f32 1.0, %v4750
    %v4752 = vmul.f32 %v4696, %v4452
    %v4753 = vmul.f32 %v4711, %v4453
    %v4754 = vmul.f32 %v4658, %v4712
    %v4755 = vmul.f32 %v4673, %v4713
    %v4756 = vadd.f32 %v4752, %v4754
    %v4757 = vadd.f32 %v4753, %v4755
    %v4758 = vtanh.pop %v4756
    %v4759 = vtanh.pop %v4757
    %v4760 = vmul.f32 %v4736, %v4758
    %v4761 = vmul.f32 %v4751, %v4759
    %v4762 = vxor.u32 %v4628, 2147483648
    %v4763 = vxor.u32 %v4632, 2147483648
    %v4764 = vmul.f32 %v4762, 1.442695
    %v4765 = vpow.pop %v4764
    %v4766 = vmul.f32 %v4763, 1.442695
    %v4767 = vpow.pop %v4766
    %v4768 = vadd.f32 %v4765, 1.0
    %v4769 = vadd.f32 %v4767, 1.0
    %v4770 = vrcp.pop %v4768
    %v4771 = vmul.f32 %v4768, %v4770
    %v4772 = vsub.f32 1.0, %v4771
    %v4773 = vmul.f32 %v4770, %v4772
    %v4774 = vadd.f32 %v4770, %v4773
    %vm4775 = vweird.f32 %v4768
    %vm4776 = vweird.f32 %v4770
    %vm4777 = vmor %vm4775, %vm4776
    %v4778 = vsel %vm4777, %v4770, %v4774
    %v4779 = vand.u32 2147483647, %v4768
    %vm4780 = vcmp.eq.f32.partialorder %v4779, 8.507059e+37
    %v4781 = vand.u32 %v4768, 2147483648
    %v4782 = vor.u32 1.1754944e-38, %v4781
    %v4783 = vsel %vm4780, %v4782, %v4778
    %v4784 = vmul.f32 1.0, %v4783
    %v4785 = vrcp.pop %v4769
    %v4786 = vmul.f32 %v4769, %v4785
    %v4787 = vsub.f32 1.0, %v4786
    %v4788 = vmul.f32 %v4785, %v4787
    %v4789 = vadd.f32 %v4785, %v4788
    %vm4790 = vweird.f32 %v4769
    %vm4791 = vweird.f32 %v4785
    %vm4792 = vmor %vm4790, %vm4791
    %v4793 = vsel %vm4792, %v4785, %v4789
    %v4794 = vand.u32 2147483647, %v4769
    %vm4795 = vcmp.eq.f32.partialorder %v4794, 8.507059e+37
    %v4796 = vand.u32 %v4769, 2147483648
    %v4797 = vor.u32 1.1754944e-38, %v4796
    %v4798 = vsel %vm4795, %v4797, %v4793
    %v4799 = vmul.f32 1.0, %v4798
    %v4800 = vxor.u32 %v4629, 2147483648
    %v4801 = vxor.u32 %v4633, 2147483648
    %v4802 = vmul.f32 %v4800, 1.442695
    %v4803 = vpow.pop %v4802
    %v4804 = vmul.f32 %v4801, 1.442695
    %v4805 = vpow.pop %v4804
    %v4806 = vadd.f32 %v4803, 1.0
    %v4807 = vadd.f32 %v4805, 1.0
    %v4808 = vrcp.pop %v4806
    %v4809 = vmul.f32 %v4806, %v4808
    %v4810 = vsub.f32 1.0, %v4809
    %v4811 = vmul.f32 %v4808, %v4810
    %v4812 = vadd.f32 %v4808, %v4811
    %vm4813 = vweird.f32 %v4806
    %vm4814 = vweird.f32 %v4808
    %vm4815 = vmor %vm4813, %vm4814
    %v4816 = vsel %vm4815, %v4808, %v4812
    %v4817 = vand.u32 2147483647, %v4806
    %vm4818 = vcmp.eq.f32.partialorder %v4817, 8.507059e+37
    %v4819 = vand.u32 %v4806, 2147483648
    %v4820 = vor.u32 1.1754944e-38, %v4819
    %v4821 = vsel %vm4818, %v4820, %v4816
    %v4822 = vmul.f32 1.0, %v4821
    %v4823 = vrcp.pop %v4807
    %v4824 = vmul.f32 %v4807, %v4823
    %v4825 = vsub.f32 1.0, %v4824
    %v4826 = vmul.f32 %v4823, %v4825
    %v4827 = vadd.f32 %v4823, %v4826
    %vm4828 = vweird.f32 %v4807
    %vm4829 = vweird.f32 %v4823
    %vm4830 = vmor %vm4828, %vm4829
    %v4831 = vsel %vm4830, %v4823, %v4827
    %v4832 = vand.u32 2147483647, %v4807
    %vm4833 = vcmp.eq.f32.partialorder %v4832, 8.507059e+37
    %v4834 = vand.u32 %v4807, 2147483648
    %v4835 = vor.u32 1.1754944e-38, %v4834
    %v4836 = vsel %vm4833, %v4835, %v4831
    %v4837 = vmul.f32 1.0, %v4836
    %v4838 = vtanh.pop %v4630
    %v4839 = vtanh.pop %v4634
    %v4840 = vxor.u32 %v4631, 2147483648
    %v4841 = vxor.u32 %v4635, 2147483648
    %v4842 = vmul.f32 %v4840, 1.442695
    %v4843 = vpow.pop %v4842
    %v4844 = vmul.f32 %v4841, 1.442695
    %v4845 = vpow.pop %v4844
    %v4846 = vadd.f32 %v4843, 1.0
    %v4847 = vadd.f32 %v4845, 1.0
    %v4848 = vrcp.pop %v4846
    %v4849 = vmul.f32 %v4846, %v4848
    %v4850 = vsub.f32 1.0, %v4849
    %v4851 = vmul.f32 %v4848, %v4850
    %v4852 = vadd.f32 %v4848, %v4851
    %vm4853 = vweird.f32 %v4846
    %vm4854 = vweird.f32 %v4848
    %vm4855 = vmor %vm4853, %vm4854
    %v4856 = vsel %vm4855, %v4848, %v4852
    %v4857 = vand.u32 2147483647, %v4846
    %vm4858 = vcmp.eq.f32.partialorder %v4857, 8.507059e+37
    %v4859 = vand.u32 %v4846, 2147483648
    %v4860 = vor.u32 1.1754944e-38, %v4859
    %v4861 = vsel %vm4858, %v4860, %v4856
    %v4862 = vmul.f32 1.0, %v4861
    %v4863 = vrcp.pop %v4847
    %v4864 = vmul.f32 %v4847, %v4863
    %v4865 = vsub.f32 1.0, %v4864
    %v4866 = vmul.f32 %v4863, %v4865
    %v4867 = vadd.f32 %v4863, %v4866
    %vm4868 = vweird.f32 %v4847
    %vm4869 = vweird.f32 %v4863
    %vm4870 = vmor %vm4868, %vm4869
    %v4871 = vsel %vm4870, %v4863, %v4867
    %v4872 = vand.u32 2147483647, %v4847
    %vm4873 = vcmp.eq.f32.partialorder %v4872, 8.507059e+37
    %v4874 = vand.u32 %v4847, 2147483648
    %v4875 = vor.u32 1.1754944e-38, %v4874
    %v4876 = vsel %vm4873, %v4875, %v4871
    %v4877 = vmul.f32 1.0, %v4876
    %v4878 = vmul.f32 %v4822, %v4470
    %v4879 = vmul.f32 %v4837, %v4471
    %v4880 = vmul.f32 %v4784, %v4838
    %v4881 = vmul.f32 %v4799, %v4839
    %v4882 = vadd.f32 %v4878, %v4880
    %v4883 = vadd.f32 %v4879, %v4881
    %v4884 = vtanh.pop %v4882
    %v4885 = vtanh.pop %v4883
    %v4886 = vmul.f32 %v4862, %v4884
    %v4887 = vmul.f32 %v4877, %v4885
    %v4888 = vpack.c.bf16 %v4760, %v4760
    %v4889 = vpack.c.bf16 %v4761, %v4761
    %v4890 = vsel %vm4466, %v4888, %v4450
    %v4891 = vsel %vm4467, %v4889, %v4451
    %v4892 = vsel %vm4464, %v4756, %v4452
    %v4893 = vsel %vm4465, %v4757, %v4453
    %v4894 = vpack.c.bf16 %v4886, %v4886
    %v4895 = vpack.c.bf16 %v4887, %v4887
    %v4896 = vsel %vm4448, %v4894, %v4468
    %v4897 = vsel %vm4449, %v4895, %v4469
    %v4898 = vsel %vm4446, %v4882, %v4470
    %v4899 = vsel %vm4447, %v4883, %v4471
    %v4900 = vld [vmem:[%s3561] sm:$0xff]
    %v4901 = vld [vmem:[%s3561 + $0x8] sm:$0xff]
    %v4902 = vld [vmem:[%s3561 + $0x20] sm:$0xff]
    %v4903 = vld [vmem:[%s3561 + $0x28] sm:$0xff]
    %v4904 = vld [vmem:[%s3556 + $0x10] sm:$0xff]
    %v4905 = vld [vmem:[%s3556 + $0x18] sm:$0xff]
    %v4906 = vld [vmem:[%s3556 + $0x30] sm:$0xff]
    %v4907 = vld [vmem:[%s3556 + $0x38] sm:$0xff]
    %v4910 = vunpack.c.l.b16 %v4890
    %v4911 = vunpack.c.l.b16 %v4891
    %v4912 = vpack.c.b16 %v4911, %v4910
    %4914 = vmatpush.bf16.msra.mxu0 %v1518
    %4915 = vmatpush.bf16.msra.mxu0 %v1514
    %4916 = vmatpush.bf16.msra.mxu0 %v1510
    %4917 = vmatpush.bf16.msra.mxu0 %v1506
    %4918 = vmatpush.bf16.msra.mxu0 %v1502
    %4919 = vmatpush.bf16.msra.mxu0 %v1498
    %4920 = vmatpush.bf16.msra.mxu0 %v1494
    %4921 = vmatpush.bf16.msra.mxu0 %v1490
    %4922 = vmatmul.bf16.gmra.mxu0 %v4912
    %v4923 = vpop.f32.mrf.mxu0
    %v4924 = vadd.f32 0.0, %v4923
    %v4925 = vpop.f32.mrf.mxu0
    %v4926 = vadd.f32 0.0, %v4925
    %4927 = vdwg.mxu0
    %4928 = vmatpush.bf16.msra.mxu0 %v1519
    %4929 = vmatpush.bf16.msra.mxu0 %v1515
    %4930 = vmatpush.bf16.msra.mxu0 %v1511
    %4931 = vmatpush.bf16.msra.mxu0 %v1507
    %4932 = vmatpush.bf16.msra.mxu0 %v1503
    %4933 = vmatpush.bf16.msra.mxu0 %v1499
    %4934 = vmatpush.bf16.msra.mxu0 %v1495
    %4935 = vmatpush.bf16.msra.mxu0 %v1491
    %4936 = vmatmul.bf16.gmra.mxu0 %v4912
    %v4937 = vpop.f32.mrf.mxu0
    %v4938 = vadd.f32 0.0, %v4937
    %v4939 = vpop.f32.mrf.mxu0
    %v4940 = vadd.f32 0.0, %v4939
    %4941 = vdwg.mxu0
    %4942 = vmatpush.bf16.msra.mxu0 %v1520
    %4943 = vmatpush.bf16.msra.mxu0 %v1516
    %4944 = vmatpush.bf16.msra.mxu0 %v1512
    %4945 = vmatpush.bf16.msra.mxu0 %v1508
    %4946 = vmatpush.bf16.msra.mxu0 %v1504
    %4947 = vmatpush.bf16.msra.mxu0 %v1500
    %4948 = vmatpush.bf16.msra.mxu0 %v1496
    %4949 = vmatpush.bf16.msra.mxu0 %v1492
    %4950 = vmatmul.bf16.gmra.mxu0 %v4912
    %v4951 = vpop.f32.mrf.mxu0
    %v4952 = vadd.f32 0.0, %v4951
    %v4953 = vpop.f32.mrf.mxu0
    %v4954 = vadd.f32 0.0, %v4953
    %4955 = vdwg.mxu0
    %4956 = vmatpush.bf16.msra.mxu0 %v1521
    %4957 = vmatpush.bf16.msra.mxu0 %v1517
    %4958 = vmatpush.bf16.msra.mxu0 %v1513
    %4959 = vmatpush.bf16.msra.mxu0 %v1509
    %4960 = vmatpush.bf16.msra.mxu0 %v1505
    %4961 = vmatpush.bf16.msra.mxu0 %v1501
    %4962 = vmatpush.bf16.msra.mxu0 %v1497
    %4963 = vmatpush.bf16.msra.mxu0 %v1493
    %4964 = vmatmul.bf16.gmra.mxu0 %v4912
    %v4965 = vpop.f32.mrf.mxu0
    %v4966 = vadd.f32 0.0, %v4965
    %v4967 = vpop.f32.mrf.mxu0
    %v4968 = vadd.f32 0.0, %v4967
    %4969 = vdwg.mxu0
    %v4970 = vunpack.c.l.bf16 %v4900
    %v4971 = vunpack.c.h.bf16 %v4900
    %v4972 = vunpack.c.l.bf16 %v4901
    %v4973 = vunpack.c.h.bf16 %v4901
    %v4974 = vunpack.c.l.bf16 %v4902
    %v4975 = vunpack.c.h.bf16 %v4902
    %v4976 = vunpack.c.l.bf16 %v4903
    %v4977 = vunpack.c.h.bf16 %v4903
    %v4978 = vadd.f32 %v4970, %v4924
    %v4979 = vadd.f32 %v4971, %v4938
    %v4980 = vadd.f32 %v4972, %v4952
    %v4981 = vadd.f32 %v4973, %v4966
    %v4982 = vadd.f32 %v4974, %v4926
    %v4983 = vadd.f32 %v4975, %v4940
    %v4984 = vadd.f32 %v4976, %v4954
    %v4985 = vadd.f32 %v4977, %v4968
    %v4988 = vunpack.c.l.b16 %v4896
    %v4989 = vunpack.c.l.b16 %v4897
    %v4990 = vpack.c.b16 %v4989, %v4988
    %4992 = vmatpush.bf16.msra.mxu0 %v1782
    %4993 = vmatpush.bf16.msra.mxu0 %v1778
    %4994 = vmatpush.bf16.msra.mxu0 %v1774
    %4995 = vmatpush.bf16.msra.mxu0 %v1770
    %4996 = vmatpush.bf16.msra.mxu0 %v1766
    %4997 = vmatpush.bf16.msra.mxu0 %v1762
    %4998 = vmatpush.bf16.msra.mxu0 %v1758
    %4999 = vmatpush.bf16.msra.mxu0 %v1754
    %5000 = vmatmul.bf16.gmra.mxu0 %v4990
    %v5001 = vpop.f32.mrf.mxu0
    %v5002 = vadd.f32 0.0, %v5001
    %v5003 = vpop.f32.mrf.mxu0
    %v5004 = vadd.f32 0.0, %v5003
    %5005 = vdwg.mxu0
    %5006 = vmatpush.bf16.msra.mxu0 %v1783
    %5007 = vmatpush.bf16.msra.mxu0 %v1779
    %5008 = vmatpush.bf16.msra.mxu0 %v1775
    %5009 = vmatpush.bf16.msra.mxu0 %v1771
    %5010 = vmatpush.bf16.msra.mxu0 %v1767
    %5011 = vmatpush.bf16.msra.mxu0 %v1763
    %5012 = vmatpush.bf16.msra.mxu0 %v1759
    %5013 = vmatpush.bf16.msra.mxu0 %v1755
    %5014 = vmatmul.bf16.gmra.mxu0 %v4990
    %v5015 = vpop.f32.mrf.mxu0
    %v5016 = vadd.f32 0.0, %v5015
    %v5017 = vpop.f32.mrf.mxu0
    %v5018 = vadd.f32 0.0, %v5017
    %5019 = vdwg.mxu0
    %5020 = vmatpush.bf16.msra.mxu0 %v1784
    %5021 = vmatpush.bf16.msra.mxu0 %v1780
    %5022 = vmatpush.bf16.msra.mxu0 %v1776
    %5023 = vmatpush.bf16.msra.mxu0 %v1772
    %5024 = vmatpush.bf16.msra.mxu0 %v1768
    %5025 = vmatpush.bf16.msra.mxu0 %v1764
    %5026 = vmatpush.bf16.msra.mxu0 %v1760
    %5027 = vmatpush.bf16.msra.mxu0 %v1756
    %5028 = vmatmul.bf16.gmra.mxu0 %v4990
    %v5029 = vpop.f32.mrf.mxu0
    %v5030 = vadd.f32 0.0, %v5029
    %v5031 = vpop.f32.mrf.mxu0
    %v5032 = vadd.f32 0.0, %v5031
    %5033 = vdwg.mxu0
    %5034 = vmatpush.bf16.msra.mxu0 %v1785
    %5035 = vmatpush.bf16.msra.mxu0 %v1781
    %5036 = vmatpush.bf16.msra.mxu0 %v1777
    %5037 = vmatpush.bf16.msra.mxu0 %v1773
    %5038 = vmatpush.bf16.msra.mxu0 %v1769
    %5039 = vmatpush.bf16.msra.mxu0 %v1765
    %5040 = vmatpush.bf16.msra.mxu0 %v1761
    %5041 = vmatpush.bf16.msra.mxu0 %v1757
    %5042 = vmatmul.bf16.gmra.mxu0 %v4990
    %v5043 = vpop.f32.mrf.mxu0
    %v5044 = vadd.f32 0.0, %v5043
    %v5045 = vpop.f32.mrf.mxu0
    %v5046 = vadd.f32 0.0, %v5045
    %5047 = vdwg.mxu0
    %v5048 = vunpack.c.l.bf16 %v4904
    %v5049 = vunpack.c.h.bf16 %v4904
    %v5050 = vunpack.c.l.bf16 %v4905
    %v5051 = vunpack.c.h.bf16 %v4905
    %v5052 = vunpack.c.l.bf16 %v4906
    %v5053 = vunpack.c.h.bf16 %v4906
    %v5054 = vunpack.c.l.bf16 %v4907
    %v5055 = vunpack.c.h.bf16 %v4907
    %v5056 = vadd.f32 %v5048, %v5002
    %v5057 = vadd.f32 %v5049, %v5016
    %v5058 = vadd.f32 %v5050, %v5030
    %v5059 = vadd.f32 %v5051, %v5044
    %v5060 = vadd.f32 %v5052, %v5004
    %v5061 = vadd.f32 %v5053, %v5018
    %v5062 = vadd.f32 %v5054, %v5032
    %v5063 = vadd.f32 %v5055, %v5046
    %v5064 = vxor.u32 %v4978, 2147483648
    %v5065 = vxor.u32 %v4982, 2147483648
    %v5066 = vmul.f32 %v5064, 1.442695
    %v5067 = vpow.pop %v5066
    %v5068 = vmul.f32 %v5065, 1.442695
    %v5069 = vpow.pop %v5068
    %v5070 = vadd.f32 %v5067, 1.0
    %v5071 = vadd.f32 %v5069, 1.0
    %v5072 = vrcp.pop %v5070
    %v5073 = vmul.f32 %v5070, %v5072
    %v5074 = vsub.f32 1.0, %v5073
    %v5075 = vmul.f32 %v5072, %v5074
    %v5076 = vadd.f32 %v5072, %v5075
    %vm5077 = vweird.f32 %v5070
    %vm5078 = vweird.f32 %v5072
    %vm5079 = vmor %vm5077, %vm5078
    %v5080 = vsel %vm5079, %v5072, %v5076
    %v5081 = vand.u32 2147483647, %v5070
    %vm5082 = vcmp.eq.f32.partialorder %v5081, 8.507059e+37
    %v5083 = vand.u32 %v5070, 2147483648
    %v5084 = vor.u32 1.1754944e-38, %v5083
    %v5085 = vsel %vm5082, %v5084, %v5080
    %v5086 = vmul.f32 1.0, %v5085
    %v5087 = vrcp.pop %v5071
    %v5088 = vmul.f32 %v5071, %v5087
    %v5089 = vsub.f32 1.0, %v5088
    %v5090 = vmul.f32 %v5087, %v5089
    %v5091 = vadd.f32 %v5087, %v5090
    %vm5092 = vweird.f32 %v5071
    %vm5093 = vweird.f32 %v5087
    %vm5094 = vmor %vm5092, %vm5093
    %v5095 = vsel %vm5094, %v5087, %v5091
    %v5096 = vand.u32 2147483647, %v5071
    %vm5097 = vcmp.eq.f32.partialorder %v5096, 8.507059e+37
    %v5098 = vand.u32 %v5071, 2147483648
    %v5099 = vor.u32 1.1754944e-38, %v5098
    %v5100 = vsel %vm5097, %v5099, %v5095
    %v5101 = vmul.f32 1.0, %v5100
    %v5102 = vxor.u32 %v4979, 2147483648
    %v5103 = vxor.u32 %v4983, 2147483648
    %v5104 = vmul.f32 %v5102, 1.442695
    %v5105 = vpow.pop %v5104
    %v5106 = vmul.f32 %v5103, 1.442695
    %v5107 = vpow.pop %v5106
    %v5108 = vadd.f32 %v5105, 1.0
    %v5109 = vadd.f32 %v5107, 1.0
    %v5110 = vrcp.pop %v5108
    %v5111 = vmul.f32 %v5108, %v5110
    %v5112 = vsub.f32 1.0, %v5111
    %v5113 = vmul.f32 %v5110, %v5112
    %v5114 = vadd.f32 %v5110, %v5113
    %vm5115 = vweird.f32 %v5108
    %vm5116 = vweird.f32 %v5110
    %vm5117 = vmor %vm5115, %vm5116
    %v5118 = vsel %vm5117, %v5110, %v5114
    %v5119 = vand.u32 2147483647, %v5108
    %vm5120 = vcmp.eq.f32.partialorder %v5119, 8.507059e+37
    %v5121 = vand.u32 %v5108, 2147483648
    %v5122 = vor.u32 1.1754944e-38, %v5121
    %v5123 = vsel %vm5120, %v5122, %v5118
    %v5124 = vmul.f32 1.0, %v5123
    %v5125 = vrcp.pop %v5109
    %v5126 = vmul.f32 %v5109, %v5125
    %v5127 = vsub.f32 1.0, %v5126
    %v5128 = vmul.f32 %v5125, %v5127
    %v5129 = vadd.f32 %v5125, %v5128
    %vm5130 = vweird.f32 %v5109
    %vm5131 = vweird.f32 %v5125
    %vm5132 = vmor %vm5130, %vm5131
    %v5133 = vsel %vm5132, %v5125, %v5129
    %v5134 = vand.u32 2147483647, %v5109
    %vm5135 = vcmp.eq.f32.partialorder %v5134, 8.507059e+37
    %v5136 = vand.u32 %v5109, 2147483648
    %v5137 = vor.u32 1.1754944e-38, %v5136
    %v5138 = vsel %vm5135, %v5137, %v5133
    %v5139 = vmul.f32 1.0, %v5138
    %v5140 = vtanh.pop %v4980
    %v5141 = vtanh.pop %v4984
    %v5142 = vxor.u32 %v4981, 2147483648
    %v5143 = vxor.u32 %v4985, 2147483648
    %v5144 = vmul.f32 %v5142, 1.442695
    %v5145 = vpow.pop %v5144
    %v5146 = vmul.f32 %v5143, 1.442695
    %v5147 = vpow.pop %v5146
    %v5148 = vadd.f32 %v5145, 1.0
    %v5149 = vadd.f32 %v5147, 1.0
    %v5150 = vrcp.pop %v5148
    %v5151 = vmul.f32 %v5148, %v5150
    %v5152 = vsub.f32 1.0, %v5151
    %v5153 = vmul.f32 %v5150, %v5152
    %v5154 = vadd.f32 %v5150, %v5153
    %vm5155 = vweird.f32 %v5148
    %vm5156 = vweird.f32 %v5150
    %vm5157 = vmor %vm5155, %vm5156
    %v5158 = vsel %vm5157, %v5150, %v5154
    %v5159 = vand.u32 2147483647, %v5148
    %vm5160 = vcmp.eq.f32.partialorder %v5159, 8.507059e+37
    %v5161 = vand.u32 %v5148, 2147483648
    %v5162 = vor.u32 1.1754944e-38, %v5161
    %v5163 = vsel %vm5160, %v5162, %v5158
    %v5164 = vmul.f32 1.0, %v5163
    %v5165 = vrcp.pop %v5149
    %v5166 = vmul.f32 %v5149, %v5165
    %v5167 = vsub.f32 1.0, %v5166
    %v5168 = vmul.f32 %v5165, %v5167
    %v5169 = vadd.f32 %v5165, %v5168
    %vm5170 = vweird.f32 %v5149
    %vm5171 = vweird.f32 %v5165
    %vm5172 = vmor %vm5170, %vm5171
    %v5173 = vsel %vm5172, %v5165, %v5169
    %v5174 = vand.u32 2147483647, %v5149
    %vm5175 = vcmp.eq.f32.partialorder %v5174, 8.507059e+37
    %v5176 = vand.u32 %v5149, 2147483648
    %v5177 = vor.u32 1.1754944e-38, %v5176
    %v5178 = vsel %vm5175, %v5177, %v5173
    %v5179 = vmul.f32 1.0, %v5178
    %v5180 = vmul.f32 %v5124, %v4892
    %v5181 = vmul.f32 %v5139, %v4893
    %v5182 = vmul.f32 %v5086, %v5140
    %v5183 = vmul.f32 %v5101, %v5141
    %v5184 = vadd.f32 %v5180, %v5182
    %v5185 = vadd.f32 %v5181, %v5183
    %v5186 = vtanh.pop %v5184
    %v5187 = vtanh.pop %v5185
    %v5188 = vmul.f32 %v5164, %v5186
    %v5189 = vmul.f32 %v5179, %v5187
    %v5190 = vxor.u32 %v5056, 2147483648
    %v5191 = vxor.u32 %v5060, 2147483648
    %v5192 = vmul.f32 %v5190, 1.442695
    %v5193 = vpow.pop %v5192
    %v5194 = vmul.f32 %v5191, 1.442695
    %v5195 = vpow.pop %v5194
    %v5196 = vadd.f32 %v5193, 1.0
    %v5197 = vadd.f32 %v5195, 1.0
    %v5198 = vrcp.pop %v5196
    %v5199 = vmul.f32 %v5196, %v5198
    %v5200 = vsub.f32 1.0, %v5199
    %v5201 = vmul.f32 %v5198, %v5200
    %v5202 = vadd.f32 %v5198, %v5201
    %vm5203 = vweird.f32 %v5196
    %vm5204 = vweird.f32 %v5198
    %vm5205 = vmor %vm5203, %vm5204
    %v5206 = vsel %vm5205, %v5198, %v5202
    %v5207 = vand.u32 2147483647, %v5196
    %vm5208 = vcmp.eq.f32.partialorder %v5207, 8.507059e+37
    %v5209 = vand.u32 %v5196, 2147483648
    %v5210 = vor.u32 1.1754944e-38, %v5209
    %v5211 = vsel %vm5208, %v5210, %v5206
    %v5212 = vmul.f32 1.0, %v5211
    %v5213 = vrcp.pop %v5197
    %v5214 = vmul.f32 %v5197, %v5213
    %v5215 = vsub.f32 1.0, %v5214
    %v5216 = vmul.f32 %v5213, %v5215
    %v5217 = vadd.f32 %v5213, %v5216
    %vm5218 = vweird.f32 %v5197
    %vm5219 = vweird.f32 %v5213
    %vm5220 = vmor %vm5218, %vm5219
    %v5221 = vsel %vm5220, %v5213, %v5217
    %v5222 = vand.u32 2147483647, %v5197
    %vm5223 = vcmp.eq.f32.partialorder %v5222, 8.507059e+37
    %v5224 = vand.u32 %v5197, 2147483648
    %v5225 = vor.u32 1.1754944e-38, %v5224
    %v5226 = vsel %vm5223, %v5225, %v5221
    %v5227 = vmul.f32 1.0, %v5226
    %v5228 = vxor.u32 %v5057, 2147483648
    %v5229 = vxor.u32 %v5061, 2147483648
    %v5230 = vmul.f32 %v5228, 1.442695
    %v5231 = vpow.pop %v5230
    %v5232 = vmul.f32 %v5229, 1.442695
    %v5233 = vpow.pop %v5232
    %v5234 = vadd.f32 %v5231, 1.0
    %v5235 = vadd.f32 %v5233, 1.0
    %v5236 = vrcp.pop %v5234
    %v5237 = vmul.f32 %v5234, %v5236
    %v5238 = vsub.f32 1.0, %v5237
    %v5239 = vmul.f32 %v5236, %v5238
    %v5240 = vadd.f32 %v5236, %v5239
    %vm5241 = vweird.f32 %v5234
    %vm5242 = vweird.f32 %v5236
    %vm5243 = vmor %vm5241, %vm5242
    %v5244 = vsel %vm5243, %v5236, %v5240
    %v5245 = vand.u32 2147483647, %v5234
    %vm5246 = vcmp.eq.f32.partialorder %v5245, 8.507059e+37
    %v5247 = vand.u32 %v5234, 2147483648
    %v5248 = vor.u32 1.1754944e-38, %v5247
    %v5249 = vsel %vm5246, %v5248, %v5244
    %v5250 = vmul.f32 1.0, %v5249
    %v5251 = vrcp.pop %v5235
    %v5252 = vmul.f32 %v5235, %v5251
    %v5253 = vsub.f32 1.0, %v5252
    %v5254 = vmul.f32 %v5251, %v5253
    %v5255 = vadd.f32 %v5251, %v5254
    %vm5256 = vweird.f32 %v5235
    %vm5257 = vweird.f32 %v5251
    %vm5258 = vmor %vm5256, %vm5257
    %v5259 = vsel %vm5258, %v5251, %v5255
    %v5260 = vand.u32 2147483647, %v5235
    %vm5261 = vcmp.eq.f32.partialorder %v5260, 8.507059e+37
    %v5262 = vand.u32 %v5235, 2147483648
    %v5263 = vor.u32 1.1754944e-38, %v5262
    %v5264 = vsel %vm5261, %v5263, %v5259
    %v5265 = vmul.f32 1.0, %v5264
    %v5266 = vtanh.pop %v5058
    %v5267 = vtanh.pop %v5062
    %v5268 = vxor.u32 %v5059, 2147483648
    %v5269 = vxor.u32 %v5063, 2147483648
    %v5270 = vmul.f32 %v5268, 1.442695
    %v5271 = vpow.pop %v5270
    %v5272 = vmul.f32 %v5269, 1.442695
    %v5273 = vpow.pop %v5272
    %v5274 = vadd.f32 %v5271, 1.0
    %v5275 = vadd.f32 %v5273, 1.0
    %v5276 = vrcp.pop %v5274
    %v5277 = vmul.f32 %v5274, %v5276
    %v5278 = vsub.f32 1.0, %v5277
    %v5279 = vmul.f32 %v5276, %v5278
    %v5280 = vadd.f32 %v5276, %v5279
    %vm5281 = vweird.f32 %v5274
    %vm5282 = vweird.f32 %v5276
    %vm5283 = vmor %vm5281, %vm5282
    %v5284 = vsel %vm5283, %v5276, %v5280
    %v5285 = vand.u32 2147483647, %v5274
    %vm5286 = vcmp.eq.f32.partialorder %v5285, 8.507059e+37
    %v5287 = vand.u32 %v5274, 2147483648
    %v5288 = vor.u32 1.1754944e-38, %v5287
    %v5289 = vsel %vm5286, %v5288, %v5284
    %v5290 = vmul.f32 1.0, %v5289
    %v5291 = vrcp.pop %v5275
    %v5292 = vmul.f32 %v5275, %v5291
    %v5293 = vsub.f32 1.0, %v5292
    %v5294 = vmul.f32 %v5291, %v5293
    %v5295 = vadd.f32 %v5291, %v5294
    %vm5296 = vweird.f32 %v5275
    %vm5297 = vweird.f32 %v5291
    %vm5298 = vmor %vm5296, %vm5297
    %v5299 = vsel %vm5298, %v5291, %v5295
    %v5300 = vand.u32 2147483647, %v5275
    %vm5301 = vcmp.eq.f32.partialorder %v5300, 8.507059e+37
    %v5302 = vand.u32 %v5275, 2147483648
    %v5303 = vor.u32 1.1754944e-38, %v5302
    %v5304 = vsel %vm5301, %v5303, %v5299
    %v5305 = vmul.f32 1.0, %v5304
    %v5306 = vmul.f32 %v5250, %v4898
    %v5307 = vmul.f32 %v5265, %v4899
    %v5308 = vmul.f32 %v5212, %v5266
    %v5309 = vmul.f32 %v5227, %v5267
    %v5310 = vadd.f32 %v5306, %v5308
    %v5311 = vadd.f32 %v5307, %v5309
    %v5312 = vtanh.pop %v5310
    %v5313 = vtanh.pop %v5311
    %v5314 = vmul.f32 %v5290, %v5312
    %v5315 = vmul.f32 %v5305, %v5313
    %v5316 = vpack.c.bf16 %v5188, %v5188
    %v5317 = vpack.c.bf16 %v5189, %v5189
    %v5318 = vsel %vm4008, %v5316, %v4890
    %v5319 = vsel %vm4009, %v5317, %v4891
    %v5320 = vsel %vm4006, %v5184, %v4892
    %v5321 = vsel %vm4007, %v5185, %v4893
    %v5322 = vpack.c.bf16 %v5314, %v5314
    %v5323 = vpack.c.bf16 %v5315, %v5315
    %v5324 = vsel %vm3990, %v5322, %v4896
    %v5325 = vsel %vm3991, %v5323, %v4897
    %v5326 = vsel %vm3988, %v5310, %v4898
    %v5327 = vsel %vm3989, %v5311, %v4899
    %v5328 = vld [vmem:[%s3103] sm:$0xff]
    %v5329 = vld [vmem:[%s3103 + $0x8] sm:$0xff]
    %v5330 = vld [vmem:[%s3103 + $0x20] sm:$0xff]
    %v5331 = vld [vmem:[%s3103 + $0x28] sm:$0xff]
    %v5332 = vld [vmem:[%s3098 + $0x10] sm:$0xff]
    %v5333 = vld [vmem:[%s3098 + $0x18] sm:$0xff]
    %v5334 = vld [vmem:[%s3098 + $0x30] sm:$0xff]
    %v5335 = vld [vmem:[%s3098 + $0x38] sm:$0xff]
    %v5338 = vunpack.c.l.b16 %v5318
    %v5339 = vunpack.c.l.b16 %v5319
    %v5340 = vpack.c.b16 %v5339, %v5338
    %5342 = vmatpush.bf16.msra.mxu0 %v1518
    %5343 = vmatpush.bf16.msra.mxu0 %v1514
    %5344 = vmatpush.bf16.msra.mxu0 %v1510
    %5345 = vmatpush.bf16.msra.mxu0 %v1506
    %5346 = vmatpush.bf16.msra.mxu0 %v1502
    %5347 = vmatpush.bf16.msra.mxu0 %v1498
    %5348 = vmatpush.bf16.msra.mxu0 %v1494
    %5349 = vmatpush.bf16.msra.mxu0 %v1490
    %5350 = vmatmul.bf16.gmra.mxu0 %v5340
    %v5351 = vpop.f32.mrf.mxu0
    %v5352 = vadd.f32 0.0, %v5351
    %v5353 = vpop.f32.mrf.mxu0
    %v5354 = vadd.f32 0.0, %v5353
    %5355 = vdwg.mxu0
    %5356 = vmatpush.bf16.msra.mxu0 %v1519
    %5357 = vmatpush.bf16.msra.mxu0 %v1515
    %5358 = vmatpush.bf16.msra.mxu0 %v1511
    %5359 = vmatpush.bf16.msra.mxu0 %v1507
    %5360 = vmatpush.bf16.msra.mxu0 %v1503
    %5361 = vmatpush.bf16.msra.mxu0 %v1499
    %5362 = vmatpush.bf16.msra.mxu0 %v1495
    %5363 = vmatpush.bf16.msra.mxu0 %v1491
    %5364 = vmatmul.bf16.gmra.mxu0 %v5340
    %v5365 = vpop.f32.mrf.mxu0
    %v5366 = vadd.f32 0.0, %v5365
    %v5367 = vpop.f32.mrf.mxu0
    %v5368 = vadd.f32 0.0, %v5367
    %5369 = vdwg.mxu0
    %5370 = vmatpush.bf16.msra.mxu0 %v1520
    %5371 = vmatpush.bf16.msra.mxu0 %v1516
    %5372 = vmatpush.bf16.msra.mxu0 %v1512
    %5373 = vmatpush.bf16.msra.mxu0 %v1508
    %5374 = vmatpush.bf16.msra.mxu0 %v1504
    %5375 = vmatpush.bf16.msra.mxu0 %v1500
    %5376 = vmatpush.bf16.msra.mxu0 %v1496
    %5377 = vmatpush.bf16.msra.mxu0 %v1492
    %5378 = vmatmul.bf16.gmra.mxu0 %v5340
    %v5379 = vpop.f32.mrf.mxu0
    %v5380 = vadd.f32 0.0, %v5379
    %v5381 = vpop.f32.mrf.mxu0
    %v5382 = vadd.f32 0.0, %v5381
    %5383 = vdwg.mxu0
    %5384 = vmatpush.bf16.msra.mxu0 %v1521
    %5385 = vmatpush.bf16.msra.mxu0 %v1517
    %5386 = vmatpush.bf16.msra.mxu0 %v1513
    %5387 = vmatpush.bf16.msra.mxu0 %v1509
    %5388 = vmatpush.bf16.msra.mxu0 %v1505
    %5389 = vmatpush.bf16.msra.mxu0 %v1501
    %5390 = vmatpush.bf16.msra.mxu0 %v1497
    %5391 = vmatpush.bf16.msra.mxu0 %v1493
    %5392 = vmatmul.bf16.gmra.mxu0 %v5340
    %v5393 = vpop.f32.mrf.mxu0
    %v5394 = vadd.f32 0.0, %v5393
    %v5395 = vpop.f32.mrf.mxu0
    %v5396 = vadd.f32 0.0, %v5395
    %5397 = vdwg.mxu0
    %v5398 = vunpack.c.l.bf16 %v5328
    %v5399 = vunpack.c.h.bf16 %v5328
    %v5400 = vunpack.c.l.bf16 %v5329
    %v5401 = vunpack.c.h.bf16 %v5329
    %v5402 = vunpack.c.l.bf16 %v5330
    %v5403 = vunpack.c.h.bf16 %v5330
    %v5404 = vunpack.c.l.bf16 %v5331
    %v5405 = vunpack.c.h.bf16 %v5331
    %v5406 = vadd.f32 %v5398, %v5352
    %v5407 = vadd.f32 %v5399, %v5366
    %v5408 = vadd.f32 %v5400, %v5380
    %v5409 = vadd.f32 %v5401, %v5394
    %v5410 = vadd.f32 %v5402, %v5354
    %v5411 = vadd.f32 %v5403, %v5368
    %v5412 = vadd.f32 %v5404, %v5382
    %v5413 = vadd.f32 %v5405, %v5396
    %v5416 = vunpack.c.l.b16 %v5324
    %v5417 = vunpack.c.l.b16 %v5325
    %v5418 = vpack.c.b16 %v5417, %v5416
    %5420 = vmatpush.bf16.msra.mxu0 %v1782
    %5421 = vmatpush.bf16.msra.mxu0 %v1778
    %5422 = vmatpush.bf16.msra.mxu0 %v1774
    %5423 = vmatpush.bf16.msra.mxu0 %v1770
    %5424 = vmatpush.bf16.msra.mxu0 %v1766
    %5425 = vmatpush.bf16.msra.mxu0 %v1762
    %5426 = vmatpush.bf16.msra.mxu0 %v1758
    %5427 = vmatpush.bf16.msra.mxu0 %v1754
    %5428 = vmatmul.bf16.gmra.mxu0 %v5418
    %v5429 = vpop.f32.mrf.mxu0
    %v5430 = vadd.f32 0.0, %v5429
    %v5431 = vpop.f32.mrf.mxu0
    %v5432 = vadd.f32 0.0, %v5431
    %5433 = vdwg.mxu0
    %5434 = vmatpush.bf16.msra.mxu0 %v1783
    %5435 = vmatpush.bf16.msra.mxu0 %v1779
    %5436 = vmatpush.bf16.msra.mxu0 %v1775
    %5437 = vmatpush.bf16.msra.mxu0 %v1771
    %5438 = vmatpush.bf16.msra.mxu0 %v1767
    %5439 = vmatpush.bf16.msra.mxu0 %v1763
    %5440 = vmatpush.bf16.msra.mxu0 %v1759
    %5441 = vmatpush.bf16.msra.mxu0 %v1755
    %5442 = vmatmul.bf16.gmra.mxu0 %v5418
    %v5443 = vpop.f32.mrf.mxu0
    %v5444 = vadd.f32 0.0, %v5443
    %v5445 = vpop.f32.mrf.mxu0
    %v5446 = vadd.f32 0.0, %v5445
    %5447 = vdwg.mxu0
    %5448 = vmatpush.bf16.msra.mxu0 %v1784
    %5449 = vmatpush.bf16.msra.mxu0 %v1780
    %5450 = vmatpush.bf16.msra.mxu0 %v1776
    %5451 = vmatpush.bf16.msra.mxu0 %v1772
    %5452 = vmatpush.bf16.msra.mxu0 %v1768
    %5453 = vmatpush.bf16.msra.mxu0 %v1764
    %5454 = vmatpush.bf16.msra.mxu0 %v1760
    %5455 = vmatpush.bf16.msra.mxu0 %v1756
    %5456 = vmatmul.bf16.gmra.mxu0 %v5418
    %v5457 = vpop.f32.mrf.mxu0
    %v5458 = vadd.f32 0.0, %v5457
    %v5459 = vpop.f32.mrf.mxu0
    %v5460 = vadd.f32 0.0, %v5459
    %5461 = vdwg.mxu0
    %5462 = vmatpush.bf16.msra.mxu0 %v1785
    %5463 = vmatpush.bf16.msra.mxu0 %v1781
    %5464 = vmatpush.bf16.msra.mxu0 %v1777
    %5465 = vmatpush.bf16.msra.mxu0 %v1773
    %5466 = vmatpush.bf16.msra.mxu0 %v1769
    %5467 = vmatpush.bf16.msra.mxu0 %v1765
    %5468 = vmatpush.bf16.msra.mxu0 %v1761
    %5469 = vmatpush.bf16.msra.mxu0 %v1757
    %5470 = vmatmul.bf16.gmra.mxu0 %v5418
    %v5471 = vpop.f32.mrf.mxu0
    %v5472 = vadd.f32 0.0, %v5471
    %v5473 = vpop.f32.mrf.mxu0
    %v5474 = vadd.f32 0.0, %v5473
    %5475 = vdwg.mxu0
    %v5476 = vunpack.c.l.bf16 %v5332
    %v5477 = vunpack.c.h.bf16 %v5332
    %v5478 = vunpack.c.l.bf16 %v5333
    %v5479 = vunpack.c.h.bf16 %v5333
    %v5480 = vunpack.c.l.bf16 %v5334
    %v5481 = vunpack.c.h.bf16 %v5334
    %v5482 = vunpack.c.l.bf16 %v5335
    %v5483 = vunpack.c.h.bf16 %v5335
    %v5484 = vadd.f32 %v5476, %v5430
    %v5485 = vadd.f32 %v5477, %v5444
    %v5486 = vadd.f32 %v5478, %v5458
    %v5487 = vadd.f32 %v5479, %v5472
    %v5488 = vadd.f32 %v5480, %v5432
    %v5489 = vadd.f32 %v5481, %v5446
    %v5490 = vadd.f32 %v5482, %v5460
    %v5491 = vadd.f32 %v5483, %v5474
    %v5492 = vxor.u32 %v5406, 2147483648
    %v5493 = vxor.u32 %v5410, 2147483648
    %v5494 = vmul.f32 %v5492, 1.442695
    %v5495 = vpow.pop %v5494
    %v5496 = vmul.f32 %v5493, 1.442695
    %v5497 = vpow.pop %v5496
    %v5498 = vadd.f32 %v5495, 1.0
    %v5499 = vadd.f32 %v5497, 1.0
    %v5500 = vrcp.pop %v5498
    %v5501 = vmul.f32 %v5498, %v5500
    %v5502 = vsub.f32 1.0, %v5501
    %v5503 = vmul.f32 %v5500, %v5502
    %v5504 = vadd.f32 %v5500, %v5503
    %vm5505 = vweird.f32 %v5498
    %vm5506 = vweird.f32 %v5500
    %vm5507 = vmor %vm5505, %vm5506
    %v5508 = vsel %vm5507, %v5500, %v5504
    %v5509 = vand.u32 2147483647, %v5498
    %vm5510 = vcmp.eq.f32.partialorder %v5509, 8.507059e+37
    %v5511 = vand.u32 %v5498, 2147483648
    %v5512 = vor.u32 1.1754944e-38, %v5511
    %v5513 = vsel %vm5510, %v5512, %v5508
    %v5514 = vmul.f32 1.0, %v5513
    %v5515 = vrcp.pop %v5499
    %v5516 = vmul.f32 %v5499, %v5515
    %v5517 = vsub.f32 1.0, %v5516
    %v5518 = vmul.f32 %v5515, %v5517
    %v5519 = vadd.f32 %v5515, %v5518
    %vm5520 = vweird.f32 %v5499
    %vm5521 = vweird.f32 %v5515
    %vm5522 = vmor %vm5520, %vm5521
    %v5523 = vsel %vm5522, %v5515, %v5519
    %v5524 = vand.u32 2147483647, %v5499
    %vm5525 = vcmp.eq.f32.partialorder %v5524, 8.507059e+37
    %v5526 = vand.u32 %v5499, 2147483648
    %v5527 = vor.u32 1.1754944e-38, %v5526
    %v5528 = vsel %vm5525, %v5527, %v5523
    %v5529 = vmul.f32 1.0, %v5528
    %v5530 = vxor.u32 %v5407, 2147483648
    %v5531 = vxor.u32 %v5411, 2147483648
    %v5532 = vmul.f32 %v5530, 1.442695
    %v5533 = vpow.pop %v5532
    %v5534 = vmul.f32 %v5531, 1.442695
    %v5535 = vpow.pop %v5534
    %v5536 = vadd.f32 %v5533, 1.0
    %v5537 = vadd.f32 %v5535, 1.0
    %v5538 = vrcp.pop %v5536
    %v5539 = vmul.f32 %v5536, %v5538
    %v5540 = vsub.f32 1.0, %v5539
    %v5541 = vmul.f32 %v5538, %v5540
    %v5542 = vadd.f32 %v5538, %v5541
    %vm5543 = vweird.f32 %v5536
    %vm5544 = vweird.f32 %v5538
    %vm5545 = vmor %vm5543, %vm5544
    %v5546 = vsel %vm5545, %v5538, %v5542
    %v5547 = vand.u32 2147483647, %v5536
    %vm5548 = vcmp.eq.f32.partialorder %v5547, 8.507059e+37
    %v5549 = vand.u32 %v5536, 2147483648
    %v5550 = vor.u32 1.1754944e-38, %v5549
    %v5551 = vsel %vm5548, %v5550, %v5546
    %v5552 = vmul.f32 1.0, %v5551
    %v5553 = vrcp.pop %v5537
    %v5554 = vmul.f32 %v5537, %v5553
    %v5555 = vsub.f32 1.0, %v5554
    %v5556 = vmul.f32 %v5553, %v5555
    %v5557 = vadd.f32 %v5553, %v5556
    %vm5558 = vweird.f32 %v5537
    %vm5559 = vweird.f32 %v5553
    %vm5560 = vmor %vm5558, %vm5559
    %v5561 = vsel %vm5560, %v5553, %v5557
    %v5562 = vand.u32 2147483647, %v5537
    %vm5563 = vcmp.eq.f32.partialorder %v5562, 8.507059e+37
    %v5564 = vand.u32 %v5537, 2147483648
    %v5565 = vor.u32 1.1754944e-38, %v5564
    %v5566 = vsel %vm5563, %v5565, %v5561
    %v5567 = vmul.f32 1.0, %v5566
    %v5568 = vtanh.pop %v5408
    %v5569 = vtanh.pop %v5412
    %v5570 = vxor.u32 %v5409, 2147483648
    %v5571 = vxor.u32 %v5413, 2147483648
    %v5572 = vmul.f32 %v5570, 1.442695
    %v5573 = vpow.pop %v5572
    %v5574 = vmul.f32 %v5571, 1.442695
    %v5575 = vpow.pop %v5574
    %v5576 = vadd.f32 %v5573, 1.0
    %v5577 = vadd.f32 %v5575, 1.0
    %v5578 = vrcp.pop %v5576
    %v5579 = vmul.f32 %v5576, %v5578
    %v5580 = vsub.f32 1.0, %v5579
    %v5581 = vmul.f32 %v5578, %v5580
    %v5582 = vadd.f32 %v5578, %v5581
    %vm5583 = vweird.f32 %v5576
    %vm5584 = vweird.f32 %v5578
    %vm5585 = vmor %vm5583, %vm5584
    %v5586 = vsel %vm5585, %v5578, %v5582
    %v5587 = vand.u32 2147483647, %v5576
    %vm5588 = vcmp.eq.f32.partialorder %v5587, 8.507059e+37
    %v5589 = vand.u32 %v5576, 2147483648
    %v5590 = vor.u32 1.1754944e-38, %v5589
    %v5591 = vsel %vm5588, %v5590, %v5586
    %v5592 = vmul.f32 1.0, %v5591
    %v5593 = vrcp.pop %v5577
    %v5594 = vmul.f32 %v5577, %v5593
    %v5595 = vsub.f32 1.0, %v5594
    %v5596 = vmul.f32 %v5593, %v5595
    %v5597 = vadd.f32 %v5593, %v5596
    %vm5598 = vweird.f32 %v5577
    %vm5599 = vweird.f32 %v5593
    %vm5600 = vmor %vm5598, %vm5599
    %v5601 = vsel %vm5600, %v5593, %v5597
    %v5602 = vand.u32 2147483647, %v5577
    %vm5603 = vcmp.eq.f32.partialorder %v5602, 8.507059e+37
    %v5604 = vand.u32 %v5577, 2147483648
    %v5605 = vor.u32 1.1754944e-38, %v5604
    %v5606 = vsel %vm5603, %v5605, %v5601
    %v5607 = vmul.f32 1.0, %v5606
    %v5608 = vmul.f32 %v5552, %v5320
    %v5609 = vmul.f32 %v5567, %v5321
    %v5610 = vmul.f32 %v5514, %v5568
    %v5611 = vmul.f32 %v5529, %v5569
    %v5612 = vadd.f32 %v5608, %v5610
    %v5613 = vadd.f32 %v5609, %v5611
    %v5614 = vtanh.pop %v5612
    %v5615 = vtanh.pop %v5613
    %v5616 = vmul.f32 %v5592, %v5614
    %v5617 = vmul.f32 %v5607, %v5615
    %v5618 = vxor.u32 %v5484, 2147483648
    %v5619 = vxor.u32 %v5488, 2147483648
    %v5620 = vmul.f32 %v5618, 1.442695
    %v5621 = vpow.pop %v5620
    %v5622 = vmul.f32 %v5619, 1.442695
    %v5623 = vpow.pop %v5622
    %v5624 = vadd.f32 %v5621, 1.0
    %v5625 = vadd.f32 %v5623, 1.0
    %v5626 = vrcp.pop %v5624
    %v5627 = vmul.f32 %v5624, %v5626
    %v5628 = vsub.f32 1.0, %v5627
    %v5629 = vmul.f32 %v5626, %v5628
    %v5630 = vadd.f32 %v5626, %v5629
    %vm5631 = vweird.f32 %v5624
    %vm5632 = vweird.f32 %v5626
    %vm5633 = vmor %vm5631, %vm5632
    %v5634 = vsel %vm5633, %v5626, %v5630
    %v5635 = vand.u32 2147483647, %v5624
    %vm5636 = vcmp.eq.f32.partialorder %v5635, 8.507059e+37
    %v5637 = vand.u32 %v5624, 2147483648
    %v5638 = vor.u32 1.1754944e-38, %v5637
    %v5639 = vsel %vm5636, %v5638, %v5634
    %v5640 = vmul.f32 1.0, %v5639
    %v5641 = vrcp.pop %v5625
    %v5642 = vmul.f32 %v5625, %v5641
    %v5643 = vsub.f32 1.0, %v5642
    %v5644 = vmul.f32 %v5641, %v5643
    %v5645 = vadd.f32 %v5641, %v5644
    %vm5646 = vweird.f32 %v5625
    %vm5647 = vweird.f32 %v5641
    %vm5648 = vmor %vm5646, %vm5647
    %v5649 = vsel %vm5648, %v5641, %v5645
    %v5650 = vand.u32 2147483647, %v5625
    %vm5651 = vcmp.eq.f32.partialorder %v5650, 8.507059e+37
    %v5652 = vand.u32 %v5625, 2147483648
    %v5653 = vor.u32 1.1754944e-38, %v5652
    %v5654 = vsel %vm5651, %v5653, %v5649
    %v5655 = vmul.f32 1.0, %v5654
    %v5656 = vxor.u32 %v5485, 2147483648
    %v5657 = vxor.u32 %v5489, 2147483648
    %v5658 = vmul.f32 %v5656, 1.442695
    %v5659 = vpow.pop %v5658
    %v5660 = vmul.f32 %v5657, 1.442695
    %v5661 = vpow.pop %v5660
    %v5662 = vadd.f32 %v5659, 1.0
    %v5663 = vadd.f32 %v5661, 1.0
    %v5664 = vrcp.pop %v5662
    %v5665 = vmul.f32 %v5662, %v5664
    %v5666 = vsub.f32 1.0, %v5665
    %v5667 = vmul.f32 %v5664, %v5666
    %v5668 = vadd.f32 %v5664, %v5667
    %vm5669 = vweird.f32 %v5662
    %vm5670 = vweird.f32 %v5664
    %vm5671 = vmor %vm5669, %vm5670
    %v5672 = vsel %vm5671, %v5664, %v5668
    %v5673 = vand.u32 2147483647, %v5662
    %vm5674 = vcmp.eq.f32.partialorder %v5673, 8.507059e+37
    %v5675 = vand.u32 %v5662, 2147483648
    %v5676 = vor.u32 1.1754944e-38, %v5675
    %v5677 = vsel %vm5674, %v5676, %v5672
    %v5678 = vmul.f32 1.0, %v5677
    %v5679 = vrcp.pop %v5663
    %v5680 = vmul.f32 %v5663, %v5679
    %v5681 = vsub.f32 1.0, %v5680
    %v5682 = vmul.f32 %v5679, %v5681
    %v5683 = vadd.f32 %v5679, %v5682
    %vm5684 = vweird.f32 %v5663
    %vm5685 = vweird.f32 %v5679
    %vm5686 = vmor %vm5684, %vm5685
    %v5687 = vsel %vm5686, %v5679, %v5683
    %v5688 = vand.u32 2147483647, %v5663
    %vm5689 = vcmp.eq.f32.partialorder %v5688, 8.507059e+37
    %v5690 = vand.u32 %v5663, 2147483648
    %v5691 = vor.u32 1.1754944e-38, %v5690
    %v5692 = vsel %vm5689, %v5691, %v5687
    %v5693 = vmul.f32 1.0, %v5692
    %v5694 = vtanh.pop %v5486
    %v5695 = vtanh.pop %v5490
    %v5696 = vxor.u32 %v5487, 2147483648
    %v5697 = vxor.u32 %v5491, 2147483648
    %v5698 = vmul.f32 %v5696, 1.442695
    %v5699 = vpow.pop %v5698
    %v5700 = vmul.f32 %v5697, 1.442695
    %v5701 = vpow.pop %v5700
    %v5702 = vadd.f32 %v5699, 1.0
    %v5703 = vadd.f32 %v5701, 1.0
    %v5704 = vrcp.pop %v5702
    %v5705 = vmul.f32 %v5702, %v5704
    %v5706 = vsub.f32 1.0, %v5705
    %v5707 = vmul.f32 %v5704, %v5706
    %v5708 = vadd.f32 %v5704, %v5707
    %vm5709 = vweird.f32 %v5702
    %vm5710 = vweird.f32 %v5704
    %vm5711 = vmor %vm5709, %vm5710
    %v5712 = vsel %vm5711, %v5704, %v5708
    %v5713 = vand.u32 2147483647, %v5702
    %vm5714 = vcmp.eq.f32.partialorder %v5713, 8.507059e+37
    %v5715 = vand.u32 %v5702, 2147483648
    %v5716 = vor.u32 1.1754944e-38, %v5715
    %v5717 = vsel %vm5714, %v5716, %v5712
    %v5718 = vmul.f32 1.0, %v5717
    %v5719 = vrcp.pop %v5703
    %v5720 = vmul.f32 %v5703, %v5719
    %v5721 = vsub.f32 1.0, %v5720
    %v5722 = vmul.f32 %v5719, %v5721
    %v5723 = vadd.f32 %v5719, %v5722
    %vm5724 = vweird.f32 %v5703
    %vm5725 = vweird.f32 %v5719
    %vm5726 = vmor %vm5724, %vm5725
    %v5727 = vsel %vm5726, %v5719, %v5723
    %v5728 = vand.u32 2147483647, %v5703
    %vm5729 = vcmp.eq.f32.partialorder %v5728, 8.507059e+37
    %v5730 = vand.u32 %v5703, 2147483648
    %v5731 = vor.u32 1.1754944e-38, %v5730
    %v5732 = vsel %vm5729, %v5731, %v5727
    %v5733 = vmul.f32 1.0, %v5732
    %v5734 = vmul.f32 %v5678, %v5326
    %v5735 = vmul.f32 %v5693, %v5327
    %v5736 = vmul.f32 %v5640, %v5694
    %v5737 = vmul.f32 %v5655, %v5695
    %v5738 = vadd.f32 %v5734, %v5736
    %v5739 = vadd.f32 %v5735, %v5737
    %v5740 = vtanh.pop %v5738
    %v5741 = vtanh.pop %v5739
    %v5742 = vmul.f32 %v5718, %v5740
    %v5743 = vmul.f32 %v5733, %v5741
    %v5744 = vpack.c.bf16 %v5616, %v5616
    %v5745 = vpack.c.bf16 %v5617, %v5617
    %v5746 = vsel %vm3550, %v5744, %v5318
    %v5747 = vsel %vm3551, %v5745, %v5319
    %v5748 = vsel %vm3548, %v5612, %v5320
    %v5749 = vsel %vm3549, %v5613, %v5321
    %v5750 = vpack.c.bf16 %v5742, %v5742
    %v5751 = vpack.c.bf16 %v5743, %v5743
    %v5752 = vsel %vm3532, %v5750, %v5324
    %v5753 = vsel %vm3533, %v5751, %v5325
    %v5754 = vsel %vm3530, %v5738, %v5326
    %v5755 = vsel %vm3531, %v5739, %v5327
    %v5756 = vld [vmem:[%s2645] sm:$0xff]
    %v5757 = vld [vmem:[%s2645 + $0x8] sm:$0xff]
    %v5758 = vld [vmem:[%s2645 + $0x20] sm:$0xff]
    %v5759 = vld [vmem:[%s2645 + $0x28] sm:$0xff]
    %v5760 = vld [vmem:[%s2640 + $0x10] sm:$0xff]
    %v5761 = vld [vmem:[%s2640 + $0x18] sm:$0xff]
    %v5762 = vld [vmem:[%s2640 + $0x30] sm:$0xff]
    %v5763 = vld [vmem:[%s2640 + $0x38] sm:$0xff]
    %v5766 = vunpack.c.l.b16 %v5746
    %v5767 = vunpack.c.l.b16 %v5747
    %v5768 = vpack.c.b16 %v5767, %v5766
    %5770 = vmatpush.bf16.msra.mxu0 %v1518
    %5771 = vmatpush.bf16.msra.mxu0 %v1514
    %5772 = vmatpush.bf16.msra.mxu0 %v1510
    %5773 = vmatpush.bf16.msra.mxu0 %v1506
    %5774 = vmatpush.bf16.msra.mxu0 %v1502
    %5775 = vmatpush.bf16.msra.mxu0 %v1498
    %5776 = vmatpush.bf16.msra.mxu0 %v1494
    %5777 = vmatpush.bf16.msra.mxu0 %v1490
    %5778 = vmatmul.bf16.gmra.mxu0 %v5768
    %v5779 = vpop.f32.mrf.mxu0
    %v5780 = vadd.f32 0.0, %v5779
    %v5781 = vpop.f32.mrf.mxu0
    %v5782 = vadd.f32 0.0, %v5781
    %5783 = vdwg.mxu0
    %5784 = vmatpush.bf16.msra.mxu0 %v1519
    %5785 = vmatpush.bf16.msra.mxu0 %v1515
    %5786 = vmatpush.bf16.msra.mxu0 %v1511
    %5787 = vmatpush.bf16.msra.mxu0 %v1507
    %5788 = vmatpush.bf16.msra.mxu0 %v1503
    %5789 = vmatpush.bf16.msra.mxu0 %v1499
    %5790 = vmatpush.bf16.msra.mxu0 %v1495
    %5791 = vmatpush.bf16.msra.mxu0 %v1491
    %5792 = vmatmul.bf16.gmra.mxu0 %v5768
    %v5793 = vpop.f32.mrf.mxu0
    %v5794 = vadd.f32 0.0, %v5793
    %v5795 = vpop.f32.mrf.mxu0
    %v5796 = vadd.f32 0.0, %v5795
    %5797 = vdwg.mxu0
    %5798 = vmatpush.bf16.msra.mxu0 %v1520
    %5799 = vmatpush.bf16.msra.mxu0 %v1516
    %5800 = vmatpush.bf16.msra.mxu0 %v1512
    %5801 = vmatpush.bf16.msra.mxu0 %v1508
    %5802 = vmatpush.bf16.msra.mxu0 %v1504
    %5803 = vmatpush.bf16.msra.mxu0 %v1500
    %5804 = vmatpush.bf16.msra.mxu0 %v1496
    %5805 = vmatpush.bf16.msra.mxu0 %v1492
    %5806 = vmatmul.bf16.gmra.mxu0 %v5768
    %v5807 = vpop.f32.mrf.mxu0
    %v5808 = vadd.f32 0.0, %v5807
    %v5809 = vpop.f32.mrf.mxu0
    %v5810 = vadd.f32 0.0, %v5809
    %5811 = vdwg.mxu0
    %5812 = vmatpush.bf16.msra.mxu0 %v1521
    %5813 = vmatpush.bf16.msra.mxu0 %v1517
    %5814 = vmatpush.bf16.msra.mxu0 %v1513
    %5815 = vmatpush.bf16.msra.mxu0 %v1509
    %5816 = vmatpush.bf16.msra.mxu0 %v1505
    %5817 = vmatpush.bf16.msra.mxu0 %v1501
    %5818 = vmatpush.bf16.msra.mxu0 %v1497
    %5819 = vmatpush.bf16.msra.mxu0 %v1493
    %5820 = vmatmul.bf16.gmra.mxu0 %v5768
    %v5821 = vpop.f32.mrf.mxu0
    %v5822 = vadd.f32 0.0, %v5821
    %v5823 = vpop.f32.mrf.mxu0
    %v5824 = vadd.f32 0.0, %v5823
    %5825 = vdwg.mxu0
    %v5826 = vunpack.c.l.bf16 %v5756
    %v5827 = vunpack.c.h.bf16 %v5756
    %v5828 = vunpack.c.l.bf16 %v5757
    %v5829 = vunpack.c.h.bf16 %v5757
    %v5830 = vunpack.c.l.bf16 %v5758
    %v5831 = vunpack.c.h.bf16 %v5758
    %v5832 = vunpack.c.l.bf16 %v5759
    %v5833 = vunpack.c.h.bf16 %v5759
    %v5834 = vadd.f32 %v5826, %v5780
    %v5835 = vadd.f32 %v5827, %v5794
    %v5836 = vadd.f32 %v5828, %v5808
    %v5837 = vadd.f32 %v5829, %v5822
    %v5838 = vadd.f32 %v5830, %v5782
    %v5839 = vadd.f32 %v5831, %v5796
    %v5840 = vadd.f32 %v5832, %v5810
    %v5841 = vadd.f32 %v5833, %v5824
    %v5844 = vunpack.c.l.b16 %v5752
    %v5845 = vunpack.c.l.b16 %v5753
    %v5846 = vpack.c.b16 %v5845, %v5844
    %5848 = vmatpush.bf16.msra.mxu0 %v1782
    %5849 = vmatpush.bf16.msra.mxu0 %v1778
    %5850 = vmatpush.bf16.msra.mxu0 %v1774
    %5851 = vmatpush.bf16.msra.mxu0 %v1770
    %5852 = vmatpush.bf16.msra.mxu0 %v1766
    %5853 = vmatpush.bf16.msra.mxu0 %v1762
    %5854 = vmatpush.bf16.msra.mxu0 %v1758
    %5855 = vmatpush.bf16.msra.mxu0 %v1754
    %5856 = vmatmul.bf16.gmra.mxu0 %v5846
    %v5857 = vpop.f32.mrf.mxu0
    %v5858 = vadd.f32 0.0, %v5857
    %v5859 = vpop.f32.mrf.mxu0
    %v5860 = vadd.f32 0.0, %v5859
    %5861 = vdwg.mxu0
    %5862 = vmatpush.bf16.msra.mxu0 %v1783
    %5863 = vmatpush.bf16.msra.mxu0 %v1779
    %5864 = vmatpush.bf16.msra.mxu0 %v1775
    %5865 = vmatpush.bf16.msra.mxu0 %v1771
    %5866 = vmatpush.bf16.msra.mxu0 %v1767
    %5867 = vmatpush.bf16.msra.mxu0 %v1763
    %5868 = vmatpush.bf16.msra.mxu0 %v1759
    %5869 = vmatpush.bf16.msra.mxu0 %v1755
    %5870 = vmatmul.bf16.gmra.mxu0 %v5846
    %v5871 = vpop.f32.mrf.mxu0
    %v5872 = vadd.f32 0.0, %v5871
    %v5873 = vpop.f32.mrf.mxu0
    %v5874 = vadd.f32 0.0, %v5873
    %5875 = vdwg.mxu0
    %5876 = vmatpush.bf16.msra.mxu0 %v1784
    %5877 = vmatpush.bf16.msra.mxu0 %v1780
    %5878 = vmatpush.bf16.msra.mxu0 %v1776
    %5879 = vmatpush.bf16.msra.mxu0 %v1772
    %5880 = vmatpush.bf16.msra.mxu0 %v1768
    %5881 = vmatpush.bf16.msra.mxu0 %v1764
    %5882 = vmatpush.bf16.msra.mxu0 %v1760
    %5883 = vmatpush.bf16.msra.mxu0 %v1756
    %5884 = vmatmul.bf16.gmra.mxu0 %v5846
    %v5885 = vpop.f32.mrf.mxu0
    %v5886 = vadd.f32 0.0, %v5885
    %v5887 = vpop.f32.mrf.mxu0
    %v5888 = vadd.f32 0.0, %v5887
    %5889 = vdwg.mxu0
    %5890 = vmatpush.bf16.msra.mxu0 %v1785
    %5891 = vmatpush.bf16.msra.mxu0 %v1781
    %5892 = vmatpush.bf16.msra.mxu0 %v1777
    %5893 = vmatpush.bf16.msra.mxu0 %v1773
    %5894 = vmatpush.bf16.msra.mxu0 %v1769
    %5895 = vmatpush.bf16.msra.mxu0 %v1765
    %5896 = vmatpush.bf16.msra.mxu0 %v1761
    %5897 = vmatpush.bf16.msra.mxu0 %v1757
    %5898 = vmatmul.bf16.gmra.mxu0 %v5846
    %v5899 = vpop.f32.mrf.mxu0
    %v5900 = vadd.f32 0.0, %v5899
    %v5901 = vpop.f32.mrf.mxu0
    %v5902 = vadd.f32 0.0, %v5901
    %5903 = vdwg.mxu0
    %v5904 = vunpack.c.l.bf16 %v5760
    %v5905 = vunpack.c.h.bf16 %v5760
    %v5906 = vunpack.c.l.bf16 %v5761
    %v5907 = vunpack.c.h.bf16 %v5761
    %v5908 = vunpack.c.l.bf16 %v5762
    %v5909 = vunpack.c.h.bf16 %v5762
    %v5910 = vunpack.c.l.bf16 %v5763
    %v5911 = vunpack.c.h.bf16 %v5763
    %v5912 = vadd.f32 %v5904, %v5858
    %v5913 = vadd.f32 %v5905, %v5872
    %v5914 = vadd.f32 %v5906, %v5886
    %v5915 = vadd.f32 %v5907, %v5900
    %v5916 = vadd.f32 %v5908, %v5860
    %v5917 = vadd.f32 %v5909, %v5874
    %v5918 = vadd.f32 %v5910, %v5888
    %v5919 = vadd.f32 %v5911, %v5902
    %v5920 = vxor.u32 %v5834, 2147483648
    %v5921 = vxor.u32 %v5838, 2147483648
    %v5922 = vmul.f32 %v5920, 1.442695
    %v5923 = vpow.pop %v5922
    %v5924 = vmul.f32 %v5921, 1.442695
    %v5925 = vpow.pop %v5924
    %v5926 = vadd.f32 %v5923, 1.0
    %v5927 = vadd.f32 %v5925, 1.0
    %v5928 = vrcp.pop %v5926
    %v5929 = vmul.f32 %v5926, %v5928
    %v5930 = vsub.f32 1.0, %v5929
    %v5931 = vmul.f32 %v5928, %v5930
    %v5932 = vadd.f32 %v5928, %v5931
    %vm5933 = vweird.f32 %v5926
    %vm5934 = vweird.f32 %v5928
    %vm5935 = vmor %vm5933, %vm5934
    %v5936 = vsel %vm5935, %v5928, %v5932
    %v5937 = vand.u32 2147483647, %v5926
    %vm5938 = vcmp.eq.f32.partialorder %v5937, 8.507059e+37
    %v5939 = vand.u32 %v5926, 2147483648
    %v5940 = vor.u32 1.1754944e-38, %v5939
    %v5941 = vsel %vm5938, %v5940, %v5936
    %v5942 = vmul.f32 1.0, %v5941
    %v5943 = vrcp.pop %v5927
    %v5944 = vmul.f32 %v5927, %v5943
    %v5945 = vsub.f32 1.0, %v5944
    %v5946 = vmul.f32 %v5943, %v5945
    %v5947 = vadd.f32 %v5943, %v5946
    %vm5948 = vweird.f32 %v5927
    %vm5949 = vweird.f32 %v5943
    %vm5950 = vmor %vm5948, %vm5949
    %v5951 = vsel %vm5950, %v5943, %v5947
    %v5952 = vand.u32 2147483647, %v5927
    %vm5953 = vcmp.eq.f32.partialorder %v5952, 8.507059e+37
    %v5954 = vand.u32 %v5927, 2147483648
    %v5955 = vor.u32 1.1754944e-38, %v5954
    %v5956 = vsel %vm5953, %v5955, %v5951
    %v5957 = vmul.f32 1.0, %v5956
    %v5958 = vxor.u32 %v5835, 2147483648
    %v5959 = vxor.u32 %v5839, 2147483648
    %v5960 = vmul.f32 %v5958, 1.442695
    %v5961 = vpow.pop %v5960
    %v5962 = vmul.f32 %v5959, 1.442695
    %v5963 = vpow.pop %v5962
    %v5964 = vadd.f32 %v5961, 1.0
    %v5965 = vadd.f32 %v5963, 1.0
    %v5966 = vrcp.pop %v5964
    %v5967 = vmul.f32 %v5964, %v5966
    %v5968 = vsub.f32 1.0, %v5967
    %v5969 = vmul.f32 %v5966, %v5968
    %v5970 = vadd.f32 %v5966, %v5969
    %vm5971 = vweird.f32 %v5964
    %vm5972 = vweird.f32 %v5966
    %vm5973 = vmor %vm5971, %vm5972
    %v5974 = vsel %vm5973, %v5966, %v5970
    %v5975 = vand.u32 2147483647, %v5964
    %vm5976 = vcmp.eq.f32.partialorder %v5975, 8.507059e+37
    %v5977 = vand.u32 %v5964, 2147483648
    %v5978 = vor.u32 1.1754944e-38, %v5977
    %v5979 = vsel %vm5976, %v5978, %v5974
    %v5980 = vmul.f32 1.0, %v5979
    %v5981 = vrcp.pop %v5965
    %v5982 = vmul.f32 %v5965, %v5981
    %v5983 = vsub.f32 1.0, %v5982
    %v5984 = vmul.f32 %v5981, %v5983
    %v5985 = vadd.f32 %v5981, %v5984
    %vm5986 = vweird.f32 %v5965
    %vm5987 = vweird.f32 %v5981
    %vm5988 = vmor %vm5986, %vm5987
    %v5989 = vsel %vm5988, %v5981, %v5985
    %v5990 = vand.u32 2147483647, %v5965
    %vm5991 = vcmp.eq.f32.partialorder %v5990, 8.507059e+37
    %v5992 = vand.u32 %v5965, 2147483648
    %v5993 = vor.u32 1.1754944e-38, %v5992
    %v5994 = vsel %vm5991, %v5993, %v5989
    %v5995 = vmul.f32 1.0, %v5994
    %v5996 = vtanh.pop %v5836
    %v5997 = vtanh.pop %v5840
    %v5998 = vxor.u32 %v5837, 2147483648
    %v5999 = vxor.u32 %v5841, 2147483648
    %v6000 = vmul.f32 %v5998, 1.442695
    %v6001 = vpow.pop %v6000
    %v6002 = vmul.f32 %v5999, 1.442695
    %v6003 = vpow.pop %v6002
    %v6004 = vadd.f32 %v6001, 1.0
    %v6005 = vadd.f32 %v6003, 1.0
    %v6006 = vrcp.pop %v6004
    %v6007 = vmul.f32 %v6004, %v6006
    %v6008 = vsub.f32 1.0, %v6007
    %v6009 = vmul.f32 %v6006, %v6008
    %v6010 = vadd.f32 %v6006, %v6009
    %vm6011 = vweird.f32 %v6004
    %vm6012 = vweird.f32 %v6006
    %vm6013 = vmor %vm6011, %vm6012
    %v6014 = vsel %vm6013, %v6006, %v6010
    %v6015 = vand.u32 2147483647, %v6004
    %vm6016 = vcmp.eq.f32.partialorder %v6015, 8.507059e+37
    %v6017 = vand.u32 %v6004, 2147483648
    %v6018 = vor.u32 1.1754944e-38, %v6017
    %v6019 = vsel %vm6016, %v6018, %v6014
    %v6020 = vmul.f32 1.0, %v6019
    %v6021 = vrcp.pop %v6005
    %v6022 = vmul.f32 %v6005, %v6021
    %v6023 = vsub.f32 1.0, %v6022
    %v6024 = vmul.f32 %v6021, %v6023
    %v6025 = vadd.f32 %v6021, %v6024
    %vm6026 = vweird.f32 %v6005
    %vm6027 = vweird.f32 %v6021
    %vm6028 = vmor %vm6026, %vm6027
    %v6029 = vsel %vm6028, %v6021, %v6025
    %v6030 = vand.u32 2147483647, %v6005
    %vm6031 = vcmp.eq.f32.partialorder %v6030, 8.507059e+37
    %v6032 = vand.u32 %v6005, 2147483648
    %v6033 = vor.u32 1.1754944e-38, %v6032
    %v6034 = vsel %vm6031, %v6033, %v6029
    %v6035 = vmul.f32 1.0, %v6034
    %v6036 = vmul.f32 %v5980, %v5748
    %v6037 = vmul.f32 %v5995, %v5749
    %v6038 = vmul.f32 %v5942, %v5996
    %v6039 = vmul.f32 %v5957, %v5997
    %v6040 = vadd.f32 %v6036, %v6038
    %v6041 = vadd.f32 %v6037, %v6039
    %v6042 = vtanh.pop %v6040
    %v6043 = vtanh.pop %v6041
    %v6044 = vmul.f32 %v6020, %v6042
    %v6045 = vmul.f32 %v6035, %v6043
    %v6046 = vxor.u32 %v5912, 2147483648
    %v6047 = vxor.u32 %v5916, 2147483648
    %v6048 = vmul.f32 %v6046, 1.442695
    %v6049 = vpow.pop %v6048
    %v6050 = vmul.f32 %v6047, 1.442695
    %v6051 = vpow.pop %v6050
    %v6052 = vadd.f32 %v6049, 1.0
    %v6053 = vadd.f32 %v6051, 1.0
    %v6054 = vrcp.pop %v6052
    %v6055 = vmul.f32 %v6052, %v6054
    %v6056 = vsub.f32 1.0, %v6055
    %v6057 = vmul.f32 %v6054, %v6056
    %v6058 = vadd.f32 %v6054, %v6057
    %vm6059 = vweird.f32 %v6052
    %vm6060 = vweird.f32 %v6054
    %vm6061 = vmor %vm6059, %vm6060
    %v6062 = vsel %vm6061, %v6054, %v6058
    %v6063 = vand.u32 2147483647, %v6052
    %vm6064 = vcmp.eq.f32.partialorder %v6063, 8.507059e+37
    %v6065 = vand.u32 %v6052, 2147483648
    %v6066 = vor.u32 1.1754944e-38, %v6065
    %v6067 = vsel %vm6064, %v6066, %v6062
    %v6068 = vmul.f32 1.0, %v6067
    %v6069 = vrcp.pop %v6053
    %v6070 = vmul.f32 %v6053, %v6069
    %v6071 = vsub.f32 1.0, %v6070
    %v6072 = vmul.f32 %v6069, %v6071
    %v6073 = vadd.f32 %v6069, %v6072
    %vm6074 = vweird.f32 %v6053
    %vm6075 = vweird.f32 %v6069
    %vm6076 = vmor %vm6074, %vm6075
    %v6077 = vsel %vm6076, %v6069, %v6073
    %v6078 = vand.u32 2147483647, %v6053
    %vm6079 = vcmp.eq.f32.partialorder %v6078, 8.507059e+37
    %v6080 = vand.u32 %v6053, 2147483648
    %v6081 = vor.u32 1.1754944e-38, %v6080
    %v6082 = vsel %vm6079, %v6081, %v6077
    %v6083 = vmul.f32 1.0, %v6082
    %v6084 = vxor.u32 %v5913, 2147483648
    %v6085 = vxor.u32 %v5917, 2147483648
    %v6086 = vmul.f32 %v6084, 1.442695
    %v6087 = vpow.pop %v6086
    %v6088 = vmul.f32 %v6085, 1.442695
    %v6089 = vpow.pop %v6088
    %v6090 = vadd.f32 %v6087, 1.0
    %v6091 = vadd.f32 %v6089, 1.0
    %v6092 = vrcp.pop %v6090
    %v6093 = vmul.f32 %v6090, %v6092
    %v6094 = vsub.f32 1.0, %v6093
    %v6095 = vmul.f32 %v6092, %v6094
    %v6096 = vadd.f32 %v6092, %v6095
    %vm6097 = vweird.f32 %v6090
    %vm6098 = vweird.f32 %v6092
    %vm6099 = vmor %vm6097, %vm6098
    %v6100 = vsel %vm6099, %v6092, %v6096
    %v6101 = vand.u32 2147483647, %v6090
    %vm6102 = vcmp.eq.f32.partialorder %v6101, 8.507059e+37
    %v6103 = vand.u32 %v6090, 2147483648
    %v6104 = vor.u32 1.1754944e-38, %v6103
    %v6105 = vsel %vm6102, %v6104, %v6100
    %v6106 = vmul.f32 1.0, %v6105
    %v6107 = vrcp.pop %v6091
    %v6108 = vmul.f32 %v6091, %v6107
    %v6109 = vsub.f32 1.0, %v6108
    %v6110 = vmul.f32 %v6107, %v6109
    %v6111 = vadd.f32 %v6107, %v6110
    %vm6112 = vweird.f32 %v6091
    %vm6113 = vweird.f32 %v6107
    %vm6114 = vmor %vm6112, %vm6113
    %v6115 = vsel %vm6114, %v6107, %v6111
    %v6116 = vand.u32 2147483647, %v6091
    %vm6117 = vcmp.eq.f32.partialorder %v6116, 8.507059e+37
    %v6118 = vand.u32 %v6091, 2147483648
    %v6119 = vor.u32 1.1754944e-38, %v6118
    %v6120 = vsel %vm6117, %v6119, %v6115
    %v6121 = vmul.f32 1.0, %v6120
    %v6122 = vtanh.pop %v5914
    %v6123 = vtanh.pop %v5918
    %v6124 = vxor.u32 %v5915, 2147483648
    %v6125 = vxor.u32 %v5919, 2147483648
    %v6126 = vmul.f32 %v6124, 1.442695
    %v6127 = vpow.pop %v6126
    %v6128 = vmul.f32 %v6125, 1.442695
    %v6129 = vpow.pop %v6128
    %v6130 = vadd.f32 %v6127, 1.0
    %v6131 = vadd.f32 %v6129, 1.0
    %v6132 = vrcp.pop %v6130
    %v6133 = vmul.f32 %v6130, %v6132
    %v6134 = vsub.f32 1.0, %v6133
    %v6135 = vmul.f32 %v6132, %v6134
    %v6136 = vadd.f32 %v6132, %v6135
    %vm6137 = vweird.f32 %v6130
    %vm6138 = vweird.f32 %v6132
    %vm6139 = vmor %vm6137, %vm6138
    %v6140 = vsel %vm6139, %v6132, %v6136
    %v6141 = vand.u32 2147483647, %v6130
    %vm6142 = vcmp.eq.f32.partialorder %v6141, 8.507059e+37
    %v6143 = vand.u32 %v6130, 2147483648
    %v6144 = vor.u32 1.1754944e-38, %v6143
    %v6145 = vsel %vm6142, %v6144, %v6140
    %v6146 = vmul.f32 1.0, %v6145
    %v6147 = vrcp.pop %v6131
    %v6148 = vmul.f32 %v6131, %v6147
    %v6149 = vsub.f32 1.0, %v6148
    %v6150 = vmul.f32 %v6147, %v6149
    %v6151 = vadd.f32 %v6147, %v6150
    %vm6152 = vweird.f32 %v6131
    %vm6153 = vweird.f32 %v6147
    %vm6154 = vmor %vm6152, %vm6153
    %v6155 = vsel %vm6154, %v6147, %v6151
    %v6156 = vand.u32 2147483647, %v6131
    %vm6157 = vcmp.eq.f32.partialorder %v6156, 8.507059e+37
    %v6158 = vand.u32 %v6131, 2147483648
    %v6159 = vor.u32 1.1754944e-38, %v6158
    %v6160 = vsel %vm6157, %v6159, %v6155
    %v6161 = vmul.f32 1.0, %v6160
    %v6162 = vmul.f32 %v6106, %v5754
    %v6163 = vmul.f32 %v6121, %v5755
    %v6164 = vmul.f32 %v6068, %v6122
    %v6165 = vmul.f32 %v6083, %v6123
    %v6166 = vadd.f32 %v6162, %v6164
    %v6167 = vadd.f32 %v6163, %v6165
    %v6168 = vtanh.pop %v6166
    %v6169 = vtanh.pop %v6167
    %v6170 = vmul.f32 %v6146, %v6168
    %v6171 = vmul.f32 %v6161, %v6169
    %v6172 = vpack.c.bf16 %v6044, %v6044
    %v6173 = vpack.c.bf16 %v6045, %v6045
    %v6174 = vsel %vm3092, %v6172, %v5746
    %v6175 = vsel %vm3093, %v6173, %v5747
    %v6176 = vsel %vm3090, %v6040, %v5748
    %v6177 = vsel %vm3091, %v6041, %v5749
    %v6178 = vpack.c.bf16 %v6170, %v6170
    %v6179 = vpack.c.bf16 %v6171, %v6171
    %v6180 = vsel %vm3074, %v6178, %v5752
    %v6181 = vsel %vm3075, %v6179, %v5753
    %v6182 = vsel %vm3072, %v6166, %v5754
    %v6183 = vsel %vm3073, %v6167, %v5755
    %v6184 = vld [vmem:[%s2187] sm:$0xff]
    %v6185 = vld [vmem:[%s2187 + $0x8] sm:$0xff]
    %v6186 = vld [vmem:[%s2187 + $0x20] sm:$0xff]
    %v6187 = vld [vmem:[%s2187 + $0x28] sm:$0xff]
    %v6188 = vld [vmem:[%s2182 + $0x10] sm:$0xff]
    %v6189 = vld [vmem:[%s2182 + $0x18] sm:$0xff]
    %v6190 = vld [vmem:[%s2182 + $0x30] sm:$0xff]
    %v6191 = vld [vmem:[%s2182 + $0x38] sm:$0xff]
    %v6194 = vunpack.c.l.b16 %v6174
    %v6195 = vunpack.c.l.b16 %v6175
    %v6196 = vpack.c.b16 %v6195, %v6194
    %6198 = vmatpush.bf16.msra.mxu0 %v1518
    %6199 = vmatpush.bf16.msra.mxu0 %v1514
    %6200 = vmatpush.bf16.msra.mxu0 %v1510
    %6201 = vmatpush.bf16.msra.mxu0 %v1506
    %6202 = vmatpush.bf16.msra.mxu0 %v1502
    %6203 = vmatpush.bf16.msra.mxu0 %v1498
    %6204 = vmatpush.bf16.msra.mxu0 %v1494
    %6205 = vmatpush.bf16.msra.mxu0 %v1490
    %6206 = vmatmul.bf16.gmra.mxu0 %v6196
    %v6207 = vpop.f32.mrf.mxu0
    %v6208 = vadd.f32 0.0, %v6207
    %v6209 = vpop.f32.mrf.mxu0
    %v6210 = vadd.f32 0.0, %v6209
    %6211 = vdwg.mxu0
    %6212 = vmatpush.bf16.msra.mxu0 %v1519
    %6213 = vmatpush.bf16.msra.mxu0 %v1515
    %6214 = vmatpush.bf16.msra.mxu0 %v1511
    %6215 = vmatpush.bf16.msra.mxu0 %v1507
    %6216 = vmatpush.bf16.msra.mxu0 %v1503
    %6217 = vmatpush.bf16.msra.mxu0 %v1499
    %6218 = vmatpush.bf16.msra.mxu0 %v1495
    %6219 = vmatpush.bf16.msra.mxu0 %v1491
    %6220 = vmatmul.bf16.gmra.mxu0 %v6196
    %v6221 = vpop.f32.mrf.mxu0
    %v6222 = vadd.f32 0.0, %v6221
    %v6223 = vpop.f32.mrf.mxu0
    %v6224 = vadd.f32 0.0, %v6223
    %6225 = vdwg.mxu0
    %6226 = vmatpush.bf16.msra.mxu0 %v1520
    %6227 = vmatpush.bf16.msra.mxu0 %v1516
    %6228 = vmatpush.bf16.msra.mxu0 %v1512
    %6229 = vmatpush.bf16.msra.mxu0 %v1508
    %6230 = vmatpush.bf16.msra.mxu0 %v1504
    %6231 = vmatpush.bf16.msra.mxu0 %v1500
    %6232 = vmatpush.bf16.msra.mxu0 %v1496
    %6233 = vmatpush.bf16.msra.mxu0 %v1492
    %6234 = vmatmul.bf16.gmra.mxu0 %v6196
    %v6235 = vpop.f32.mrf.mxu0
    %v6236 = vadd.f32 0.0, %v6235
    %v6237 = vpop.f32.mrf.mxu0
    %v6238 = vadd.f32 0.0, %v6237
    %6239 = vdwg.mxu0
    %6240 = vmatpush.bf16.msra.mxu0 %v1521
    %6241 = vmatpush.bf16.msra.mxu0 %v1517
    %6242 = vmatpush.bf16.msra.mxu0 %v1513
    %6243 = vmatpush.bf16.msra.mxu0 %v1509
    %6244 = vmatpush.bf16.msra.mxu0 %v1505
    %6245 = vmatpush.bf16.msra.mxu0 %v1501
    %6246 = vmatpush.bf16.msra.mxu0 %v1497
    %6247 = vmatpush.bf16.msra.mxu0 %v1493
    %6248 = vmatmul.bf16.gmra.mxu0 %v6196
    %v6249 = vpop.f32.mrf.mxu0
    %v6250 = vadd.f32 0.0, %v6249
    %v6251 = vpop.f32.mrf.mxu0
    %v6252 = vadd.f32 0.0, %v6251
    %6253 = vdwg.mxu0
    %v6254 = vunpack.c.l.bf16 %v6184
    %v6255 = vunpack.c.h.bf16 %v6184
    %v6256 = vunpack.c.l.bf16 %v6185
    %v6257 = vunpack.c.h.bf16 %v6185
    %v6258 = vunpack.c.l.bf16 %v6186
    %v6259 = vunpack.c.h.bf16 %v6186
    %v6260 = vunpack.c.l.bf16 %v6187
    %v6261 = vunpack.c.h.bf16 %v6187
    %v6262 = vadd.f32 %v6254, %v6208
    %v6263 = vadd.f32 %v6255, %v6222
    %v6264 = vadd.f32 %v6256, %v6236
    %v6265 = vadd.f32 %v6257, %v6250
    %v6266 = vadd.f32 %v6258, %v6210
    %v6267 = vadd.f32 %v6259, %v6224
    %v6268 = vadd.f32 %v6260, %v6238
    %v6269 = vadd.f32 %v6261, %v6252
    %v6272 = vunpack.c.l.b16 %v6180
    %v6273 = vunpack.c.l.b16 %v6181
    %v6274 = vpack.c.b16 %v6273, %v6272
    %6276 = vmatpush.bf16.msra.mxu0 %v1782
    %6277 = vmatpush.bf16.msra.mxu0 %v1778
    %6278 = vmatpush.bf16.msra.mxu0 %v1774
    %6279 = vmatpush.bf16.msra.mxu0 %v1770
    %6280 = vmatpush.bf16.msra.mxu0 %v1766
    %6281 = vmatpush.bf16.msra.mxu0 %v1762
    %6282 = vmatpush.bf16.msra.mxu0 %v1758
    %6283 = vmatpush.bf16.msra.mxu0 %v1754
    %6284 = vmatmul.bf16.gmra.mxu0 %v6274
    %v6285 = vpop.f32.mrf.mxu0
    %v6286 = vadd.f32 0.0, %v6285
    %v6287 = vpop.f32.mrf.mxu0
    %v6288 = vadd.f32 0.0, %v6287
    %6289 = vdwg.mxu0
    %6290 = vmatpush.bf16.msra.mxu0 %v1783
    %6291 = vmatpush.bf16.msra.mxu0 %v1779
    %6292 = vmatpush.bf16.msra.mxu0 %v1775
    %6293 = vmatpush.bf16.msra.mxu0 %v1771
    %6294 = vmatpush.bf16.msra.mxu0 %v1767
    %6295 = vmatpush.bf16.msra.mxu0 %v1763
    %6296 = vmatpush.bf16.msra.mxu0 %v1759
    %6297 = vmatpush.bf16.msra.mxu0 %v1755
    %6298 = vmatmul.bf16.gmra.mxu0 %v6274
    %v6299 = vpop.f32.mrf.mxu0
    %v6300 = vadd.f32 0.0, %v6299
    %v6301 = vpop.f32.mrf.mxu0
    %v6302 = vadd.f32 0.0, %v6301
    %6303 = vdwg.mxu0
    %6304 = vmatpush.bf16.msra.mxu0 %v1784
    %6305 = vmatpush.bf16.msra.mxu0 %v1780
    %6306 = vmatpush.bf16.msra.mxu0 %v1776
    %6307 = vmatpush.bf16.msra.mxu0 %v1772
    %6308 = vmatpush.bf16.msra.mxu0 %v1768
    %6309 = vmatpush.bf16.msra.mxu0 %v1764
    %6310 = vmatpush.bf16.msra.mxu0 %v1760
    %6311 = vmatpush.bf16.msra.mxu0 %v1756
    %6312 = vmatmul.bf16.gmra.mxu0 %v6274
    %v6313 = vpop.f32.mrf.mxu0
    %v6314 = vadd.f32 0.0, %v6313
    %v6315 = vpop.f32.mrf.mxu0
    %v6316 = vadd.f32 0.0, %v6315
    %6317 = vdwg.mxu0
    %6318 = vmatpush.bf16.msra.mxu0 %v1785
    %6319 = vmatpush.bf16.msra.mxu0 %v1781
    %6320 = vmatpush.bf16.msra.mxu0 %v1777
    %6321 = vmatpush.bf16.msra.mxu0 %v1773
    %6322 = vmatpush.bf16.msra.mxu0 %v1769
    %6323 = vmatpush.bf16.msra.mxu0 %v1765
    %6324 = vmatpush.bf16.msra.mxu0 %v1761
    %6325 = vmatpush.bf16.msra.mxu0 %v1757
    %6326 = vmatmul.bf16.gmra.mxu0 %v6274
    %v6327 = vpop.f32.mrf.mxu0
    %v6328 = vadd.f32 0.0, %v6327
    %v6329 = vpop.f32.mrf.mxu0
    %v6330 = vadd.f32 0.0, %v6329
    %6331 = vdwg.mxu0
    %v6332 = vunpack.c.l.bf16 %v6188
    %v6333 = vunpack.c.h.bf16 %v6188
    %v6334 = vunpack.c.l.bf16 %v6189
    %v6335 = vunpack.c.h.bf16 %v6189
    %v6336 = vunpack.c.l.bf16 %v6190
    %v6337 = vunpack.c.h.bf16 %v6190
    %v6338 = vunpack.c.l.bf16 %v6191
    %v6339 = vunpack.c.h.bf16 %v6191
    %v6340 = vadd.f32 %v6332, %v6286
    %v6341 = vadd.f32 %v6333, %v6300
    %v6342 = vadd.f32 %v6334, %v6314
    %v6343 = vadd.f32 %v6335, %v6328
    %v6344 = vadd.f32 %v6336, %v6288
    %v6345 = vadd.f32 %v6337, %v6302
    %v6346 = vadd.f32 %v6338, %v6316
    %v6347 = vadd.f32 %v6339, %v6330
    %v6348 = vxor.u32 %v6262, 2147483648
    %v6349 = vxor.u32 %v6266, 2147483648
    %v6350 = vmul.f32 %v6348, 1.442695
    %v6351 = vpow.pop %v6350
    %v6352 = vmul.f32 %v6349, 1.442695
    %v6353 = vpow.pop %v6352
    %v6354 = vadd.f32 %v6351, 1.0
    %v6355 = vadd.f32 %v6353, 1.0
    %v6356 = vrcp.pop %v6354
    %v6357 = vmul.f32 %v6354, %v6356
    %v6358 = vsub.f32 1.0, %v6357
    %v6359 = vmul.f32 %v6356, %v6358
    %v6360 = vadd.f32 %v6356, %v6359
    %vm6361 = vweird.f32 %v6354
    %vm6362 = vweird.f32 %v6356
    %vm6363 = vmor %vm6361, %vm6362
    %v6364 = vsel %vm6363, %v6356, %v6360
    %v6365 = vand.u32 2147483647, %v6354
    %vm6366 = vcmp.eq.f32.partialorder %v6365, 8.507059e+37
    %v6367 = vand.u32 %v6354, 2147483648
    %v6368 = vor.u32 1.1754944e-38, %v6367
    %v6369 = vsel %vm6366, %v6368, %v6364
    %v6370 = vmul.f32 1.0, %v6369
    %v6371 = vrcp.pop %v6355
    %v6372 = vmul.f32 %v6355, %v6371
    %v6373 = vsub.f32 1.0, %v6372
    %v6374 = vmul.f32 %v6371, %v6373
    %v6375 = vadd.f32 %v6371, %v6374
    %vm6376 = vweird.f32 %v6355
    %vm6377 = vweird.f32 %v6371
    %vm6378 = vmor %vm6376, %vm6377
    %v6379 = vsel %vm6378, %v6371, %v6375
    %v6380 = vand.u32 2147483647, %v6355
    %vm6381 = vcmp.eq.f32.partialorder %v6380, 8.507059e+37
    %v6382 = vand.u32 %v6355, 2147483648
    %v6383 = vor.u32 1.1754944e-38, %v6382
    %v6384 = vsel %vm6381, %v6383, %v6379
    %v6385 = vmul.f32 1.0, %v6384
    %v6386 = vxor.u32 %v6263, 2147483648
    %v6387 = vxor.u32 %v6267, 2147483648
    %v6388 = vmul.f32 %v6386, 1.442695
    %v6389 = vpow.pop %v6388
    %v6390 = vmul.f32 %v6387, 1.442695
    %v6391 = vpow.pop %v6390
    %v6392 = vadd.f32 %v6389, 1.0
    %v6393 = vadd.f32 %v6391, 1.0
    %v6394 = vrcp.pop %v6392
    %v6395 = vmul.f32 %v6392, %v6394
    %v6396 = vsub.f32 1.0, %v6395
    %v6397 = vmul.f32 %v6394, %v6396
    %v6398 = vadd.f32 %v6394, %v6397
    %vm6399 = vweird.f32 %v6392
    %vm6400 = vweird.f32 %v6394
    %vm6401 = vmor %vm6399, %vm6400
    %v6402 = vsel %vm6401, %v6394, %v6398
    %v6403 = vand.u32 2147483647, %v6392
    %vm6404 = vcmp.eq.f32.partialorder %v6403, 8.507059e+37
    %v6405 = vand.u32 %v6392, 2147483648
    %v6406 = vor.u32 1.1754944e-38, %v6405
    %v6407 = vsel %vm6404, %v6406, %v6402
    %v6408 = vmul.f32 1.0, %v6407
    %v6409 = vrcp.pop %v6393
    %v6410 = vmul.f32 %v6393, %v6409
    %v6411 = vsub.f32 1.0, %v6410
    %v6412 = vmul.f32 %v6409, %v6411
    %v6413 = vadd.f32 %v6409, %v6412
    %vm6414 = vweird.f32 %v6393
    %vm6415 = vweird.f32 %v6409
    %vm6416 = vmor %vm6414, %vm6415
    %v6417 = vsel %vm6416, %v6409, %v6413
    %v6418 = vand.u32 2147483647, %v6393
    %vm6419 = vcmp.eq.f32.partialorder %v6418, 8.507059e+37
    %v6420 = vand.u32 %v6393, 2147483648
    %v6421 = vor.u32 1.1754944e-38, %v6420
    %v6422 = vsel %vm6419, %v6421, %v6417
    %v6423 = vmul.f32 1.0, %v6422
    %v6424 = vtanh.pop %v6264
    %v6425 = vtanh.pop %v6268
    %v6426 = vxor.u32 %v6265, 2147483648
    %v6427 = vxor.u32 %v6269, 2147483648
    %v6428 = vmul.f32 %v6426, 1.442695
    %v6429 = vpow.pop %v6428
    %v6430 = vmul.f32 %v6427, 1.442695
    %v6431 = vpow.pop %v6430
    %v6432 = vadd.f32 %v6429, 1.0
    %v6433 = vadd.f32 %v6431, 1.0
    %v6434 = vrcp.pop %v6432
    %v6435 = vmul.f32 %v6432, %v6434
    %v6436 = vsub.f32 1.0, %v6435
    %v6437 = vmul.f32 %v6434, %v6436
    %v6438 = vadd.f32 %v6434, %v6437
    %vm6439 = vweird.f32 %v6432
    %vm6440 = vweird.f32 %v6434
    %vm6441 = vmor %vm6439, %vm6440
    %v6442 = vsel %vm6441, %v6434, %v6438
    %v6443 = vand.u32 2147483647, %v6432
    %vm6444 = vcmp.eq.f32.partialorder %v6443, 8.507059e+37
    %v6445 = vand.u32 %v6432, 2147483648
    %v6446 = vor.u32 1.1754944e-38, %v6445
    %v6447 = vsel %vm6444, %v6446, %v6442
    %v6448 = vmul.f32 1.0, %v6447
    %v6449 = vrcp.pop %v6433
    %v6450 = vmul.f32 %v6433, %v6449
    %v6451 = vsub.f32 1.0, %v6450
    %v6452 = vmul.f32 %v6449, %v6451
    %v6453 = vadd.f32 %v6449, %v6452
    %vm6454 = vweird.f32 %v6433
    %vm6455 = vweird.f32 %v6449
    %vm6456 = vmor %vm6454, %vm6455
    %v6457 = vsel %vm6456, %v6449, %v6453
    %v6458 = vand.u32 2147483647, %v6433
    %vm6459 = vcmp.eq.f32.partialorder %v6458, 8.507059e+37
    %v6460 = vand.u32 %v6433, 2147483648
    %v6461 = vor.u32 1.1754944e-38, %v6460
    %v6462 = vsel %vm6459, %v6461, %v6457
    %v6463 = vmul.f32 1.0, %v6462
    %v6464 = vmul.f32 %v6408, %v6176
    %v6465 = vmul.f32 %v6423, %v6177
    %v6466 = vmul.f32 %v6370, %v6424
    %v6467 = vmul.f32 %v6385, %v6425
    %v6468 = vadd.f32 %v6464, %v6466
    %v6469 = vadd.f32 %v6465, %v6467
    %v6470 = vtanh.pop %v6468
    %v6471 = vtanh.pop %v6469
    %v6472 = vmul.f32 %v6448, %v6470
    %v6473 = vmul.f32 %v6463, %v6471
    %v6474 = vxor.u32 %v6340, 2147483648
    %v6475 = vxor.u32 %v6344, 2147483648
    %v6476 = vmul.f32 %v6474, 1.442695
    %v6477 = vpow.pop %v6476
    %v6478 = vmul.f32 %v6475, 1.442695
    %v6479 = vpow.pop %v6478
    %v6480 = vadd.f32 %v6477, 1.0
    %v6481 = vadd.f32 %v6479, 1.0
    %v6482 = vrcp.pop %v6480
    %v6483 = vmul.f32 %v6480, %v6482
    %v6484 = vsub.f32 1.0, %v6483
    %v6485 = vmul.f32 %v6482, %v6484
    %v6486 = vadd.f32 %v6482, %v6485
    %vm6487 = vweird.f32 %v6480
    %vm6488 = vweird.f32 %v6482
    %vm6489 = vmor %vm6487, %vm6488
    %v6490 = vsel %vm6489, %v6482, %v6486
    %v6491 = vand.u32 2147483647, %v6480
    %vm6492 = vcmp.eq.f32.partialorder %v6491, 8.507059e+37
    %v6493 = vand.u32 %v6480, 2147483648
    %v6494 = vor.u32 1.1754944e-38, %v6493
    %v6495 = vsel %vm6492, %v6494, %v6490
    %v6496 = vmul.f32 1.0, %v6495
    %v6497 = vrcp.pop %v6481
    %v6498 = vmul.f32 %v6481, %v6497
    %v6499 = vsub.f32 1.0, %v6498
    %v6500 = vmul.f32 %v6497, %v6499
    %v6501 = vadd.f32 %v6497, %v6500
    %vm6502 = vweird.f32 %v6481
    %vm6503 = vweird.f32 %v6497
    %vm6504 = vmor %vm6502, %vm6503
    %v6505 = vsel %vm6504, %v6497, %v6501
    %v6506 = vand.u32 2147483647, %v6481
    %vm6507 = vcmp.eq.f32.partialorder %v6506, 8.507059e+37
    %v6508 = vand.u32 %v6481, 2147483648
    %v6509 = vor.u32 1.1754944e-38, %v6508
    %v6510 = vsel %vm6507, %v6509, %v6505
    %v6511 = vmul.f32 1.0, %v6510
    %v6512 = vxor.u32 %v6341, 2147483648
    %v6513 = vxor.u32 %v6345, 2147483648
    %v6514 = vmul.f32 %v6512, 1.442695
    %v6515 = vpow.pop %v6514
    %v6516 = vmul.f32 %v6513, 1.442695
    %v6517 = vpow.pop %v6516
    %v6518 = vadd.f32 %v6515, 1.0
    %v6519 = vadd.f32 %v6517, 1.0
    %v6520 = vrcp.pop %v6518
    %v6521 = vmul.f32 %v6518, %v6520
    %v6522 = vsub.f32 1.0, %v6521
    %v6523 = vmul.f32 %v6520, %v6522
    %v6524 = vadd.f32 %v6520, %v6523
    %vm6525 = vweird.f32 %v6518
    %vm6526 = vweird.f32 %v6520
    %vm6527 = vmor %vm6525, %vm6526
    %v6528 = vsel %vm6527, %v6520, %v6524
    %v6529 = vand.u32 2147483647, %v6518
    %vm6530 = vcmp.eq.f32.partialorder %v6529, 8.507059e+37
    %v6531 = vand.u32 %v6518, 2147483648
    %v6532 = vor.u32 1.1754944e-38, %v6531
    %v6533 = vsel %vm6530, %v6532, %v6528
    %v6534 = vmul.f32 1.0, %v6533
    %v6535 = vrcp.pop %v6519
    %v6536 = vmul.f32 %v6519, %v6535
    %v6537 = vsub.f32 1.0, %v6536
    %v6538 = vmul.f32 %v6535, %v6537
    %v6539 = vadd.f32 %v6535, %v6538
    %vm6540 = vweird.f32 %v6519
    %vm6541 = vweird.f32 %v6535
    %vm6542 = vmor %vm6540, %vm6541
    %v6543 = vsel %vm6542, %v6535, %v6539
    %v6544 = vand.u32 2147483647, %v6519
    %vm6545 = vcmp.eq.f32.partialorder %v6544, 8.507059e+37
    %v6546 = vand.u32 %v6519, 2147483648
    %v6547 = vor.u32 1.1754944e-38, %v6546
    %v6548 = vsel %vm6545, %v6547, %v6543
    %v6549 = vmul.f32 1.0, %v6548
    %v6550 = vtanh.pop %v6342
    %v6551 = vtanh.pop %v6346
    %v6552 = vxor.u32 %v6343, 2147483648
    %v6553 = vxor.u32 %v6347, 2147483648
    %v6554 = vmul.f32 %v6552, 1.442695
    %v6555 = vpow.pop %v6554
    %v6556 = vmul.f32 %v6553, 1.442695
    %v6557 = vpow.pop %v6556
    %v6558 = vadd.f32 %v6555, 1.0
    %v6559 = vadd.f32 %v6557, 1.0
    %v6560 = vrcp.pop %v6558
    %v6561 = vmul.f32 %v6558, %v6560
    %v6562 = vsub.f32 1.0, %v6561
    %v6563 = vmul.f32 %v6560, %v6562
    %v6564 = vadd.f32 %v6560, %v6563
    %vm6565 = vweird.f32 %v6558
    %vm6566 = vweird.f32 %v6560
    %vm6567 = vmor %vm6565, %vm6566
    %v6568 = vsel %vm6567, %v6560, %v6564
    %v6569 = vand.u32 2147483647, %v6558
    %vm6570 = vcmp.eq.f32.partialorder %v6569, 8.507059e+37
    %v6571 = vand.u32 %v6558, 2147483648
    %v6572 = vor.u32 1.1754944e-38, %v6571
    %v6573 = vsel %vm6570, %v6572, %v6568
    %v6574 = vmul.f32 1.0, %v6573
    %v6575 = vrcp.pop %v6559
    %v6576 = vmul.f32 %v6559, %v6575
    %v6577 = vsub.f32 1.0, %v6576
    %v6578 = vmul.f32 %v6575, %v6577
    %v6579 = vadd.f32 %v6575, %v6578
    %vm6580 = vweird.f32 %v6559
    %vm6581 = vweird.f32 %v6575
    %vm6582 = vmor %vm6580, %vm6581
    %v6583 = vsel %vm6582, %v6575, %v6579
    %v6584 = vand.u32 2147483647, %v6559
    %vm6585 = vcmp.eq.f32.partialorder %v6584, 8.507059e+37
    %v6586 = vand.u32 %v6559, 2147483648
    %v6587 = vor.u32 1.1754944e-38, %v6586
    %v6588 = vsel %vm6585, %v6587, %v6583
    %v6589 = vmul.f32 1.0, %v6588
    %v6590 = vmul.f32 %v6534, %v6182
    %v6591 = vmul.f32 %v6549, %v6183
    %v6592 = vmul.f32 %v6496, %v6550
    %v6593 = vmul.f32 %v6511, %v6551
    %v6594 = vadd.f32 %v6590, %v6592
    %v6595 = vadd.f32 %v6591, %v6593
    %v6596 = vtanh.pop %v6594
    %v6597 = vtanh.pop %v6595
    %v6598 = vmul.f32 %v6574, %v6596
    %v6599 = vmul.f32 %v6589, %v6597
    %v6600 = vpack.c.bf16 %v6472, %v6472
    %v6601 = vpack.c.bf16 %v6473, %v6473
    %v6602 = vsel %vm2634, %v6600, %v6174
    %v6603 = vsel %vm2635, %v6601, %v6175
    %v6604 = vsel %vm2632, %v6468, %v6176
    %v6605 = vsel %vm2633, %v6469, %v6177
    %v6606 = vpack.c.bf16 %v6598, %v6598
    %v6607 = vpack.c.bf16 %v6599, %v6599
    %v6608 = vsel %vm2616, %v6606, %v6180
    %v6609 = vsel %vm2617, %v6607, %v6181
    %v6610 = vsel %vm2614, %v6594, %v6182
    %v6611 = vsel %vm2615, %v6595, %v6183
    %v6612 = vld [vmem:[%s1357] sm:$0xff]
    %v6613 = vld [vmem:[%s1357 + $0x8] sm:$0xff]
    %v6614 = vld [vmem:[%s1357 + $0x20] sm:$0xff]
    %v6615 = vld [vmem:[%s1357 + $0x28] sm:$0xff]
    %v6616 = vld [vmem:[#allocation2 + $0x10] sm:$0xff]
    %v6617 = vld [vmem:[#allocation2 + $0x18] sm:$0xff]
    %v6618 = vld [vmem:[#allocation2 + $0x30] sm:$0xff]
    %v6619 = vld [vmem:[#allocation2 + $0x38] sm:$0xff]
    %v6622 = vunpack.c.l.b16 %v6602
    %v6623 = vunpack.c.l.b16 %v6603
    %v6624 = vpack.c.b16 %v6623, %v6622
    %6626 = vmatpush.bf16.msra.mxu0 %v1518
    %6627 = vmatpush.bf16.msra.mxu0 %v1514
    %6628 = vmatpush.bf16.msra.mxu0 %v1510
    %6629 = vmatpush.bf16.msra.mxu0 %v1506
    %6630 = vmatpush.bf16.msra.mxu0 %v1502
    %6631 = vmatpush.bf16.msra.mxu0 %v1498
    %6632 = vmatpush.bf16.msra.mxu0 %v1494
    %6633 = vmatpush.bf16.msra.mxu0 %v1490
    %6634 = vmatmul.bf16.gmra.mxu0 %v6624
    %v6635 = vpop.f32.mrf.mxu0
    %v6636 = vadd.f32 0.0, %v6635
    %v6637 = vpop.f32.mrf.mxu0
    %v6638 = vadd.f32 0.0, %v6637
    %6639 = vdwg.mxu0
    %6640 = vmatpush.bf16.msra.mxu0 %v1519
    %6641 = vmatpush.bf16.msra.mxu0 %v1515
    %6642 = vmatpush.bf16.msra.mxu0 %v1511
    %6643 = vmatpush.bf16.msra.mxu0 %v1507
    %6644 = vmatpush.bf16.msra.mxu0 %v1503
    %6645 = vmatpush.bf16.msra.mxu0 %v1499
    %6646 = vmatpush.bf16.msra.mxu0 %v1495
    %6647 = vmatpush.bf16.msra.mxu0 %v1491
    %6648 = vmatmul.bf16.gmra.mxu0 %v6624
    %v6649 = vpop.f32.mrf.mxu0
    %v6650 = vadd.f32 0.0, %v6649
    %v6651 = vpop.f32.mrf.mxu0
    %v6652 = vadd.f32 0.0, %v6651
    %6653 = vdwg.mxu0
    %6654 = vmatpush.bf16.msra.mxu0 %v1520
    %6655 = vmatpush.bf16.msra.mxu0 %v1516
    %6656 = vmatpush.bf16.msra.mxu0 %v1512
    %6657 = vmatpush.bf16.msra.mxu0 %v1508
    %6658 = vmatpush.bf16.msra.mxu0 %v1504
    %6659 = vmatpush.bf16.msra.mxu0 %v1500
    %6660 = vmatpush.bf16.msra.mxu0 %v1496
    %6661 = vmatpush.bf16.msra.mxu0 %v1492
    %6662 = vmatmul.bf16.gmra.mxu0 %v6624
    %v6663 = vpop.f32.mrf.mxu0
    %v6664 = vadd.f32 0.0, %v6663
    %v6665 = vpop.f32.mrf.mxu0
    %v6666 = vadd.f32 0.0, %v6665
    %6667 = vdwg.mxu0
    %6668 = vmatpush.bf16.msra.mxu0 %v1521
    %6669 = vmatpush.bf16.msra.mxu0 %v1517
    %6670 = vmatpush.bf16.msra.mxu0 %v1513
    %6671 = vmatpush.bf16.msra.mxu0 %v1509
    %6672 = vmatpush.bf16.msra.mxu0 %v1505
    %6673 = vmatpush.bf16.msra.mxu0 %v1501
    %6674 = vmatpush.bf16.msra.mxu0 %v1497
    %6675 = vmatpush.bf16.msra.mxu0 %v1493
    %6676 = vmatmul.bf16.gmra.mxu0 %v6624
    %v6677 = vpop.f32.mrf.mxu0
    %v6678 = vadd.f32 0.0, %v6677
    %v6679 = vpop.f32.mrf.mxu0
    %v6680 = vadd.f32 0.0, %v6679
    %6681 = vdwg.mxu0
    %v6682 = vunpack.c.l.bf16 %v6612
    %v6683 = vunpack.c.h.bf16 %v6612
    %v6684 = vunpack.c.l.bf16 %v6613
    %v6685 = vunpack.c.h.bf16 %v6613
    %v6686 = vunpack.c.l.bf16 %v6614
    %v6687 = vunpack.c.h.bf16 %v6614
    %v6688 = vunpack.c.l.bf16 %v6615
    %v6689 = vunpack.c.h.bf16 %v6615
    %v6690 = vadd.f32 %v6682, %v6636
    %v6691 = vadd.f32 %v6683, %v6650
    %v6692 = vadd.f32 %v6684, %v6664
    %v6693 = vadd.f32 %v6685, %v6678
    %v6694 = vadd.f32 %v6686, %v6638
    %v6695 = vadd.f32 %v6687, %v6652
    %v6696 = vadd.f32 %v6688, %v6666
    %v6697 = vadd.f32 %v6689, %v6680
    %v6700 = vunpack.c.l.b16 %v6608
    %v6701 = vunpack.c.l.b16 %v6609
    %v6702 = vpack.c.b16 %v6701, %v6700
    %6704 = vmatpush.bf16.msra.mxu0 %v1782
    %6705 = vmatpush.bf16.msra.mxu0 %v1778
    %6706 = vmatpush.bf16.msra.mxu0 %v1774
    %6707 = vmatpush.bf16.msra.mxu0 %v1770
    %6708 = vmatpush.bf16.msra.mxu0 %v1766
    %6709 = vmatpush.bf16.msra.mxu0 %v1762
    %6710 = vmatpush.bf16.msra.mxu0 %v1758
    %6711 = vmatpush.bf16.msra.mxu0 %v1754
    %6712 = vmatmul.bf16.gmra.mxu0 %v6702
    %v6713 = vpop.f32.mrf.mxu0
    %v6714 = vadd.f32 0.0, %v6713
    %v6715 = vpop.f32.mrf.mxu0
    %v6716 = vadd.f32 0.0, %v6715
    %6717 = vdwg.mxu0
    %6718 = vmatpush.bf16.msra.mxu0 %v1783
    %6719 = vmatpush.bf16.msra.mxu0 %v1779
    %6720 = vmatpush.bf16.msra.mxu0 %v1775
    %6721 = vmatpush.bf16.msra.mxu0 %v1771
    %6722 = vmatpush.bf16.msra.mxu0 %v1767
    %6723 = vmatpush.bf16.msra.mxu0 %v1763
    %6724 = vmatpush.bf16.msra.mxu0 %v1759
    %6725 = vmatpush.bf16.msra.mxu0 %v1755
    %6726 = vmatmul.bf16.gmra.mxu0 %v6702
    %v6727 = vpop.f32.mrf.mxu0
    %v6728 = vadd.f32 0.0, %v6727
    %v6729 = vpop.f32.mrf.mxu0
    %v6730 = vadd.f32 0.0, %v6729
    %6731 = vdwg.mxu0
    %6732 = vmatpush.bf16.msra.mxu0 %v1784
    %6733 = vmatpush.bf16.msra.mxu0 %v1780
    %6734 = vmatpush.bf16.msra.mxu0 %v1776
    %6735 = vmatpush.bf16.msra.mxu0 %v1772
    %6736 = vmatpush.bf16.msra.mxu0 %v1768
    %6737 = vmatpush.bf16.msra.mxu0 %v1764
    %6738 = vmatpush.bf16.msra.mxu0 %v1760
    %6739 = vmatpush.bf16.msra.mxu0 %v1756
    %6740 = vmatmul.bf16.gmra.mxu0 %v6702
    %v6741 = vpop.f32.mrf.mxu0
    %v6742 = vadd.f32 0.0, %v6741
    %v6743 = vpop.f32.mrf.mxu0
    %v6744 = vadd.f32 0.0, %v6743
    %6745 = vdwg.mxu0
    %6746 = vmatpush.bf16.msra.mxu0 %v1785
    %6747 = vmatpush.bf16.msra.mxu0 %v1781
    %6748 = vmatpush.bf16.msra.mxu0 %v1777
    %6749 = vmatpush.bf16.msra.mxu0 %v1773
    %6750 = vmatpush.bf16.msra.mxu0 %v1769
    %6751 = vmatpush.bf16.msra.mxu0 %v1765
    %6752 = vmatpush.bf16.msra.mxu0 %v1761
    %6753 = vmatpush.bf16.msra.mxu0 %v1757
    %6754 = vmatmul.bf16.gmra.mxu0 %v6702
    %v6755 = vpop.f32.mrf.mxu0
    %v6756 = vadd.f32 0.0, %v6755
    %v6757 = vpop.f32.mrf.mxu0
    %v6758 = vadd.f32 0.0, %v6757
    %6759 = vdwg.mxu0
    %v6760 = vunpack.c.l.bf16 %v6616
    %v6761 = vunpack.c.h.bf16 %v6616
    %v6762 = vunpack.c.l.bf16 %v6617
    %v6763 = vunpack.c.h.bf16 %v6617
    %v6764 = vunpack.c.l.bf16 %v6618
    %v6765 = vunpack.c.h.bf16 %v6618
    %v6766 = vunpack.c.l.bf16 %v6619
    %v6767 = vunpack.c.h.bf16 %v6619
    %v6768 = vadd.f32 %v6760, %v6714
    %v6769 = vadd.f32 %v6761, %v6728
    %v6770 = vadd.f32 %v6762, %v6742
    %v6771 = vadd.f32 %v6763, %v6756
    %v6772 = vadd.f32 %v6764, %v6716
    %v6773 = vadd.f32 %v6765, %v6730
    %v6774 = vadd.f32 %v6766, %v6744
    %v6775 = vadd.f32 %v6767, %v6758
    %v6776 = vxor.u32 %v6690, 2147483648
    %v6777 = vxor.u32 %v6694, 2147483648
    %v6778 = vmul.f32 %v6776, 1.442695
    %v6779 = vpow.pop %v6778
    %v6780 = vmul.f32 %v6777, 1.442695
    %v6781 = vpow.pop %v6780
    %v6782 = vadd.f32 %v6779, 1.0
    %v6783 = vadd.f32 %v6781, 1.0
    %v6784 = vrcp.pop %v6782
    %v6785 = vmul.f32 %v6782, %v6784
    %v6786 = vsub.f32 1.0, %v6785
    %v6787 = vmul.f32 %v6784, %v6786
    %v6788 = vadd.f32 %v6784, %v6787
    %vm6789 = vweird.f32 %v6782
    %vm6790 = vweird.f32 %v6784
    %vm6791 = vmor %vm6789, %vm6790
    %v6792 = vsel %vm6791, %v6784, %v6788
    %v6793 = vand.u32 2147483647, %v6782
    %vm6794 = vcmp.eq.f32.partialorder %v6793, 8.507059e+37
    %v6795 = vand.u32 %v6782, 2147483648
    %v6796 = vor.u32 1.1754944e-38, %v6795
    %v6797 = vsel %vm6794, %v6796, %v6792
    %v6798 = vmul.f32 1.0, %v6797
    %v6799 = vrcp.pop %v6783
    %v6800 = vmul.f32 %v6783, %v6799
    %v6801 = vsub.f32 1.0, %v6800
    %v6802 = vmul.f32 %v6799, %v6801
    %v6803 = vadd.f32 %v6799, %v6802
    %vm6804 = vweird.f32 %v6783
    %vm6805 = vweird.f32 %v6799
    %vm6806 = vmor %vm6804, %vm6805
    %v6807 = vsel %vm6806, %v6799, %v6803
    %v6808 = vand.u32 2147483647, %v6783
    %vm6809 = vcmp.eq.f32.partialorder %v6808, 8.507059e+37
    %v6810 = vand.u32 %v6783, 2147483648
    %v6811 = vor.u32 1.1754944e-38, %v6810
    %v6812 = vsel %vm6809, %v6811, %v6807
    %v6813 = vmul.f32 1.0, %v6812
    %v6814 = vxor.u32 %v6691, 2147483648
    %v6815 = vxor.u32 %v6695, 2147483648
    %v6816 = vmul.f32 %v6814, 1.442695
    %v6817 = vpow.pop %v6816
    %v6818 = vmul.f32 %v6815, 1.442695
    %v6819 = vpow.pop %v6818
    %v6820 = vadd.f32 %v6817, 1.0
    %v6821 = vadd.f32 %v6819, 1.0
    %v6822 = vrcp.pop %v6820
    %v6823 = vmul.f32 %v6820, %v6822
    %v6824 = vsub.f32 1.0, %v6823
    %v6825 = vmul.f32 %v6822, %v6824
    %v6826 = vadd.f32 %v6822, %v6825
    %vm6827 = vweird.f32 %v6820
    %vm6828 = vweird.f32 %v6822
    %vm6829 = vmor %vm6827, %vm6828
    %v6830 = vsel %vm6829, %v6822, %v6826
    %v6831 = vand.u32 2147483647, %v6820
    %vm6832 = vcmp.eq.f32.partialorder %v6831, 8.507059e+37
    %v6833 = vand.u32 %v6820, 2147483648
    %v6834 = vor.u32 1.1754944e-38, %v6833
    %v6835 = vsel %vm6832, %v6834, %v6830
    %v6836 = vmul.f32 1.0, %v6835
    %v6837 = vrcp.pop %v6821
    %v6838 = vmul.f32 %v6821, %v6837
    %v6839 = vsub.f32 1.0, %v6838
    %v6840 = vmul.f32 %v6837, %v6839
    %v6841 = vadd.f32 %v6837, %v6840
    %vm6842 = vweird.f32 %v6821
    %vm6843 = vweird.f32 %v6837
    %vm6844 = vmor %vm6842, %vm6843
    %v6845 = vsel %vm6844, %v6837, %v6841
    %v6846 = vand.u32 2147483647, %v6821
    %vm6847 = vcmp.eq.f32.partialorder %v6846, 8.507059e+37
    %v6848 = vand.u32 %v6821, 2147483648
    %v6849 = vor.u32 1.1754944e-38, %v6848
    %v6850 = vsel %vm6847, %v6849, %v6845
    %v6851 = vmul.f32 1.0, %v6850
    %v6852 = vtanh.pop %v6692
    %v6853 = vtanh.pop %v6696
    %v6854 = vxor.u32 %v6693, 2147483648
    %v6855 = vxor.u32 %v6697, 2147483648
    %v6856 = vmul.f32 %v6854, 1.442695
    %v6857 = vpow.pop %v6856
    %v6858 = vmul.f32 %v6855, 1.442695
    %v6859 = vpow.pop %v6858
    %v6860 = vadd.f32 %v6857, 1.0
    %v6861 = vadd.f32 %v6859, 1.0
    %v6862 = vrcp.pop %v6860
    %v6863 = vmul.f32 %v6860, %v6862
    %v6864 = vsub.f32 1.0, %v6863
    %v6865 = vmul.f32 %v6862, %v6864
    %v6866 = vadd.f32 %v6862, %v6865
    %vm6867 = vweird.f32 %v6860
    %vm6868 = vweird.f32 %v6862
    %vm6869 = vmor %vm6867, %vm6868
    %v6870 = vsel %vm6869, %v6862, %v6866
    %v6871 = vand.u32 2147483647, %v6860
    %vm6872 = vcmp.eq.f32.partialorder %v6871, 8.507059e+37
    %v6873 = vand.u32 %v6860, 2147483648
    %v6874 = vor.u32 1.1754944e-38, %v6873
    %v6875 = vsel %vm6872, %v6874, %v6870
    %v6876 = vmul.f32 1.0, %v6875
    %v6877 = vrcp.pop %v6861
    %v6878 = vmul.f32 %v6861, %v6877
    %v6879 = vsub.f32 1.0, %v6878
    %v6880 = vmul.f32 %v6877, %v6879
    %v6881 = vadd.f32 %v6877, %v6880
    %vm6882 = vweird.f32 %v6861
    %vm6883 = vweird.f32 %v6877
    %vm6884 = vmor %vm6882, %vm6883
    %v6885 = vsel %vm6884, %v6877, %v6881
    %v6886 = vand.u32 2147483647, %v6861
    %vm6887 = vcmp.eq.f32.partialorder %v6886, 8.507059e+37
    %v6888 = vand.u32 %v6861, 2147483648
    %v6889 = vor.u32 1.1754944e-38, %v6888
    %v6890 = vsel %vm6887, %v6889, %v6885
    %v6891 = vmul.f32 1.0, %v6890
    %v6892 = vmul.f32 %v6836, %v6604
    %v6893 = vmul.f32 %v6851, %v6605
    %v6894 = vmul.f32 %v6798, %v6852
    %v6895 = vmul.f32 %v6813, %v6853
    %v6896 = vadd.f32 %v6892, %v6894
    %v6897 = vadd.f32 %v6893, %v6895
    %v6898 = vtanh.pop %v6896
    %v6899 = vtanh.pop %v6897
    %v6900 = vmul.f32 %v6876, %v6898
    %v6901 = vmul.f32 %v6891, %v6899
    %v6902 = vxor.u32 %v6768, 2147483648
    %v6903 = vxor.u32 %v6772, 2147483648
    %v6904 = vmul.f32 %v6902, 1.442695
    %v6905 = vpow.pop %v6904
    %v6906 = vmul.f32 %v6903, 1.442695
    %v6907 = vpow.pop %v6906
    %v6908 = vadd.f32 %v6905, 1.0
    %v6909 = vadd.f32 %v6907, 1.0
    %v6910 = vrcp.pop %v6908
    %v6911 = vmul.f32 %v6908, %v6910
    %v6912 = vsub.f32 1.0, %v6911
    %v6913 = vmul.f32 %v6910, %v6912
    %v6914 = vadd.f32 %v6910, %v6913
    %vm6915 = vweird.f32 %v6908
    %vm6916 = vweird.f32 %v6910
    %vm6917 = vmor %vm6915, %vm6916
    %v6918 = vsel %vm6917, %v6910, %v6914
    %v6919 = vand.u32 2147483647, %v6908
    %vm6920 = vcmp.eq.f32.partialorder %v6919, 8.507059e+37
    %v6921 = vand.u32 %v6908, 2147483648
    %v6922 = vor.u32 1.1754944e-38, %v6921
    %v6923 = vsel %vm6920, %v6922, %v6918
    %v6924 = vmul.f32 1.0, %v6923
    %v6925 = vrcp.pop %v6909
    %v6926 = vmul.f32 %v6909, %v6925
    %v6927 = vsub.f32 1.0, %v6926
    %v6928 = vmul.f32 %v6925, %v6927
    %v6929 = vadd.f32 %v6925, %v6928
    %vm6930 = vweird.f32 %v6909
    %vm6931 = vweird.f32 %v6925
    %vm6932 = vmor %vm6930, %vm6931
    %v6933 = vsel %vm6932, %v6925, %v6929
    %v6934 = vand.u32 2147483647, %v6909
    %vm6935 = vcmp.eq.f32.partialorder %v6934, 8.507059e+37
    %v6936 = vand.u32 %v6909, 2147483648
    %v6937 = vor.u32 1.1754944e-38, %v6936
    %v6938 = vsel %vm6935, %v6937, %v6933
    %v6939 = vmul.f32 1.0, %v6938
    %v6940 = vxor.u32 %v6769, 2147483648
    %v6941 = vxor.u32 %v6773, 2147483648
    %v6942 = vmul.f32 %v6940, 1.442695
    %v6943 = vpow.pop %v6942
    %v6944 = vmul.f32 %v6941, 1.442695
    %v6945 = vpow.pop %v6944
    %v6946 = vadd.f32 %v6943, 1.0
    %v6947 = vadd.f32 %v6945, 1.0
    %v6948 = vrcp.pop %v6946
    %v6949 = vmul.f32 %v6946, %v6948
    %v6950 = vsub.f32 1.0, %v6949
    %v6951 = vmul.f32 %v6948, %v6950
    %v6952 = vadd.f32 %v6948, %v6951
    %vm6953 = vweird.f32 %v6946
    %vm6954 = vweird.f32 %v6948
    %vm6955 = vmor %vm6953, %vm6954
    %v6956 = vsel %vm6955, %v6948, %v6952
    %v6957 = vand.u32 2147483647, %v6946
    %vm6958 = vcmp.eq.f32.partialorder %v6957, 8.507059e+37
    %v6959 = vand.u32 %v6946, 2147483648
    %v6960 = vor.u32 1.1754944e-38, %v6959
    %v6961 = vsel %vm6958, %v6960, %v6956
    %v6962 = vmul.f32 1.0, %v6961
    %v6963 = vrcp.pop %v6947
    %v6964 = vmul.f32 %v6947, %v6963
    %v6965 = vsub.f32 1.0, %v6964
    %v6966 = vmul.f32 %v6963, %v6965
    %v6967 = vadd.f32 %v6963, %v6966
    %vm6968 = vweird.f32 %v6947
    %vm6969 = vweird.f32 %v6963
    %vm6970 = vmor %vm6968, %vm6969
    %v6971 = vsel %vm6970, %v6963, %v6967
    %v6972 = vand.u32 2147483647, %v6947
    %vm6973 = vcmp.eq.f32.partialorder %v6972, 8.507059e+37
    %v6974 = vand.u32 %v6947, 2147483648
    %v6975 = vor.u32 1.1754944e-38, %v6974
    %v6976 = vsel %vm6973, %v6975, %v6971
    %v6977 = vmul.f32 1.0, %v6976
    %v6978 = vtanh.pop %v6770
    %v6979 = vtanh.pop %v6774
    %v6980 = vxor.u32 %v6771, 2147483648
    %v6981 = vxor.u32 %v6775, 2147483648
    %v6982 = vmul.f32 %v6980, 1.442695
    %v6983 = vpow.pop %v6982
    %v6984 = vmul.f32 %v6981, 1.442695
    %v6985 = vpow.pop %v6984
    %v6986 = vadd.f32 %v6983, 1.0
    %v6987 = vadd.f32 %v6985, 1.0
    %v6988 = vrcp.pop %v6986
    %v6989 = vmul.f32 %v6986, %v6988
    %v6990 = vsub.f32 1.0, %v6989
    %v6991 = vmul.f32 %v6988, %v6990
    %v6992 = vadd.f32 %v6988, %v6991
    %vm6993 = vweird.f32 %v6986
    %vm6994 = vweird.f32 %v6988
    %vm6995 = vmor %vm6993, %vm6994
    %v6996 = vsel %vm6995, %v6988, %v6992
    %v6997 = vand.u32 2147483647, %v6986
    %vm6998 = vcmp.eq.f32.partialorder %v6997, 8.507059e+37
    %v6999 = vand.u32 %v6986, 2147483648
    %v7000 = vor.u32 1.1754944e-38, %v6999
    %v7001 = vsel %vm6998, %v7000, %v6996
    %v7002 = vmul.f32 1.0, %v7001
    %v7003 = vrcp.pop %v6987
    %v7004 = vmul.f32 %v6987, %v7003
    %v7005 = vsub.f32 1.0, %v7004
    %v7006 = vmul.f32 %v7003, %v7005
    %v7007 = vadd.f32 %v7003, %v7006
    %vm7008 = vweird.f32 %v6987
    %vm7009 = vweird.f32 %v7003
    %vm7010 = vmor %vm7008, %vm7009
    %v7011 = vsel %vm7010, %v7003, %v7007
    %v7012 = vand.u32 2147483647, %v6987
    %vm7013 = vcmp.eq.f32.partialorder %v7012, 8.507059e+37
    %v7014 = vand.u32 %v6987, 2147483648
    %v7015 = vor.u32 1.1754944e-38, %v7014
    %v7016 = vsel %vm7013, %v7015, %v7011
    %v7017 = vmul.f32 1.0, %v7016
    %v7018 = vmul.f32 %v6962, %v6610
    %v7019 = vmul.f32 %v6977, %v6611
    %v7020 = vmul.f32 %v6924, %v6978
    %v7021 = vmul.f32 %v6939, %v6979
    %v7022 = vadd.f32 %v7018, %v7020
    %v7023 = vadd.f32 %v7019, %v7021
    %v7024 = vtanh.pop %v7022
    %v7025 = vtanh.pop %v7023
    %v7026 = vmul.f32 %v7002, %v7024
    %v7027 = vmul.f32 %v7017, %v7025
    %v7028 = vpack.c.bf16 %v6900, %v6900
    %v7029 = vpack.c.bf16 %v6901, %v6901
    %v7030 = vsel %vm2176, %v7028, %v6602
    %v7031 = vsel %vm2177, %v7029, %v6603
    %v7032 = vpack.c.bf16 %v7026, %v7026
    %v7033 = vpack.c.bf16 %v7027, %v7027
    %v7034 = vsel %vm2158, %v7032, %v6608
    %v7035 = vsel %vm2159, %v7033, %v6609
    %v7038 = vunpack.c.l.b16 %v7030
    %v7039 = vunpack.c.l.b16 %v7031
    %v7040 = vpack.c.b16 %v7039, %v7038
    %v7044 = vunpack.c.l.b16 %v7034
    %v7045 = vunpack.c.l.b16 %v7035
    %v7046 = vpack.c.b16 %v7045, %v7044
    %v7048 = vld [vmem:[#allocation11] sm:$0xf]
    %v7049 = vld [vmem:[#allocation11 + $0x4] sm:$0xf]
    %v7050 = vld [vmem:[#allocation11 + $0x8] sm:$0xf]
    %v7051 = vld [vmem:[#allocation11 + $0xc] sm:$0xf]
    %v7052 = vld [vmem:[#allocation11 + $0x10] sm:$0xf]
    %v7053 = vld [vmem:[#allocation11 + $0x14] sm:$0xf]
    %v7054 = vld [vmem:[#allocation11 + $0x18] sm:$0xf]
    %v7055 = vld [vmem:[#allocation11 + $0x1c] sm:$0xf]
    %v7056 = vld [vmem:[#allocation11 + $0x20] sm:$0xf]
    %v7057 = vld [vmem:[#allocation11 + $0x24] sm:$0xf]
    %v7058 = vld [vmem:[#allocation11 + $0x28] sm:$0xf]
    %v7059 = vld [vmem:[#allocation11 + $0x2c] sm:$0xf]
    %v7060 = vld [vmem:[#allocation11 + $0x30] sm:$0xf]
    %v7061 = vld [vmem:[#allocation11 + $0x34] sm:$0xf]
    %v7062 = vld [vmem:[#allocation11 + $0x38] sm:$0xf]
    %v7063 = vld [vmem:[#allocation11 + $0x3c] sm:$0xf]
    %v7064 = vld [vmem:[#allocation11 + $0x40] sm:$0xf]
    %v7065 = vld [vmem:[#allocation11 + $0x44] sm:$0xf]
    %v7066 = vld [vmem:[#allocation11 + $0x48] sm:$0xf]
    %v7067 = vld [vmem:[#allocation11 + $0x4c] sm:$0xf]
    %v7068 = vld [vmem:[#allocation11 + $0x50] sm:$0xf]
    %v7069 = vld [vmem:[#allocation11 + $0x54] sm:$0xf]
    %v7070 = vld [vmem:[#allocation11 + $0x58] sm:$0xf]
    %v7071 = vld [vmem:[#allocation11 + $0x5c] sm:$0xf]
    %v7072 = vld [vmem:[#allocation11 + $0x60] sm:$0xf]
    %v7073 = vld [vmem:[#allocation11 + $0x64] sm:$0xf]
    %v7074 = vld [vmem:[#allocation11 + $0x68] sm:$0xf]
    %v7075 = vld [vmem:[#allocation11 + $0x6c] sm:$0xf]
    %v7076 = vld [vmem:[#allocation11 + $0x70] sm:$0xf]
    %v7077 = vld [vmem:[#allocation11 + $0x74] sm:$0xf]
    %v7078 = vld [vmem:[#allocation11 + $0x78] sm:$0xf]
    %v7079 = vld [vmem:[#allocation11 + $0x7c] sm:$0xf]
    %v7080 = vld [vmem:[%s7] sm:$0x1]
    %v7082 = vperm.slane %v7080, 0
    %v7116 = vunpack.c.l.b16 %v7048
    %v7117 = vunpack.c.l.b16 %v7049
    %v7118 = vunpack.c.l.b16 %v7050
    %v7119 = vunpack.c.l.b16 %v7051
    %v7120 = vunpack.c.l.b16 %v7052
    %v7121 = vunpack.c.l.b16 %v7053
    %v7122 = vunpack.c.l.b16 %v7054
    %v7123 = vunpack.c.l.b16 %v7055
    %v7124 = vunpack.c.l.b16 %v7056
    %v7125 = vunpack.c.l.b16 %v7057
    %v7126 = vunpack.c.l.b16 %v7058
    %v7127 = vunpack.c.l.b16 %v7059
    %v7128 = vunpack.c.l.b16 %v7060
    %v7129 = vunpack.c.l.b16 %v7061
    %v7130 = vunpack.c.l.b16 %v7062
    %v7131 = vunpack.c.l.b16 %v7063
    %v7132 = vunpack.c.l.b16 %v7064
    %v7133 = vunpack.c.l.b16 %v7065
    %v7134 = vunpack.c.l.b16 %v7066
    %v7135 = vunpack.c.l.b16 %v7067
    %v7136 = vunpack.c.l.b16 %v7068
    %v7137 = vunpack.c.l.b16 %v7069
    %v7138 = vunpack.c.l.b16 %v7070
    %v7139 = vunpack.c.l.b16 %v7071
    %v7140 = vunpack.c.l.b16 %v7072
    %v7141 = vunpack.c.l.b16 %v7073
    %v7142 = vunpack.c.l.b16 %v7074
    %v7143 = vunpack.c.l.b16 %v7075
    %v7144 = vunpack.c.l.b16 %v7076
    %v7145 = vunpack.c.l.b16 %v7077
    %v7146 = vunpack.c.l.b16 %v7078
    %v7147 = vunpack.c.l.b16 %v7079
    %v7148 = vpack.c.b16 %v7117, %v7116
    %v7149 = vpack.c.b16 %v7119, %v7118
    %v7150 = vpack.c.b16 %v7121, %v7120
    %v7151 = vpack.c.b16 %v7123, %v7122
    %v7152 = vpack.c.b16 %v7125, %v7124
    %v7153 = vpack.c.b16 %v7127, %v7126
    %v7154 = vpack.c.b16 %v7129, %v7128
    %v7155 = vpack.c.b16 %v7131, %v7130
    %v7156 = vpack.c.b16 %v7133, %v7132
    %v7157 = vpack.c.b16 %v7135, %v7134
    %v7158 = vpack.c.b16 %v7137, %v7136
    %v7159 = vpack.c.b16 %v7139, %v7138
    %v7160 = vpack.c.b16 %v7141, %v7140
    %v7161 = vpack.c.b16 %v7143, %v7142
    %v7162 = vpack.c.b16 %v7145, %v7144
    %v7163 = vpack.c.b16 %v7147, %v7146
    %7180 = vmatpush.bf16.msra.mxu0 %v7155
    %7181 = vmatpush.bf16.msra.mxu0 %v7154
    %7182 = vmatpush.bf16.msra.mxu0 %v7153
    %7183 = vmatpush.bf16.msra.mxu0 %v7152
    %7184 = vmatpush.bf16.msra.mxu0 %v7151
    %7185 = vmatpush.bf16.msra.mxu0 %v7150
    %7186 = vmatpush.bf16.msra.mxu0 %v7149
    %7187 = vmatpush.bf16.msra.mxu0 %v7148
    %7188 = vmatmul.bf16.gmra.mxu0 %v7040
    %v7189 = vpop.f32.mrf.mxu0
    %v7190 = vadd.f32 %v7082, %v7189
    %v7191 = vpop.f32.mrf.mxu0
    %v7192 = vadd.f32 %v7082, %v7191
    %7193 = vdwg.mxu0
    %7194 = vmatpush.bf16.msra.mxu0 %v7163
    %7195 = vmatpush.bf16.msra.mxu0 %v7162
    %7196 = vmatpush.bf16.msra.mxu0 %v7161
    %7197 = vmatpush.bf16.msra.mxu0 %v7160
    %7198 = vmatpush.bf16.msra.mxu0 %v7159
    %7199 = vmatpush.bf16.msra.mxu0 %v7158
    %7200 = vmatpush.bf16.msra.mxu0 %v7157
    %7201 = vmatpush.bf16.msra.mxu0 %v7156
    %7202 = vmatmul.bf16.gmra.mxu0 %v7046
    %v7203 = vpop.f32.mrf.mxu0
    %v7204 = vadd.f32 %v7190, %v7203
    %v7205 = vpop.f32.mrf.mxu0
    %v7206 = vadd.f32 %v7192, %v7205
    %7207 = vdwg.mxu0
    %7208 = vst [vmem:[#allocation12] sm:$0xff] %v7204
    %7209 = vst [vmem:[#allocation12 + $0x8] sm:$0xff] %v7206
    // Predicated region
    $region54: #{tpu_custom_call.1} parent=1 // pred_check
      _
    $region55: #{tpu_custom_call.1} parent=1 // pred_check_branch
      %7211 = sbr.rel (0) target = $region57
    $region56: #{tpu_custom_call.1} parent=1 // pred_region
      %7213 = vsyncadd [#allocation5], 0
      %s7214 = sshll.u32 [#allocation12], 4
      %s7215 = int_to_ptr.vmem [resolvable:$true] %s7214
      %s7216 = sshll.u32 %s8, 4
      %s7217 = int_to_ptr.hbm [resolvable:$true] %s7216
      %7222 = dma.vmem_to_hbm [thread:$0]  %s7215, 256, %s7217, [#allocation5], 128, 128, 8
    $region57: #{tpu_custom_call.1} parent=1 // pred_fallthru
      _
    // Predicated region
    $region58: #{tpu_custom_call.1} parent=1 // pred_check
      _
    $region59: #{tpu_custom_call.1} parent=1 // pred_check_branch
      %7224 = sbr.rel (0) target = $region61
    $region60: #{tpu_custom_call.1} parent=1 // pred_region
      %7226 = dma.done [#allocation5], 256
    $region61: #{tpu_custom_call.1} parent=1 // pred_fallthru
      _
    %7227 = vsyncpa [#allocation4], 1
    %7228 = vsyncpa [#allocation7], 1
    %7229 = vsyncpa [#allocation10], 1
    %7230 = vsyncpa [#allocation5], 1

</llo_original>
